<compile_context>
chip_gen: v7x
topology: tpu7x:2x2x1
jax: 0.10.0
libtpu: 0.0.40
codegen_flags: <defaults>
</compile_context>

<pallas_src>
import math

import jax
import jax.numpy as jnp
from jax import lax
from jax.experimental import pallas as pl
from jax.experimental.pallas import tpu as pltpu


def _gelu_tanh(x):
    # tanh-approx GELU (== PyTorch nn.GELU(approximate='tanh')).
    # Max |diff| vs the exact erf GELU is ~3e-4; tanh runs on the EUP slot.
    c = math.sqrt(2.0 / math.pi)
    return 0.5 * x * (1.0 + jnp.tanh(c * (x + 0.044715 * (x * x * x))))


def make_resblock_kernel(H, W, Cp, eps=1e-5, compute_dtype=jnp.bfloat16):
    """compute_dtype: dtype of the padded scratch / im2col patches / weights
    (the MXU operand path).  Accumulation, GroupNorm, GELU and the residual add
    are always f32."""
    HW = H * W

    def im2col(pv):
        # pv: (H+2, W+2, Cp) value in compute_dtype.  Stack the 9 shifted
        # windows along the lane axis -> (HW, 9*Cp): each conv becomes a single
        # K=9*Cp MXU matmul (good K-utilization on the 256-wide v6e/v7x MXUs).
        # NOTE(v5e): the 128-wide MXU gains nothing from K=9*Cp; a per-tap
        # accumulation variant (9x K=Cp dots, no concat buffer) is preferable
        # there — not emitted here to keep one code path.
        cols = []
        for ky in range(3):
            for kx in range(3):
                cols.append(pv[ky:ky + H, kx:kx + W, :].reshape(HW, Cp))
        return jnp.concatenate(cols, axis=-1)

    def group_norm(h, gamma, beta, gmat_scaled):
        # centered two-pass stats (no E[x^2]-E[x]^2 cancellation), merged per
        # group with the pre-scaled (Cp, Cp) group-indicator matmul
        # (1/(gsz*HW) is already folded into gmat_scaled on the host; groups
        # never cross packed-image boundaries).
        s = jnp.sum(h, axis=0, keepdims=True)                            # (1, Cp)
        gmean = jnp.dot(s, gmat_scaled, preferred_element_type=jnp.float32)
        d = h - gmean
        sq = jnp.sum(d * d, axis=0, keepdims=True)                       # (1, Cp)
        gvar = jnp.dot(sq, gmat_scaled, preferred_element_type=jnp.float32)
        scale = lax.rsqrt(gvar + eps) * gamma
        return d * scale + beta

    def conv(pad_ref, w_ref, b_ref):
        patches = im2col(pad_ref[...])                                   # compute_dtype
        return jnp.dot(patches, w_ref[...],
                       preferred_element_type=jnp.float32) + b_ref[...]  # f32

    def kernel(x_ref, w1_ref, b1_ref, g1_ref, be1_ref,
               w2_ref, b2_ref, g2_ref, be2_ref, gmat_ref,
               o_ref, pad):
        cd = compute_dtype

        # zero only the 1-pixel halo border; the interior is always overwritten.
        # (kept per-step: the grid axis is "parallel" and may be core-sharded.)
        pad[0:1, :, :] = jnp.zeros((1, W + 2, Cp), cd)
        pad[H + 1:H + 2, :, :] = jnp.zeros((1, W + 2, Cp), cd)
        pad[1:H + 1, 0:1, :] = jnp.zeros((H, 1, Cp), cd)
        pad[1:H + 1, W + 1:W + 2, :] = jnp.zeros((H, 1, Cp), cd)

        pad[1:H + 1, 1:W + 1, :] = x_ref[0].astype(cd)                   # (H, W, Cp)

        gmat = gmat_ref[...]

        # conv1 -> norm1 -> GELU (conv output / norm / act in f32)
        h = conv(pad, w1_ref, b1_ref)                                    # (HW, Cp) f32
        h = _gelu_tanh(group_norm(h, g1_ref[...], be1_ref[...], gmat))

        # re-use the same zero-bordered scratch as conv2's padded input.
        pad[1:H + 1, 1:W + 1, :] = h.reshape(H, W, Cp).astype(cd)

        # conv2 -> norm2 -> +identity -> GELU.  The identity is re-read from
        # the still-resident VMEM input block right here (short live range,
        # no value held across both convs, no extra HBM traffic).
        h2 = conv(pad, w2_ref, b2_ref)
        h2 = group_norm(h2, g2_ref[...], be2_ref[...], gmat)
        identity = x_ref[0].astype(jnp.float32).reshape(HW, Cp)
        h2 = _gelu_tanh(h2 + identity)

        o_ref[0] = h2.reshape(H, W, Cp).astype(o_ref.dtype)

    return kernel


def _pack_factor(N, C):
    # Largest divisor of N whose packed channel width P*C still fits 128 lanes,
    # preferring one that leaves >= 2 grid steps so v7x's two TensorCores both
    # get work from the "parallel" grid axis.
    pmax = max(1, 128 // C)
    for p in range(min(N, pmax), 0, -1):
        if N % p == 0 and N // p >= 2:
            return p
    for p in range(min(N, pmax), 0, -1):
        if N % p == 0:
            return p
    return 1


def resblock_forward(x_nchw, params, groups=8, eps=1e-5,
                     compute_dtype=jnp.bfloat16):
    """x_nchw: (N, C, H, W) float32 — PyTorch layout in / out.

    compute_dtype controls the MXU operand path (weights / im2col patches /
    padded scratch).  Default bf16 (f32 accumulation); pass jnp.float32 for a
    bit-tighter verification path."""
    w1, b1, g1, be1, w2, b2, g2, be2 = params
    N, C, H, W = x_nchw.shape
    assert C % groups == 0
    gsz = C // groups

    # ---- pack P images along the channel / lane axis ------------------------
    P = _pack_factor(N, C)
    Cp = P * C
    NP = N // P
    # NOTE: if Cp < 128 (large C or awkward N) everything still works, but VPU
    # ops / GroupNorm / stores run lane-sparse — a perf cliff, not a bug.

    x = jnp.transpose(x_nchw, (0, 2, 3, 1))                              # (N,H,W,C)
    xp = (x.reshape(NP, P, H, W, C)
            .transpose(0, 2, 3, 1, 4)
            .reshape(NP, H, W, Cp))

    def pack_weight(w):
        # PyTorch (Cout, Cin, 3, 3) -> (9*Cp, Cp), block-diagonal over the P
        # packed images, rows ordered tap-major then packed input channel
        # (matches the im2col concat order).  Emitted directly in compute_dtype
        # (bf16 by default) so the weight VMEM / DMA footprint halves too.
        wt = jnp.transpose(w, (2, 3, 1, 0)).astype(jnp.float32).reshape(9, C, C)
        eye_p = jnp.eye(P, dtype=jnp.float32)
        wp = jnp.einsum('pq,kio->kpiqo', eye_p, wt).reshape(9 * Cp, Cp)
        return wp.astype(compute_dtype)

    def pack_vec(v):
        return jnp.tile(v, P).reshape(1, Cp).astype(jnp.float32)

    w1k, w2k = pack_weight(w1), pack_weight(w2)
    b1r, g1r, be1r = pack_vec(b1), pack_vec(g1), pack_vec(be1)
    b2r, g2r, be2r = pack_vec(b2), pack_vec(g2), pack_vec(be2)

    # group-indicator matrix with 1/(gsz*HW) pre-folded (saves per-step VPU muls).
    gid = jnp.arange(Cp) // gsz
    gmat = (gid[:, None] == gid[None, :]).astype(jnp.float32) / float(gsz * H * W)

    kernel = make_resblock_kernel(H, W, Cp, eps=eps, compute_dtype=compute_dtype)

    vec_spec = pl.BlockSpec((1, Cp), lambda n: (0, 0))
    w_spec = pl.BlockSpec((9 * Cp, Cp), lambda n: (0, 0))

    # NOTE(scaling): at production sizes (C>=256, H=W>=64) one would (a)
    # single-buffer the constant-index weight/vec/gmat inputs
    # (pipeline_mode=pl.Buffered(1)), (b) add an "arbitrary" row-tile grid axis
    # over H with a two-pass cross-tile GroupNorm, and (c) set
    # vmem_limit_bytes explicitly (v5e scoped default is only 16 MiB, v7x has
    # only 64 MiB physical).  At the demo sizes the whole working set is ~2 MiB
    # so the defaults are kept.
    out = pl.pallas_call(
        kernel,
        out_shape=jax.ShapeDtypeStruct((NP, H, W, Cp), x.dtype),
        grid=(NP,),
        in_specs=[
            pl.BlockSpec((1, H, W, Cp), lambda n: (n, 0, 0, 0)),         # packed x
            w_spec, vec_spec, vec_spec, vec_spec,                        # conv1 / norm1
            w_spec, vec_spec, vec_spec, vec_spec,                        # conv2 / norm2
            pl.BlockSpec((Cp, Cp), lambda n: (0, 0)),                    # group matrix
        ],
        out_specs=pl.BlockSpec((1, H, W, Cp), lambda n: (n, 0, 0, 0)),
        scratch_shapes=[pltpu.VMEM((H + 2, W + 2, Cp), compute_dtype)],
        compiler_params=pltpu.CompilerParams(dimension_semantics=("parallel",)),
    )(xp, w1k, b1r, g1r, be1r, w2k, b2r, g2r, be2r, gmat)

    # ---- unpack back to NCHW -------------------------------------------------
    y = (out.reshape(NP, H, W, P, C)
            .transpose(0, 3, 1, 2, 4)
            .reshape(N, H, W, C))
    return jnp.transpose(y, (0, 3, 1, 2))


# --- pure-JAX reference (exact erf GELU, matches PyTorch ResBlock) -----------
def resblock_ref(x, params, groups=8, eps=1e-5):
    w1, b1, g1, be1, w2, b2, g2, be2 = params

    def conv(x, w, b):
        y = lax.conv_general_dilated(
            x, w, (1, 1), ((1, 1), (1, 1)),
            dimension_numbers=('NCHW', 'OIHW', 'NCHW'),
            precision=lax.Precision.HIGHEST)
        return y + b[None, :, None, None]

    def gn(x, gamma, beta):
        N, C, H, W = x.shape
        xg = x.reshape(N, groups, C // groups, H, W)
        m = xg.mean(axis=(2, 3, 4), keepdims=True)
        v = xg.var(axis=(2, 3, 4), keepdims=True)
        xn = ((xg - m) / jnp.sqrt(v + eps)).reshape(N, C, H, W)
        return xn * gamma[None, :, None, None] + beta[None, :, None, None]

    def gelu(x):
        return 0.5 * x * (1.0 + lax.erf(x / jnp.sqrt(2.0)))

    h = gelu(gn(conv(x, w1, b1), g1, be1))
    h = gn(conv(h, w2, b2), g2, be2) + x
    return gelu(h)


if __name__ == "__main__":
    # C must be divisible by 8 (GroupNorm); N=8, C=32 packs 4 images onto the
    # 128-lane channel axis and gives a 2-step grid (both v7x cores busy).
    N, C, H, W = 8, 32, 16, 16
    key = jax.random.PRNGKey(0)
    kx, kw1, kb1, kw2, kb2, kg1, kbe1, kg2, kbe2 = jax.random.split(key, 9)

    x = jax.random.normal(kx, (N, C, H, W), jnp.float32)

    params = (
        jax.random.normal(kw1, (C, C, 3, 3), jnp.float32) * 0.1,   # conv1.weight
        jax.random.normal(kb1, (C,), jnp.float32) * 0.1,           # conv1.bias
        1.0 + 0.1 * jax.random.normal(kg1, (C,), jnp.float32),     # norm1.weight
        0.1 * jax.random.normal(kbe1, (C,), jnp.float32),          # norm1.bias
        jax.random.normal(kw2, (C, C, 3, 3), jnp.float32) * 0.1,   # conv2.weight
        jax.random.normal(kb2, (C,), jnp.float32) * 0.1,           # conv2.bias
        1.0 + 0.1 * jax.random.normal(kg2, (C,), jnp.float32),     # norm2.weight
        0.1 * jax.random.normal(kbe2, (C,), jnp.float32),          # norm2.bias
    )

    ref = jax.block_until_ready(resblock_ref(x, params))

    # Default bf16 MXU path (f32 accumulation): loose tolerance vs the exact
    # erf/f32 reference (bf16 operand rounding on two convs).
    out_bf16 = jax.block_until_ready(resblock_forward(x, params))
    assert out_bf16.shape == (N, C, H, W)
    assert jnp.all(jnp.isfinite(out_bf16))
    err_bf16 = float(jnp.max(jnp.abs(out_bf16 - ref)))
    assert err_bf16 < 5e-2, f"bf16 path mismatch vs reference: {err_bf16}"

    # f32 operand path of the same kernel: tight tolerance.
    out_f32 = jax.block_until_ready(
        resblock_forward(x, params, compute_dtype=jnp.float32))
    assert jnp.all(jnp.isfinite(out_f32))
    err_f32 = float(jnp.max(jnp.abs(out_f32 - ref)))
    assert err_f32 < 5e-3, f"f32 path mismatch vs reference: {err_f32}"

    print("KERNEL_OK")
</pallas_src>

<mosaic_0001>
module attributes {stable_mosaic.version = 11 : i64} {
  func.func @kernel(%arg0: i32, %arg1: memref<1x16x16x128xf32, #tpu.memory_space<vmem>>, %arg2: memref<1152x128xbf16, #tpu.memory_space<vmem>>, %arg3: memref<1x128xf32, #tpu.memory_space<vmem>>, %arg4: memref<1x128xf32, #tpu.memory_space<vmem>>, %arg5: memref<1x128xf32, #tpu.memory_space<vmem>>, %arg6: memref<1152x128xbf16, #tpu.memory_space<vmem>>, %arg7: memref<1x128xf32, #tpu.memory_space<vmem>>, %arg8: memref<1x128xf32, #tpu.memory_space<vmem>>, %arg9: memref<1x128xf32, #tpu.memory_space<vmem>>, %arg10: memref<128x128xf32, #tpu.memory_space<vmem>>, %arg11: memref<1x16x16x128xf32, #tpu.memory_space<vmem>>, %arg12: memref<18x18x128xbf16, #tpu.memory_space<vmem>>) attributes {dimension_semantics = [#tpu.dimension_semantics<parallel>], iteration_bounds = array<i64: 2>, scalar_prefetch = 0 : i64, scratch_operands = 1 : i64, tpu.core_type = #tpu.core_type<tc>, window_params = [{transform_indices = @transform_0, window_bounds = array<i64: 1, 16, 16, 128>}, {pipeline_mode = #tpu.pipeline_mode<synchronous>, transform_indices = @transform_1, window_bounds = array<i64: 1152, 128>}, {pipeline_mode = #tpu.pipeline_mode<synchronous>, transform_indices = @transform_2, window_bounds = array<i64: 1, 128>}, {pipeline_mode = #tpu.pipeline_mode<synchronous>, transform_indices = @transform_3, window_bounds = array<i64: 1, 128>}, {pipeline_mode = #tpu.pipeline_mode<synchronous>, transform_indices = @transform_4, window_bounds = array<i64: 1, 128>}, {pipeline_mode = #tpu.pipeline_mode<synchronous>, transform_indices = @transform_5, window_bounds = array<i64: 1152, 128>}, {pipeline_mode = #tpu.pipeline_mode<synchronous>, transform_indices = @transform_6, window_bounds = array<i64: 1, 128>}, {pipeline_mode = #tpu.pipeline_mode<synchronous>, transform_indices = @transform_7, window_bounds = array<i64: 1, 128>}, {pipeline_mode = #tpu.pipeline_mode<synchronous>, transform_indices = @transform_8, window_bounds = array<i64: 1, 128>}, {pipeline_mode = #tpu.pipeline_mode<synchronous>, transform_indices = @transform_9, window_bounds = array<i64: 128, 128>}, {transform_indices = @transform_10, window_bounds = array<i64: 1, 16, 16, 128>}]} {
    %cst = arith.constant 0.000000e+00 : bf16
    %0 = vector.broadcast %cst : bf16 to vector<1x18x128xbf16>
    %c0 = arith.constant 0 : index
    %c0_0 = arith.constant 0 : index
    %c0_1 = arith.constant 0 : index
    %1 = vector.load %arg12[%c0, %c0_0, %c0_1] : memref<18x18x128xbf16, #tpu.memory_space<vmem>>, vector<1x18x128xbf16>
    tpu.vector_store %arg12[%c0, %c0_0, %c0_1], %0 {strides = array<i32>} : memref<18x18x128xbf16, #tpu.memory_space<vmem>>, vector<1x18x128xbf16>,
    %cst_2 = arith.constant 0.000000e+00 : bf16
    %2 = vector.broadcast %cst_2 : bf16 to vector<1x18x128xbf16>
    %c17 = arith.constant 17 : index
    %c0_3 = arith.constant 0 : index
    %c0_4 = arith.constant 0 : index
    %3 = vector.load %arg12[%c17, %c0_3, %c0_4] : memref<18x18x128xbf16, #tpu.memory_space<vmem>>, vector<1x18x128xbf16>
    tpu.vector_store %arg12[%c17, %c0_3, %c0_4], %2 {strides = array<i32>} : memref<18x18x128xbf16, #tpu.memory_space<vmem>>, vector<1x18x128xbf16>,
    %cst_5 = arith.constant 0.000000e+00 : bf16
    %4 = vector.broadcast %cst_5 : bf16 to vector<16x1x128xbf16>
    %c1 = arith.constant 1 : index
    %c0_6 = arith.constant 0 : index
    %c0_7 = arith.constant 0 : index
    %5 = vector.load %arg12[%c1, %c0_6, %c0_7] : memref<18x18x128xbf16, #tpu.memory_space<vmem>>, vector<16x1x128xbf16>
    tpu.vector_store %arg12[%c1, %c0_6, %c0_7], %4 {strides = array<i32>} : memref<18x18x128xbf16, #tpu.memory_space<vmem>>, vector<16x1x128xbf16>,
    %cst_8 = arith.constant 0.000000e+00 : bf16
    %6 = vector.broadcast %cst_8 : bf16 to vector<16x1x128xbf16>
    %c1_9 = arith.constant 1 : index
    %c17_10 = arith.constant 17 : index
    %c0_11 = arith.constant 0 : index
    %7 = vector.load %arg12[%c1_9, %c17_10, %c0_11] : memref<18x18x128xbf16, #tpu.memory_space<vmem>>, vector<16x1x128xbf16>
    tpu.vector_store %arg12[%c1_9, %c17_10, %c0_11], %6 {strides = array<i32>} : memref<18x18x128xbf16, #tpu.memory_space<vmem>>, vector<16x1x128xbf16>,
    %c0_12 = arith.constant 0 : index
    %c0_13 = arith.constant 0 : index
    %c0_14 = arith.constant 0 : index
    %c0_15 = arith.constant 0 : index
    %8 = vector.load %arg1[%c0_12, %c0_13, %c0_14, %c0_15] : memref<1x16x16x128xf32, #tpu.memory_space<vmem>>, vector<1x16x16x128xf32>
    %9 = vector.shape_cast %8 : vector<1x16x16x128xf32> to vector<16x16x128xf32>
    %10 = arith.truncf %9 : vector<16x16x128xf32> to vector<16x16x128xbf16>
    %c1_16 = arith.constant 1 : index
    %c1_17 = arith.constant 1 : index
    %c0_18 = arith.constant 0 : index
    %11 = vector.load %arg12[%c1_16, %c1_17, %c0_18] : memref<18x18x128xbf16, #tpu.memory_space<vmem>>, vector<16x16x128xbf16>
    tpu.vector_store %arg12[%c1_16, %c1_17, %c0_18], %10 {strides = array<i32>} : memref<18x18x128xbf16, #tpu.memory_space<vmem>>, vector<16x16x128xbf16>,
    %c0_19 = arith.constant 0 : index
    %c0_20 = arith.constant 0 : index
    %12 = vector.load %arg10[%c0_19, %c0_20] : memref<128x128xf32, #tpu.memory_space<vmem>>, vector<128x128xf32>
    %c0_21 = arith.constant 0 : index
    %c0_22 = arith.constant 0 : index
    %c0_23 = arith.constant 0 : index
    %13 = vector.load %arg12[%c0_21, %c0_22, %c0_23] : memref<18x18x128xbf16, #tpu.memory_space<vmem>>, vector<18x18x128xbf16>
    %14 = vector.extract_strided_slice %13 {offsets = [0, 0, 0], sizes = [16, 16, 128], strides = [1, 1, 1]} : vector<18x18x128xbf16> to vector<16x16x128xbf16>
    %15 = vector.shape_cast %14 : vector<16x16x128xbf16> to vector<256x128xbf16>
    %16 = vector.extract_strided_slice %13 {offsets = [0, 1, 0], sizes = [16, 16, 128], strides = [1, 1, 1]} : vector<18x18x128xbf16> to vector<16x16x128xbf16>
    %17 = vector.shape_cast %16 : vector<16x16x128xbf16> to vector<256x128xbf16>
    %18 = vector.extract_strided_slice %13 {offsets = [0, 2, 0], sizes = [16, 16, 128], strides = [1, 1, 1]} : vector<18x18x128xbf16> to vector<16x16x128xbf16>
    %19 = vector.shape_cast %18 : vector<16x16x128xbf16> to vector<256x128xbf16>
    %20 = vector.extract_strided_slice %13 {offsets = [1, 0, 0], sizes = [16, 16, 128], strides = [1, 1, 1]} : vector<18x18x128xbf16> to vector<16x16x128xbf16>
    %21 = vector.shape_cast %20 : vector<16x16x128xbf16> to vector<256x128xbf16>
    %22 = vector.extract_strided_slice %13 {offsets = [1, 1, 0], sizes = [16, 16, 128], strides = [1, 1, 1]} : vector<18x18x128xbf16> to vector<16x16x128xbf16>
    %23 = vector.shape_cast %22 : vector<16x16x128xbf16> to vector<256x128xbf16>
    %24 = vector.extract_strided_slice %13 {offsets = [1, 2, 0], sizes = [16, 16, 128], strides = [1, 1, 1]} : vector<18x18x128xbf16> to vector<16x16x128xbf16>
    %25 = vector.shape_cast %24 : vector<16x16x128xbf16> to vector<256x128xbf16>
    %26 = vector.extract_strided_slice %13 {offsets = [2, 0, 0], sizes = [16, 16, 128], strides = [1, 1, 1]} : vector<18x18x128xbf16> to vector<16x16x128xbf16>
    %27 = vector.shape_cast %26 : vector<16x16x128xbf16> to vector<256x128xbf16>
    %28 = vector.extract_strided_slice %13 {offsets = [2, 1, 0], sizes = [16, 16, 128], strides = [1, 1, 1]} : vector<18x18x128xbf16> to vector<16x16x128xbf16>
    %29 = vector.shape_cast %28 : vector<16x16x128xbf16> to vector<256x128xbf16>
    %30 = vector.extract_strided_slice %13 {offsets = [2, 2, 0], sizes = [16, 16, 128], strides = [1, 1, 1]} : vector<18x18x128xbf16> to vector<16x16x128xbf16>
    %31 = vector.shape_cast %30 : vector<16x16x128xbf16> to vector<256x128xbf16>
    %32 = tpu.concatenate %15, %17, %19, %21, %23, %25, %27, %29, %31 in 1 : vector<256x128xbf16>, vector<256x128xbf16>, vector<256x128xbf16>, vector<256x128xbf16>, vector<256x128xbf16>, vector<256x128xbf16>, vector<256x128xbf16>, vector<256x128xbf16>, vector<256x128xbf16> -> vector<256x1152xbf16>
    %c0_24 = arith.constant 0 : index
    %c0_25 = arith.constant 0 : index
    %33 = vector.load %arg2[%c0_24, %c0_25] : memref<1152x128xbf16, #tpu.memory_space<vmem>>, vector<1152x128xbf16>
    %cst_26 = arith.constant dense<0.000000e+00> : vector<256x128xf32>
    %34 = tpu.matmul %32, %33, %cst_26 {dimension_numbers = #tpu.dot_dimension_numbers<[1], [0], [0], [1], [0, 0, 1, 1], [], []>} : vector<256x1152xbf16>, vector<1152x128xbf16>, vector<256x128xf32> -> vector<256x128xf32>
    %c0_27 = arith.constant 0 : index
    %c0_28 = arith.constant 0 : index
    %35 = vector.load %arg3[%c0_27, %c0_28] : memref<1x128xf32, #tpu.memory_space<vmem>>, vector<1x128xf32>
    %36 = vector.broadcast %35 : vector<1x128xf32> to vector<256x128xf32>
    %37 = arith.addf %34, %36 : vector<256x128xf32>
    %c0_29 = arith.constant 0 : index
    %c0_30 = arith.constant 0 : index
    %38 = vector.load %arg4[%c0_29, %c0_30] : memref<1x128xf32, #tpu.memory_space<vmem>>, vector<1x128xf32>
    %c0_31 = arith.constant 0 : index
    %c0_32 = arith.constant 0 : index
    %39 = vector.load %arg5[%c0_31, %c0_32] : memref<1x128xf32, #tpu.memory_space<vmem>>, vector<1x128xf32>
    %cst_33 = arith.constant dense<0.000000e+00> : vector<128xf32>
    %40 = vector.multi_reduction <add>, %37, %cst_33 [0] : vector<256x128xf32> to vector<128xf32>
    %41 = vector.shape_cast %40 : vector<128xf32> to vector<1x128xf32>
    %cst_34 = arith.constant dense<0.000000e+00> : vector<1x128xf32>
    %42 = tpu.matmul %41, %12, %cst_34 {dimension_numbers = #tpu.dot_dimension_numbers<[1], [0], [0], [1], [0, 0, 1, 1], [], []>} : vector<1x128xf32>, vector<128x128xf32>, vector<1x128xf32> -> vector<1x128xf32>
    %43 = vector.broadcast %42 : vector<1x128xf32> to vector<256x128xf32>
    %44 = arith.subf %37, %43 : vector<256x128xf32>
    %45 = arith.mulf %44, %44 : vector<256x128xf32>
    %cst_35 = arith.constant dense<0.000000e+00> : vector<128xf32>
    %46 = vector.multi_reduction <add>, %45, %cst_35 [0] : vector<256x128xf32> to vector<128xf32>
    %47 = vector.shape_cast %46 : vector<128xf32> to vector<1x128xf32>
    %cst_36 = arith.constant dense<0.000000e+00> : vector<1x128xf32>
    %48 = tpu.matmul %47, %12, %cst_36 {dimension_numbers = #tpu.dot_dimension_numbers<[1], [0], [0], [1], [0, 0, 1, 1], [], []>} : vector<1x128xf32>, vector<128x128xf32>, vector<1x128xf32> -> vector<1x128xf32>
    %cst_37 = arith.constant 9.99999974E-6 : f32
    %49 = vector.broadcast %cst_37 : f32 to vector<1x128xf32>
    %50 = arith.addf %48, %49 : vector<1x128xf32>
    %51 = math.rsqrt %50 : vector<1x128xf32>
    %52 = arith.mulf %51, %38 : vector<1x128xf32>
    %53 = vector.broadcast %52 : vector<1x128xf32> to vector<256x128xf32>
    %54 = arith.mulf %44, %53 : vector<256x128xf32>
    %55 = vector.broadcast %39 : vector<1x128xf32> to vector<256x128xf32>
    %56 = arith.addf %54, %55 : vector<256x128xf32>
    %cst_38 = arith.constant 5.000000e-01 : f32
    %57 = vector.broadcast %cst_38 : f32 to vector<256x128xf32>
    %58 = arith.mulf %57, %56 : vector<256x128xf32>
    %59 = arith.mulf %56, %56 : vector<256x128xf32>
    %60 = arith.mulf %59, %56 : vector<256x128xf32>
    %cst_39 = arith.constant 4.471500e-02 : f32
    %61 = vector.broadcast %cst_39 : f32 to vector<256x128xf32>
    %62 = arith.mulf %61, %60 : vector<256x128xf32>
    %63 = arith.addf %56, %62 : vector<256x128xf32>
    %cst_40 = arith.constant 0.797884583 : f32
    %64 = vector.broadcast %cst_40 : f32 to vector<256x128xf32>
    %65 = arith.mulf %64, %63 : vector<256x128xf32>
    %66 = math.tanh %65 : vector<256x128xf32>
    %cst_41 = arith.constant 1.000000e+00 : f32
    %67 = vector.broadcast %cst_41 : f32 to vector<256x128xf32>
    %68 = arith.addf %67, %66 : vector<256x128xf32>
    %69 = arith.mulf %58, %68 : vector<256x128xf32>
    %70 = vector.shape_cast %69 : vector<256x128xf32> to vector<16x16x128xf32>
    %71 = arith.truncf %70 : vector<16x16x128xf32> to vector<16x16x128xbf16>
    %c1_42 = arith.constant 1 : index
    %c1_43 = arith.constant 1 : index
    %c0_44 = arith.constant 0 : index
    %72 = vector.load %arg12[%c1_42, %c1_43, %c0_44] : memref<18x18x128xbf16, #tpu.memory_space<vmem>>, vector<16x16x128xbf16>
    tpu.vector_store %arg12[%c1_42, %c1_43, %c0_44], %71 {strides = array<i32>} : memref<18x18x128xbf16, #tpu.memory_space<vmem>>, vector<16x16x128xbf16>,
    %c0_45 = arith.constant 0 : index
    %c0_46 = arith.constant 0 : index
    %c0_47 = arith.constant 0 : index
    %73 = vector.load %arg12[%c0_45, %c0_46, %c0_47] : memref<18x18x128xbf16, #tpu.memory_space<vmem>>, vector<18x18x128xbf16>
    %74 = vector.extract_strided_slice %73 {offsets = [0, 0, 0], sizes = [16, 16, 128], strides = [1, 1, 1]} : vector<18x18x128xbf16> to vector<16x16x128xbf16>
    %75 = vector.shape_cast %74 : vector<16x16x128xbf16> to vector<256x128xbf16>
    %76 = vector.extract_strided_slice %73 {offsets = [0, 1, 0], sizes = [16, 16, 128], strides = [1, 1, 1]} : vector<18x18x128xbf16> to vector<16x16x128xbf16>
    %77 = vector.shape_cast %76 : vector<16x16x128xbf16> to vector<256x128xbf16>
    %78 = vector.extract_strided_slice %73 {offsets = [0, 2, 0], sizes = [16, 16, 128], strides = [1, 1, 1]} : vector<18x18x128xbf16> to vector<16x16x128xbf16>
    %79 = vector.shape_cast %78 : vector<16x16x128xbf16> to vector<256x128xbf16>
    %80 = vector.extract_strided_slice %73 {offsets = [1, 0, 0], sizes = [16, 16, 128], strides = [1, 1, 1]} : vector<18x18x128xbf16> to vector<16x16x128xbf16>
    %81 = vector.shape_cast %80 : vector<16x16x128xbf16> to vector<256x128xbf16>
    %82 = vector.extract_strided_slice %73 {offsets = [1, 1, 0], sizes = [16, 16, 128], strides = [1, 1, 1]} : vector<18x18x128xbf16> to vector<16x16x128xbf16>
    %83 = vector.shape_cast %82 : vector<16x16x128xbf16> to vector<256x128xbf16>
    %84 = vector.extract_strided_slice %73 {offsets = [1, 2, 0], sizes = [16, 16, 128], strides = [1, 1, 1]} : vector<18x18x128xbf16> to vector<16x16x128xbf16>
    %85 = vector.shape_cast %84 : vector<16x16x128xbf16> to vector<256x128xbf16>
    %86 = vector.extract_strided_slice %73 {offsets = [2, 0, 0], sizes = [16, 16, 128], strides = [1, 1, 1]} : vector<18x18x128xbf16> to vector<16x16x128xbf16>
    %87 = vector.shape_cast %86 : vector<16x16x128xbf16> to vector<256x128xbf16>
    %88 = vector.extract_strided_slice %73 {offsets = [2, 1, 0], sizes = [16, 16, 128], strides = [1, 1, 1]} : vector<18x18x128xbf16> to vector<16x16x128xbf16>
    %89 = vector.shape_cast %88 : vector<16x16x128xbf16> to vector<256x128xbf16>
    %90 = vector.extract_strided_slice %73 {offsets = [2, 2, 0], sizes = [16, 16, 128], strides = [1, 1, 1]} : vector<18x18x128xbf16> to vector<16x16x128xbf16>
    %91 = vector.shape_cast %90 : vector<16x16x128xbf16> to vector<256x128xbf16>
    %92 = tpu.concatenate %75, %77, %79, %81, %83, %85, %87, %89, %91 in 1 : vector<256x128xbf16>, vector<256x128xbf16>, vector<256x128xbf16>, vector<256x128xbf16>, vector<256x128xbf16>, vector<256x128xbf16>, vector<256x128xbf16>, vector<256x128xbf16>, vector<256x128xbf16> -> vector<256x1152xbf16>
    %c0_48 = arith.constant 0 : index
    %c0_49 = arith.constant 0 : index
    %93 = vector.load %arg6[%c0_48, %c0_49] : memref<1152x128xbf16, #tpu.memory_space<vmem>>, vector<1152x128xbf16>
    %cst_50 = arith.constant dense<0.000000e+00> : vector<256x128xf32>
    %94 = tpu.matmul %92, %93, %cst_50 {dimension_numbers = #tpu.dot_dimension_numbers<[1], [0], [0], [1], [0, 0, 1, 1], [], []>} : vector<256x1152xbf16>, vector<1152x128xbf16>, vector<256x128xf32> -> vector<256x128xf32>
    %c0_51 = arith.constant 0 : index
    %c0_52 = arith.constant 0 : index
    %95 = vector.load %arg7[%c0_51, %c0_52] : memref<1x128xf32, #tpu.memory_space<vmem>>, vector<1x128xf32>
    %96 = vector.broadcast %95 : vector<1x128xf32> to vector<256x128xf32>
    %97 = arith.addf %94, %96 : vector<256x128xf32>
    %c0_53 = arith.constant 0 : index
    %c0_54 = arith.constant 0 : index
    %98 = vector.load %arg8[%c0_53, %c0_54] : memref<1x128xf32, #tpu.memory_space<vmem>>, vector<1x128xf32>
    %c0_55 = arith.constant 0 : index
    %c0_56 = arith.constant 0 : index
    %99 = vector.load %arg9[%c0_55, %c0_56] : memref<1x128xf32, #tpu.memory_space<vmem>>, vector<1x128xf32>
    %cst_57 = arith.constant dense<0.000000e+00> : vector<128xf32>
    %100 = vector.multi_reduction <add>, %97, %cst_57 [0] : vector<256x128xf32> to vector<128xf32>
    %101 = vector.shape_cast %100 : vector<128xf32> to vector<1x128xf32>
    %cst_58 = arith.constant dense<0.000000e+00> : vector<1x128xf32>
    %102 = tpu.matmul %101, %12, %cst_58 {dimension_numbers = #tpu.dot_dimension_numbers<[1], [0], [0], [1], [0, 0, 1, 1], [], []>} : vector<1x128xf32>, vector<128x128xf32>, vector<1x128xf32> -> vector<1x128xf32>
    %103 = vector.broadcast %102 : vector<1x128xf32> to vector<256x128xf32>
    %104 = arith.subf %97, %103 : vector<256x128xf32>
    %105 = arith.mulf %104, %104 : vector<256x128xf32>
    %cst_59 = arith.constant dense<0.000000e+00> : vector<128xf32>
    %106 = vector.multi_reduction <add>, %105, %cst_59 [0] : vector<256x128xf32> to vector<128xf32>
    %107 = vector.shape_cast %106 : vector<128xf32> to vector<1x128xf32>
    %cst_60 = arith.constant dense<0.000000e+00> : vector<1x128xf32>
    %108 = tpu.matmul %107, %12, %cst_60 {dimension_numbers = #tpu.dot_dimension_numbers<[1], [0], [0], [1], [0, 0, 1, 1], [], []>} : vector<1x128xf32>, vector<128x128xf32>, vector<1x128xf32> -> vector<1x128xf32>
    %cst_61 = arith.constant 9.99999974E-6 : f32
    %109 = vector.broadcast %cst_61 : f32 to vector<1x128xf32>
    %110 = arith.addf %108, %109 : vector<1x128xf32>
    %111 = math.rsqrt %110 : vector<1x128xf32>
    %112 = arith.mulf %111, %98 : vector<1x128xf32>
    %113 = vector.broadcast %112 : vector<1x128xf32> to vector<256x128xf32>
    %114 = arith.mulf %104, %113 : vector<256x128xf32>
    %115 = vector.broadcast %99 : vector<1x128xf32> to vector<256x128xf32>
    %116 = arith.addf %114, %115 : vector<256x128xf32>
    %c0_62 = arith.constant 0 : index
    %c0_63 = arith.constant 0 : index
    %c0_64 = arith.constant 0 : index
    %c0_65 = arith.constant 0 : index
    %117 = vector.load %arg1[%c0_62, %c0_63, %c0_64, %c0_65] : memref<1x16x16x128xf32, #tpu.memory_space<vmem>>, vector<1x16x16x128xf32>
    %118 = vector.shape_cast %117 : vector<1x16x16x128xf32> to vector<16x16x128xf32>
    %119 = vector.shape_cast %118 : vector<16x16x128xf32> to vector<256x128xf32>
    %120 = arith.addf %116, %119 : vector<256x128xf32>
    %cst_66 = arith.constant 5.000000e-01 : f32
    %121 = vector.broadcast %cst_66 : f32 to vector<256x128xf32>
    %122 = arith.mulf %121, %120 : vector<256x128xf32>
    %123 = arith.mulf %120, %120 : vector<256x128xf32>
    %124 = arith.mulf %123, %120 : vector<256x128xf32>
    %cst_67 = arith.constant 4.471500e-02 : f32
    %125 = vector.broadcast %cst_67 : f32 to vector<256x128xf32>
    %126 = arith.mulf %125, %124 : vector<256x128xf32>
    %127 = arith.addf %120, %126 : vector<256x128xf32>
    %cst_68 = arith.constant 0.797884583 : f32
    %128 = vector.broadcast %cst_68 : f32 to vector<256x128xf32>
    %129 = arith.mulf %128, %127 : vector<256x128xf32>
    %130 = math.tanh %129 : vector<256x128xf32>
    %cst_69 = arith.constant 1.000000e+00 : f32
    %131 = vector.broadcast %cst_69 : f32 to vector<256x128xf32>
    %132 = arith.addf %131, %130 : vector<256x128xf32>
    %133 = arith.mulf %122, %132 : vector<256x128xf32>
    %134 = vector.shape_cast %133 : vector<256x128xf32> to vector<16x16x128xf32>
    %c0_70 = arith.constant 0 : index
    %c0_71 = arith.constant 0 : index
    %c0_72 = arith.constant 0 : index
    %c0_73 = arith.constant 0 : index
    %135 = vector.load %arg11[%c0_70, %c0_71, %c0_72, %c0_73] : memref<1x16x16x128xf32, #tpu.memory_space<vmem>>, vector<1x16x16x128xf32>
    %136 = vector.shape_cast %135 : vector<1x16x16x128xf32> to vector<16x16x128xf32>
    %137 = vector.shape_cast %134 : vector<16x16x128xf32> to vector<1x16x16x128xf32>
    tpu.vector_store %arg11[%c0_70, %c0_71, %c0_72, %c0_73], %137 {strides = array<i32>} : memref<1x16x16x128xf32, #tpu.memory_space<vmem>>, vector<1x16x16x128xf32>,
    return
  }
  func.func @transform_0(%arg0: i32) -> (i32, i32, i32, i32) {
    %c0_i32 = arith.constant 0 : i32
    %c0_i32_0 = arith.constant 0 : i32
    %c0_i32_1 = arith.constant 0 : i32
    %c0_i32_2 = arith.constant 0 : i32
    return %arg0, %c0_i32, %c0_i32_0, %c0_i32_1 : i32, i32, i32, i32
  }
  func.func @transform_1(%arg0: i32) -> (i32, i32) {
    %c0_i32 = arith.constant 0 : i32
    %c0_i32_0 = arith.constant 0 : i32
    %c0_i32_1 = arith.constant 0 : i32
    return %c0_i32, %c0_i32_0 : i32, i32
  }
  func.func @transform_2(%arg0: i32) -> (i32, i32) {
    %c0_i32 = arith.constant 0 : i32
    %c0_i32_0 = arith.constant 0 : i32
    %c0_i32_1 = arith.constant 0 : i32
    return %c0_i32, %c0_i32_0 : i32, i32
  }
  func.func @transform_3(%arg0: i32) -> (i32, i32) {
    %c0_i32 = arith.constant 0 : i32
    %c0_i32_0 = arith.constant 0 : i32
    %c0_i32_1 = arith.constant 0 : i32
    return %c0_i32, %c0_i32_0 : i32, i32
  }
  func.func @transform_4(%arg0: i32) -> (i32, i32) {
    %c0_i32 = arith.constant 0 : i32
    %c0_i32_0 = arith.constant 0 : i32
    %c0_i32_1 = arith.constant 0 : i32
    return %c0_i32, %c0_i32_0 : i32, i32
  }
  func.func @transform_5(%arg0: i32) -> (i32, i32) {
    %c0_i32 = arith.constant 0 : i32
    %c0_i32_0 = arith.constant 0 : i32
    %c0_i32_1 = arith.constant 0 : i32
    return %c0_i32, %c0_i32_0 : i32, i32
  }
  func.func @transform_6(%arg0: i32) -> (i32, i32) {
    %c0_i32 = arith.constant 0 : i32
    %c0_i32_0 = arith.constant 0 : i32
    %c0_i32_1 = arith.constant 0 : i32
    return %c0_i32, %c0_i32_0 : i32, i32
  }
  func.func @transform_7(%arg0: i32) -> (i32, i32) {
    %c0_i32 = arith.constant 0 : i32
    %c0_i32_0 = arith.constant 0 : i32
    %c0_i32_1 = arith.constant 0 : i32
    return %c0_i32, %c0_i32_0 : i32, i32
  }
  func.func @transform_8(%arg0: i32) -> (i32, i32) {
    %c0_i32 = arith.constant 0 : i32
    %c0_i32_0 = arith.constant 0 : i32
    %c0_i32_1 = arith.constant 0 : i32
    return %c0_i32, %c0_i32_0 : i32, i32
  }
  func.func @transform_9(%arg0: i32) -> (i32, i32) {
    %c0_i32 = arith.constant 0 : i32
    %c0_i32_0 = arith.constant 0 : i32
    %c0_i32_1 = arith.constant 0 : i32
    return %c0_i32, %c0_i32_0 : i32, i32
  }
  func.func @transform_10(%arg0: i32) -> (i32, i32, i32, i32) {
    %c0_i32 = arith.constant 0 : i32
    %c0_i32_0 = arith.constant 0 : i32
    %c0_i32_1 = arith.constant 0 : i32
    %c0_i32_2 = arith.constant 0 : i32
    return %arg0, %c0_i32, %c0_i32_0, %c0_i32_1 : i32, i32, i32, i32
  }
}

</mosaic_0001>

<llo_original>
// kernel: tpu_custom_call.1
$region0: #{tpu_custom_call.1}
  #allocation0 [shape = 'u32[]', space=smem, size = 0x4, offset = 0x4, fixed_abs, tag = 'smem constant byte address 0x4 - core index']
  #allocation1 [shape = 'u32[144,128]{1,0:T(1,128)}', space=vmem, size = 0x12000, scoped, tag = 'internal scratch']
  #allocation2 [shape = 'bf16[18,18,128]{2,1,0:T(8,128)(2,1)}', space=vmem, size = 0x1b000, scoped, tag = 'scratch operand']
  %s0 = inlined_call_operand.hbm [shape: f32[2,16,16,128], index: 0, kind: input, shape index: {}]
  %s1 = inlined_call_operand.hbm [shape: bf16[1152,128], index: 1, kind: input, shape index: {}]
  %s2 = inlined_call_operand.vmem [shape: f32[1,128], index: 2, kind: input, shape index: {}]
  %s3 = inlined_call_operand.vmem [shape: f32[1,128], index: 3, kind: input, shape index: {}]
  %s4 = inlined_call_operand.vmem [shape: f32[1,128], index: 4, kind: input, shape index: {}]
  %s5 = inlined_call_operand.hbm [shape: bf16[1152,128], index: 5, kind: input, shape index: {}]
  %s6 = inlined_call_operand.vmem [shape: f32[1,128], index: 6, kind: input, shape index: {}]
  %s7 = inlined_call_operand.vmem [shape: f32[1,128], index: 7, kind: input, shape index: {}]
  %s8 = inlined_call_operand.vmem [shape: f32[1,128], index: 8, kind: input, shape index: {}]
  %s9 = inlined_call_operand.hbm [shape: f32[128,128], index: 9, kind: input, shape index: {}]
  %s10 = inlined_call_operand.hbm [shape: f32[2,16,16,128], index: 10, kind: output, shape index: {}]
  %s11 = sld [smem:[#allocation0]]
  $region89: #{tpu_custom_call.1} parent=0
    _
  %s13 = ssub.s32 1, %s11
  %s14 = scalar_select 0, %s13, %s11
  $region1: #{tpu_custom_call.1} parent=0
    #allocation3 [shape = 'u8[262144]{0}', space=vmem, size = 0x40000, scoped, tag = 'input window, operand 0']
    #allocation4 [shape = 's32[2]{0}', space=sflag, size = 0x8, scoped, tag = 'scoped memory for tpu_custom_call.1']
    #allocation5 [shape = 's32[2]{0}', space=sflag, size = 0x8, scoped, tag = 'scoped memory for tpu_custom_call.1']
    #allocation6 [shape = 'u8[294912]{0}', space=vmem, size = 0x48000, scoped, tag = 'input window, operand 1, single buffered']
    #allocation7 [shape = 's32[1]{0}', space=sflag, size = 0x4, scoped, tag = 'scoped memory for tpu_custom_call.1']
    #allocation8 [shape = 'u8[294912]{0}', space=vmem, size = 0x48000, scoped, tag = 'input window, operand 5, single buffered']
    #allocation9 [shape = 'u8[65536]{0}', space=vmem, size = 0x10000, scoped, tag = 'input window, operand 9, single buffered']
    #allocation10 [shape = 's32[1]{0}', space=sflag, size = 0x4, scoped, tag = 'scoped memory for tpu_custom_call.1']
    #allocation11 [shape = 'u8[262144]{0}', space=vmem, size = 0x40000, scoped, tag = 'output window, operand 0']
    %15 = vsyncpa [#allocation4], 0
    %s16 = scalar_lea.sflag [#allocation4], 1
    %17 = vsyncpa %s16, 0
    %18 = vsyncpa [#allocation7], 0
    %19 = vsyncpa [#allocation10], 0
    %20 = vsyncpa [#allocation5], 0
    %s21 = scalar_lea.sflag [#allocation5], 1
    %22 = vsyncpa %s21, 0
    loop: start=0, step=1, limit=4
    $region2: #{tpu_custom_call.1} parent=1 // loop_pre_header
      _
    $region3: #{tpu_custom_call.1} parent=1 // loop_header
      %s24 = sphi 0, %s28
      %p25 = scmp.ge.s32.totalorder %s24, 4
      %s34 = sphi 0, %s36
      %s37 = sphi 0, %s34
      %s38 = sphi 0, %s37
      %s54 = sphi 0, %s38
      %s58 = sphi 0, %s58
      %s60 = sphi 0, %s58
      %s61 = sphi 0, %s60
      %s75 = sphi 0, %s61
      %s79 = sphi 0, %s79
      %s81 = sphi 0, %s79
      %s82 = sphi 0, %s81
      %s96 = sphi 0, %s82
      %s100 = sphi 0, %s100
      %s102 = sphi 0, %s100
      %s103 = sphi 0, %s102
      %s117 = sphi 0, %s103
      %s121 = sphi 0, %s121
      %s123 = sphi 0, %s121
      %s124 = sphi 0, %s123
      %s138 = sphi 0, %s124
      %s142 = sphi 0, %s142
      %s144 = sphi 0, %s142
      %s145 = sphi 0, %s144
      %s159 = sphi 0, %s145
      %s163 = sphi 0, %s163
      %s165 = sphi 0, %s163
      %s166 = sphi 0, %s165
      %s180 = sphi 0, %s166
      %s184 = sphi 0, %s184
      %s186 = sphi 0, %s184
      %s187 = sphi 0, %s186
      %s201 = sphi 0, %s187
      %s205 = sphi 0, %s205
      %s207 = sphi 0, %s205
      %s208 = sphi 0, %s207
      %s222 = sphi 0, %s208
      %s226 = sphi 0, %s226
      %s228 = sphi 0, %s226
      %s229 = sphi 0, %s228
      %s243 = sphi 0, %s229
      %s249 = sphi 0, %s251
      %s252 = sphi 0, %s249
      %s253 = sphi 0, %s252
      %s269 = sphi 0, %s253
    $region4: #{tpu_custom_call.1} parent=1 // loop_header_branch
      %27 = sbr.rel (%p25) target = $region8
    $region5: #{tpu_custom_call.1} parent=1 // loop_body
      %s29 = ssub.s32 %s24, 1
      %s30 = ssub.s32 %s24, 2
      %s31 = sadd.s32 %s24, 1
      %s32 = ssub.s32 %s24, %s31
      %p33 = scmp.eq.s32.totalorder %s32, 0
      %s35 = sadd.s32 %s34, 1
      %s36 = scalar_select %p33, %s34, %s35
      %p39 = pneg %p33
      %p40 = scmp.eq.s32.totalorder %s24, 1
      %p41 = por %p39, %p40
      %p42 = scmp.ne.s32.totalorder %s34, %s37
      %p43 = scmp.eq.s32.totalorder %s24, 0
      %p44 = por %p42, %p43
      %p45 = scmp.ne.s32.totalorder %s34, %s37
      %p46 = scmp.eq.s32.totalorder %s29, 1
      %p47 = por %p45, %p46
      %p48 = scmp.ne.s32.totalorder %s37, %s38
      %p49 = scmp.eq.s32.totalorder %s29, 0
      %p50 = por %p48, %p49
      %p51 = scmp.ne.s32.totalorder %s37, %s38
      %p52 = scmp.eq.s32.totalorder %s30, 1
      %p53 = por %p51, %p52
      %p55 = scmp.ne.s32.totalorder %s38, %s54
      %p56 = scmp.eq.s32.totalorder %s30, 0
      %p57 = por %p55, %p56
      %s59 = sadd.s32 %s58, 1
      %p62 = scmp.eq.s32.totalorder %s24, 1
      %p63 = scmp.ne.s32.totalorder %s58, %s60
      %p64 = scmp.eq.s32.totalorder %s24, 0
      %p65 = por %p63, %p64
      %p66 = scmp.ne.s32.totalorder %s58, %s60
      %p67 = scmp.eq.s32.totalorder %s29, 1
      %p68 = por %p66, %p67
      %p69 = scmp.ne.s32.totalorder %s60, %s61
      %p70 = scmp.eq.s32.totalorder %s29, 0
      %p71 = por %p69, %p70
      %p72 = scmp.ne.s32.totalorder %s60, %s61
      %p73 = scmp.eq.s32.totalorder %s30, 1
      %p74 = por %p72, %p73
      %p76 = scmp.ne.s32.totalorder %s61, %s75
      %p77 = scmp.eq.s32.totalorder %s30, 0
      %p78 = por %p76, %p77
      %s80 = sadd.s32 %s79, 1
      %p83 = scmp.eq.s32.totalorder %s24, 1
      %p84 = scmp.ne.s32.totalorder %s79, %s81
      %p85 = scmp.eq.s32.totalorder %s24, 0
      %p86 = por %p84, %p85
      %p87 = scmp.ne.s32.totalorder %s79, %s81
      %p88 = scmp.eq.s32.totalorder %s29, 1
      %p89 = por %p87, %p88
      %p90 = scmp.ne.s32.totalorder %s81, %s82
      %p91 = scmp.eq.s32.totalorder %s29, 0
      %p92 = por %p90, %p91
      %p93 = scmp.ne.s32.totalorder %s81, %s82
      %p94 = scmp.eq.s32.totalorder %s30, 1
      %p95 = por %p93, %p94
      %p97 = scmp.ne.s32.totalorder %s82, %s96
      %p98 = scmp.eq.s32.totalorder %s30, 0
      %p99 = por %p97, %p98
      %s101 = sadd.s32 %s100, 1
      %p104 = scmp.eq.s32.totalorder %s24, 1
      %p105 = scmp.ne.s32.totalorder %s100, %s102
      %p106 = scmp.eq.s32.totalorder %s24, 0
      %p107 = por %p105, %p106
      %p108 = scmp.ne.s32.totalorder %s100, %s102
      %p109 = scmp.eq.s32.totalorder %s29, 1
      %p110 = por %p108, %p109
      %p111 = scmp.ne.s32.totalorder %s102, %s103
      %p112 = scmp.eq.s32.totalorder %s29, 0
      %p113 = por %p111, %p112
      %p114 = scmp.ne.s32.totalorder %s102, %s103
      %p115 = scmp.eq.s32.totalorder %s30, 1
      %p116 = por %p114, %p115
      %p118 = scmp.ne.s32.totalorder %s103, %s117
      %p119 = scmp.eq.s32.totalorder %s30, 0
      %p120 = por %p118, %p119
      %s122 = sadd.s32 %s121, 1
      %p125 = scmp.eq.s32.totalorder %s24, 1
      %p126 = scmp.ne.s32.totalorder %s121, %s123
      %p127 = scmp.eq.s32.totalorder %s24, 0
      %p128 = por %p126, %p127
      %p129 = scmp.ne.s32.totalorder %s121, %s123
      %p130 = scmp.eq.s32.totalorder %s29, 1
      %p131 = por %p129, %p130
      %p132 = scmp.ne.s32.totalorder %s123, %s124
      %p133 = scmp.eq.s32.totalorder %s29, 0
      %p134 = por %p132, %p133
      %p135 = scmp.ne.s32.totalorder %s123, %s124
      %p136 = scmp.eq.s32.totalorder %s30, 1
      %p137 = por %p135, %p136
      %p139 = scmp.ne.s32.totalorder %s124, %s138
      %p140 = scmp.eq.s32.totalorder %s30, 0
      %p141 = por %p139, %p140
      %s143 = sadd.s32 %s142, 1
      %p146 = scmp.eq.s32.totalorder %s24, 1
      %p147 = scmp.ne.s32.totalorder %s142, %s144
      %p148 = scmp.eq.s32.totalorder %s24, 0
      %p149 = por %p147, %p148
      %p150 = scmp.ne.s32.totalorder %s142, %s144
      %p151 = scmp.eq.s32.totalorder %s29, 1
      %p152 = por %p150, %p151
      %p153 = scmp.ne.s32.totalorder %s144, %s145
      %p154 = scmp.eq.s32.totalorder %s29, 0
      %p155 = por %p153, %p154
      %p156 = scmp.ne.s32.totalorder %s144, %s145
      %p157 = scmp.eq.s32.totalorder %s30, 1
      %p158 = por %p156, %p157
      %p160 = scmp.ne.s32.totalorder %s145, %s159
      %p161 = scmp.eq.s32.totalorder %s30, 0
      %p162 = por %p160, %p161
      %s164 = sadd.s32 %s163, 1
      %p167 = scmp.eq.s32.totalorder %s24, 1
      %p168 = scmp.ne.s32.totalorder %s163, %s165
      %p169 = scmp.eq.s32.totalorder %s24, 0
      %p170 = por %p168, %p169
      %p171 = scmp.ne.s32.totalorder %s163, %s165
      %p172 = scmp.eq.s32.totalorder %s29, 1
      %p173 = por %p171, %p172
      %p174 = scmp.ne.s32.totalorder %s165, %s166
      %p175 = scmp.eq.s32.totalorder %s29, 0
      %p176 = por %p174, %p175
      %p177 = scmp.ne.s32.totalorder %s165, %s166
      %p178 = scmp.eq.s32.totalorder %s30, 1
      %p179 = por %p177, %p178
      %p181 = scmp.ne.s32.totalorder %s166, %s180
      %p182 = scmp.eq.s32.totalorder %s30, 0
      %p183 = por %p181, %p182
      %s185 = sadd.s32 %s184, 1
      %p188 = scmp.eq.s32.totalorder %s24, 1
      %p189 = scmp.ne.s32.totalorder %s184, %s186
      %p190 = scmp.eq.s32.totalorder %s24, 0
      %p191 = por %p189, %p190
      %p192 = scmp.ne.s32.totalorder %s184, %s186
      %p193 = scmp.eq.s32.totalorder %s29, 1
      %p194 = por %p192, %p193
      %p195 = scmp.ne.s32.totalorder %s186, %s187
      %p196 = scmp.eq.s32.totalorder %s29, 0
      %p197 = por %p195, %p196
      %p198 = scmp.ne.s32.totalorder %s186, %s187
      %p199 = scmp.eq.s32.totalorder %s30, 1
      %p200 = por %p198, %p199
      %p202 = scmp.ne.s32.totalorder %s187, %s201
      %p203 = scmp.eq.s32.totalorder %s30, 0
      %p204 = por %p202, %p203
      %s206 = sadd.s32 %s205, 1
      %p209 = scmp.eq.s32.totalorder %s24, 1
      %p210 = scmp.ne.s32.totalorder %s205, %s207
      %p211 = scmp.eq.s32.totalorder %s24, 0
      %p212 = por %p210, %p211
      %p213 = scmp.ne.s32.totalorder %s205, %s207
      %p214 = scmp.eq.s32.totalorder %s29, 1
      %p215 = por %p213, %p214
      %p216 = scmp.ne.s32.totalorder %s207, %s208
      %p217 = scmp.eq.s32.totalorder %s29, 0
      %p218 = por %p216, %p217
      %p219 = scmp.ne.s32.totalorder %s207, %s208
      %p220 = scmp.eq.s32.totalorder %s30, 1
      %p221 = por %p219, %p220
      %p223 = scmp.ne.s32.totalorder %s208, %s222
      %p224 = scmp.eq.s32.totalorder %s30, 0
      %p225 = por %p223, %p224
      %s227 = sadd.s32 %s226, 1
      %p230 = scmp.eq.s32.totalorder %s24, 1
      %p231 = scmp.ne.s32.totalorder %s226, %s228
      %p232 = scmp.eq.s32.totalorder %s24, 0
      %p233 = por %p231, %p232
      %p234 = scmp.ne.s32.totalorder %s226, %s228
      %p235 = scmp.eq.s32.totalorder %s29, 1
      %p236 = por %p234, %p235
      %p237 = scmp.ne.s32.totalorder %s228, %s229
      %p238 = scmp.eq.s32.totalorder %s29, 0
      %p239 = por %p237, %p238
      %p240 = scmp.ne.s32.totalorder %s228, %s229
      %p241 = scmp.eq.s32.totalorder %s30, 1
      %p242 = por %p240, %p241
      %p244 = scmp.ne.s32.totalorder %s229, %s243
      %p245 = scmp.eq.s32.totalorder %s30, 0
      %p246 = por %p244, %p245
      %s247 = ssub.s32 %s24, %s31
      %p248 = scmp.eq.s32.totalorder %s247, 0
      %s250 = sadd.s32 %s249, 1
      %s251 = scalar_select %p248, %s249, %s250
      %p254 = pneg %p248
      %p255 = scmp.eq.s32.totalorder %s24, 1
      %p256 = por %p254, %p255
      %p257 = scmp.ne.s32.totalorder %s249, %s252
      %p258 = scmp.eq.s32.totalorder %s24, 0
      %p259 = por %p257, %p258
      %p260 = scmp.ne.s32.totalorder %s249, %s252
      %p261 = scmp.eq.s32.totalorder %s29, 1
      %p262 = por %p260, %p261
      %p263 = scmp.ne.s32.totalorder %s252, %s253
      %p264 = scmp.eq.s32.totalorder %s29, 0
      %p265 = por %p263, %p264
      %p266 = scmp.ne.s32.totalorder %s252, %s253
      %p267 = scmp.eq.s32.totalorder %s30, 1
      %p268 = por %p266, %p267
      %p270 = scmp.ne.s32.totalorder %s253, %s269
      %p271 = scmp.eq.s32.totalorder %s30, 0
      %p272 = por %p270, %p271
      %p273 = scmp.le.s32.totalorder 1, %s24
      %p274 = scmp.lt.s32.totalorder %s24, 3
      %p275 = pnand %p273, %p274
      %p276 = pneg %p275
      // Predicated region
      $region9: #{tpu_custom_call.1} parent=5 // pred_check
        _
      $region10: #{tpu_custom_call.1} parent=5 // pred_check_branch
        %278 = sbr.rel (%p275) target = $region12
      $region11: #{tpu_custom_call.1} parent=5 // pred_region
        %s279 = ssub.s32 %s24, 1
        // Predicated region
        $region13: #{tpu_custom_call.1} parent=11 // pred_check
          %p280 = pneg %p71
        $region14: #{tpu_custom_call.1} parent=11 // pred_check_branch
          %282 = sbr.rel (%p280) target = $region16
        $region15: #{tpu_custom_call.1} parent=11 // pred_region
          %s284 = ssub.s32 9216, 9216
          %285 = vsyncadd [#allocation7], %s284
          %s286 = sshll.u32 [#allocation6], 4
          %s287 = int_to_ptr.vmem [resolvable:$true] %s286
          %292 = dma.hbm_to_vmem [thread:$0]  %s1, 9216, %s287, [#allocation7], 64, 64, 4
        $region16: #{tpu_custom_call.1} parent=11 // pred_fallthru
          _
        // Predicated region
        $region17: #{tpu_custom_call.1} parent=11 // pred_check
          %p293 = pneg %p92
        $region18: #{tpu_custom_call.1} parent=11 // pred_check_branch
          %295 = sbr.rel (%p293) target = $region20
        $region19: #{tpu_custom_call.1} parent=11 // pred_region
          _
        $region20: #{tpu_custom_call.1} parent=11 // pred_fallthru
          _
        // Predicated region
        $region21: #{tpu_custom_call.1} parent=11 // pred_check
          %p296 = pneg %p113
        $region22: #{tpu_custom_call.1} parent=11 // pred_check_branch
          %298 = sbr.rel (%p296) target = $region24
        $region23: #{tpu_custom_call.1} parent=11 // pred_region
          _
        $region24: #{tpu_custom_call.1} parent=11 // pred_fallthru
          _
        // Predicated region
        $region25: #{tpu_custom_call.1} parent=11 // pred_check
          %p299 = pneg %p134
        $region26: #{tpu_custom_call.1} parent=11 // pred_check_branch
          %301 = sbr.rel (%p299) target = $region28
        $region27: #{tpu_custom_call.1} parent=11 // pred_region
          _
        $region28: #{tpu_custom_call.1} parent=11 // pred_fallthru
          _
        // Predicated region
        $region29: #{tpu_custom_call.1} parent=11 // pred_check
          %p302 = pneg %p155
        $region30: #{tpu_custom_call.1} parent=11 // pred_check_branch
          %304 = sbr.rel (%p302) target = $region32
        $region31: #{tpu_custom_call.1} parent=11 // pred_region
          %s306 = ssub.s32 9216, 9216
          %307 = vsyncadd [#allocation7], %s306
          %s308 = sshll.u32 [#allocation8], 4
          %s309 = int_to_ptr.vmem [resolvable:$true] %s308
          %314 = dma.hbm_to_vmem [thread:$0]  %s5, 9216, %s309, [#allocation7], 64, 64, 4
        $region32: #{tpu_custom_call.1} parent=11 // pred_fallthru
          _
        // Predicated region
        $region33: #{tpu_custom_call.1} parent=11 // pred_check
          %p315 = pneg %p176
        $region34: #{tpu_custom_call.1} parent=11 // pred_check_branch
          %317 = sbr.rel (%p315) target = $region36
        $region35: #{tpu_custom_call.1} parent=11 // pred_region
          _
        $region36: #{tpu_custom_call.1} parent=11 // pred_fallthru
          _
        // Predicated region
        $region37: #{tpu_custom_call.1} parent=11 // pred_check
          %p318 = pneg %p197
        $region38: #{tpu_custom_call.1} parent=11 // pred_check_branch
          %320 = sbr.rel (%p318) target = $region40
        $region39: #{tpu_custom_call.1} parent=11 // pred_region
          _
        $region40: #{tpu_custom_call.1} parent=11 // pred_fallthru
          _
        // Predicated region
        $region41: #{tpu_custom_call.1} parent=11 // pred_check
          %p321 = pneg %p218
        $region42: #{tpu_custom_call.1} parent=11 // pred_check_branch
          %323 = sbr.rel (%p321) target = $region44
        $region43: #{tpu_custom_call.1} parent=11 // pred_region
          _
        $region44: #{tpu_custom_call.1} parent=11 // pred_fallthru
          _
        // Predicated region
        $region45: #{tpu_custom_call.1} parent=11 // pred_check
          %p324 = pneg %p239
        $region46: #{tpu_custom_call.1} parent=11 // pred_check_branch
          %326 = sbr.rel (%p324) target = $region48
        $region47: #{tpu_custom_call.1} parent=11 // pred_region
          %s328 = ssub.s32 2048, 2048
          %329 = vsyncadd [#allocation10], %s328
          %s330 = sshll.u32 [#allocation9], 4
          %s331 = int_to_ptr.vmem [resolvable:$true] %s330
          %336 = dma.hbm_to_vmem [thread:$0]  %s9, 2048, %s331, [#allocation10], 128, 128, 8
        $region48: #{tpu_custom_call.1} parent=11 // pred_fallthru
          _
      $region12: #{tpu_custom_call.1} parent=5 // pred_fallthru
        _
      %p337 = scmp.lt.s32.totalorder %s24, 2
      // Predicated region
      $region49: #{tpu_custom_call.1} parent=5 // pred_check
        %p338 = pneg %p337
      $region50: #{tpu_custom_call.1} parent=5 // pred_check_branch
        %340 = sbr.rel (%p338) target = $region52
      $region51: #{tpu_custom_call.1} parent=5 // pred_region
        // Predicated region
        $region53: #{tpu_custom_call.1} parent=51 // pred_check
          %p341 = pneg %p44
        $region54: #{tpu_custom_call.1} parent=51 // pred_check_branch
          %343 = sbr.rel (%p341) target = $region56
        $region55: #{tpu_custom_call.1} parent=51 // pred_region
          %s344 = sand.u32 %s34, 1
          %s345 = scalar_lea.sflag [#allocation4], %s344
          %s346 = sand.u32 %s34, 1
          %s347 = smul.addr %s346, 256
          %s348 = scalar_lea.vmem [#allocation3], %s347
          %s350 = ssub.s32 4096, 4096
          %351 = vsyncadd %s345, %s350
          %s352 = smul.addr %s24, 32
          %s353 = smul.addr %s352, 128
          %s354 = scalar_lea.hbm %s0, %s353
          %s355 = sshll.u32 %s348, 4
          %s356 = int_to_ptr.vmem [resolvable:$true] %s355
          %361 = dma.hbm_to_vmem [thread:$0]  %s354, 4096, %s356, %s345, 128, 128, 8
        $region56: #{tpu_custom_call.1} parent=51 // pred_fallthru
          _
      $region52: #{tpu_custom_call.1} parent=5 // pred_fallthru
        _
      %p362 = scmp.le.s32.totalorder 1, %s24
      %p363 = scmp.lt.s32.totalorder %s24, 3
      %p364 = pnand %p362, %p363
      %p365 = pneg %p364
      // Predicated region
      $region57: #{tpu_custom_call.1} parent=5 // pred_check
        _
      $region58: #{tpu_custom_call.1} parent=5 // pred_check_branch
        %367 = sbr.rel (%p364) target = $region60
      $region59: #{tpu_custom_call.1} parent=5 // pred_region
        %s368 = ssub.s32 %s24, 1
        %s369 = sand.u32 %s37, 1
        %s370 = scalar_lea.sflag [#allocation4], %s369
        %s371 = sand.u32 %s37, 1
        %s372 = smul.addr %s371, 256
        %s373 = scalar_lea.vmem [#allocation3], %s372
        // Predicated region
        $region61: #{tpu_custom_call.1} parent=59 // pred_check
          %p374 = pneg %p50
        $region62: #{tpu_custom_call.1} parent=59 // pred_check_branch
          %376 = sbr.rel (%p374) target = $region64
        $region63: #{tpu_custom_call.1} parent=59 // pred_region
          %377 = dma.done %s370, 4096
        $region64: #{tpu_custom_call.1} parent=59 // pred_fallthru
          _
        // Predicated region
        $region65: #{tpu_custom_call.1} parent=59 // pred_check
          %p378 = pneg %p71
        $region66: #{tpu_custom_call.1} parent=59 // pred_check_branch
          %380 = sbr.rel (%p378) target = $region68
        $region67: #{tpu_custom_call.1} parent=59 // pred_region
          %381 = dma.done [#allocation7], 9216
        $region68: #{tpu_custom_call.1} parent=59 // pred_fallthru
          _
        // Predicated region
        $region69: #{tpu_custom_call.1} parent=59 // pred_check
          %p382 = pneg %p155
        $region70: #{tpu_custom_call.1} parent=59 // pred_check_branch
          %384 = sbr.rel (%p382) target = $region72
        $region71: #{tpu_custom_call.1} parent=59 // pred_region
          %385 = dma.done [#allocation7], 9216
        $region72: #{tpu_custom_call.1} parent=59 // pred_fallthru
          _
        // Predicated region
        $region73: #{tpu_custom_call.1} parent=59 // pred_check
          %p386 = pneg %p239
        $region74: #{tpu_custom_call.1} parent=59 // pred_check_branch
          %388 = sbr.rel (%p386) target = $region76
        $region75: #{tpu_custom_call.1} parent=59 // pred_region
          %389 = dma.done [#allocation10], 2048
        $region76: #{tpu_custom_call.1} parent=59 // pred_fallthru
          _
        %s390 = sand.u32 %s37, 1
        %s391 = scalar_lea.sflag [#allocation4], %s390
        %s392 = sand.u32 %s37, 1
        %s393 = smul.addr %s392, 256
        %s394 = scalar_lea.vmem [#allocation3], %s393
        %p395 = pneg %p50
        %p396 = pneg %p47
        %p397 = pneg %p71
        %p398 = pneg %p68
        %p399 = pneg %p92
        %p400 = pneg %p89
        %p401 = pneg %p113
        %p402 = pneg %p110
        %p403 = pneg %p134
        %p404 = pneg %p131
        %p405 = pneg %p155
        %p406 = pneg %p152
        %p407 = pneg %p176
        %p408 = pneg %p173
        %p409 = pneg %p197
        %p410 = pneg %p194
        %p411 = pneg %p218
        %p412 = pneg %p215
        %p413 = pneg %p239
        %p414 = pneg %p236
        %p415 = pneg %p265
        %p416 = pneg %p262
        %s417 = sand.u32 %s252, 1
        %s418 = scalar_lea.sflag [#allocation5], %s417
        %s419 = sand.u32 %s252, 1
        %s420 = smul.addr %s419, 256
        %s421 = scalar_lea.vmem [#allocation11], %s420
        %423 = vst [vmem:[#allocation2] sm:$0xf] 0
        %424 = vst [vmem:[#allocation2 + $0x4] sm:$0xf] 0
        %425 = vst [vmem:[#allocation2 + $0x8] sm:$0x1] 0
        %s426 = scalar_lea.vmem [#allocation2], 204
        %427 = vst [vmem:[%s426] sm:$0xf] 0
        %428 = vst [vmem:[%s426 + $0x4] sm:$0xf] 0
        %429 = vst [vmem:[%s426 + $0x8] sm:$0x1] 0
        %s430 = scalar_lea.vmem [#allocation2], 12
        %vm431 = vcmask 1040384
        %vm432 = vsmask.f32 256
        %vm433 = vmand %vm431, %vm432
        %v434 = vld [vmem:[%s430] sm:$0x1]
        %v435 = vsel %vm433, 0, %v434
        %436 = vst [vmem:[%s430] sm:$0x1] %v435
        %v437 = vld [vmem:[%s430 + $0xc] sm:$0x1]
        %v438 = vsel %vm433, 0, %v437
        %439 = vst [vmem:[%s430 + $0xc] sm:$0x1] %v438
        %v440 = vld [vmem:[%s430 + $0x18] sm:$0x1]
        %v441 = vsel %vm433, 0, %v440
        %442 = vst [vmem:[%s430 + $0x18] sm:$0x1] %v441
        %v443 = vld [vmem:[%s430 + $0x24] sm:$0x1]
        %v444 = vsel %vm433, 0, %v443
        %445 = vst [vmem:[%s430 + $0x24] sm:$0x1] %v444
        %v446 = vld [vmem:[%s430 + $0x30] sm:$0x1]
        %v447 = vsel %vm433, 0, %v446
        %448 = vst [vmem:[%s430 + $0x30] sm:$0x1] %v447
        %v449 = vld [vmem:[%s430 + $0x3c] sm:$0x1]
        %v450 = vsel %vm433, 0, %v449
        %451 = vst [vmem:[%s430 + $0x3c] sm:$0x1] %v450
        %v452 = vld [vmem:[%s430 + $0x48] sm:$0x1]
        %v453 = vsel %vm433, 0, %v452
        %454 = vst [vmem:[%s430 + $0x48] sm:$0x1] %v453
        %v455 = vld [vmem:[%s430 + $0x54] sm:$0x1]
        %v456 = vsel %vm433, 0, %v455
        %457 = vst [vmem:[%s430 + $0x54] sm:$0x1] %v456
        %v458 = vld [vmem:[%s430 + $0x60] sm:$0x1]
        %v459 = vsel %vm433, 0, %v458
        %460 = vst [vmem:[%s430 + $0x60] sm:$0x1] %v459
        %v461 = vld [vmem:[%s430 + $0x6c] sm:$0x1]
        %v462 = vsel %vm433, 0, %v461
        %463 = vst [vmem:[%s430 + $0x6c] sm:$0x1] %v462
        %v464 = vld [vmem:[%s430 + $0x78] sm:$0x1]
        %v465 = vsel %vm433, 0, %v464
        %466 = vst [vmem:[%s430 + $0x78] sm:$0x1] %v465
        %v467 = vld [vmem:[%s430 + $0x84] sm:$0x1]
        %v468 = vsel %vm433, 0, %v467
        %469 = vst [vmem:[%s430 + $0x84] sm:$0x1] %v468
        %v470 = vld [vmem:[%s430 + $0x90] sm:$0x1]
        %v471 = vsel %vm433, 0, %v470
        %472 = vst [vmem:[%s430 + $0x90] sm:$0x1] %v471
        %v473 = vld [vmem:[%s430 + $0x9c] sm:$0x1]
        %v474 = vsel %vm433, 0, %v473
        %475 = vst [vmem:[%s430 + $0x9c] sm:$0x1] %v474
        %v476 = vld [vmem:[%s430 + $0xa8] sm:$0x1]
        %v477 = vsel %vm433, 0, %v476
        %478 = vst [vmem:[%s430 + $0xa8] sm:$0x1] %v477
        %v479 = vld [vmem:[%s430 + $0xb4] sm:$0x1]
        %v480 = vsel %vm433, 0, %v479
        %481 = vst [vmem:[%s430 + $0xb4] sm:$0x1] %v480
        %vm482 = vsmask.f32 7938
        %vm483 = vmand %vm431, %vm482
        %v484 = vld [vmem:[%s430 + $0x8] sm:$0x1]
        %v485 = vsel %vm483, 0, %v484
        %486 = vst [vmem:[%s430 + $0x8] sm:$0x1] %v485
        %v487 = vld [vmem:[%s430 + $0x14] sm:$0x1]
        %v488 = vsel %vm483, 0, %v487
        %489 = vst [vmem:[%s430 + $0x14] sm:$0x1] %v488
        %v490 = vld [vmem:[%s430 + $0x20] sm:$0x1]
        %v491 = vsel %vm483, 0, %v490
        %492 = vst [vmem:[%s430 + $0x20] sm:$0x1] %v491
        %v493 = vld [vmem:[%s430 + $0x2c] sm:$0x1]
        %v494 = vsel %vm483, 0, %v493
        %495 = vst [vmem:[%s430 + $0x2c] sm:$0x1] %v494
        %v496 = vld [vmem:[%s430 + $0x38] sm:$0x1]
        %v497 = vsel %vm483, 0, %v496
        %498 = vst [vmem:[%s430 + $0x38] sm:$0x1] %v497
        %v499 = vld [vmem:[%s430 + $0x44] sm:$0x1]
        %v500 = vsel %vm483, 0, %v499
        %501 = vst [vmem:[%s430 + $0x44] sm:$0x1] %v500
        %v502 = vld [vmem:[%s430 + $0x50] sm:$0x1]
        %v503 = vsel %vm483, 0, %v502
        %504 = vst [vmem:[%s430 + $0x50] sm:$0x1] %v503
        %v505 = vld [vmem:[%s430 + $0x5c] sm:$0x1]
        %v506 = vsel %vm483, 0, %v505
        %507 = vst [vmem:[%s430 + $0x5c] sm:$0x1] %v506
        %v508 = vld [vmem:[%s430 + $0x68] sm:$0x1]
        %v509 = vsel %vm483, 0, %v508
        %510 = vst [vmem:[%s430 + $0x68] sm:$0x1] %v509
        %v511 = vld [vmem:[%s430 + $0x74] sm:$0x1]
        %v512 = vsel %vm483, 0, %v511
        %513 = vst [vmem:[%s430 + $0x74] sm:$0x1] %v512
        %v514 = vld [vmem:[%s430 + $0x80] sm:$0x1]
        %v515 = vsel %vm483, 0, %v514
        %516 = vst [vmem:[%s430 + $0x80] sm:$0x1] %v515
        %v517 = vld [vmem:[%s430 + $0x8c] sm:$0x1]
        %v518 = vsel %vm483, 0, %v517
        %519 = vst [vmem:[%s430 + $0x8c] sm:$0x1] %v518
        %v520 = vld [vmem:[%s430 + $0x98] sm:$0x1]
        %v521 = vsel %vm483, 0, %v520
        %522 = vst [vmem:[%s430 + $0x98] sm:$0x1] %v521
        %v523 = vld [vmem:[%s430 + $0xa4] sm:$0x1]
        %v524 = vsel %vm483, 0, %v523
        %525 = vst [vmem:[%s430 + $0xa4] sm:$0x1] %v524
        %v526 = vld [vmem:[%s430 + $0xb0] sm:$0x1]
        %v527 = vsel %vm483, 0, %v526
        %528 = vst [vmem:[%s430 + $0xb0] sm:$0x1] %v527
        %v529 = vld [vmem:[%s430 + $0xbc] sm:$0x1]
        %v530 = vsel %vm483, 0, %v529
        %531 = vst [vmem:[%s430 + $0xbc] sm:$0x1] %v530
        %v532 = vld [vmem:[%s373] sm:$0xff]
        %v533 = vld [vmem:[%s373 + $0x8] sm:$0xff]
        %v534 = vld [vmem:[%s373 + $0x10] sm:$0xff]
        %v535 = vld [vmem:[%s373 + $0x18] sm:$0xff]
        %v536 = vld [vmem:[%s373 + $0x20] sm:$0xff]
        %v537 = vld [vmem:[%s373 + $0x28] sm:$0xff]
        %v538 = vld [vmem:[%s373 + $0x30] sm:$0xff]
        %v539 = vld [vmem:[%s373 + $0x38] sm:$0xff]
        %v540 = vld [vmem:[%s373 + $0x40] sm:$0xff]
        %v541 = vld [vmem:[%s373 + $0x48] sm:$0xff]
        %v542 = vld [vmem:[%s373 + $0x50] sm:$0xff]
        %v543 = vld [vmem:[%s373 + $0x58] sm:$0xff]
        %v544 = vld [vmem:[%s373 + $0x60] sm:$0xff]
        %v545 = vld [vmem:[%s373 + $0x68] sm:$0xff]
        %v546 = vld [vmem:[%s373 + $0x70] sm:$0xff]
        %v547 = vld [vmem:[%s373 + $0x78] sm:$0xff]
        %v548 = vld [vmem:[%s373 + $0x80] sm:$0xff]
        %v549 = vld [vmem:[%s373 + $0x88] sm:$0xff]
        %v550 = vld [vmem:[%s373 + $0x90] sm:$0xff]
        %v551 = vld [vmem:[%s373 + $0x98] sm:$0xff]
        %v552 = vld [vmem:[%s373 + $0xa0] sm:$0xff]
        %v553 = vld [vmem:[%s373 + $0xa8] sm:$0xff]
        %v554 = vld [vmem:[%s373 + $0xb0] sm:$0xff]
        %v555 = vld [vmem:[%s373 + $0xb8] sm:$0xff]
        %v556 = vld [vmem:[%s373 + $0xc0] sm:$0xff]
        %v557 = vld [vmem:[%s373 + $0xc8] sm:$0xff]
        %v558 = vld [vmem:[%s373 + $0xd0] sm:$0xff]
        %v559 = vld [vmem:[%s373 + $0xd8] sm:$0xff]
        %v560 = vld [vmem:[%s373 + $0xe0] sm:$0xff]
        %v561 = vld [vmem:[%s373 + $0xe8] sm:$0xff]
        %v562 = vld [vmem:[%s373 + $0xf0] sm:$0xff]
        %v563 = vld [vmem:[%s373 + $0xf8] sm:$0xff]
        %v564 = vpack.c.bf16 %v533, %v532
        %v565 = vpack.c.bf16 %v535, %v534
        %v566 = vpack.c.bf16 %v537, %v536
        %v567 = vpack.c.bf16 %v539, %v538
        %v568 = vpack.c.bf16 %v541, %v540
        %v569 = vpack.c.bf16 %v543, %v542
        %v570 = vpack.c.bf16 %v545, %v544
        %v571 = vpack.c.bf16 %v547, %v546
        %v572 = vpack.c.bf16 %v549, %v548
        %v573 = vpack.c.bf16 %v551, %v550
        %v574 = vpack.c.bf16 %v553, %v552
        %v575 = vpack.c.bf16 %v555, %v554
        %v576 = vpack.c.bf16 %v557, %v556
        %v577 = vpack.c.bf16 %v559, %v558
        %v578 = vpack.c.bf16 %v561, %v560
        %v579 = vpack.c.bf16 %v563, %v562
        %v596 = vunpack.c.l.b16 %v564
        %v597 = vunpack.c.h.b16 %v564
        %v598 = vunpack.c.l.b16 %v565
        %v599 = vunpack.c.h.b16 %v565
        %v600 = vunpack.c.l.b16 %v566
        %v601 = vunpack.c.h.b16 %v566
        %v602 = vunpack.c.l.b16 %v567
        %v603 = vunpack.c.h.b16 %v567
        %v604 = vunpack.c.l.b16 %v568
        %v605 = vunpack.c.h.b16 %v568
        %v606 = vunpack.c.l.b16 %v569
        %v607 = vunpack.c.h.b16 %v569
        %v608 = vunpack.c.l.b16 %v570
        %v609 = vunpack.c.h.b16 %v570
        %v610 = vunpack.c.l.b16 %v571
        %v611 = vunpack.c.h.b16 %v571
        %v612 = vunpack.c.l.b16 %v572
        %v613 = vunpack.c.h.b16 %v572
        %v614 = vunpack.c.l.b16 %v573
        %v615 = vunpack.c.h.b16 %v573
        %v616 = vunpack.c.l.b16 %v574
        %v617 = vunpack.c.h.b16 %v574
        %v618 = vunpack.c.l.b16 %v575
        %v619 = vunpack.c.h.b16 %v575
        %v620 = vunpack.c.l.b16 %v576
        %v621 = vunpack.c.h.b16 %v576
        %v622 = vunpack.c.l.b16 %v577
        %v623 = vunpack.c.h.b16 %v577
        %v624 = vunpack.c.l.b16 %v578
        %v625 = vunpack.c.h.b16 %v578
        %v626 = vunpack.c.l.b16 %v579
        %v627 = vunpack.c.h.b16 %v579
        %v628 = vpack.c.b16 %v596, %v596
        %v629 = vpack.c.b16 %v597, %v597
        %v630 = vpack.c.b16 %v598, %v598
        %v631 = vpack.c.b16 %v599, %v599
        %v632 = vpack.c.b16 %v600, %v600
        %v633 = vpack.c.b16 %v601, %v601
        %v634 = vpack.c.b16 %v602, %v602
        %v635 = vpack.c.b16 %v603, %v603
        %v636 = vpack.c.b16 %v604, %v604
        %v637 = vpack.c.b16 %v605, %v605
        %v638 = vpack.c.b16 %v606, %v606
        %v639 = vpack.c.b16 %v607, %v607
        %v640 = vpack.c.b16 %v608, %v608
        %v641 = vpack.c.b16 %v609, %v609
        %v642 = vpack.c.b16 %v610, %v610
        %v643 = vpack.c.b16 %v611, %v611
        %v644 = vpack.c.b16 %v612, %v612
        %v645 = vpack.c.b16 %v613, %v613
        %v646 = vpack.c.b16 %v614, %v614
        %v647 = vpack.c.b16 %v615, %v615
        %v648 = vpack.c.b16 %v616, %v616
        %v649 = vpack.c.b16 %v617, %v617
        %v650 = vpack.c.b16 %v618, %v618
        %v651 = vpack.c.b16 %v619, %v619
        %v652 = vpack.c.b16 %v620, %v620
        %v653 = vpack.c.b16 %v621, %v621
        %v654 = vpack.c.b16 %v622, %v622
        %v655 = vpack.c.b16 %v623, %v623
        %v656 = vpack.c.b16 %v624, %v624
        %v657 = vpack.c.b16 %v625, %v625
        %v658 = vpack.c.b16 %v626, %v626
        %v659 = vpack.c.b16 %v627, %v627
        %vm660 = vsmask.f32 4368
        %vm661 = vmor %vm432, %vm660
        %v663 = vshrl.u32 %v628, 16
        %v665 = vrot.slane %v663, 7
        %v666 = vshll.u32 %v628, 16
        %v668 = vor.u32 %v665, %v666
        %v669 = vrot.slane %v665, 4
        %v671 = vshrl.u32 %v629, 16
        %v673 = vrot.slane %v671, 7
        %v674 = vshll.u32 %v629, 16
        %v676 = vor.u32 %v673, %v674
        %v677 = vsel %vm661, %v669, %v676
        %v678 = vrot.slane %v673, 4
        %v680 = vshrl.u32 %v630, 16
        %v682 = vrot.slane %v680, 7
        %v683 = vshll.u32 %v630, 16
        %v685 = vor.u32 %v682, %v683
        %v686 = vrot.slane %v682, 4
        %v688 = vshrl.u32 %v631, 16
        %v690 = vrot.slane %v688, 7
        %v691 = vshll.u32 %v631, 16
        %v693 = vor.u32 %v690, %v691
        %v694 = vsel %vm661, %v686, %v693
        %v695 = vrot.slane %v690, 4
        %v697 = vshrl.u32 %v632, 16
        %v699 = vrot.slane %v697, 7
        %v700 = vshll.u32 %v632, 16
        %v702 = vor.u32 %v699, %v700
        %v703 = vrot.slane %v699, 4
        %v705 = vshrl.u32 %v633, 16
        %v707 = vrot.slane %v705, 7
        %v708 = vshll.u32 %v633, 16
        %v710 = vor.u32 %v707, %v708
        %v711 = vsel %vm661, %v703, %v710
        %v712 = vrot.slane %v707, 4
        %v714 = vshrl.u32 %v634, 16
        %v716 = vrot.slane %v714, 7
        %v717 = vshll.u32 %v634, 16
        %v719 = vor.u32 %v716, %v717
        %v720 = vrot.slane %v716, 4
        %v722 = vshrl.u32 %v635, 16
        %v724 = vrot.slane %v722, 7
        %v725 = vshll.u32 %v635, 16
        %v727 = vor.u32 %v724, %v725
        %v728 = vsel %vm661, %v720, %v727
        %v729 = vrot.slane %v724, 4
        %v731 = vshrl.u32 %v636, 16
        %v733 = vrot.slane %v731, 7
        %v734 = vshll.u32 %v636, 16
        %v736 = vor.u32 %v733, %v734
        %v737 = vrot.slane %v733, 4
        %v739 = vshrl.u32 %v637, 16
        %v741 = vrot.slane %v739, 7
        %v742 = vshll.u32 %v637, 16
        %v744 = vor.u32 %v741, %v742
        %v745 = vsel %vm661, %v737, %v744
        %v746 = vrot.slane %v741, 4
        %v748 = vshrl.u32 %v638, 16
        %v750 = vrot.slane %v748, 7
        %v751 = vshll.u32 %v638, 16
        %v753 = vor.u32 %v750, %v751
        %v754 = vrot.slane %v750, 4
        %v756 = vshrl.u32 %v639, 16
        %v758 = vrot.slane %v756, 7
        %v759 = vshll.u32 %v639, 16
        %v761 = vor.u32 %v758, %v759
        %v762 = vsel %vm661, %v754, %v761
        %v763 = vrot.slane %v758, 4
        %v765 = vshrl.u32 %v640, 16
        %v767 = vrot.slane %v765, 7
        %v768 = vshll.u32 %v640, 16
        %v770 = vor.u32 %v767, %v768
        %v771 = vrot.slane %v767, 4
        %v773 = vshrl.u32 %v641, 16
        %v775 = vrot.slane %v773, 7
        %v776 = vshll.u32 %v641, 16
        %v778 = vor.u32 %v775, %v776
        %v779 = vsel %vm661, %v771, %v778
        %v780 = vrot.slane %v775, 4
        %v782 = vshrl.u32 %v642, 16
        %v784 = vrot.slane %v782, 7
        %v785 = vshll.u32 %v642, 16
        %v787 = vor.u32 %v784, %v785
        %v788 = vrot.slane %v784, 4
        %v790 = vshrl.u32 %v643, 16
        %v792 = vrot.slane %v790, 7
        %v793 = vshll.u32 %v643, 16
        %v795 = vor.u32 %v792, %v793
        %v796 = vsel %vm661, %v788, %v795
        %v797 = vrot.slane %v792, 4
        %v799 = vshrl.u32 %v644, 16
        %v801 = vrot.slane %v799, 7
        %v802 = vshll.u32 %v644, 16
        %v804 = vor.u32 %v801, %v802
        %v805 = vrot.slane %v801, 4
        %v807 = vshrl.u32 %v645, 16
        %v809 = vrot.slane %v807, 7
        %v810 = vshll.u32 %v645, 16
        %v812 = vor.u32 %v809, %v810
        %v813 = vsel %vm661, %v805, %v812
        %v814 = vrot.slane %v809, 4
        %v816 = vshrl.u32 %v646, 16
        %v818 = vrot.slane %v816, 7
        %v819 = vshll.u32 %v646, 16
        %v821 = vor.u32 %v818, %v819
        %v822 = vrot.slane %v818, 4
        %v824 = vshrl.u32 %v647, 16
        %v826 = vrot.slane %v824, 7
        %v827 = vshll.u32 %v647, 16
        %v829 = vor.u32 %v826, %v827
        %v830 = vsel %vm661, %v822, %v829
        %v831 = vrot.slane %v826, 4
        %v833 = vshrl.u32 %v648, 16
        %v835 = vrot.slane %v833, 7
        %v836 = vshll.u32 %v648, 16
        %v838 = vor.u32 %v835, %v836
        %v839 = vrot.slane %v835, 4
        %v841 = vshrl.u32 %v649, 16
        %v843 = vrot.slane %v841, 7
        %v844 = vshll.u32 %v649, 16
        %v846 = vor.u32 %v843, %v844
        %v847 = vsel %vm661, %v839, %v846
        %v848 = vrot.slane %v843, 4
        %v850 = vshrl.u32 %v650, 16
        %v852 = vrot.slane %v850, 7
        %v853 = vshll.u32 %v650, 16
        %v855 = vor.u32 %v852, %v853
        %v856 = vrot.slane %v852, 4
        %v858 = vshrl.u32 %v651, 16
        %v860 = vrot.slane %v858, 7
        %v861 = vshll.u32 %v651, 16
        %v863 = vor.u32 %v860, %v861
        %v864 = vsel %vm661, %v856, %v863
        %v865 = vrot.slane %v860, 4
        %v867 = vshrl.u32 %v652, 16
        %v869 = vrot.slane %v867, 7
        %v870 = vshll.u32 %v652, 16
        %v872 = vor.u32 %v869, %v870
        %v873 = vrot.slane %v869, 4
        %v875 = vshrl.u32 %v653, 16
        %v877 = vrot.slane %v875, 7
        %v878 = vshll.u32 %v653, 16
        %v880 = vor.u32 %v877, %v878
        %v881 = vsel %vm661, %v873, %v880
        %v882 = vrot.slane %v877, 4
        %v884 = vshrl.u32 %v654, 16
        %v886 = vrot.slane %v884, 7
        %v887 = vshll.u32 %v654, 16
        %v889 = vor.u32 %v886, %v887
        %v890 = vrot.slane %v886, 4
        %v892 = vshrl.u32 %v655, 16
        %v894 = vrot.slane %v892, 7
        %v895 = vshll.u32 %v655, 16
        %v897 = vor.u32 %v894, %v895
        %v898 = vsel %vm661, %v890, %v897
        %v899 = vrot.slane %v894, 4
        %v901 = vshrl.u32 %v656, 16
        %v903 = vrot.slane %v901, 7
        %v904 = vshll.u32 %v656, 16
        %v906 = vor.u32 %v903, %v904
        %v907 = vrot.slane %v903, 4
        %v909 = vshrl.u32 %v657, 16
        %v911 = vrot.slane %v909, 7
        %v912 = vshll.u32 %v657, 16
        %v914 = vor.u32 %v911, %v912
        %v915 = vsel %vm661, %v907, %v914
        %v916 = vrot.slane %v911, 4
        %v918 = vshrl.u32 %v658, 16
        %v920 = vrot.slane %v918, 7
        %v921 = vshll.u32 %v658, 16
        %v923 = vor.u32 %v920, %v921
        %v924 = vrot.slane %v920, 4
        %v926 = vshrl.u32 %v659, 16
        %v928 = vrot.slane %v926, 7
        %v929 = vshll.u32 %v659, 16
        %v931 = vor.u32 %v928, %v929
        %v932 = vsel %vm661, %v924, %v931
        %v933 = vrot.slane %v928, 4
        %vm982 = vcmask 1043456
        %vm983 = vmand %vm982, %vm482
        %v984 = vld [vmem:[%s430] sm:$0xf]
        %v985 = vsel %vm983, %v668, %v984
        %986 = vst [vmem:[%s430] sm:$0xf] %v985
        %987 = vst [vmem:[%s430 + $0x4] sm:$0xf] %v677
        %v988 = vld [vmem:[%s430 + $0x8] sm:$0x1]
        %v989 = vsel %vm433, %v678, %v988
        %990 = vst [vmem:[%s430 + $0x8] sm:$0x1] %v989
        %v991 = vld [vmem:[%s430 + $0xc] sm:$0xf]
        %v992 = vsel %vm983, %v685, %v991
        %993 = vst [vmem:[%s430 + $0xc] sm:$0xf] %v992
        %994 = vst [vmem:[%s430 + $0x10] sm:$0xf] %v694
        %v995 = vld [vmem:[%s430 + $0x14] sm:$0x1]
        %v996 = vsel %vm433, %v695, %v995
        %997 = vst [vmem:[%s430 + $0x14] sm:$0x1] %v996
        %v998 = vld [vmem:[%s430 + $0x18] sm:$0xf]
        %v999 = vsel %vm983, %v702, %v998
        %1000 = vst [vmem:[%s430 + $0x18] sm:$0xf] %v999
        %1001 = vst [vmem:[%s430 + $0x1c] sm:$0xf] %v711
        %v1002 = vld [vmem:[%s430 + $0x20] sm:$0x1]
        %v1003 = vsel %vm433, %v712, %v1002
        %1004 = vst [vmem:[%s430 + $0x20] sm:$0x1] %v1003
        %v1005 = vld [vmem:[%s430 + $0x24] sm:$0xf]
        %v1006 = vsel %vm983, %v719, %v1005
        %1007 = vst [vmem:[%s430 + $0x24] sm:$0xf] %v1006
        %1008 = vst [vmem:[%s430 + $0x28] sm:$0xf] %v728
        %v1009 = vld [vmem:[%s430 + $0x2c] sm:$0x1]
        %v1010 = vsel %vm433, %v729, %v1009
        %1011 = vst [vmem:[%s430 + $0x2c] sm:$0x1] %v1010
        %v1012 = vld [vmem:[%s430 + $0x30] sm:$0xf]
        %v1013 = vsel %vm983, %v736, %v1012
        %1014 = vst [vmem:[%s430 + $0x30] sm:$0xf] %v1013
        %1015 = vst [vmem:[%s430 + $0x34] sm:$0xf] %v745
        %v1016 = vld [vmem:[%s430 + $0x38] sm:$0x1]
        %v1017 = vsel %vm433, %v746, %v1016
        %1018 = vst [vmem:[%s430 + $0x38] sm:$0x1] %v1017
        %v1019 = vld [vmem:[%s430 + $0x3c] sm:$0xf]
        %v1020 = vsel %vm983, %v753, %v1019
        %1021 = vst [vmem:[%s430 + $0x3c] sm:$0xf] %v1020
        %1022 = vst [vmem:[%s430 + $0x40] sm:$0xf] %v762
        %v1023 = vld [vmem:[%s430 + $0x44] sm:$0x1]
        %v1024 = vsel %vm433, %v763, %v1023
        %1025 = vst [vmem:[%s430 + $0x44] sm:$0x1] %v1024
        %v1026 = vld [vmem:[%s430 + $0x48] sm:$0xf]
        %v1027 = vsel %vm983, %v770, %v1026
        %1028 = vst [vmem:[%s430 + $0x48] sm:$0xf] %v1027
        %1029 = vst [vmem:[%s430 + $0x4c] sm:$0xf] %v779
        %v1030 = vld [vmem:[%s430 + $0x50] sm:$0x1]
        %v1031 = vsel %vm433, %v780, %v1030
        %1032 = vst [vmem:[%s430 + $0x50] sm:$0x1] %v1031
        %v1033 = vld [vmem:[%s430 + $0x54] sm:$0xf]
        %v1034 = vsel %vm983, %v787, %v1033
        %1035 = vst [vmem:[%s430 + $0x54] sm:$0xf] %v1034
        %1036 = vst [vmem:[%s430 + $0x58] sm:$0xf] %v796
        %v1037 = vld [vmem:[%s430 + $0x5c] sm:$0x1]
        %v1038 = vsel %vm433, %v797, %v1037
        %1039 = vst [vmem:[%s430 + $0x5c] sm:$0x1] %v1038
        %v1040 = vld [vmem:[%s430 + $0x60] sm:$0xf]
        %v1041 = vsel %vm983, %v804, %v1040
        %1042 = vst [vmem:[%s430 + $0x60] sm:$0xf] %v1041
        %1043 = vst [vmem:[%s430 + $0x64] sm:$0xf] %v813
        %v1044 = vld [vmem:[%s430 + $0x68] sm:$0x1]
        %v1045 = vsel %vm433, %v814, %v1044
        %1046 = vst [vmem:[%s430 + $0x68] sm:$0x1] %v1045
        %v1047 = vld [vmem:[%s430 + $0x6c] sm:$0xf]
        %v1048 = vsel %vm983, %v821, %v1047
        %1049 = vst [vmem:[%s430 + $0x6c] sm:$0xf] %v1048
        %1050 = vst [vmem:[%s430 + $0x70] sm:$0xf] %v830
        %v1051 = vld [vmem:[%s430 + $0x74] sm:$0x1]
        %v1052 = vsel %vm433, %v831, %v1051
        %1053 = vst [vmem:[%s430 + $0x74] sm:$0x1] %v1052
        %v1054 = vld [vmem:[%s430 + $0x78] sm:$0xf]
        %v1055 = vsel %vm983, %v838, %v1054
        %1056 = vst [vmem:[%s430 + $0x78] sm:$0xf] %v1055
        %1057 = vst [vmem:[%s430 + $0x7c] sm:$0xf] %v847
        %v1058 = vld [vmem:[%s430 + $0x80] sm:$0x1]
        %v1059 = vsel %vm433, %v848, %v1058
        %1060 = vst [vmem:[%s430 + $0x80] sm:$0x1] %v1059
        %v1061 = vld [vmem:[%s430 + $0x84] sm:$0xf]
        %v1062 = vsel %vm983, %v855, %v1061
        %1063 = vst [vmem:[%s430 + $0x84] sm:$0xf] %v1062
        %1064 = vst [vmem:[%s430 + $0x88] sm:$0xf] %v864
        %v1065 = vld [vmem:[%s430 + $0x8c] sm:$0x1]
        %v1066 = vsel %vm433, %v865, %v1065
        %1067 = vst [vmem:[%s430 + $0x8c] sm:$0x1] %v1066
        %v1068 = vld [vmem:[%s430 + $0x90] sm:$0xf]
        %v1069 = vsel %vm983, %v872, %v1068
        %1070 = vst [vmem:[%s430 + $0x90] sm:$0xf] %v1069
        %1071 = vst [vmem:[%s430 + $0x94] sm:$0xf] %v881
        %v1072 = vld [vmem:[%s430 + $0x98] sm:$0x1]
        %v1073 = vsel %vm433, %v882, %v1072
        %1074 = vst [vmem:[%s430 + $0x98] sm:$0x1] %v1073
        %v1075 = vld [vmem:[%s430 + $0x9c] sm:$0xf]
        %v1076 = vsel %vm983, %v889, %v1075
        %1077 = vst [vmem:[%s430 + $0x9c] sm:$0xf] %v1076
        %1078 = vst [vmem:[%s430 + $0xa0] sm:$0xf] %v898
        %v1079 = vld [vmem:[%s430 + $0xa4] sm:$0x1]
        %v1080 = vsel %vm433, %v899, %v1079
        %1081 = vst [vmem:[%s430 + $0xa4] sm:$0x1] %v1080
        %v1082 = vld [vmem:[%s430 + $0xa8] sm:$0xf]
        %v1083 = vsel %vm983, %v906, %v1082
        %1084 = vst [vmem:[%s430 + $0xa8] sm:$0xf] %v1083
        %1085 = vst [vmem:[%s430 + $0xac] sm:$0xf] %v915
        %v1086 = vld [vmem:[%s430 + $0xb0] sm:$0x1]
        %v1087 = vsel %vm433, %v916, %v1086
        %1088 = vst [vmem:[%s430 + $0xb0] sm:$0x1] %v1087
        %v1089 = vld [vmem:[%s430 + $0xb4] sm:$0xf]
        %v1090 = vsel %vm983, %v923, %v1089
        %1091 = vst [vmem:[%s430 + $0xb4] sm:$0xf] %v1090
        %1092 = vst [vmem:[%s430 + $0xb8] sm:$0xf] %v932
        %v1093 = vld [vmem:[%s430 + $0xbc] sm:$0x1]
        %v1094 = vsel %vm433, %v933, %v1093
        %1095 = vst [vmem:[%s430 + $0xbc] sm:$0x1] %v1094
        %v1096 = vld [vmem:[#allocation9] sm:$0xff]
        %v1097 = vld [vmem:[#allocation9 + $0x8] sm:$0xff]
        %v1098 = vld [vmem:[#allocation9 + $0x10] sm:$0xff]
        %v1099 = vld [vmem:[#allocation9 + $0x18] sm:$0xff]
        %v1100 = vld [vmem:[#allocation9 + $0x20] sm:$0xff]
        %v1101 = vld [vmem:[#allocation9 + $0x28] sm:$0xff]
        %v1102 = vld [vmem:[#allocation9 + $0x30] sm:$0xff]
        %v1103 = vld [vmem:[#allocation9 + $0x38] sm:$0xff]
        %v1104 = vld [vmem:[#allocation9 + $0x40] sm:$0xff]
        %v1105 = vld [vmem:[#allocation9 + $0x48] sm:$0xff]
        %v1106 = vld [vmem:[#allocation9 + $0x50] sm:$0xff]
        %v1107 = vld [vmem:[#allocation9 + $0x58] sm:$0xff]
        %v1108 = vld [vmem:[#allocation9 + $0x60] sm:$0xff]
        %v1109 = vld [vmem:[#allocation9 + $0x68] sm:$0xff]
        %v1110 = vld [vmem:[#allocation9 + $0x70] sm:$0xff]
        %v1111 = vld [vmem:[#allocation9 + $0x78] sm:$0xff]
        %v1112 = vld [vmem:[#allocation2] sm:$0xf]
        %v1113 = vld [vmem:[#allocation2 + $0x4] sm:$0xf]
        %v1114 = vld [vmem:[#allocation2 + $0x8] sm:$0x1]
        %v1115 = vld [vmem:[#allocation2 + $0xc] sm:$0xf]
        %v1116 = vld [vmem:[#allocation2 + $0x10] sm:$0xf]
        %v1117 = vld [vmem:[#allocation2 + $0x14] sm:$0x1]
        %v1118 = vld [vmem:[#allocation2 + $0x18] sm:$0xf]
        %v1119 = vld [vmem:[#allocation2 + $0x1c] sm:$0xf]
        %v1120 = vld [vmem:[#allocation2 + $0x20] sm:$0x1]
        %v1121 = vld [vmem:[#allocation2 + $0x24] sm:$0xf]
        %v1122 = vld [vmem:[#allocation2 + $0x28] sm:$0xf]
        %v1123 = vld [vmem:[#allocation2 + $0x2c] sm:$0x1]
        %v1124 = vld [vmem:[#allocation2 + $0x30] sm:$0xf]
        %v1125 = vld [vmem:[#allocation2 + $0x34] sm:$0xf]
        %v1126 = vld [vmem:[#allocation2 + $0x38] sm:$0x1]
        %v1127 = vld [vmem:[#allocation2 + $0x3c] sm:$0xf]
        %v1128 = vld [vmem:[#allocation2 + $0x40] sm:$0xf]
        %v1129 = vld [vmem:[#allocation2 + $0x44] sm:$0x1]
        %v1130 = vld [vmem:[#allocation2 + $0x48] sm:$0xf]
        %v1131 = vld [vmem:[#allocation2 + $0x4c] sm:$0xf]
        %v1132 = vld [vmem:[#allocation2 + $0x50] sm:$0x1]
        %v1133 = vld [vmem:[#allocation2 + $0x54] sm:$0xf]
        %v1134 = vld [vmem:[#allocation2 + $0x58] sm:$0xf]
        %v1135 = vld [vmem:[#allocation2 + $0x5c] sm:$0x1]
        %v1136 = vld [vmem:[#allocation2 + $0x60] sm:$0xf]
        %v1137 = vld [vmem:[#allocation2 + $0x64] sm:$0xf]
        %v1138 = vld [vmem:[#allocation2 + $0x68] sm:$0x1]
        %v1139 = vld [vmem:[#allocation2 + $0x6c] sm:$0xf]
        %v1140 = vld [vmem:[#allocation2 + $0x70] sm:$0xf]
        %v1141 = vld [vmem:[#allocation2 + $0x74] sm:$0x1]
        %v1142 = vld [vmem:[#allocation2 + $0x78] sm:$0xf]
        %v1143 = vld [vmem:[#allocation2 + $0x7c] sm:$0xf]
        %v1144 = vld [vmem:[#allocation2 + $0x80] sm:$0x1]
        %v1145 = vld [vmem:[#allocation2 + $0x84] sm:$0xf]
        %v1146 = vld [vmem:[#allocation2 + $0x88] sm:$0xf]
        %v1147 = vld [vmem:[#allocation2 + $0x8c] sm:$0x1]
        %v1148 = vld [vmem:[#allocation2 + $0x90] sm:$0xf]
        %v1149 = vld [vmem:[#allocation2 + $0x94] sm:$0xf]
        %v1150 = vld [vmem:[#allocation2 + $0x98] sm:$0x1]
        %v1151 = vld [vmem:[#allocation2 + $0x9c] sm:$0xf]
        %v1152 = vld [vmem:[#allocation2 + $0xa0] sm:$0xf]
        %v1153 = vld [vmem:[#allocation2 + $0xa4] sm:$0x1]
        %v1154 = vld [vmem:[#allocation2 + $0xa8] sm:$0xf]
        %v1155 = vld [vmem:[#allocation2 + $0xac] sm:$0xf]
        %v1156 = vld [vmem:[#allocation2 + $0xb0] sm:$0x1]
        %v1157 = vld [vmem:[#allocation2 + $0xb4] sm:$0xf]
        %v1158 = vld [vmem:[#allocation2 + $0xb8] sm:$0xf]
        %v1159 = vld [vmem:[#allocation2 + $0xbc] sm:$0x1]
        %v1160 = vld [vmem:[#allocation2 + $0xc0] sm:$0xf]
        %v1161 = vld [vmem:[#allocation2 + $0xc4] sm:$0xf]
        %v1162 = vld [vmem:[#allocation2 + $0xc8] sm:$0x1]
        %v1163 = vld [vmem:[#allocation2 + $0xcc] sm:$0xf]
        %v1164 = vld [vmem:[#allocation2 + $0xd0] sm:$0xf]
        %v1165 = vld [vmem:[#allocation2 + $0xd4] sm:$0x1]
        %vm1166 = vsmask.f32 3328
        %vm1167 = vsmask.f32 7440
        %vm1168 = vmor %vm1166, %vm1167
        %v1170 = vshrl.u32 %v1112, 16
        %v1172 = vrot.slane %v1170, 4
        %v1173 = vshll.u32 %v1112, 16
        %v1175 = vrot.slane %v1173, 5
        %v1176 = vor.u32 %v1172, %v1175
        %v1177 = vrot.slane %v1176, 4
        %v1179 = vshll.u32 %v1113, 16
        %v1181 = vrot.slane %v1179, 5
        %v1182 = vsel %vm1168, %v1177, %v1181
        %v1183 = vshrl.u32 %v1113, 16
        %v1185 = vrot.slane %v1183, 4
        %v1186 = vor.u32 %v1185, %v1181
        %v1187 = vrot.slane %v1186, 4
        %v1189 = vshll.u32 %v1114, 16
        %v1191 = vrot.slane %v1189, 5
        %v1192 = vsel %vm1168, %v1187, %v1191
        %v1194 = vshrl.u32 %v1115, 16
        %v1196 = vrot.slane %v1194, 4
        %v1197 = vshll.u32 %v1115, 16
        %v1199 = vrot.slane %v1197, 5
        %v1200 = vor.u32 %v1196, %v1199
        %v1201 = vrot.slane %v1200, 4
        %v1203 = vshll.u32 %v1116, 16
        %v1205 = vrot.slane %v1203, 5
        %v1206 = vsel %vm1168, %v1201, %v1205
        %v1207 = vshrl.u32 %v1116, 16
        %v1209 = vrot.slane %v1207, 4
        %v1210 = vor.u32 %v1209, %v1205
        %v1211 = vrot.slane %v1210, 4
        %v1213 = vshll.u32 %v1117, 16
        %v1215 = vrot.slane %v1213, 5
        %v1216 = vsel %vm1168, %v1211, %v1215
        %v1218 = vshrl.u32 %v1118, 16
        %v1220 = vrot.slane %v1218, 4
        %v1221 = vshll.u32 %v1118, 16
        %v1223 = vrot.slane %v1221, 5
        %v1224 = vor.u32 %v1220, %v1223
        %v1225 = vrot.slane %v1224, 4
        %v1227 = vshll.u32 %v1119, 16
        %v1229 = vrot.slane %v1227, 5
        %v1230 = vsel %vm1168, %v1225, %v1229
        %v1231 = vshrl.u32 %v1119, 16
        %v1233 = vrot.slane %v1231, 4
        %v1234 = vor.u32 %v1233, %v1229
        %v1235 = vrot.slane %v1234, 4
        %v1237 = vshll.u32 %v1120, 16
        %v1239 = vrot.slane %v1237, 5
        %v1240 = vsel %vm1168, %v1235, %v1239
        %v1242 = vshrl.u32 %v1121, 16
        %v1244 = vrot.slane %v1242, 4
        %v1245 = vshll.u32 %v1121, 16
        %v1247 = vrot.slane %v1245, 5
        %v1248 = vor.u32 %v1244, %v1247
        %v1249 = vrot.slane %v1248, 4
        %v1251 = vshll.u32 %v1122, 16
        %v1253 = vrot.slane %v1251, 5
        %v1254 = vsel %vm1168, %v1249, %v1253
        %v1255 = vshrl.u32 %v1122, 16
        %v1257 = vrot.slane %v1255, 4
        %v1258 = vor.u32 %v1257, %v1253
        %v1259 = vrot.slane %v1258, 4
        %v1261 = vshll.u32 %v1123, 16
        %v1263 = vrot.slane %v1261, 5
        %v1264 = vsel %vm1168, %v1259, %v1263
        %v1266 = vshrl.u32 %v1124, 16
        %v1268 = vrot.slane %v1266, 4
        %v1269 = vshll.u32 %v1124, 16
        %v1271 = vrot.slane %v1269, 5
        %v1272 = vor.u32 %v1268, %v1271
        %v1273 = vrot.slane %v1272, 4
        %v1275 = vshll.u32 %v1125, 16
        %v1277 = vrot.slane %v1275, 5
        %v1278 = vsel %vm1168, %v1273, %v1277
        %v1279 = vshrl.u32 %v1125, 16
        %v1281 = vrot.slane %v1279, 4
        %v1282 = vor.u32 %v1281, %v1277
        %v1283 = vrot.slane %v1282, 4
        %v1285 = vshll.u32 %v1126, 16
        %v1287 = vrot.slane %v1285, 5
        %v1288 = vsel %vm1168, %v1283, %v1287
        %v1290 = vshrl.u32 %v1127, 16
        %v1292 = vrot.slane %v1290, 4
        %v1293 = vshll.u32 %v1127, 16
        %v1295 = vrot.slane %v1293, 5
        %v1296 = vor.u32 %v1292, %v1295
        %v1297 = vrot.slane %v1296, 4
        %v1299 = vshll.u32 %v1128, 16
        %v1301 = vrot.slane %v1299, 5
        %v1302 = vsel %vm1168, %v1297, %v1301
        %v1303 = vshrl.u32 %v1128, 16
        %v1305 = vrot.slane %v1303, 4
        %v1306 = vor.u32 %v1305, %v1301
        %v1307 = vrot.slane %v1306, 4
        %v1309 = vshll.u32 %v1129, 16
        %v1311 = vrot.slane %v1309, 5
        %v1312 = vsel %vm1168, %v1307, %v1311
        %v1314 = vshrl.u32 %v1130, 16
        %v1316 = vrot.slane %v1314, 4
        %v1317 = vshll.u32 %v1130, 16
        %v1319 = vrot.slane %v1317, 5
        %v1320 = vor.u32 %v1316, %v1319
        %v1321 = vrot.slane %v1320, 4
        %v1323 = vshll.u32 %v1131, 16
        %v1325 = vrot.slane %v1323, 5
        %v1326 = vsel %vm1168, %v1321, %v1325
        %v1327 = vshrl.u32 %v1131, 16
        %v1329 = vrot.slane %v1327, 4
        %v1330 = vor.u32 %v1329, %v1325
        %v1331 = vrot.slane %v1330, 4
        %v1333 = vshll.u32 %v1132, 16
        %v1335 = vrot.slane %v1333, 5
        %v1336 = vsel %vm1168, %v1331, %v1335
        %v1338 = vshrl.u32 %v1133, 16
        %v1340 = vrot.slane %v1338, 4
        %v1341 = vshll.u32 %v1133, 16
        %v1343 = vrot.slane %v1341, 5
        %v1344 = vor.u32 %v1340, %v1343
        %v1345 = vrot.slane %v1344, 4
        %v1347 = vshll.u32 %v1134, 16
        %v1349 = vrot.slane %v1347, 5
        %v1350 = vsel %vm1168, %v1345, %v1349
        %v1351 = vshrl.u32 %v1134, 16
        %v1353 = vrot.slane %v1351, 4
        %v1354 = vor.u32 %v1353, %v1349
        %v1355 = vrot.slane %v1354, 4
        %v1357 = vshll.u32 %v1135, 16
        %v1359 = vrot.slane %v1357, 5
        %v1360 = vsel %vm1168, %v1355, %v1359
        %v1362 = vshrl.u32 %v1136, 16
        %v1364 = vrot.slane %v1362, 4
        %v1365 = vshll.u32 %v1136, 16
        %v1367 = vrot.slane %v1365, 5
        %v1368 = vor.u32 %v1364, %v1367
        %v1369 = vrot.slane %v1368, 4
        %v1371 = vshll.u32 %v1137, 16
        %v1373 = vrot.slane %v1371, 5
        %v1374 = vsel %vm1168, %v1369, %v1373
        %v1375 = vshrl.u32 %v1137, 16
        %v1377 = vrot.slane %v1375, 4
        %v1378 = vor.u32 %v1377, %v1373
        %v1379 = vrot.slane %v1378, 4
        %v1381 = vshll.u32 %v1138, 16
        %v1383 = vrot.slane %v1381, 5
        %v1384 = vsel %vm1168, %v1379, %v1383
        %v1386 = vshrl.u32 %v1139, 16
        %v1388 = vrot.slane %v1386, 4
        %v1389 = vshll.u32 %v1139, 16
        %v1391 = vrot.slane %v1389, 5
        %v1392 = vor.u32 %v1388, %v1391
        %v1393 = vrot.slane %v1392, 4
        %v1395 = vshll.u32 %v1140, 16
        %v1397 = vrot.slane %v1395, 5
        %v1398 = vsel %vm1168, %v1393, %v1397
        %v1399 = vshrl.u32 %v1140, 16
        %v1401 = vrot.slane %v1399, 4
        %v1402 = vor.u32 %v1401, %v1397
        %v1403 = vrot.slane %v1402, 4
        %v1405 = vshll.u32 %v1141, 16
        %v1407 = vrot.slane %v1405, 5
        %v1408 = vsel %vm1168, %v1403, %v1407
        %v1410 = vshrl.u32 %v1142, 16
        %v1412 = vrot.slane %v1410, 4
        %v1413 = vshll.u32 %v1142, 16
        %v1415 = vrot.slane %v1413, 5
        %v1416 = vor.u32 %v1412, %v1415
        %v1417 = vrot.slane %v1416, 4
        %v1419 = vshll.u32 %v1143, 16
        %v1421 = vrot.slane %v1419, 5
        %v1422 = vsel %vm1168, %v1417, %v1421
        %v1423 = vshrl.u32 %v1143, 16
        %v1425 = vrot.slane %v1423, 4
        %v1426 = vor.u32 %v1425, %v1421
        %v1427 = vrot.slane %v1426, 4
        %v1429 = vshll.u32 %v1144, 16
        %v1431 = vrot.slane %v1429, 5
        %v1432 = vsel %vm1168, %v1427, %v1431
        %v1434 = vshrl.u32 %v1145, 16
        %v1436 = vrot.slane %v1434, 4
        %v1437 = vshll.u32 %v1145, 16
        %v1439 = vrot.slane %v1437, 5
        %v1440 = vor.u32 %v1436, %v1439
        %v1441 = vrot.slane %v1440, 4
        %v1443 = vshll.u32 %v1146, 16
        %v1445 = vrot.slane %v1443, 5
        %v1446 = vsel %vm1168, %v1441, %v1445
        %v1447 = vshrl.u32 %v1146, 16
        %v1449 = vrot.slane %v1447, 4
        %v1450 = vor.u32 %v1449, %v1445
        %v1451 = vrot.slane %v1450, 4
        %v1453 = vshll.u32 %v1147, 16
        %v1455 = vrot.slane %v1453, 5
        %v1456 = vsel %vm1168, %v1451, %v1455
        %v1458 = vshrl.u32 %v1148, 16
        %v1460 = vrot.slane %v1458, 4
        %v1461 = vshll.u32 %v1148, 16
        %v1463 = vrot.slane %v1461, 5
        %v1464 = vor.u32 %v1460, %v1463
        %v1465 = vrot.slane %v1464, 4
        %v1467 = vshll.u32 %v1149, 16
        %v1469 = vrot.slane %v1467, 5
        %v1470 = vsel %vm1168, %v1465, %v1469
        %v1471 = vshrl.u32 %v1149, 16
        %v1473 = vrot.slane %v1471, 4
        %v1474 = vor.u32 %v1473, %v1469
        %v1475 = vrot.slane %v1474, 4
        %v1477 = vshll.u32 %v1150, 16
        %v1479 = vrot.slane %v1477, 5
        %v1480 = vsel %vm1168, %v1475, %v1479
        %v1482 = vshrl.u32 %v1151, 16
        %v1484 = vrot.slane %v1482, 4
        %v1485 = vshll.u32 %v1151, 16
        %v1487 = vrot.slane %v1485, 5
        %v1488 = vor.u32 %v1484, %v1487
        %v1489 = vrot.slane %v1488, 4
        %v1491 = vshll.u32 %v1152, 16
        %v1493 = vrot.slane %v1491, 5
        %v1494 = vsel %vm1168, %v1489, %v1493
        %v1495 = vshrl.u32 %v1152, 16
        %v1497 = vrot.slane %v1495, 4
        %v1498 = vor.u32 %v1497, %v1493
        %v1499 = vrot.slane %v1498, 4
        %v1501 = vshll.u32 %v1153, 16
        %v1503 = vrot.slane %v1501, 5
        %v1504 = vsel %vm1168, %v1499, %v1503
        %v1506 = vshrl.u32 %v1154, 16
        %v1508 = vrot.slane %v1506, 4
        %v1509 = vshll.u32 %v1154, 16
        %v1511 = vrot.slane %v1509, 5
        %v1512 = vor.u32 %v1508, %v1511
        %v1513 = vrot.slane %v1512, 4
        %v1515 = vshll.u32 %v1155, 16
        %v1517 = vrot.slane %v1515, 5
        %v1518 = vsel %vm1168, %v1513, %v1517
        %v1519 = vshrl.u32 %v1155, 16
        %v1521 = vrot.slane %v1519, 4
        %v1522 = vor.u32 %v1521, %v1517
        %v1523 = vrot.slane %v1522, 4
        %v1525 = vshll.u32 %v1156, 16
        %v1527 = vrot.slane %v1525, 5
        %v1528 = vsel %vm1168, %v1523, %v1527
        %v1530 = vshrl.u32 %v1157, 16
        %v1532 = vrot.slane %v1530, 4
        %v1533 = vshll.u32 %v1157, 16
        %v1535 = vrot.slane %v1533, 5
        %v1536 = vor.u32 %v1532, %v1535
        %v1537 = vrot.slane %v1536, 4
        %v1539 = vshll.u32 %v1158, 16
        %v1541 = vrot.slane %v1539, 5
        %v1542 = vsel %vm1168, %v1537, %v1541
        %v1543 = vshrl.u32 %v1158, 16
        %v1545 = vrot.slane %v1543, 4
        %v1546 = vor.u32 %v1545, %v1541
        %v1547 = vrot.slane %v1546, 4
        %v1549 = vshll.u32 %v1159, 16
        %v1551 = vrot.slane %v1549, 5
        %v1552 = vsel %vm1168, %v1547, %v1551
        %vm1601 = vcmask 1042432
        %vm1602 = vcmask 1046532
        %vm1603 = vmor %vm1601, %vm1602
        %v1604 = vrot.slane %v1112, 5
        %v1605 = vrot.slane %v1604, 4
        %v1606 = vrot.slane %v1113, 5
        %v1607 = vsel %vm1603, %v1605, %v1606
        %v1608 = vrot.slane %v1606, 4
        %v1609 = vrot.slane %v1114, 5
        %v1610 = vsel %vm1603, %v1608, %v1609
        %v1611 = vrot.slane %v1115, 5
        %v1612 = vrot.slane %v1611, 4
        %v1613 = vrot.slane %v1116, 5
        %v1614 = vsel %vm1603, %v1612, %v1613
        %v1615 = vrot.slane %v1613, 4
        %v1616 = vrot.slane %v1117, 5
        %v1617 = vsel %vm1603, %v1615, %v1616
        %v1618 = vrot.slane %v1118, 5
        %v1619 = vrot.slane %v1618, 4
        %v1620 = vrot.slane %v1119, 5
        %v1621 = vsel %vm1603, %v1619, %v1620
        %v1622 = vrot.slane %v1620, 4
        %v1623 = vrot.slane %v1120, 5
        %v1624 = vsel %vm1603, %v1622, %v1623
        %v1625 = vrot.slane %v1121, 5
        %v1626 = vrot.slane %v1625, 4
        %v1627 = vrot.slane %v1122, 5
        %v1628 = vsel %vm1603, %v1626, %v1627
        %v1629 = vrot.slane %v1627, 4
        %v1630 = vrot.slane %v1123, 5
        %v1631 = vsel %vm1603, %v1629, %v1630
        %v1632 = vrot.slane %v1124, 5
        %v1633 = vrot.slane %v1632, 4
        %v1634 = vrot.slane %v1125, 5
        %v1635 = vsel %vm1603, %v1633, %v1634
        %v1636 = vrot.slane %v1634, 4
        %v1637 = vrot.slane %v1126, 5
        %v1638 = vsel %vm1603, %v1636, %v1637
        %v1639 = vrot.slane %v1127, 5
        %v1640 = vrot.slane %v1639, 4
        %v1641 = vrot.slane %v1128, 5
        %v1642 = vsel %vm1603, %v1640, %v1641
        %v1643 = vrot.slane %v1641, 4
        %v1644 = vrot.slane %v1129, 5
        %v1645 = vsel %vm1603, %v1643, %v1644
        %v1646 = vrot.slane %v1130, 5
        %v1647 = vrot.slane %v1646, 4
        %v1648 = vrot.slane %v1131, 5
        %v1649 = vsel %vm1603, %v1647, %v1648
        %v1650 = vrot.slane %v1648, 4
        %v1651 = vrot.slane %v1132, 5
        %v1652 = vsel %vm1603, %v1650, %v1651
        %v1653 = vrot.slane %v1133, 5
        %v1654 = vrot.slane %v1653, 4
        %v1655 = vrot.slane %v1134, 5
        %v1656 = vsel %vm1603, %v1654, %v1655
        %v1657 = vrot.slane %v1655, 4
        %v1658 = vrot.slane %v1135, 5
        %v1659 = vsel %vm1603, %v1657, %v1658
        %v1660 = vrot.slane %v1136, 5
        %v1661 = vrot.slane %v1660, 4
        %v1662 = vrot.slane %v1137, 5
        %v1663 = vsel %vm1603, %v1661, %v1662
        %v1664 = vrot.slane %v1662, 4
        %v1665 = vrot.slane %v1138, 5
        %v1666 = vsel %vm1603, %v1664, %v1665
        %v1667 = vrot.slane %v1139, 5
        %v1668 = vrot.slane %v1667, 4
        %v1669 = vrot.slane %v1140, 5
        %v1670 = vsel %vm1603, %v1668, %v1669
        %v1671 = vrot.slane %v1669, 4
        %v1672 = vrot.slane %v1141, 5
        %v1673 = vsel %vm1603, %v1671, %v1672
        %v1674 = vrot.slane %v1142, 5
        %v1675 = vrot.slane %v1674, 4
        %v1676 = vrot.slane %v1143, 5
        %v1677 = vsel %vm1603, %v1675, %v1676
        %v1678 = vrot.slane %v1676, 4
        %v1679 = vrot.slane %v1144, 5
        %v1680 = vsel %vm1603, %v1678, %v1679
        %v1681 = vrot.slane %v1145, 5
        %v1682 = vrot.slane %v1681, 4
        %v1683 = vrot.slane %v1146, 5
        %v1684 = vsel %vm1603, %v1682, %v1683
        %v1685 = vrot.slane %v1683, 4
        %v1686 = vrot.slane %v1147, 5
        %v1687 = vsel %vm1603, %v1685, %v1686
        %v1688 = vrot.slane %v1148, 5
        %v1689 = vrot.slane %v1688, 4
        %v1690 = vrot.slane %v1149, 5
        %v1691 = vsel %vm1603, %v1689, %v1690
        %v1692 = vrot.slane %v1690, 4
        %v1693 = vrot.slane %v1150, 5
        %v1694 = vsel %vm1603, %v1692, %v1693
        %v1695 = vrot.slane %v1151, 5
        %v1696 = vrot.slane %v1695, 4
        %v1697 = vrot.slane %v1152, 5
        %v1698 = vsel %vm1603, %v1696, %v1697
        %v1699 = vrot.slane %v1697, 4
        %v1700 = vrot.slane %v1153, 5
        %v1701 = vsel %vm1603, %v1699, %v1700
        %v1702 = vrot.slane %v1154, 5
        %v1703 = vrot.slane %v1702, 4
        %v1704 = vrot.slane %v1155, 5
        %v1705 = vsel %vm1603, %v1703, %v1704
        %v1706 = vrot.slane %v1704, 4
        %v1707 = vrot.slane %v1156, 5
        %v1708 = vsel %vm1603, %v1706, %v1707
        %v1709 = vrot.slane %v1157, 5
        %v1710 = vrot.slane %v1709, 4
        %v1711 = vrot.slane %v1158, 5
        %v1712 = vsel %vm1603, %v1710, %v1711
        %v1713 = vrot.slane %v1711, 4
        %v1714 = vrot.slane %v1159, 5
        %v1715 = vsel %vm1603, %v1713, %v1714
        %v1717 = vshrl.u32 %v1160, 16
        %v1719 = vrot.slane %v1717, 4
        %v1720 = vshll.u32 %v1160, 16
        %v1722 = vrot.slane %v1720, 5
        %v1723 = vor.u32 %v1719, %v1722
        %v1724 = vrot.slane %v1723, 4
        %v1726 = vshll.u32 %v1161, 16
        %v1728 = vrot.slane %v1726, 5
        %v1729 = vsel %vm1168, %v1724, %v1728
        %v1730 = vshrl.u32 %v1161, 16
        %v1732 = vrot.slane %v1730, 4
        %v1733 = vor.u32 %v1732, %v1728
        %v1734 = vrot.slane %v1733, 4
        %v1736 = vshll.u32 %v1162, 16
        %v1738 = vrot.slane %v1736, 5
        %v1739 = vsel %vm1168, %v1734, %v1738
        %v1743 = vrot.slane %v1160, 5
        %v1744 = vrot.slane %v1743, 4
        %v1745 = vrot.slane %v1161, 5
        %v1746 = vsel %vm1603, %v1744, %v1745
        %v1747 = vrot.slane %v1745, 4
        %v1748 = vrot.slane %v1162, 5
        %v1749 = vsel %vm1603, %v1747, %v1748
        %v1751 = vshrl.u32 %v1163, 16
        %v1753 = vrot.slane %v1751, 4
        %v1754 = vshll.u32 %v1163, 16
        %v1756 = vrot.slane %v1754, 5
        %v1757 = vor.u32 %v1753, %v1756
        %v1758 = vrot.slane %v1757, 4
        %v1760 = vshll.u32 %v1164, 16
        %v1762 = vrot.slane %v1760, 5
        %v1763 = vsel %vm1168, %v1758, %v1762
        %v1764 = vshrl.u32 %v1164, 16
        %v1766 = vrot.slane %v1764, 4
        %v1767 = vor.u32 %v1766, %v1762
        %v1768 = vrot.slane %v1767, 4
        %v1770 = vshll.u32 %v1165, 16
        %v1772 = vrot.slane %v1770, 5
        %v1773 = vsel %vm1168, %v1768, %v1772
        %v1777 = vrot.slane %v1163, 5
        %v1778 = vrot.slane %v1777, 4
        %v1779 = vrot.slane %v1164, 5
        %v1780 = vsel %vm1603, %v1778, %v1779
        %v1781 = vrot.slane %v1779, 4
        %v1782 = vrot.slane %v1165, 5
        %v1783 = vsel %vm1603, %v1781, %v1782
        %v1784 = vunpack.c.l.b16 %v1112
        %v1785 = vunpack.c.l.b16 %v1113
        %v1786 = vunpack.c.l.b16 %v1115
        %v1787 = vunpack.c.l.b16 %v1116
        %v1788 = vunpack.c.l.b16 %v1118
        %v1789 = vunpack.c.l.b16 %v1119
        %v1790 = vunpack.c.l.b16 %v1121
        %v1791 = vunpack.c.l.b16 %v1122
        %v1792 = vunpack.c.l.b16 %v1124
        %v1793 = vunpack.c.l.b16 %v1125
        %v1794 = vunpack.c.l.b16 %v1127
        %v1795 = vunpack.c.l.b16 %v1128
        %v1796 = vunpack.c.l.b16 %v1130
        %v1797 = vunpack.c.l.b16 %v1131
        %v1798 = vunpack.c.l.b16 %v1133
        %v1799 = vunpack.c.l.b16 %v1134
        %v1800 = vunpack.c.l.b16 %v1136
        %v1801 = vunpack.c.l.b16 %v1137
        %v1802 = vunpack.c.l.b16 %v1139
        %v1803 = vunpack.c.l.b16 %v1140
        %v1804 = vunpack.c.l.b16 %v1142
        %v1805 = vunpack.c.l.b16 %v1143
        %v1806 = vunpack.c.l.b16 %v1145
        %v1807 = vunpack.c.l.b16 %v1146
        %v1808 = vunpack.c.l.b16 %v1148
        %v1809 = vunpack.c.l.b16 %v1149
        %v1810 = vunpack.c.l.b16 %v1151
        %v1811 = vunpack.c.l.b16 %v1152
        %v1812 = vunpack.c.l.b16 %v1154
        %v1813 = vunpack.c.l.b16 %v1155
        %v1814 = vunpack.c.l.b16 %v1157
        %v1815 = vunpack.c.l.b16 %v1158
        %v1816 = vpack.c.b16 %v1785, %v1784
        %v1817 = vpack.c.b16 %v1787, %v1786
        %v1818 = vpack.c.b16 %v1789, %v1788
        %v1819 = vpack.c.b16 %v1791, %v1790
        %v1820 = vpack.c.b16 %v1793, %v1792
        %v1821 = vpack.c.b16 %v1795, %v1794
        %v1822 = vpack.c.b16 %v1797, %v1796
        %v1823 = vpack.c.b16 %v1799, %v1798
        %v1824 = vpack.c.b16 %v1801, %v1800
        %v1825 = vpack.c.b16 %v1803, %v1802
        %v1826 = vpack.c.b16 %v1805, %v1804
        %v1827 = vpack.c.b16 %v1807, %v1806
        %v1828 = vpack.c.b16 %v1809, %v1808
        %v1829 = vpack.c.b16 %v1811, %v1810
        %v1830 = vpack.c.b16 %v1813, %v1812
        %v1831 = vpack.c.b16 %v1815, %v1814
        %v1848 = vunpack.c.l.b16 %v1182
        %v1849 = vunpack.c.l.b16 %v1192
        %v1850 = vunpack.c.l.b16 %v1206
        %v1851 = vunpack.c.l.b16 %v1216
        %v1852 = vunpack.c.l.b16 %v1230
        %v1853 = vunpack.c.l.b16 %v1240
        %v1854 = vunpack.c.l.b16 %v1254
        %v1855 = vunpack.c.l.b16 %v1264
        %v1856 = vunpack.c.l.b16 %v1278
        %v1857 = vunpack.c.l.b16 %v1288
        %v1858 = vunpack.c.l.b16 %v1302
        %v1859 = vunpack.c.l.b16 %v1312
        %v1860 = vunpack.c.l.b16 %v1326
        %v1861 = vunpack.c.l.b16 %v1336
        %v1862 = vunpack.c.l.b16 %v1350
        %v1863 = vunpack.c.l.b16 %v1360
        %v1864 = vunpack.c.l.b16 %v1374
        %v1865 = vunpack.c.l.b16 %v1384
        %v1866 = vunpack.c.l.b16 %v1398
        %v1867 = vunpack.c.l.b16 %v1408
        %v1868 = vunpack.c.l.b16 %v1422
        %v1869 = vunpack.c.l.b16 %v1432
        %v1870 = vunpack.c.l.b16 %v1446
        %v1871 = vunpack.c.l.b16 %v1456
        %v1872 = vunpack.c.l.b16 %v1470
        %v1873 = vunpack.c.l.b16 %v1480
        %v1874 = vunpack.c.l.b16 %v1494
        %v1875 = vunpack.c.l.b16 %v1504
        %v1876 = vunpack.c.l.b16 %v1518
        %v1877 = vunpack.c.l.b16 %v1528
        %v1878 = vunpack.c.l.b16 %v1542
        %v1879 = vunpack.c.l.b16 %v1552
        %v1880 = vpack.c.b16 %v1849, %v1848
        %v1881 = vpack.c.b16 %v1851, %v1850
        %v1882 = vpack.c.b16 %v1853, %v1852
        %v1883 = vpack.c.b16 %v1855, %v1854
        %v1884 = vpack.c.b16 %v1857, %v1856
        %v1885 = vpack.c.b16 %v1859, %v1858
        %v1886 = vpack.c.b16 %v1861, %v1860
        %v1887 = vpack.c.b16 %v1863, %v1862
        %v1888 = vpack.c.b16 %v1865, %v1864
        %v1889 = vpack.c.b16 %v1867, %v1866
        %v1890 = vpack.c.b16 %v1869, %v1868
        %v1891 = vpack.c.b16 %v1871, %v1870
        %v1892 = vpack.c.b16 %v1873, %v1872
        %v1893 = vpack.c.b16 %v1875, %v1874
        %v1894 = vpack.c.b16 %v1877, %v1876
        %v1895 = vpack.c.b16 %v1879, %v1878
        %v1912 = vunpack.c.l.b16 %v1607
        %v1913 = vunpack.c.l.b16 %v1610
        %v1914 = vunpack.c.l.b16 %v1614
        %v1915 = vunpack.c.l.b16 %v1617
        %v1916 = vunpack.c.l.b16 %v1621
        %v1917 = vunpack.c.l.b16 %v1624
        %v1918 = vunpack.c.l.b16 %v1628
        %v1919 = vunpack.c.l.b16 %v1631
        %v1920 = vunpack.c.l.b16 %v1635
        %v1921 = vunpack.c.l.b16 %v1638
        %v1922 = vunpack.c.l.b16 %v1642
        %v1923 = vunpack.c.l.b16 %v1645
        %v1924 = vunpack.c.l.b16 %v1649
        %v1925 = vunpack.c.l.b16 %v1652
        %v1926 = vunpack.c.l.b16 %v1656
        %v1927 = vunpack.c.l.b16 %v1659
        %v1928 = vunpack.c.l.b16 %v1663
        %v1929 = vunpack.c.l.b16 %v1666
        %v1930 = vunpack.c.l.b16 %v1670
        %v1931 = vunpack.c.l.b16 %v1673
        %v1932 = vunpack.c.l.b16 %v1677
        %v1933 = vunpack.c.l.b16 %v1680
        %v1934 = vunpack.c.l.b16 %v1684
        %v1935 = vunpack.c.l.b16 %v1687
        %v1936 = vunpack.c.l.b16 %v1691
        %v1937 = vunpack.c.l.b16 %v1694
        %v1938 = vunpack.c.l.b16 %v1698
        %v1939 = vunpack.c.l.b16 %v1701
        %v1940 = vunpack.c.l.b16 %v1705
        %v1941 = vunpack.c.l.b16 %v1708
        %v1942 = vunpack.c.l.b16 %v1712
        %v1943 = vunpack.c.l.b16 %v1715
        %v1944 = vpack.c.b16 %v1913, %v1912
        %v1945 = vpack.c.b16 %v1915, %v1914
        %v1946 = vpack.c.b16 %v1917, %v1916
        %v1947 = vpack.c.b16 %v1919, %v1918
        %v1948 = vpack.c.b16 %v1921, %v1920
        %v1949 = vpack.c.b16 %v1923, %v1922
        %v1950 = vpack.c.b16 %v1925, %v1924
        %v1951 = vpack.c.b16 %v1927, %v1926
        %v1952 = vpack.c.b16 %v1929, %v1928
        %v1953 = vpack.c.b16 %v1931, %v1930
        %v1954 = vpack.c.b16 %v1933, %v1932
        %v1955 = vpack.c.b16 %v1935, %v1934
        %v1956 = vpack.c.b16 %v1937, %v1936
        %v1957 = vpack.c.b16 %v1939, %v1938
        %v1958 = vpack.c.b16 %v1941, %v1940
        %v1959 = vpack.c.b16 %v1943, %v1942
        %v1976 = vunpack.c.l.b16 %v1160
        %v1977 = vunpack.c.l.b16 %v1161
        %v1978 = vpack.c.b16 %v1977, %v1976
        %v1980 = vunpack.c.l.b16 %v1729
        %v1981 = vunpack.c.l.b16 %v1739
        %v1982 = vpack.c.b16 %v1981, %v1980
        %v1984 = vunpack.c.l.b16 %v1746
        %v1985 = vunpack.c.l.b16 %v1749
        %v1986 = vpack.c.b16 %v1985, %v1984
        %v1988 = vunpack.c.l.b16 %v1163
        %v1989 = vunpack.c.l.b16 %v1164
        %v1990 = vpack.c.b16 %v1989, %v1988
        %v1992 = vunpack.c.l.b16 %v1763
        %v1993 = vunpack.c.l.b16 %v1773
        %v1994 = vpack.c.b16 %v1993, %v1992
        %v1996 = vunpack.c.l.b16 %v1780
        %v1997 = vunpack.c.l.b16 %v1783
        %v1998 = vpack.c.b16 %v1997, %v1996
        %v2000 = vld [vmem:[#allocation6] sm:$0xf]
        %v2001 = vld [vmem:[#allocation6 + $0x4] sm:$0xf]
        %v2002 = vld [vmem:[#allocation6 + $0x8] sm:$0xf]
        %v2003 = vld [vmem:[#allocation6 + $0xc] sm:$0xf]
        %v2004 = vld [vmem:[#allocation6 + $0x10] sm:$0xf]
        %v2005 = vld [vmem:[#allocation6 + $0x14] sm:$0xf]
        %v2006 = vld [vmem:[#allocation6 + $0x18] sm:$0xf]
        %v2007 = vld [vmem:[#allocation6 + $0x1c] sm:$0xf]
        %v2008 = vld [vmem:[#allocation6 + $0x20] sm:$0xf]
        %v2009 = vld [vmem:[#allocation6 + $0x24] sm:$0xf]
        %v2010 = vld [vmem:[#allocation6 + $0x28] sm:$0xf]
        %v2011 = vld [vmem:[#allocation6 + $0x2c] sm:$0xf]
        %v2012 = vld [vmem:[#allocation6 + $0x30] sm:$0xf]
        %v2013 = vld [vmem:[#allocation6 + $0x34] sm:$0xf]
        %v2014 = vld [vmem:[#allocation6 + $0x38] sm:$0xf]
        %v2015 = vld [vmem:[#allocation6 + $0x3c] sm:$0xf]
        %v2016 = vld [vmem:[#allocation6 + $0x40] sm:$0xf]
        %v2017 = vld [vmem:[#allocation6 + $0x44] sm:$0xf]
        %v2018 = vld [vmem:[#allocation6 + $0x48] sm:$0xf]
        %v2019 = vld [vmem:[#allocation6 + $0x4c] sm:$0xf]
        %v2020 = vld [vmem:[#allocation6 + $0x50] sm:$0xf]
        %v2021 = vld [vmem:[#allocation6 + $0x54] sm:$0xf]
        %v2022 = vld [vmem:[#allocation6 + $0x58] sm:$0xf]
        %v2023 = vld [vmem:[#allocation6 + $0x5c] sm:$0xf]
        %v2024 = vld [vmem:[#allocation6 + $0x60] sm:$0xf]
        %v2025 = vld [vmem:[#allocation6 + $0x64] sm:$0xf]
        %v2026 = vld [vmem:[#allocation6 + $0x68] sm:$0xf]
        %v2027 = vld [vmem:[#allocation6 + $0x6c] sm:$0xf]
        %v2028 = vld [vmem:[#allocation6 + $0x70] sm:$0xf]
        %v2029 = vld [vmem:[#allocation6 + $0x74] sm:$0xf]
        %v2030 = vld [vmem:[#allocation6 + $0x78] sm:$0xf]
        %v2031 = vld [vmem:[#allocation6 + $0x7c] sm:$0xf]
        %v2032 = vld [vmem:[#allocation6 + $0x80] sm:$0xf]
        %v2033 = vld [vmem:[#allocation6 + $0x84] sm:$0xf]
        %v2034 = vld [vmem:[#allocation6 + $0x88] sm:$0xf]
        %v2035 = vld [vmem:[#allocation6 + $0x8c] sm:$0xf]
        %v2036 = vld [vmem:[#allocation6 + $0x90] sm:$0xf]
        %v2037 = vld [vmem:[#allocation6 + $0x94] sm:$0xf]
        %v2038 = vld [vmem:[#allocation6 + $0x98] sm:$0xf]
        %v2039 = vld [vmem:[#allocation6 + $0x9c] sm:$0xf]
        %v2040 = vld [vmem:[#allocation6 + $0xa0] sm:$0xf]
        %v2041 = vld [vmem:[#allocation6 + $0xa4] sm:$0xf]
        %v2042 = vld [vmem:[#allocation6 + $0xa8] sm:$0xf]
        %v2043 = vld [vmem:[#allocation6 + $0xac] sm:$0xf]
        %v2044 = vld [vmem:[#allocation6 + $0xb0] sm:$0xf]
        %v2045 = vld [vmem:[#allocation6 + $0xb4] sm:$0xf]
        %v2046 = vld [vmem:[#allocation6 + $0xb8] sm:$0xf]
        %v2047 = vld [vmem:[#allocation6 + $0xbc] sm:$0xf]
        %v2048 = vld [vmem:[#allocation6 + $0xc0] sm:$0xf]
        %v2049 = vld [vmem:[#allocation6 + $0xc4] sm:$0xf]
        %v2050 = vld [vmem:[#allocation6 + $0xc8] sm:$0xf]
        %v2051 = vld [vmem:[#allocation6 + $0xcc] sm:$0xf]
        %v2052 = vld [vmem:[#allocation6 + $0xd0] sm:$0xf]
        %v2053 = vld [vmem:[#allocation6 + $0xd4] sm:$0xf]
        %v2054 = vld [vmem:[#allocation6 + $0xd8] sm:$0xf]
        %v2055 = vld [vmem:[#allocation6 + $0xdc] sm:$0xf]
        %v2056 = vld [vmem:[#allocation6 + $0xe0] sm:$0xf]
        %v2057 = vld [vmem:[#allocation6 + $0xe4] sm:$0xf]
        %v2058 = vld [vmem:[#allocation6 + $0xe8] sm:$0xf]
        %v2059 = vld [vmem:[#allocation6 + $0xec] sm:$0xf]
        %v2060 = vld [vmem:[#allocation6 + $0xf0] sm:$0xf]
        %v2061 = vld [vmem:[#allocation6 + $0xf4] sm:$0xf]
        %v2062 = vld [vmem:[#allocation6 + $0xf8] sm:$0xf]
        %v2063 = vld [vmem:[#allocation6 + $0xfc] sm:$0xf]
        %v2064 = vld [vmem:[#allocation6 + $0x100] sm:$0xf]
        %v2065 = vld [vmem:[#allocation6 + $0x104] sm:$0xf]
        %v2066 = vld [vmem:[#allocation6 + $0x108] sm:$0xf]
        %v2067 = vld [vmem:[#allocation6 + $0x10c] sm:$0xf]
        %v2068 = vld [vmem:[#allocation6 + $0x110] sm:$0xf]
        %v2069 = vld [vmem:[#allocation6 + $0x114] sm:$0xf]
        %v2070 = vld [vmem:[#allocation6 + $0x118] sm:$0xf]
        %v2071 = vld [vmem:[#allocation6 + $0x11c] sm:$0xf]
        %v2072 = vld [vmem:[#allocation6 + $0x120] sm:$0xf]
        %v2073 = vld [vmem:[#allocation6 + $0x124] sm:$0xf]
        %v2074 = vld [vmem:[#allocation6 + $0x128] sm:$0xf]
        %v2075 = vld [vmem:[#allocation6 + $0x12c] sm:$0xf]
        %v2076 = vld [vmem:[#allocation6 + $0x130] sm:$0xf]
        %v2077 = vld [vmem:[#allocation6 + $0x134] sm:$0xf]
        %v2078 = vld [vmem:[#allocation6 + $0x138] sm:$0xf]
        %v2079 = vld [vmem:[#allocation6 + $0x13c] sm:$0xf]
        %v2080 = vld [vmem:[#allocation6 + $0x140] sm:$0xf]
        %v2081 = vld [vmem:[#allocation6 + $0x144] sm:$0xf]
        %v2082 = vld [vmem:[#allocation6 + $0x148] sm:$0xf]
        %v2083 = vld [vmem:[#allocation6 + $0x14c] sm:$0xf]
        %v2084 = vld [vmem:[#allocation6 + $0x150] sm:$0xf]
        %v2085 = vld [vmem:[#allocation6 + $0x154] sm:$0xf]
        %v2086 = vld [vmem:[#allocation6 + $0x158] sm:$0xf]
        %v2087 = vld [vmem:[#allocation6 + $0x15c] sm:$0xf]
        %v2088 = vld [vmem:[#allocation6 + $0x160] sm:$0xf]
        %v2089 = vld [vmem:[#allocation6 + $0x164] sm:$0xf]
        %v2090 = vld [vmem:[#allocation6 + $0x168] sm:$0xf]
        %v2091 = vld [vmem:[#allocation6 + $0x16c] sm:$0xf]
        %v2092 = vld [vmem:[#allocation6 + $0x170] sm:$0xf]
        %v2093 = vld [vmem:[#allocation6 + $0x174] sm:$0xf]
        %v2094 = vld [vmem:[#allocation6 + $0x178] sm:$0xf]
        %v2095 = vld [vmem:[#allocation6 + $0x17c] sm:$0xf]
        %v2096 = vld [vmem:[#allocation6 + $0x180] sm:$0xf]
        %v2097 = vld [vmem:[#allocation6 + $0x184] sm:$0xf]
        %v2098 = vld [vmem:[#allocation6 + $0x188] sm:$0xf]
        %v2099 = vld [vmem:[#allocation6 + $0x18c] sm:$0xf]
        %v2100 = vld [vmem:[#allocation6 + $0x190] sm:$0xf]
        %v2101 = vld [vmem:[#allocation6 + $0x194] sm:$0xf]
        %v2102 = vld [vmem:[#allocation6 + $0x198] sm:$0xf]
        %v2103 = vld [vmem:[#allocation6 + $0x19c] sm:$0xf]
        %v2104 = vld [vmem:[#allocation6 + $0x1a0] sm:$0xf]
        %v2105 = vld [vmem:[#allocation6 + $0x1a4] sm:$0xf]
        %v2106 = vld [vmem:[#allocation6 + $0x1a8] sm:$0xf]
        %v2107 = vld [vmem:[#allocation6 + $0x1ac] sm:$0xf]
        %v2108 = vld [vmem:[#allocation6 + $0x1b0] sm:$0xf]
        %v2109 = vld [vmem:[#allocation6 + $0x1b4] sm:$0xf]
        %v2110 = vld [vmem:[#allocation6 + $0x1b8] sm:$0xf]
        %v2111 = vld [vmem:[#allocation6 + $0x1bc] sm:$0xf]
        %v2112 = vld [vmem:[#allocation6 + $0x1c0] sm:$0xf]
        %v2113 = vld [vmem:[#allocation6 + $0x1c4] sm:$0xf]
        %v2114 = vld [vmem:[#allocation6 + $0x1c8] sm:$0xf]
        %v2115 = vld [vmem:[#allocation6 + $0x1cc] sm:$0xf]
        %v2116 = vld [vmem:[#allocation6 + $0x1d0] sm:$0xf]
        %v2117 = vld [vmem:[#allocation6 + $0x1d4] sm:$0xf]
        %v2118 = vld [vmem:[#allocation6 + $0x1d8] sm:$0xf]
        %v2119 = vld [vmem:[#allocation6 + $0x1dc] sm:$0xf]
        %v2120 = vld [vmem:[#allocation6 + $0x1e0] sm:$0xf]
        %v2121 = vld [vmem:[#allocation6 + $0x1e4] sm:$0xf]
        %v2122 = vld [vmem:[#allocation6 + $0x1e8] sm:$0xf]
        %v2123 = vld [vmem:[#allocation6 + $0x1ec] sm:$0xf]
        %v2124 = vld [vmem:[#allocation6 + $0x1f0] sm:$0xf]
        %v2125 = vld [vmem:[#allocation6 + $0x1f4] sm:$0xf]
        %v2126 = vld [vmem:[#allocation6 + $0x1f8] sm:$0xf]
        %v2127 = vld [vmem:[#allocation6 + $0x1fc] sm:$0xf]
        %v2128 = vld [vmem:[#allocation6 + $0x200] sm:$0xf]
        %v2129 = vld [vmem:[#allocation6 + $0x204] sm:$0xf]
        %v2130 = vld [vmem:[#allocation6 + $0x208] sm:$0xf]
        %v2131 = vld [vmem:[#allocation6 + $0x20c] sm:$0xf]
        %v2132 = vld [vmem:[#allocation6 + $0x210] sm:$0xf]
        %v2133 = vld [vmem:[#allocation6 + $0x214] sm:$0xf]
        %v2134 = vld [vmem:[#allocation6 + $0x218] sm:$0xf]
        %v2135 = vld [vmem:[#allocation6 + $0x21c] sm:$0xf]
        %v2136 = vld [vmem:[#allocation6 + $0x220] sm:$0xf]
        %v2137 = vld [vmem:[#allocation6 + $0x224] sm:$0xf]
        %v2138 = vld [vmem:[#allocation6 + $0x228] sm:$0xf]
        %v2139 = vld [vmem:[#allocation6 + $0x22c] sm:$0xf]
        %v2140 = vld [vmem:[#allocation6 + $0x230] sm:$0xf]
        %v2141 = vld [vmem:[#allocation6 + $0x234] sm:$0xf]
        %v2142 = vld [vmem:[#allocation6 + $0x238] sm:$0xf]
        %v2143 = vld [vmem:[#allocation6 + $0x23c] sm:$0xf]
        %v2144 = vld [vmem:[%s2] sm:$0x1]
        %v2146 = vlaneseq
        %v2147 = vshrl.u32 %v2146, 7
        %v2148 = vsub.s32 0, %v2147
        %v2149 = vrot.slane %v2144, %v2148
        %v2295 = vunpack.c.l.b16 %v2000
        %v2296 = vunpack.c.l.b16 %v2001
        %v2297 = vunpack.c.l.b16 %v2002
        %v2298 = vunpack.c.l.b16 %v2003
        %v2299 = vunpack.c.l.b16 %v2004
        %v2300 = vunpack.c.l.b16 %v2005
        %v2301 = vunpack.c.l.b16 %v2006
        %v2302 = vunpack.c.l.b16 %v2007
        %v2303 = vunpack.c.l.b16 %v2008
        %v2304 = vunpack.c.l.b16 %v2009
        %v2305 = vunpack.c.l.b16 %v2010
        %v2306 = vunpack.c.l.b16 %v2011
        %v2307 = vunpack.c.l.b16 %v2012
        %v2308 = vunpack.c.l.b16 %v2013
        %v2309 = vunpack.c.l.b16 %v2014
        %v2310 = vunpack.c.l.b16 %v2015
        %v2311 = vunpack.c.l.b16 %v2016
        %v2312 = vunpack.c.l.b16 %v2017
        %v2313 = vunpack.c.l.b16 %v2018
        %v2314 = vunpack.c.l.b16 %v2019
        %v2315 = vunpack.c.l.b16 %v2020
        %v2316 = vunpack.c.l.b16 %v2021
        %v2317 = vunpack.c.l.b16 %v2022
        %v2318 = vunpack.c.l.b16 %v2023
        %v2319 = vunpack.c.l.b16 %v2024
        %v2320 = vunpack.c.l.b16 %v2025
        %v2321 = vunpack.c.l.b16 %v2026
        %v2322 = vunpack.c.l.b16 %v2027
        %v2323 = vunpack.c.l.b16 %v2028
        %v2324 = vunpack.c.l.b16 %v2029
        %v2325 = vunpack.c.l.b16 %v2030
        %v2326 = vunpack.c.l.b16 %v2031
        %v2327 = vunpack.c.l.b16 %v2032
        %v2328 = vunpack.c.l.b16 %v2033
        %v2329 = vunpack.c.l.b16 %v2034
        %v2330 = vunpack.c.l.b16 %v2035
        %v2331 = vunpack.c.l.b16 %v2036
        %v2332 = vunpack.c.l.b16 %v2037
        %v2333 = vunpack.c.l.b16 %v2038
        %v2334 = vunpack.c.l.b16 %v2039
        %v2335 = vunpack.c.l.b16 %v2040
        %v2336 = vunpack.c.l.b16 %v2041
        %v2337 = vunpack.c.l.b16 %v2042
        %v2338 = vunpack.c.l.b16 %v2043
        %v2339 = vunpack.c.l.b16 %v2044
        %v2340 = vunpack.c.l.b16 %v2045
        %v2341 = vunpack.c.l.b16 %v2046
        %v2342 = vunpack.c.l.b16 %v2047
        %v2343 = vunpack.c.l.b16 %v2048
        %v2344 = vunpack.c.l.b16 %v2049
        %v2345 = vunpack.c.l.b16 %v2050
        %v2346 = vunpack.c.l.b16 %v2051
        %v2347 = vunpack.c.l.b16 %v2052
        %v2348 = vunpack.c.l.b16 %v2053
        %v2349 = vunpack.c.l.b16 %v2054
        %v2350 = vunpack.c.l.b16 %v2055
        %v2351 = vunpack.c.l.b16 %v2056
        %v2352 = vunpack.c.l.b16 %v2057
        %v2353 = vunpack.c.l.b16 %v2058
        %v2354 = vunpack.c.l.b16 %v2059
        %v2355 = vunpack.c.l.b16 %v2060
        %v2356 = vunpack.c.l.b16 %v2061
        %v2357 = vunpack.c.l.b16 %v2062
        %v2358 = vunpack.c.l.b16 %v2063
        %v2359 = vunpack.c.l.b16 %v2064
        %v2360 = vunpack.c.l.b16 %v2065
        %v2361 = vunpack.c.l.b16 %v2066
        %v2362 = vunpack.c.l.b16 %v2067
        %v2363 = vunpack.c.l.b16 %v2068
        %v2364 = vunpack.c.l.b16 %v2069
        %v2365 = vunpack.c.l.b16 %v2070
        %v2366 = vunpack.c.l.b16 %v2071
        %v2367 = vunpack.c.l.b16 %v2072
        %v2368 = vunpack.c.l.b16 %v2073
        %v2369 = vunpack.c.l.b16 %v2074
        %v2370 = vunpack.c.l.b16 %v2075
        %v2371 = vunpack.c.l.b16 %v2076
        %v2372 = vunpack.c.l.b16 %v2077
        %v2373 = vunpack.c.l.b16 %v2078
        %v2374 = vunpack.c.l.b16 %v2079
        %v2375 = vunpack.c.l.b16 %v2080
        %v2376 = vunpack.c.l.b16 %v2081
        %v2377 = vunpack.c.l.b16 %v2082
        %v2378 = vunpack.c.l.b16 %v2083
        %v2379 = vunpack.c.l.b16 %v2084
        %v2380 = vunpack.c.l.b16 %v2085
        %v2381 = vunpack.c.l.b16 %v2086
        %v2382 = vunpack.c.l.b16 %v2087
        %v2383 = vunpack.c.l.b16 %v2088
        %v2384 = vunpack.c.l.b16 %v2089
        %v2385 = vunpack.c.l.b16 %v2090
        %v2386 = vunpack.c.l.b16 %v2091
        %v2387 = vunpack.c.l.b16 %v2092
        %v2388 = vunpack.c.l.b16 %v2093
        %v2389 = vunpack.c.l.b16 %v2094
        %v2390 = vunpack.c.l.b16 %v2095
        %v2391 = vunpack.c.l.b16 %v2096
        %v2392 = vunpack.c.l.b16 %v2097
        %v2393 = vunpack.c.l.b16 %v2098
        %v2394 = vunpack.c.l.b16 %v2099
        %v2395 = vunpack.c.l.b16 %v2100
        %v2396 = vunpack.c.l.b16 %v2101
        %v2397 = vunpack.c.l.b16 %v2102
        %v2398 = vunpack.c.l.b16 %v2103
        %v2399 = vunpack.c.l.b16 %v2104
        %v2400 = vunpack.c.l.b16 %v2105
        %v2401 = vunpack.c.l.b16 %v2106
        %v2402 = vunpack.c.l.b16 %v2107
        %v2403 = vunpack.c.l.b16 %v2108
        %v2404 = vunpack.c.l.b16 %v2109
        %v2405 = vunpack.c.l.b16 %v2110
        %v2406 = vunpack.c.l.b16 %v2111
        %v2407 = vunpack.c.l.b16 %v2112
        %v2408 = vunpack.c.l.b16 %v2113
        %v2409 = vunpack.c.l.b16 %v2114
        %v2410 = vunpack.c.l.b16 %v2115
        %v2411 = vunpack.c.l.b16 %v2116
        %v2412 = vunpack.c.l.b16 %v2117
        %v2413 = vunpack.c.l.b16 %v2118
        %v2414 = vunpack.c.l.b16 %v2119
        %v2415 = vunpack.c.l.b16 %v2120
        %v2416 = vunpack.c.l.b16 %v2121
        %v2417 = vunpack.c.l.b16 %v2122
        %v2418 = vunpack.c.l.b16 %v2123
        %v2419 = vunpack.c.l.b16 %v2124
        %v2420 = vunpack.c.l.b16 %v2125
        %v2421 = vunpack.c.l.b16 %v2126
        %v2422 = vunpack.c.l.b16 %v2127
        %v2423 = vunpack.c.l.b16 %v2128
        %v2424 = vunpack.c.l.b16 %v2129
        %v2425 = vunpack.c.l.b16 %v2130
        %v2426 = vunpack.c.l.b16 %v2131
        %v2427 = vunpack.c.l.b16 %v2132
        %v2428 = vunpack.c.l.b16 %v2133
        %v2429 = vunpack.c.l.b16 %v2134
        %v2430 = vunpack.c.l.b16 %v2135
        %v2431 = vunpack.c.l.b16 %v2136
        %v2432 = vunpack.c.l.b16 %v2137
        %v2433 = vunpack.c.l.b16 %v2138
        %v2434 = vunpack.c.l.b16 %v2139
        %v2435 = vunpack.c.l.b16 %v2140
        %v2436 = vunpack.c.l.b16 %v2141
        %v2437 = vunpack.c.l.b16 %v2142
        %v2438 = vunpack.c.l.b16 %v2143
        %v2439 = vpack.c.b16 %v2296, %v2295
        %v2440 = vpack.c.b16 %v2298, %v2297
        %v2441 = vpack.c.b16 %v2300, %v2299
        %v2442 = vpack.c.b16 %v2302, %v2301
        %v2443 = vpack.c.b16 %v2304, %v2303
        %v2444 = vpack.c.b16 %v2306, %v2305
        %v2445 = vpack.c.b16 %v2308, %v2307
        %v2446 = vpack.c.b16 %v2310, %v2309
        %v2447 = vpack.c.b16 %v2312, %v2311
        %v2448 = vpack.c.b16 %v2314, %v2313
        %v2449 = vpack.c.b16 %v2316, %v2315
        %v2450 = vpack.c.b16 %v2318, %v2317
        %v2451 = vpack.c.b16 %v2320, %v2319
        %v2452 = vpack.c.b16 %v2322, %v2321
        %v2453 = vpack.c.b16 %v2324, %v2323
        %v2454 = vpack.c.b16 %v2326, %v2325
        %v2455 = vpack.c.b16 %v2328, %v2327
        %v2456 = vpack.c.b16 %v2330, %v2329
        %v2457 = vpack.c.b16 %v2332, %v2331
        %v2458 = vpack.c.b16 %v2334, %v2333
        %v2459 = vpack.c.b16 %v2336, %v2335
        %v2460 = vpack.c.b16 %v2338, %v2337
        %v2461 = vpack.c.b16 %v2340, %v2339
        %v2462 = vpack.c.b16 %v2342, %v2341
        %v2463 = vpack.c.b16 %v2344, %v2343
        %v2464 = vpack.c.b16 %v2346, %v2345
        %v2465 = vpack.c.b16 %v2348, %v2347
        %v2466 = vpack.c.b16 %v2350, %v2349
        %v2467 = vpack.c.b16 %v2352, %v2351
        %v2468 = vpack.c.b16 %v2354, %v2353
        %v2469 = vpack.c.b16 %v2356, %v2355
        %v2470 = vpack.c.b16 %v2358, %v2357
        %v2471 = vpack.c.b16 %v2360, %v2359
        %v2472 = vpack.c.b16 %v2362, %v2361
        %v2473 = vpack.c.b16 %v2364, %v2363
        %v2474 = vpack.c.b16 %v2366, %v2365
        %v2475 = vpack.c.b16 %v2368, %v2367
        %v2476 = vpack.c.b16 %v2370, %v2369
        %v2477 = vpack.c.b16 %v2372, %v2371
        %v2478 = vpack.c.b16 %v2374, %v2373
        %v2479 = vpack.c.b16 %v2376, %v2375
        %v2480 = vpack.c.b16 %v2378, %v2377
        %v2481 = vpack.c.b16 %v2380, %v2379
        %v2482 = vpack.c.b16 %v2382, %v2381
        %v2483 = vpack.c.b16 %v2384, %v2383
        %v2484 = vpack.c.b16 %v2386, %v2385
        %v2485 = vpack.c.b16 %v2388, %v2387
        %v2486 = vpack.c.b16 %v2390, %v2389
        %v2487 = vpack.c.b16 %v2392, %v2391
        %v2488 = vpack.c.b16 %v2394, %v2393
        %v2489 = vpack.c.b16 %v2396, %v2395
        %v2490 = vpack.c.b16 %v2398, %v2397
        %v2491 = vpack.c.b16 %v2400, %v2399
        %v2492 = vpack.c.b16 %v2402, %v2401
        %v2493 = vpack.c.b16 %v2404, %v2403
        %v2494 = vpack.c.b16 %v2406, %v2405
        %v2495 = vpack.c.b16 %v2408, %v2407
        %v2496 = vpack.c.b16 %v2410, %v2409
        %v2497 = vpack.c.b16 %v2412, %v2411
        %v2498 = vpack.c.b16 %v2414, %v2413
        %v2499 = vpack.c.b16 %v2416, %v2415
        %v2500 = vpack.c.b16 %v2418, %v2417
        %v2501 = vpack.c.b16 %v2420, %v2419
        %v2502 = vpack.c.b16 %v2422, %v2421
        %v2503 = vpack.c.b16 %v2424, %v2423
        %v2504 = vpack.c.b16 %v2426, %v2425
        %v2505 = vpack.c.b16 %v2428, %v2427
        %v2506 = vpack.c.b16 %v2430, %v2429
        %v2507 = vpack.c.b16 %v2432, %v2431
        %v2508 = vpack.c.b16 %v2434, %v2433
        %v2509 = vpack.c.b16 %v2436, %v2435
        %v2510 = vpack.c.b16 %v2438, %v2437
        %2583 = vmatprep.subr.bf16.mxu0 0
        %2584 = vmatpush1.bf16.msra.mxu0 %v2439
        %2585 = vmatprep.subr.bf16.mxu0 0
        %2586 = vmatpush1.bf16.msra.mxu0 %v2440
        %2587 = vmatprep.subr.bf16.mxu0 0
        %2588 = vmatpush1.bf16.msra.mxu0 %v2441
        %2589 = vmatprep.subr.bf16.mxu0 0
        %2590 = vmatpush1.bf16.msra.mxu0 %v2442
        %2591 = vmatprep.subr.bf16.mxu0 0
        %2592 = vmatpush1.bf16.msra.mxu0 %v2443
        %2593 = vmatprep.subr.bf16.mxu0 0
        %2594 = vmatpush1.bf16.msra.mxu0 %v2444
        %2595 = vmatprep.subr.bf16.mxu0 0
        %2596 = vmatpush1.bf16.msra.mxu0 %v2445
        %2597 = vmatprep.subr.bf16.mxu0 0
        %2598 = vmatpush1.bf16.msra.mxu0 %v2446
        %2599 = vmatprep.subr.bf16.mxu0 0
        %2600 = vmatpush1.bf16.msra.mxu0 %v2447
        %2601 = vmatprep.subr.bf16.mxu0 0
        %2602 = vmatpush1.bf16.msra.mxu0 %v2448
        %2603 = vmatprep.subr.bf16.mxu0 0
        %2604 = vmatpush1.bf16.msra.mxu0 %v2449
        %2605 = vmatprep.subr.bf16.mxu0 0
        %2606 = vmatpush1.bf16.msra.mxu0 %v2450
        %2607 = vmatprep.subr.bf16.mxu0 0
        %2608 = vmatpush1.bf16.msra.mxu0 %v2451
        %2609 = vmatprep.subr.bf16.mxu0 0
        %2610 = vmatpush1.bf16.msra.mxu0 %v2452
        %2611 = vmatprep.subr.bf16.mxu0 0
        %2612 = vmatpush1.bf16.msra.mxu0 %v2453
        %2613 = vmatprep.subr.bf16.mxu0 0
        %2614 = vmatpush1.bf16.msra.mxu0 %v2454
        %2615 = vmatprep.mubr.bf16.mxu0 %v1880
        %2616 = vmatmul.mubr.bf16.gmra.mrb[0].mxu0 %v1816
        %v2617 = vpop.f32.mrb[0].mxu0
        %v2618 = vadd.f32 %v2149, %v2617
        %v2619 = vpop.f32.mrb[0].mxu0
        %v2620 = vpop.f32.mrb[0].mxu0
        %v2621 = vadd.f32 %v2149, %v2620
        %v2622 = vpop.f32.mrb[0].mxu0
        %2623 = vmatprep.mubr.bf16.mxu0 %v1881
        %2624 = vmatmul.mubr.bf16.gmra.mrb[0].mxu0 %v1817
        %v2625 = vpop.f32.mrb[0].mxu0
        %v2626 = vadd.f32 %v2149, %v2625
        %v2627 = vpop.f32.mrb[0].mxu0
        %v2628 = vpop.f32.mrb[0].mxu0
        %v2629 = vadd.f32 %v2149, %v2628
        %v2630 = vpop.f32.mrb[0].mxu0
        %2631 = vmatprep.mubr.bf16.mxu0 %v1882
        %2632 = vmatmul.mubr.bf16.gmra.mrb[0].mxu0 %v1818
        %v2633 = vpop.f32.mrb[0].mxu0
        %v2634 = vadd.f32 %v2149, %v2633
        %v2635 = vpop.f32.mrb[0].mxu0
        %v2636 = vpop.f32.mrb[0].mxu0
        %v2637 = vadd.f32 %v2149, %v2636
        %v2638 = vpop.f32.mrb[0].mxu0
        %2639 = vmatprep.mubr.bf16.mxu0 %v1883
        %2640 = vmatmul.mubr.bf16.gmra.mrb[0].mxu0 %v1819
        %v2641 = vpop.f32.mrb[0].mxu0
        %v2642 = vadd.f32 %v2149, %v2641
        %v2643 = vpop.f32.mrb[0].mxu0
        %v2644 = vpop.f32.mrb[0].mxu0
        %v2645 = vadd.f32 %v2149, %v2644
        %v2646 = vpop.f32.mrb[0].mxu0
        %2647 = vmatprep.mubr.bf16.mxu0 %v1884
        %2648 = vmatmul.mubr.bf16.gmra.mrb[0].mxu0 %v1820
        %v2649 = vpop.f32.mrb[0].mxu0
        %v2650 = vadd.f32 %v2149, %v2649
        %v2651 = vpop.f32.mrb[0].mxu0
        %v2652 = vpop.f32.mrb[0].mxu0
        %v2653 = vadd.f32 %v2149, %v2652
        %v2654 = vpop.f32.mrb[0].mxu0
        %2655 = vmatprep.mubr.bf16.mxu0 %v1885
        %2656 = vmatmul.mubr.bf16.gmra.mrb[0].mxu0 %v1821
        %v2657 = vpop.f32.mrb[0].mxu0
        %v2658 = vadd.f32 %v2149, %v2657
        %v2659 = vpop.f32.mrb[0].mxu0
        %v2660 = vpop.f32.mrb[0].mxu0
        %v2661 = vadd.f32 %v2149, %v2660
        %v2662 = vpop.f32.mrb[0].mxu0
        %2663 = vmatprep.mubr.bf16.mxu0 %v1886
        %2664 = vmatmul.mubr.bf16.gmra.mrb[0].mxu0 %v1822
        %v2665 = vpop.f32.mrb[0].mxu0
        %v2666 = vadd.f32 %v2149, %v2665
        %v2667 = vpop.f32.mrb[0].mxu0
        %v2668 = vpop.f32.mrb[0].mxu0
        %v2669 = vadd.f32 %v2149, %v2668
        %v2670 = vpop.f32.mrb[0].mxu0
        %2671 = vmatprep.mubr.bf16.mxu0 %v1887
        %2672 = vmatmul.mubr.bf16.gmra.mrb[0].mxu0 %v1823
        %v2673 = vpop.f32.mrb[0].mxu0
        %v2674 = vadd.f32 %v2149, %v2673
        %v2675 = vpop.f32.mrb[0].mxu0
        %v2676 = vpop.f32.mrb[0].mxu0
        %v2677 = vadd.f32 %v2149, %v2676
        %v2678 = vpop.f32.mrb[0].mxu0
        %2679 = vmatprep.mubr.bf16.mxu0 %v1888
        %2680 = vmatmul.mubr.bf16.gmra.mrb[0].mxu0 %v1824
        %v2681 = vpop.f32.mrb[0].mxu0
        %v2682 = vadd.f32 %v2149, %v2681
        %v2683 = vpop.f32.mrb[0].mxu0
        %v2684 = vpop.f32.mrb[0].mxu0
        %v2685 = vadd.f32 %v2149, %v2684
        %v2686 = vpop.f32.mrb[0].mxu0
        %2687 = vmatprep.mubr.bf16.mxu0 %v1889
        %2688 = vmatmul.mubr.bf16.gmra.mrb[0].mxu0 %v1825
        %v2689 = vpop.f32.mrb[0].mxu0
        %v2690 = vadd.f32 %v2149, %v2689
        %v2691 = vpop.f32.mrb[0].mxu0
        %v2692 = vpop.f32.mrb[0].mxu0
        %v2693 = vadd.f32 %v2149, %v2692
        %v2694 = vpop.f32.mrb[0].mxu0
        %2695 = vmatprep.mubr.bf16.mxu0 %v1890
        %2696 = vmatmul.mubr.bf16.gmra.mrb[0].mxu0 %v1826
        %v2697 = vpop.f32.mrb[0].mxu0
        %v2698 = vadd.f32 %v2149, %v2697
        %v2699 = vpop.f32.mrb[0].mxu0
        %v2700 = vpop.f32.mrb[0].mxu0
        %v2701 = vadd.f32 %v2149, %v2700
        %v2702 = vpop.f32.mrb[0].mxu0
        %2703 = vmatprep.mubr.bf16.mxu0 %v1891
        %2704 = vmatmul.mubr.bf16.gmra.mrb[0].mxu0 %v1827
        %v2705 = vpop.f32.mrb[0].mxu0
        %v2706 = vadd.f32 %v2149, %v2705
        %v2707 = vpop.f32.mrb[0].mxu0
        %v2708 = vpop.f32.mrb[0].mxu0
        %v2709 = vadd.f32 %v2149, %v2708
        %v2710 = vpop.f32.mrb[0].mxu0
        %2711 = vmatprep.mubr.bf16.mxu0 %v1892
        %2712 = vmatmul.mubr.bf16.gmra.mrb[0].mxu0 %v1828
        %v2713 = vpop.f32.mrb[0].mxu0
        %v2714 = vadd.f32 %v2149, %v2713
        %v2715 = vpop.f32.mrb[0].mxu0
        %v2716 = vpop.f32.mrb[0].mxu0
        %v2717 = vadd.f32 %v2149, %v2716
        %v2718 = vpop.f32.mrb[0].mxu0
        %2719 = vmatprep.mubr.bf16.mxu0 %v1893
        %2720 = vmatmul.mubr.bf16.gmra.mrb[0].mxu0 %v1829
        %v2721 = vpop.f32.mrb[0].mxu0
        %v2722 = vadd.f32 %v2149, %v2721
        %v2723 = vpop.f32.mrb[0].mxu0
        %v2724 = vpop.f32.mrb[0].mxu0
        %v2725 = vadd.f32 %v2149, %v2724
        %v2726 = vpop.f32.mrb[0].mxu0
        %2727 = vmatprep.mubr.bf16.mxu0 %v1894
        %2728 = vmatmul.mubr.bf16.gmra.mrb[0].mxu0 %v1830
        %v2729 = vpop.f32.mrb[0].mxu0
        %v2730 = vadd.f32 %v2149, %v2729
        %v2731 = vpop.f32.mrb[0].mxu0
        %v2732 = vpop.f32.mrb[0].mxu0
        %v2733 = vadd.f32 %v2149, %v2732
        %v2734 = vpop.f32.mrb[0].mxu0
        %2735 = vmatprep.mubr.bf16.mxu0 %v1895
        %2736 = vmatmul.mubr.bf16.gmra.mrb[0].mxu0 %v1831
        %v2737 = vpop.f32.mrb[0].mxu0
        %v2738 = vadd.f32 %v2149, %v2737
        %v2739 = vpop.f32.mrb[0].mxu0
        %v2740 = vpop.f32.mrb[0].mxu0
        %v2741 = vadd.f32 %v2149, %v2740
        %v2742 = vpop.f32.mrb[0].mxu0
        %2743 = vdwg.mxu0
        %2744 = vmatprep.subr.bf16.mxu0 0
        %2745 = vmatpush1.bf16.msra.mxu0 %v2455
        %2746 = vmatprep.subr.bf16.mxu0 0
        %2747 = vmatpush1.bf16.msra.mxu0 %v2456
        %2748 = vmatprep.subr.bf16.mxu0 0
        %2749 = vmatpush1.bf16.msra.mxu0 %v2457
        %2750 = vmatprep.subr.bf16.mxu0 0
        %2751 = vmatpush1.bf16.msra.mxu0 %v2458
        %2752 = vmatprep.subr.bf16.mxu0 0
        %2753 = vmatpush1.bf16.msra.mxu0 %v2459
        %2754 = vmatprep.subr.bf16.mxu0 0
        %2755 = vmatpush1.bf16.msra.mxu0 %v2460
        %2756 = vmatprep.subr.bf16.mxu0 0
        %2757 = vmatpush1.bf16.msra.mxu0 %v2461
        %2758 = vmatprep.subr.bf16.mxu0 0
        %2759 = vmatpush1.bf16.msra.mxu0 %v2462
        %2760 = vmatprep.subr.bf16.mxu0 0
        %2761 = vmatpush1.bf16.msra.mxu0 %v2463
        %2762 = vmatprep.subr.bf16.mxu0 0
        %2763 = vmatpush1.bf16.msra.mxu0 %v2464
        %2764 = vmatprep.subr.bf16.mxu0 0
        %2765 = vmatpush1.bf16.msra.mxu0 %v2465
        %2766 = vmatprep.subr.bf16.mxu0 0
        %2767 = vmatpush1.bf16.msra.mxu0 %v2466
        %2768 = vmatprep.subr.bf16.mxu0 0
        %2769 = vmatpush1.bf16.msra.mxu0 %v2467
        %2770 = vmatprep.subr.bf16.mxu0 0
        %2771 = vmatpush1.bf16.msra.mxu0 %v2468
        %2772 = vmatprep.subr.bf16.mxu0 0
        %2773 = vmatpush1.bf16.msra.mxu0 %v2469
        %2774 = vmatprep.subr.bf16.mxu0 0
        %2775 = vmatpush1.bf16.msra.mxu0 %v2470
        %2776 = vmatprep.mubr.bf16.mxu0 %v1817
        %2777 = vmatmul.mubr.bf16.gmra.mrb[0].mxu0 %v1944
        %v2778 = vpop.f32.mrb[0].mxu0
        %v2779 = vadd.f32 %v2618, %v2778
        %v2780 = vpop.f32.mrb[0].mxu0
        %v2781 = vpop.f32.mrb[0].mxu0
        %v2782 = vadd.f32 %v2621, %v2781
        %v2783 = vpop.f32.mrb[0].mxu0
        %2784 = vmatprep.mubr.bf16.mxu0 %v1818
        %2785 = vmatmul.mubr.bf16.gmra.mrb[0].mxu0 %v1945
        %v2786 = vpop.f32.mrb[0].mxu0
        %v2787 = vadd.f32 %v2626, %v2786
        %v2788 = vpop.f32.mrb[0].mxu0
        %v2789 = vpop.f32.mrb[0].mxu0
        %v2790 = vadd.f32 %v2629, %v2789
        %v2791 = vpop.f32.mrb[0].mxu0
        %2792 = vmatprep.mubr.bf16.mxu0 %v1819
        %2793 = vmatmul.mubr.bf16.gmra.mrb[0].mxu0 %v1946
        %v2794 = vpop.f32.mrb[0].mxu0
        %v2795 = vadd.f32 %v2634, %v2794
        %v2796 = vpop.f32.mrb[0].mxu0
        %v2797 = vpop.f32.mrb[0].mxu0
        %v2798 = vadd.f32 %v2637, %v2797
        %v2799 = vpop.f32.mrb[0].mxu0
        %2800 = vmatprep.mubr.bf16.mxu0 %v1820
        %2801 = vmatmul.mubr.bf16.gmra.mrb[0].mxu0 %v1947
        %v2802 = vpop.f32.mrb[0].mxu0
        %v2803 = vadd.f32 %v2642, %v2802
        %v2804 = vpop.f32.mrb[0].mxu0
        %v2805 = vpop.f32.mrb[0].mxu0
        %v2806 = vadd.f32 %v2645, %v2805
        %v2807 = vpop.f32.mrb[0].mxu0
        %2808 = vmatprep.mubr.bf16.mxu0 %v1821
        %2809 = vmatmul.mubr.bf16.gmra.mrb[0].mxu0 %v1948
        %v2810 = vpop.f32.mrb[0].mxu0
        %v2811 = vadd.f32 %v2650, %v2810
        %v2812 = vpop.f32.mrb[0].mxu0
        %v2813 = vpop.f32.mrb[0].mxu0
        %v2814 = vadd.f32 %v2653, %v2813
        %v2815 = vpop.f32.mrb[0].mxu0
        %2816 = vmatprep.mubr.bf16.mxu0 %v1822
        %2817 = vmatmul.mubr.bf16.gmra.mrb[0].mxu0 %v1949
        %v2818 = vpop.f32.mrb[0].mxu0
        %v2819 = vadd.f32 %v2658, %v2818
        %v2820 = vpop.f32.mrb[0].mxu0
        %v2821 = vpop.f32.mrb[0].mxu0
        %v2822 = vadd.f32 %v2661, %v2821
        %v2823 = vpop.f32.mrb[0].mxu0
        %2824 = vmatprep.mubr.bf16.mxu0 %v1823
        %2825 = vmatmul.mubr.bf16.gmra.mrb[0].mxu0 %v1950
        %v2826 = vpop.f32.mrb[0].mxu0
        %v2827 = vadd.f32 %v2666, %v2826
        %v2828 = vpop.f32.mrb[0].mxu0
        %v2829 = vpop.f32.mrb[0].mxu0
        %v2830 = vadd.f32 %v2669, %v2829
        %v2831 = vpop.f32.mrb[0].mxu0
        %2832 = vmatprep.mubr.bf16.mxu0 %v1824
        %2833 = vmatmul.mubr.bf16.gmra.mrb[0].mxu0 %v1951
        %v2834 = vpop.f32.mrb[0].mxu0
        %v2835 = vadd.f32 %v2674, %v2834
        %v2836 = vpop.f32.mrb[0].mxu0
        %v2837 = vpop.f32.mrb[0].mxu0
        %v2838 = vadd.f32 %v2677, %v2837
        %v2839 = vpop.f32.mrb[0].mxu0
        %2840 = vmatprep.mubr.bf16.mxu0 %v1825
        %2841 = vmatmul.mubr.bf16.gmra.mrb[0].mxu0 %v1952
        %v2842 = vpop.f32.mrb[0].mxu0
        %v2843 = vadd.f32 %v2682, %v2842
        %v2844 = vpop.f32.mrb[0].mxu0
        %v2845 = vpop.f32.mrb[0].mxu0
        %v2846 = vadd.f32 %v2685, %v2845
        %v2847 = vpop.f32.mrb[0].mxu0
        %2848 = vmatprep.mubr.bf16.mxu0 %v1826
        %2849 = vmatmul.mubr.bf16.gmra.mrb[0].mxu0 %v1953
        %v2850 = vpop.f32.mrb[0].mxu0
        %v2851 = vadd.f32 %v2690, %v2850
        %v2852 = vpop.f32.mrb[0].mxu0
        %v2853 = vpop.f32.mrb[0].mxu0
        %v2854 = vadd.f32 %v2693, %v2853
        %v2855 = vpop.f32.mrb[0].mxu0
        %2856 = vmatprep.mubr.bf16.mxu0 %v1827
        %2857 = vmatmul.mubr.bf16.gmra.mrb[0].mxu0 %v1954
        %v2858 = vpop.f32.mrb[0].mxu0
        %v2859 = vadd.f32 %v2698, %v2858
        %v2860 = vpop.f32.mrb[0].mxu0
        %v2861 = vpop.f32.mrb[0].mxu0
        %v2862 = vadd.f32 %v2701, %v2861
        %v2863 = vpop.f32.mrb[0].mxu0
        %2864 = vmatprep.mubr.bf16.mxu0 %v1828
        %2865 = vmatmul.mubr.bf16.gmra.mrb[0].mxu0 %v1955
        %v2866 = vpop.f32.mrb[0].mxu0
        %v2867 = vadd.f32 %v2706, %v2866
        %v2868 = vpop.f32.mrb[0].mxu0
        %v2869 = vpop.f32.mrb[0].mxu0
        %v2870 = vadd.f32 %v2709, %v2869
        %v2871 = vpop.f32.mrb[0].mxu0
        %2872 = vmatprep.mubr.bf16.mxu0 %v1829
        %2873 = vmatmul.mubr.bf16.gmra.mrb[0].mxu0 %v1956
        %v2874 = vpop.f32.mrb[0].mxu0
        %v2875 = vadd.f32 %v2714, %v2874
        %v2876 = vpop.f32.mrb[0].mxu0
        %v2877 = vpop.f32.mrb[0].mxu0
        %v2878 = vadd.f32 %v2717, %v2877
        %v2879 = vpop.f32.mrb[0].mxu0
        %2880 = vmatprep.mubr.bf16.mxu0 %v1830
        %2881 = vmatmul.mubr.bf16.gmra.mrb[0].mxu0 %v1957
        %v2882 = vpop.f32.mrb[0].mxu0
        %v2883 = vadd.f32 %v2722, %v2882
        %v2884 = vpop.f32.mrb[0].mxu0
        %v2885 = vpop.f32.mrb[0].mxu0
        %v2886 = vadd.f32 %v2725, %v2885
        %v2887 = vpop.f32.mrb[0].mxu0
        %2888 = vmatprep.mubr.bf16.mxu0 %v1831
        %2889 = vmatmul.mubr.bf16.gmra.mrb[0].mxu0 %v1958
        %v2890 = vpop.f32.mrb[0].mxu0
        %v2891 = vadd.f32 %v2730, %v2890
        %v2892 = vpop.f32.mrb[0].mxu0
        %v2893 = vpop.f32.mrb[0].mxu0
        %v2894 = vadd.f32 %v2733, %v2893
        %v2895 = vpop.f32.mrb[0].mxu0
        %2896 = vmatprep.mubr.bf16.mxu0 %v1978
        %2897 = vmatmul.mubr.bf16.gmra.mrb[0].mxu0 %v1959
        %v2898 = vpop.f32.mrb[0].mxu0
        %v2899 = vadd.f32 %v2738, %v2898
        %v2900 = vpop.f32.mrb[0].mxu0
        %v2901 = vpop.f32.mrb[0].mxu0
        %v2902 = vadd.f32 %v2741, %v2901
        %v2903 = vpop.f32.mrb[0].mxu0
        %2904 = vdwg.mxu0
        %2905 = vmatprep.subr.bf16.mxu0 0
        %2906 = vmatpush1.bf16.msra.mxu0 %v2471
        %2907 = vmatprep.subr.bf16.mxu0 0
        %2908 = vmatpush1.bf16.msra.mxu0 %v2472
        %2909 = vmatprep.subr.bf16.mxu0 0
        %2910 = vmatpush1.bf16.msra.mxu0 %v2473
        %2911 = vmatprep.subr.bf16.mxu0 0
        %2912 = vmatpush1.bf16.msra.mxu0 %v2474
        %2913 = vmatprep.subr.bf16.mxu0 0
        %2914 = vmatpush1.bf16.msra.mxu0 %v2475
        %2915 = vmatprep.subr.bf16.mxu0 0
        %2916 = vmatpush1.bf16.msra.mxu0 %v2476
        %2917 = vmatprep.subr.bf16.mxu0 0
        %2918 = vmatpush1.bf16.msra.mxu0 %v2477
        %2919 = vmatprep.subr.bf16.mxu0 0
        %2920 = vmatpush1.bf16.msra.mxu0 %v2478
        %2921 = vmatprep.subr.bf16.mxu0 0
        %2922 = vmatpush1.bf16.msra.mxu0 %v2479
        %2923 = vmatprep.subr.bf16.mxu0 0
        %2924 = vmatpush1.bf16.msra.mxu0 %v2480
        %2925 = vmatprep.subr.bf16.mxu0 0
        %2926 = vmatpush1.bf16.msra.mxu0 %v2481
        %2927 = vmatprep.subr.bf16.mxu0 0
        %2928 = vmatpush1.bf16.msra.mxu0 %v2482
        %2929 = vmatprep.subr.bf16.mxu0 0
        %2930 = vmatpush1.bf16.msra.mxu0 %v2483
        %2931 = vmatprep.subr.bf16.mxu0 0
        %2932 = vmatpush1.bf16.msra.mxu0 %v2484
        %2933 = vmatprep.subr.bf16.mxu0 0
        %2934 = vmatpush1.bf16.msra.mxu0 %v2485
        %2935 = vmatprep.subr.bf16.mxu0 0
        %2936 = vmatpush1.bf16.msra.mxu0 %v2486
        %2937 = vmatprep.mubr.bf16.mxu0 %v1945
        %2938 = vmatmul.mubr.bf16.gmra.mrb[0].mxu0 %v1881
        %v2939 = vpop.f32.mrb[0].mxu0
        %v2940 = vadd.f32 %v2779, %v2939
        %v2941 = vpop.f32.mrb[0].mxu0
        %v2942 = vpop.f32.mrb[0].mxu0
        %v2943 = vadd.f32 %v2782, %v2942
        %v2944 = vpop.f32.mrb[0].mxu0
        %2945 = vmatprep.mubr.bf16.mxu0 %v1946
        %2946 = vmatmul.mubr.bf16.gmra.mrb[0].mxu0 %v1882
        %v2947 = vpop.f32.mrb[0].mxu0
        %v2948 = vadd.f32 %v2787, %v2947
        %v2949 = vpop.f32.mrb[0].mxu0
        %v2950 = vpop.f32.mrb[0].mxu0
        %v2951 = vadd.f32 %v2790, %v2950
        %v2952 = vpop.f32.mrb[0].mxu0
        %2953 = vmatprep.mubr.bf16.mxu0 %v1947
        %2954 = vmatmul.mubr.bf16.gmra.mrb[0].mxu0 %v1883
        %v2955 = vpop.f32.mrb[0].mxu0
        %v2956 = vadd.f32 %v2795, %v2955
        %v2957 = vpop.f32.mrb[0].mxu0
        %v2958 = vpop.f32.mrb[0].mxu0
        %v2959 = vadd.f32 %v2798, %v2958
        %v2960 = vpop.f32.mrb[0].mxu0
        %2961 = vmatprep.mubr.bf16.mxu0 %v1948
        %2962 = vmatmul.mubr.bf16.gmra.mrb[0].mxu0 %v1884
        %v2963 = vpop.f32.mrb[0].mxu0
        %v2964 = vadd.f32 %v2803, %v2963
        %v2965 = vpop.f32.mrb[0].mxu0
        %v2966 = vpop.f32.mrb[0].mxu0
        %v2967 = vadd.f32 %v2806, %v2966
        %v2968 = vpop.f32.mrb[0].mxu0
        %2969 = vmatprep.mubr.bf16.mxu0 %v1949
        %2970 = vmatmul.mubr.bf16.gmra.mrb[0].mxu0 %v1885
        %v2971 = vpop.f32.mrb[0].mxu0
        %v2972 = vadd.f32 %v2811, %v2971
        %v2973 = vpop.f32.mrb[0].mxu0
        %v2974 = vpop.f32.mrb[0].mxu0
        %v2975 = vadd.f32 %v2814, %v2974
        %v2976 = vpop.f32.mrb[0].mxu0
        %2977 = vmatprep.mubr.bf16.mxu0 %v1950
        %2978 = vmatmul.mubr.bf16.gmra.mrb[0].mxu0 %v1886
        %v2979 = vpop.f32.mrb[0].mxu0
        %v2980 = vadd.f32 %v2819, %v2979
        %v2981 = vpop.f32.mrb[0].mxu0
        %v2982 = vpop.f32.mrb[0].mxu0
        %v2983 = vadd.f32 %v2822, %v2982
        %v2984 = vpop.f32.mrb[0].mxu0
        %2985 = vmatprep.mubr.bf16.mxu0 %v1951
        %2986 = vmatmul.mubr.bf16.gmra.mrb[0].mxu0 %v1887
        %v2987 = vpop.f32.mrb[0].mxu0
        %v2988 = vadd.f32 %v2827, %v2987
        %v2989 = vpop.f32.mrb[0].mxu0
        %v2990 = vpop.f32.mrb[0].mxu0
        %v2991 = vadd.f32 %v2830, %v2990
        %v2992 = vpop.f32.mrb[0].mxu0
        %2993 = vmatprep.mubr.bf16.mxu0 %v1952
        %2994 = vmatmul.mubr.bf16.gmra.mrb[0].mxu0 %v1888
        %v2995 = vpop.f32.mrb[0].mxu0
        %v2996 = vadd.f32 %v2835, %v2995
        %v2997 = vpop.f32.mrb[0].mxu0
        %v2998 = vpop.f32.mrb[0].mxu0
        %v2999 = vadd.f32 %v2838, %v2998
        %v3000 = vpop.f32.mrb[0].mxu0
        %3001 = vmatprep.mubr.bf16.mxu0 %v1953
        %3002 = vmatmul.mubr.bf16.gmra.mrb[0].mxu0 %v1889
        %v3003 = vpop.f32.mrb[0].mxu0
        %v3004 = vadd.f32 %v2843, %v3003
        %v3005 = vpop.f32.mrb[0].mxu0
        %v3006 = vpop.f32.mrb[0].mxu0
        %v3007 = vadd.f32 %v2846, %v3006
        %v3008 = vpop.f32.mrb[0].mxu0
        %3009 = vmatprep.mubr.bf16.mxu0 %v1954
        %3010 = vmatmul.mubr.bf16.gmra.mrb[0].mxu0 %v1890
        %v3011 = vpop.f32.mrb[0].mxu0
        %v3012 = vadd.f32 %v2851, %v3011
        %v3013 = vpop.f32.mrb[0].mxu0
        %v3014 = vpop.f32.mrb[0].mxu0
        %v3015 = vadd.f32 %v2854, %v3014
        %v3016 = vpop.f32.mrb[0].mxu0
        %3017 = vmatprep.mubr.bf16.mxu0 %v1955
        %3018 = vmatmul.mubr.bf16.gmra.mrb[0].mxu0 %v1891
        %v3019 = vpop.f32.mrb[0].mxu0
        %v3020 = vadd.f32 %v2859, %v3019
        %v3021 = vpop.f32.mrb[0].mxu0
        %v3022 = vpop.f32.mrb[0].mxu0
        %v3023 = vadd.f32 %v2862, %v3022
        %v3024 = vpop.f32.mrb[0].mxu0
        %3025 = vmatprep.mubr.bf16.mxu0 %v1956
        %3026 = vmatmul.mubr.bf16.gmra.mrb[0].mxu0 %v1892
        %v3027 = vpop.f32.mrb[0].mxu0
        %v3028 = vadd.f32 %v2867, %v3027
        %v3029 = vpop.f32.mrb[0].mxu0
        %v3030 = vpop.f32.mrb[0].mxu0
        %v3031 = vadd.f32 %v2870, %v3030
        %v3032 = vpop.f32.mrb[0].mxu0
        %3033 = vmatprep.mubr.bf16.mxu0 %v1957
        %3034 = vmatmul.mubr.bf16.gmra.mrb[0].mxu0 %v1893
        %v3035 = vpop.f32.mrb[0].mxu0
        %v3036 = vadd.f32 %v2875, %v3035
        %v3037 = vpop.f32.mrb[0].mxu0
        %v3038 = vpop.f32.mrb[0].mxu0
        %v3039 = vadd.f32 %v2878, %v3038
        %v3040 = vpop.f32.mrb[0].mxu0
        %3041 = vmatprep.mubr.bf16.mxu0 %v1958
        %3042 = vmatmul.mubr.bf16.gmra.mrb[0].mxu0 %v1894
        %v3043 = vpop.f32.mrb[0].mxu0
        %v3044 = vadd.f32 %v2883, %v3043
        %v3045 = vpop.f32.mrb[0].mxu0
        %v3046 = vpop.f32.mrb[0].mxu0
        %v3047 = vadd.f32 %v2886, %v3046
        %v3048 = vpop.f32.mrb[0].mxu0
        %3049 = vmatprep.mubr.bf16.mxu0 %v1959
        %3050 = vmatmul.mubr.bf16.gmra.mrb[0].mxu0 %v1895
        %v3051 = vpop.f32.mrb[0].mxu0
        %v3052 = vadd.f32 %v2891, %v3051
        %v3053 = vpop.f32.mrb[0].mxu0
        %v3054 = vpop.f32.mrb[0].mxu0
        %v3055 = vadd.f32 %v2894, %v3054
        %v3056 = vpop.f32.mrb[0].mxu0
        %3057 = vmatprep.mubr.bf16.mxu0 %v1986
        %3058 = vmatmul.mubr.bf16.gmra.mrb[0].mxu0 %v1982
        %v3059 = vpop.f32.mrb[0].mxu0
        %v3060 = vadd.f32 %v2899, %v3059
        %v3061 = vpop.f32.mrb[0].mxu0
        %v3062 = vpop.f32.mrb[0].mxu0
        %v3063 = vadd.f32 %v2902, %v3062
        %v3064 = vpop.f32.mrb[0].mxu0
        %3065 = vdwg.mxu0
        %3066 = vmatprep.subr.bf16.mxu0 0
        %3067 = vmatpush1.bf16.msra.mxu0 %v2487
        %3068 = vmatprep.subr.bf16.mxu0 0
        %3069 = vmatpush1.bf16.msra.mxu0 %v2488
        %3070 = vmatprep.subr.bf16.mxu0 0
        %3071 = vmatpush1.bf16.msra.mxu0 %v2489
        %3072 = vmatprep.subr.bf16.mxu0 0
        %3073 = vmatpush1.bf16.msra.mxu0 %v2490
        %3074 = vmatprep.subr.bf16.mxu0 0
        %3075 = vmatpush1.bf16.msra.mxu0 %v2491
        %3076 = vmatprep.subr.bf16.mxu0 0
        %3077 = vmatpush1.bf16.msra.mxu0 %v2492
        %3078 = vmatprep.subr.bf16.mxu0 0
        %3079 = vmatpush1.bf16.msra.mxu0 %v2493
        %3080 = vmatprep.subr.bf16.mxu0 0
        %3081 = vmatpush1.bf16.msra.mxu0 %v2494
        %3082 = vmatprep.subr.bf16.mxu0 0
        %3083 = vmatpush1.bf16.msra.mxu0 %v2495
        %3084 = vmatprep.subr.bf16.mxu0 0
        %3085 = vmatpush1.bf16.msra.mxu0 %v2496
        %3086 = vmatprep.subr.bf16.mxu0 0
        %3087 = vmatpush1.bf16.msra.mxu0 %v2497
        %3088 = vmatprep.subr.bf16.mxu0 0
        %3089 = vmatpush1.bf16.msra.mxu0 %v2498
        %3090 = vmatprep.subr.bf16.mxu0 0
        %3091 = vmatpush1.bf16.msra.mxu0 %v2499
        %3092 = vmatprep.subr.bf16.mxu0 0
        %3093 = vmatpush1.bf16.msra.mxu0 %v2500
        %3094 = vmatprep.subr.bf16.mxu0 0
        %3095 = vmatpush1.bf16.msra.mxu0 %v2501
        %3096 = vmatprep.subr.bf16.mxu0 0
        %3097 = vmatpush1.bf16.msra.mxu0 %v2502
        %3098 = vmatprep.mubr.bf16.mxu0 %v1882
        %3099 = vmatmul.mubr.bf16.gmra.mrb[0].mxu0 %v1818
        %v3100 = vpop.f32.mrb[0].mxu0
        %v3101 = vadd.f32 %v2940, %v3100
        %v3102 = vpop.f32.mrb[0].mxu0
        %v3103 = vpop.f32.mrb[0].mxu0
        %v3104 = vadd.f32 %v2943, %v3103
        %v3105 = vpop.f32.mrb[0].mxu0
        %3106 = vmatprep.mubr.bf16.mxu0 %v1883
        %3107 = vmatmul.mubr.bf16.gmra.mrb[0].mxu0 %v1819
        %v3108 = vpop.f32.mrb[0].mxu0
        %v3109 = vadd.f32 %v2948, %v3108
        %v3110 = vpop.f32.mrb[0].mxu0
        %v3111 = vpop.f32.mrb[0].mxu0
        %v3112 = vadd.f32 %v2951, %v3111
        %v3113 = vpop.f32.mrb[0].mxu0
        %3114 = vmatprep.mubr.bf16.mxu0 %v1884
        %3115 = vmatmul.mubr.bf16.gmra.mrb[0].mxu0 %v1820
        %v3116 = vpop.f32.mrb[0].mxu0
        %v3117 = vadd.f32 %v2956, %v3116
        %v3118 = vpop.f32.mrb[0].mxu0
        %v3119 = vpop.f32.mrb[0].mxu0
        %v3120 = vadd.f32 %v2959, %v3119
        %v3121 = vpop.f32.mrb[0].mxu0
        %3122 = vmatprep.mubr.bf16.mxu0 %v1885
        %3123 = vmatmul.mubr.bf16.gmra.mrb[0].mxu0 %v1821
        %v3124 = vpop.f32.mrb[0].mxu0
        %v3125 = vadd.f32 %v2964, %v3124
        %v3126 = vpop.f32.mrb[0].mxu0
        %v3127 = vpop.f32.mrb[0].mxu0
        %v3128 = vadd.f32 %v2967, %v3127
        %v3129 = vpop.f32.mrb[0].mxu0
        %3130 = vmatprep.mubr.bf16.mxu0 %v1886
        %3131 = vmatmul.mubr.bf16.gmra.mrb[0].mxu0 %v1822
        %v3132 = vpop.f32.mrb[0].mxu0
        %v3133 = vadd.f32 %v2972, %v3132
        %v3134 = vpop.f32.mrb[0].mxu0
        %v3135 = vpop.f32.mrb[0].mxu0
        %v3136 = vadd.f32 %v2975, %v3135
        %v3137 = vpop.f32.mrb[0].mxu0
        %3138 = vmatprep.mubr.bf16.mxu0 %v1887
        %3139 = vmatmul.mubr.bf16.gmra.mrb[0].mxu0 %v1823
        %v3140 = vpop.f32.mrb[0].mxu0
        %v3141 = vadd.f32 %v2980, %v3140
        %v3142 = vpop.f32.mrb[0].mxu0
        %v3143 = vpop.f32.mrb[0].mxu0
        %v3144 = vadd.f32 %v2983, %v3143
        %v3145 = vpop.f32.mrb[0].mxu0
        %3146 = vmatprep.mubr.bf16.mxu0 %v1888
        %3147 = vmatmul.mubr.bf16.gmra.mrb[0].mxu0 %v1824
        %v3148 = vpop.f32.mrb[0].mxu0
        %v3149 = vadd.f32 %v2988, %v3148
        %v3150 = vpop.f32.mrb[0].mxu0
        %v3151 = vpop.f32.mrb[0].mxu0
        %v3152 = vadd.f32 %v2991, %v3151
        %v3153 = vpop.f32.mrb[0].mxu0
        %3154 = vmatprep.mubr.bf16.mxu0 %v1889
        %3155 = vmatmul.mubr.bf16.gmra.mrb[0].mxu0 %v1825
        %v3156 = vpop.f32.mrb[0].mxu0
        %v3157 = vadd.f32 %v2996, %v3156
        %v3158 = vpop.f32.mrb[0].mxu0
        %v3159 = vpop.f32.mrb[0].mxu0
        %v3160 = vadd.f32 %v2999, %v3159
        %v3161 = vpop.f32.mrb[0].mxu0
        %3162 = vmatprep.mubr.bf16.mxu0 %v1890
        %3163 = vmatmul.mubr.bf16.gmra.mrb[0].mxu0 %v1826
        %v3164 = vpop.f32.mrb[0].mxu0
        %v3165 = vadd.f32 %v3004, %v3164
        %v3166 = vpop.f32.mrb[0].mxu0
        %v3167 = vpop.f32.mrb[0].mxu0
        %v3168 = vadd.f32 %v3007, %v3167
        %v3169 = vpop.f32.mrb[0].mxu0
        %3170 = vmatprep.mubr.bf16.mxu0 %v1891
        %3171 = vmatmul.mubr.bf16.gmra.mrb[0].mxu0 %v1827
        %v3172 = vpop.f32.mrb[0].mxu0
        %v3173 = vadd.f32 %v3012, %v3172
        %v3174 = vpop.f32.mrb[0].mxu0
        %v3175 = vpop.f32.mrb[0].mxu0
        %v3176 = vadd.f32 %v3015, %v3175
        %v3177 = vpop.f32.mrb[0].mxu0
        %3178 = vmatprep.mubr.bf16.mxu0 %v1892
        %3179 = vmatmul.mubr.bf16.gmra.mrb[0].mxu0 %v1828
        %v3180 = vpop.f32.mrb[0].mxu0
        %v3181 = vadd.f32 %v3020, %v3180
        %v3182 = vpop.f32.mrb[0].mxu0
        %v3183 = vpop.f32.mrb[0].mxu0
        %v3184 = vadd.f32 %v3023, %v3183
        %v3185 = vpop.f32.mrb[0].mxu0
        %3186 = vmatprep.mubr.bf16.mxu0 %v1893
        %3187 = vmatmul.mubr.bf16.gmra.mrb[0].mxu0 %v1829
        %v3188 = vpop.f32.mrb[0].mxu0
        %v3189 = vadd.f32 %v3028, %v3188
        %v3190 = vpop.f32.mrb[0].mxu0
        %v3191 = vpop.f32.mrb[0].mxu0
        %v3192 = vadd.f32 %v3031, %v3191
        %v3193 = vpop.f32.mrb[0].mxu0
        %3194 = vmatprep.mubr.bf16.mxu0 %v1894
        %3195 = vmatmul.mubr.bf16.gmra.mrb[0].mxu0 %v1830
        %v3196 = vpop.f32.mrb[0].mxu0
        %v3197 = vadd.f32 %v3036, %v3196
        %v3198 = vpop.f32.mrb[0].mxu0
        %v3199 = vpop.f32.mrb[0].mxu0
        %v3200 = vadd.f32 %v3039, %v3199
        %v3201 = vpop.f32.mrb[0].mxu0
        %3202 = vmatprep.mubr.bf16.mxu0 %v1895
        %3203 = vmatmul.mubr.bf16.gmra.mrb[0].mxu0 %v1831
        %v3204 = vpop.f32.mrb[0].mxu0
        %v3205 = vadd.f32 %v3044, %v3204
        %v3206 = vpop.f32.mrb[0].mxu0
        %v3207 = vpop.f32.mrb[0].mxu0
        %v3208 = vadd.f32 %v3047, %v3207
        %v3209 = vpop.f32.mrb[0].mxu0
        %3210 = vmatprep.mubr.bf16.mxu0 %v1982
        %3211 = vmatmul.mubr.bf16.gmra.mrb[0].mxu0 %v1978
        %v3212 = vpop.f32.mrb[0].mxu0
        %v3213 = vadd.f32 %v3052, %v3212
        %v3214 = vpop.f32.mrb[0].mxu0
        %v3215 = vpop.f32.mrb[0].mxu0
        %v3216 = vadd.f32 %v3055, %v3215
        %v3217 = vpop.f32.mrb[0].mxu0
        %3218 = vmatprep.mubr.bf16.mxu0 %v1994
        %3219 = vmatmul.mubr.bf16.gmra.mrb[0].mxu0 %v1990
        %v3220 = vpop.f32.mrb[0].mxu0
        %v3221 = vadd.f32 %v3060, %v3220
        %v3222 = vpop.f32.mrb[0].mxu0
        %v3223 = vpop.f32.mrb[0].mxu0
        %v3224 = vadd.f32 %v3063, %v3223
        %v3225 = vpop.f32.mrb[0].mxu0
        %3226 = vdwg.mxu0
        %3227 = vmatprep.subr.bf16.mxu0 0
        %3228 = vmatpush1.bf16.msra.mxu0 %v2503
        %3229 = vmatprep.subr.bf16.mxu0 0
        %3230 = vmatpush1.bf16.msra.mxu0 %v2504
        %3231 = vmatprep.subr.bf16.mxu0 0
        %3232 = vmatpush1.bf16.msra.mxu0 %v2505
        %3233 = vmatprep.subr.bf16.mxu0 0
        %3234 = vmatpush1.bf16.msra.mxu0 %v2506
        %3235 = vmatprep.subr.bf16.mxu0 0
        %3236 = vmatpush1.bf16.msra.mxu0 %v2507
        %3237 = vmatprep.subr.bf16.mxu0 0
        %3238 = vmatpush1.bf16.msra.mxu0 %v2508
        %3239 = vmatprep.subr.bf16.mxu0 0
        %3240 = vmatpush1.bf16.msra.mxu0 %v2509
        %3241 = vmatprep.subr.bf16.mxu0 0
        %3242 = vmatpush1.bf16.msra.mxu0 %v2510
        %3243 = vmatprep.subr.bf16.mxu0 0
        %3244 = vmatpush1.bf16.msra.mxu0 0
        %3245 = vmatprep.subr.bf16.mxu0 0
        %3246 = vmatpush1.bf16.msra.mxu0 0
        %3247 = vmatprep.subr.bf16.mxu0 0
        %3248 = vmatpush1.bf16.msra.mxu0 0
        %3249 = vmatprep.subr.bf16.mxu0 0
        %3250 = vmatpush1.bf16.msra.mxu0 0
        %3251 = vmatprep.subr.bf16.mxu0 0
        %3252 = vmatpush1.bf16.msra.mxu0 0
        %3253 = vmatprep.subr.bf16.mxu0 0
        %3254 = vmatpush1.bf16.msra.mxu0 0
        %3255 = vmatprep.subr.bf16.mxu0 0
        %3256 = vmatpush1.bf16.msra.mxu0 0
        %3257 = vmatprep.subr.bf16.mxu0 0
        %3258 = vmatpush1.bf16.msra.mxu0 0
        %3259 = vmatprep.mubr.bf16.mxu0 0
        %3260 = vmatmul.mubr.bf16.gmra.mrb[0].mxu0 %v1946
        %v3261 = vpop.f32.mrb[0].mxu0
        %v3262 = vadd.f32 %v3101, %v3261
        %v3263 = vpop.f32.mrb[0].mxu0
        %v3264 = vpop.f32.mrb[0].mxu0
        %v3265 = vadd.f32 %v3104, %v3264
        %v3266 = vpop.f32.mrb[0].mxu0
        %3267 = vmatprep.mubr.bf16.mxu0 0
        %3268 = vmatmul.mubr.bf16.gmra.mrb[0].mxu0 %v1947
        %v3269 = vpop.f32.mrb[0].mxu0
        %v3270 = vadd.f32 %v3109, %v3269
        %v3271 = vpop.f32.mrb[0].mxu0
        %v3272 = vpop.f32.mrb[0].mxu0
        %v3273 = vadd.f32 %v3112, %v3272
        %v3274 = vpop.f32.mrb[0].mxu0
        %3275 = vmatprep.mubr.bf16.mxu0 0
        %3276 = vmatmul.mubr.bf16.gmra.mrb[0].mxu0 %v1948
        %v3277 = vpop.f32.mrb[0].mxu0
        %v3278 = vadd.f32 %v3117, %v3277
        %v3279 = vpop.f32.mrb[0].mxu0
        %v3280 = vpop.f32.mrb[0].mxu0
        %v3281 = vadd.f32 %v3120, %v3280
        %v3282 = vpop.f32.mrb[0].mxu0
        %3283 = vmatprep.mubr.bf16.mxu0 0
        %3284 = vmatmul.mubr.bf16.gmra.mrb[0].mxu0 %v1949
        %v3285 = vpop.f32.mrb[0].mxu0
        %v3286 = vadd.f32 %v3125, %v3285
        %v3287 = vpop.f32.mrb[0].mxu0
        %v3288 = vpop.f32.mrb[0].mxu0
        %v3289 = vadd.f32 %v3128, %v3288
        %v3290 = vpop.f32.mrb[0].mxu0
        %3291 = vmatprep.mubr.bf16.mxu0 0
        %3292 = vmatmul.mubr.bf16.gmra.mrb[0].mxu0 %v1950
        %v3293 = vpop.f32.mrb[0].mxu0
        %v3294 = vadd.f32 %v3133, %v3293
        %v3295 = vpop.f32.mrb[0].mxu0
        %v3296 = vpop.f32.mrb[0].mxu0
        %v3297 = vadd.f32 %v3136, %v3296
        %v3298 = vpop.f32.mrb[0].mxu0
        %3299 = vmatprep.mubr.bf16.mxu0 0
        %3300 = vmatmul.mubr.bf16.gmra.mrb[0].mxu0 %v1951
        %v3301 = vpop.f32.mrb[0].mxu0
        %v3302 = vadd.f32 %v3141, %v3301
        %v3303 = vpop.f32.mrb[0].mxu0
        %v3304 = vpop.f32.mrb[0].mxu0
        %v3305 = vadd.f32 %v3144, %v3304
        %v3306 = vpop.f32.mrb[0].mxu0
        %3307 = vmatprep.mubr.bf16.mxu0 0
        %3308 = vmatmul.mubr.bf16.gmra.mrb[0].mxu0 %v1952
        %v3309 = vpop.f32.mrb[0].mxu0
        %v3310 = vadd.f32 %v3149, %v3309
        %v3311 = vpop.f32.mrb[0].mxu0
        %v3312 = vpop.f32.mrb[0].mxu0
        %v3313 = vadd.f32 %v3152, %v3312
        %v3314 = vpop.f32.mrb[0].mxu0
        %3315 = vmatprep.mubr.bf16.mxu0 0
        %3316 = vmatmul.mubr.bf16.gmra.mrb[0].mxu0 %v1953
        %v3317 = vpop.f32.mrb[0].mxu0
        %v3318 = vadd.f32 %v3157, %v3317
        %v3319 = vpop.f32.mrb[0].mxu0
        %v3320 = vpop.f32.mrb[0].mxu0
        %v3321 = vadd.f32 %v3160, %v3320
        %v3322 = vpop.f32.mrb[0].mxu0
        %3323 = vmatprep.mubr.bf16.mxu0 0
        %3324 = vmatmul.mubr.bf16.gmra.mrb[0].mxu0 %v1954
        %v3325 = vpop.f32.mrb[0].mxu0
        %v3326 = vadd.f32 %v3165, %v3325
        %v3327 = vpop.f32.mrb[0].mxu0
        %v3328 = vpop.f32.mrb[0].mxu0
        %v3329 = vadd.f32 %v3168, %v3328
        %v3330 = vpop.f32.mrb[0].mxu0
        %3331 = vmatprep.mubr.bf16.mxu0 0
        %3332 = vmatmul.mubr.bf16.gmra.mrb[0].mxu0 %v1955
        %v3333 = vpop.f32.mrb[0].mxu0
        %v3334 = vadd.f32 %v3173, %v3333
        %v3335 = vpop.f32.mrb[0].mxu0
        %v3336 = vpop.f32.mrb[0].mxu0
        %v3337 = vadd.f32 %v3176, %v3336
        %v3338 = vpop.f32.mrb[0].mxu0
        %3339 = vmatprep.mubr.bf16.mxu0 0
        %3340 = vmatmul.mubr.bf16.gmra.mrb[0].mxu0 %v1956
        %v3341 = vpop.f32.mrb[0].mxu0
        %v3342 = vadd.f32 %v3181, %v3341
        %v3343 = vpop.f32.mrb[0].mxu0
        %v3344 = vpop.f32.mrb[0].mxu0
        %v3345 = vadd.f32 %v3184, %v3344
        %v3346 = vpop.f32.mrb[0].mxu0
        %3347 = vmatprep.mubr.bf16.mxu0 0
        %3348 = vmatmul.mubr.bf16.gmra.mrb[0].mxu0 %v1957
        %v3349 = vpop.f32.mrb[0].mxu0
        %v3350 = vadd.f32 %v3189, %v3349
        %v3351 = vpop.f32.mrb[0].mxu0
        %v3352 = vpop.f32.mrb[0].mxu0
        %v3353 = vadd.f32 %v3192, %v3352
        %v3354 = vpop.f32.mrb[0].mxu0
        %3355 = vmatprep.mubr.bf16.mxu0 0
        %3356 = vmatmul.mubr.bf16.gmra.mrb[0].mxu0 %v1958
        %v3357 = vpop.f32.mrb[0].mxu0
        %v3358 = vadd.f32 %v3197, %v3357
        %v3359 = vpop.f32.mrb[0].mxu0
        %v3360 = vpop.f32.mrb[0].mxu0
        %v3361 = vadd.f32 %v3200, %v3360
        %v3362 = vpop.f32.mrb[0].mxu0
        %3363 = vmatprep.mubr.bf16.mxu0 0
        %3364 = vmatmul.mubr.bf16.gmra.mrb[0].mxu0 %v1959
        %v3365 = vpop.f32.mrb[0].mxu0
        %v3366 = vadd.f32 %v3205, %v3365
        %v3367 = vpop.f32.mrb[0].mxu0
        %v3368 = vpop.f32.mrb[0].mxu0
        %v3369 = vadd.f32 %v3208, %v3368
        %v3370 = vpop.f32.mrb[0].mxu0
        %3371 = vmatprep.mubr.bf16.mxu0 0
        %3372 = vmatmul.mubr.bf16.gmra.mrb[0].mxu0 %v1986
        %v3373 = vpop.f32.mrb[0].mxu0
        %v3374 = vadd.f32 %v3213, %v3373
        %v3375 = vpop.f32.mrb[0].mxu0
        %v3376 = vpop.f32.mrb[0].mxu0
        %v3377 = vadd.f32 %v3216, %v3376
        %v3378 = vpop.f32.mrb[0].mxu0
        %3379 = vmatprep.mubr.bf16.mxu0 0
        %3380 = vmatmul.mubr.bf16.gmra.mrb[0].mxu0 %v1998
        %v3381 = vpop.f32.mrb[0].mxu0
        %v3382 = vadd.f32 %v3221, %v3381
        %v3383 = vpop.f32.mrb[0].mxu0
        %v3384 = vpop.f32.mrb[0].mxu0
        %v3385 = vadd.f32 %v3224, %v3384
        %v3386 = vpop.f32.mrb[0].mxu0
        %3387 = vdwg.mxu0
        %v3388 = vld [vmem:[%s3] sm:$0x1]
        %v3389 = vld [vmem:[%s4] sm:$0x1]
        %v3390 = vadd.f32 %v3262, %v3265
        %v3391 = vadd.f32 %v3390, %v3270
        %v3392 = vadd.f32 %v3391, %v3273
        %v3393 = vadd.f32 %v3392, %v3278
        %v3394 = vadd.f32 %v3393, %v3281
        %v3395 = vadd.f32 %v3394, %v3286
        %v3396 = vadd.f32 %v3395, %v3289
        %v3397 = vadd.f32 %v3396, %v3294
        %v3398 = vadd.f32 %v3397, %v3297
        %v3399 = vadd.f32 %v3398, %v3302
        %v3400 = vadd.f32 %v3399, %v3305
        %v3401 = vadd.f32 %v3400, %v3310
        %v3402 = vadd.f32 %v3401, %v3313
        %v3403 = vadd.f32 %v3402, %v3318
        %v3404 = vadd.f32 %v3403, %v3321
        %v3405 = vadd.f32 %v3404, %v3326
        %v3406 = vadd.f32 %v3405, %v3329
        %v3407 = vadd.f32 %v3406, %v3334
        %v3408 = vadd.f32 %v3407, %v3337
        %v3409 = vadd.f32 %v3408, %v3342
        %v3410 = vadd.f32 %v3409, %v3345
        %v3411 = vadd.f32 %v3410, %v3350
        %v3412 = vadd.f32 %v3411, %v3353
        %v3413 = vadd.f32 %v3412, %v3358
        %v3414 = vadd.f32 %v3413, %v3361
        %v3415 = vadd.f32 %v3414, %v3366
        %v3416 = vadd.f32 %v3415, %v3369
        %v3417 = vadd.f32 %v3416, %v3374
        %v3418 = vadd.f32 %v3417, %v3377
        %v3419 = vadd.f32 %v3418, %v3382
        %v3420 = vadd.f32 %v3419, %v3385
        %v3421 = vrot.slane %v3420, 4
        %v3422 = vadd.f32 %v3420, %v3421
        %v3423 = vrot.slane %v3422, 2
        %v3424 = vadd.f32 %v3422, %v3423
        %v3425 = vrot.slane %v3424, 1
        %v3426 = vadd.f32 %v3424, %v3425
        %3427 = vmatprep.subr.mxu0 0.0
        %3428 = vmatpush1.msra.mxu0 %v1096
        %3429 = vmatprep.subr.mxu0 0.0
        %3430 = vmatpush1.msra.mxu0 %v1097
        %3431 = vmatprep.subr.mxu0 0.0
        %3432 = vmatpush1.msra.mxu0 %v1098
        %3433 = vmatprep.subr.mxu0 0.0
        %3434 = vmatpush1.msra.mxu0 %v1099
        %3435 = vmatprep.subr.mxu0 0.0
        %3436 = vmatpush1.msra.mxu0 %v1100
        %3437 = vmatprep.subr.mxu0 0.0
        %3438 = vmatpush1.msra.mxu0 %v1101
        %3439 = vmatprep.subr.mxu0 0.0
        %3440 = vmatpush1.msra.mxu0 %v1102
        %3441 = vmatprep.subr.mxu0 0.0
        %3442 = vmatpush1.msra.mxu0 %v1103
        %3443 = vmatprep.subr.mxu0 0.0
        %3444 = vmatpush1.msra.mxu0 %v1104
        %3445 = vmatprep.subr.mxu0 0.0
        %3446 = vmatpush1.msra.mxu0 %v1105
        %3447 = vmatprep.subr.mxu0 0.0
        %3448 = vmatpush1.msra.mxu0 %v1106
        %3449 = vmatprep.subr.mxu0 0.0
        %3450 = vmatpush1.msra.mxu0 %v1107
        %3451 = vmatprep.subr.mxu0 0.0
        %3452 = vmatpush1.msra.mxu0 %v1108
        %3453 = vmatprep.subr.mxu0 0.0
        %3454 = vmatpush1.msra.mxu0 %v1109
        %3455 = vmatprep.subr.mxu0 0.0
        %3456 = vmatpush1.msra.mxu0 %v1110
        %3457 = vmatprep.subr.mxu0 0.0
        %3458 = vmatpush1.msra.mxu0 %v1111
        %3459 = vmatprep.subr.mxu0 0.0
        %3460 = vmatpush1.msra.mxu0 0.0
        %3461 = vmatprep.subr.mxu0 0.0
        %3462 = vmatpush1.msra.mxu0 0.0
        %3463 = vmatprep.subr.mxu0 0.0
        %3464 = vmatpush1.msra.mxu0 0.0
        %3465 = vmatprep.subr.mxu0 0.0
        %3466 = vmatpush1.msra.mxu0 0.0
        %3467 = vmatprep.subr.mxu0 0.0
        %3468 = vmatpush1.msra.mxu0 0.0
        %3469 = vmatprep.subr.mxu0 0.0
        %3470 = vmatpush1.msra.mxu0 0.0
        %3471 = vmatprep.subr.mxu0 0.0
        %3472 = vmatpush1.msra.mxu0 0.0
        %3473 = vmatprep.subr.mxu0 0.0
        %3474 = vmatpush1.msra.mxu0 0.0
        %3475 = vmatprep.subr.mxu0 0.0
        %3476 = vmatpush1.msra.mxu0 0.0
        %3477 = vmatprep.subr.mxu0 0.0
        %3478 = vmatpush1.msra.mxu0 0.0
        %3479 = vmatprep.subr.mxu0 0.0
        %3480 = vmatpush1.msra.mxu0 0.0
        %3481 = vmatprep.subr.mxu0 0.0
        %3482 = vmatpush1.msra.mxu0 0.0
        %3483 = vmatprep.subr.mxu0 0.0
        %3484 = vmatpush1.msra.mxu0 0.0
        %3485 = vmatprep.subr.mxu0 0.0
        %3486 = vmatpush1.msra.mxu0 0.0
        %3487 = vmatprep.subr.mxu0 0.0
        %3488 = vmatpush1.msra.mxu0 0.0
        %3489 = vmatprep.subr.mxu0 0.0
        %3490 = vmatpush1.msra.mxu0 0.0
        %3491 = vmatprep.mubr.f32.mxu0 0.0
        %3492 = vmatmul.mubr.f32.gmra.mrb[0].mxu0 %v3426
        %v3493 = vpop.f32.mrb[0].mxu0
        %v3494 = vadd.f32 0.0, %v3493
        %v3495 = vpop.f32.mrb[0].mxu0
        %3496 = vdwg.mxu0
        %v3497 = vlaneseq
        %v3498 = vshrl.u32 %v3497, 7
        %v3499 = vsub.s32 0, %v3498
        %v3500 = vrot.slane %v3494, %v3499
        %v3501 = vsub.f32 %v3262, %v3500
        %v3502 = vsub.f32 %v3265, %v3500
        %v3503 = vsub.f32 %v3270, %v3500
        %v3504 = vsub.f32 %v3273, %v3500
        %v3505 = vsub.f32 %v3278, %v3500
        %v3506 = vsub.f32 %v3281, %v3500
        %v3507 = vsub.f32 %v3286, %v3500
        %v3508 = vsub.f32 %v3289, %v3500
        %v3509 = vsub.f32 %v3294, %v3500
        %v3510 = vsub.f32 %v3297, %v3500
        %v3511 = vsub.f32 %v3302, %v3500
        %v3512 = vsub.f32 %v3305, %v3500
        %v3513 = vsub.f32 %v3310, %v3500
        %v3514 = vsub.f32 %v3313, %v3500
        %v3515 = vsub.f32 %v3318, %v3500
        %v3516 = vsub.f32 %v3321, %v3500
        %v3517 = vsub.f32 %v3326, %v3500
        %v3518 = vsub.f32 %v3329, %v3500
        %v3519 = vsub.f32 %v3334, %v3500
        %v3520 = vsub.f32 %v3337, %v3500
        %v3521 = vsub.f32 %v3342, %v3500
        %v3522 = vsub.f32 %v3345, %v3500
        %v3523 = vsub.f32 %v3350, %v3500
        %v3524 = vsub.f32 %v3353, %v3500
        %v3525 = vsub.f32 %v3358, %v3500
        %v3526 = vsub.f32 %v3361, %v3500
        %v3527 = vsub.f32 %v3366, %v3500
        %v3528 = vsub.f32 %v3369, %v3500
        %v3529 = vsub.f32 %v3374, %v3500
        %v3530 = vsub.f32 %v3377, %v3500
        %v3531 = vsub.f32 %v3382, %v3500
        %v3532 = vsub.f32 %v3385, %v3500
        %v3533 = vmul.f32 %v3501, %v3501
        %v3534 = vmul.f32 %v3502, %v3502
        %v3535 = vmul.f32 %v3503, %v3503
        %v3536 = vmul.f32 %v3504, %v3504
        %v3537 = vmul.f32 %v3505, %v3505
        %v3538 = vmul.f32 %v3506, %v3506
        %v3539 = vmul.f32 %v3507, %v3507
        %v3540 = vmul.f32 %v3508, %v3508
        %v3541 = vmul.f32 %v3509, %v3509
        %v3542 = vmul.f32 %v3510, %v3510
        %v3543 = vmul.f32 %v3511, %v3511
        %v3544 = vmul.f32 %v3512, %v3512
        %v3545 = vmul.f32 %v3513, %v3513
        %v3546 = vmul.f32 %v3514, %v3514
        %v3547 = vmul.f32 %v3515, %v3515
        %v3548 = vmul.f32 %v3516, %v3516
        %v3549 = vmul.f32 %v3517, %v3517
        %v3550 = vmul.f32 %v3518, %v3518
        %v3551 = vmul.f32 %v3519, %v3519
        %v3552 = vmul.f32 %v3520, %v3520
        %v3553 = vmul.f32 %v3521, %v3521
        %v3554 = vmul.f32 %v3522, %v3522
        %v3555 = vmul.f32 %v3523, %v3523
        %v3556 = vmul.f32 %v3524, %v3524
        %v3557 = vmul.f32 %v3525, %v3525
        %v3558 = vmul.f32 %v3526, %v3526
        %v3559 = vmul.f32 %v3527, %v3527
        %v3560 = vmul.f32 %v3528, %v3528
        %v3561 = vmul.f32 %v3529, %v3529
        %v3562 = vmul.f32 %v3530, %v3530
        %v3563 = vmul.f32 %v3531, %v3531
        %v3564 = vmul.f32 %v3532, %v3532
        %v3565 = vadd.f32 %v3533, %v3534
        %v3566 = vadd.f32 %v3565, %v3535
        %v3567 = vadd.f32 %v3566, %v3536
        %v3568 = vadd.f32 %v3567, %v3537
        %v3569 = vadd.f32 %v3568, %v3538
        %v3570 = vadd.f32 %v3569, %v3539
        %v3571 = vadd.f32 %v3570, %v3540
        %v3572 = vadd.f32 %v3571, %v3541
        %v3573 = vadd.f32 %v3572, %v3542
        %v3574 = vadd.f32 %v3573, %v3543
        %v3575 = vadd.f32 %v3574, %v3544
        %v3576 = vadd.f32 %v3575, %v3545
        %v3577 = vadd.f32 %v3576, %v3546
        %v3578 = vadd.f32 %v3577, %v3547
        %v3579 = vadd.f32 %v3578, %v3548
        %v3580 = vadd.f32 %v3579, %v3549
        %v3581 = vadd.f32 %v3580, %v3550
        %v3582 = vadd.f32 %v3581, %v3551
        %v3583 = vadd.f32 %v3582, %v3552
        %v3584 = vadd.f32 %v3583, %v3553
        %v3585 = vadd.f32 %v3584, %v3554
        %v3586 = vadd.f32 %v3585, %v3555
        %v3587 = vadd.f32 %v3586, %v3556
        %v3588 = vadd.f32 %v3587, %v3557
        %v3589 = vadd.f32 %v3588, %v3558
        %v3590 = vadd.f32 %v3589, %v3559
        %v3591 = vadd.f32 %v3590, %v3560
        %v3592 = vadd.f32 %v3591, %v3561
        %v3593 = vadd.f32 %v3592, %v3562
        %v3594 = vadd.f32 %v3593, %v3563
        %v3595 = vadd.f32 %v3594, %v3564
        %v3596 = vrot.slane %v3595, 4
        %v3597 = vadd.f32 %v3595, %v3596
        %v3598 = vrot.slane %v3597, 2
        %v3599 = vadd.f32 %v3597, %v3598
        %v3600 = vrot.slane %v3599, 1
        %v3601 = vadd.f32 %v3599, %v3600
        %3602 = vmatprep.subr.mxu0 0.0
        %3603 = vmatpush1.msra.mxu0 %v1096
        %3604 = vmatprep.subr.mxu0 0.0
        %3605 = vmatpush1.msra.mxu0 %v1097
        %3606 = vmatprep.subr.mxu0 0.0
        %3607 = vmatpush1.msra.mxu0 %v1098
        %3608 = vmatprep.subr.mxu0 0.0
        %3609 = vmatpush1.msra.mxu0 %v1099
        %3610 = vmatprep.subr.mxu0 0.0
        %3611 = vmatpush1.msra.mxu0 %v1100
        %3612 = vmatprep.subr.mxu0 0.0
        %3613 = vmatpush1.msra.mxu0 %v1101
        %3614 = vmatprep.subr.mxu0 0.0
        %3615 = vmatpush1.msra.mxu0 %v1102
        %3616 = vmatprep.subr.mxu0 0.0
        %3617 = vmatpush1.msra.mxu0 %v1103
        %3618 = vmatprep.subr.mxu0 0.0
        %3619 = vmatpush1.msra.mxu0 %v1104
        %3620 = vmatprep.subr.mxu0 0.0
        %3621 = vmatpush1.msra.mxu0 %v1105
        %3622 = vmatprep.subr.mxu0 0.0
        %3623 = vmatpush1.msra.mxu0 %v1106
        %3624 = vmatprep.subr.mxu0 0.0
        %3625 = vmatpush1.msra.mxu0 %v1107
        %3626 = vmatprep.subr.mxu0 0.0
        %3627 = vmatpush1.msra.mxu0 %v1108
        %3628 = vmatprep.subr.mxu0 0.0
        %3629 = vmatpush1.msra.mxu0 %v1109
        %3630 = vmatprep.subr.mxu0 0.0
        %3631 = vmatpush1.msra.mxu0 %v1110
        %3632 = vmatprep.subr.mxu0 0.0
        %3633 = vmatpush1.msra.mxu0 %v1111
        %3634 = vmatprep.subr.mxu0 0.0
        %3635 = vmatpush1.msra.mxu0 0.0
        %3636 = vmatprep.subr.mxu0 0.0
        %3637 = vmatpush1.msra.mxu0 0.0
        %3638 = vmatprep.subr.mxu0 0.0
        %3639 = vmatpush1.msra.mxu0 0.0
        %3640 = vmatprep.subr.mxu0 0.0
        %3641 = vmatpush1.msra.mxu0 0.0
        %3642 = vmatprep.subr.mxu0 0.0
        %3643 = vmatpush1.msra.mxu0 0.0
        %3644 = vmatprep.subr.mxu0 0.0
        %3645 = vmatpush1.msra.mxu0 0.0
        %3646 = vmatprep.subr.mxu0 0.0
        %3647 = vmatpush1.msra.mxu0 0.0
        %3648 = vmatprep.subr.mxu0 0.0
        %3649 = vmatpush1.msra.mxu0 0.0
        %3650 = vmatprep.subr.mxu0 0.0
        %3651 = vmatpush1.msra.mxu0 0.0
        %3652 = vmatprep.subr.mxu0 0.0
        %3653 = vmatpush1.msra.mxu0 0.0
        %3654 = vmatprep.subr.mxu0 0.0
        %3655 = vmatpush1.msra.mxu0 0.0
        %3656 = vmatprep.subr.mxu0 0.0
        %3657 = vmatpush1.msra.mxu0 0.0
        %3658 = vmatprep.subr.mxu0 0.0
        %3659 = vmatpush1.msra.mxu0 0.0
        %3660 = vmatprep.subr.mxu0 0.0
        %3661 = vmatpush1.msra.mxu0 0.0
        %3662 = vmatprep.subr.mxu0 0.0
        %3663 = vmatpush1.msra.mxu0 0.0
        %3664 = vmatprep.subr.mxu0 0.0
        %3665 = vmatpush1.msra.mxu0 0.0
        %3666 = vmatprep.mubr.f32.mxu0 0.0
        %3667 = vmatmul.mubr.f32.gmra.mrb[0].mxu0 %v3601
        %v3668 = vpop.f32.mrb[0].mxu0
        %v3669 = vadd.f32 1e-05, %v3668
        %v3670 = vpop.f32.mrb[0].mxu0
        %3671 = vdwg.mxu0
        %v3672 = vrsqrt.pop %v3669
        %v3673 = vmul.f32 %v3672, %v3388
        %v3674 = vlaneseq
        %v3675 = vshrl.u32 %v3674, 7
        %v3676 = vsub.s32 0, %v3675
        %v3677 = vrot.slane %v3673, %v3676
        %v3678 = vmul.f32 %v3501, %v3677
        %v3679 = vmul.f32 %v3502, %v3677
        %v3680 = vmul.f32 %v3503, %v3677
        %v3681 = vmul.f32 %v3504, %v3677
        %v3682 = vmul.f32 %v3505, %v3677
        %v3683 = vmul.f32 %v3506, %v3677
        %v3684 = vmul.f32 %v3507, %v3677
        %v3685 = vmul.f32 %v3508, %v3677
        %v3686 = vmul.f32 %v3509, %v3677
        %v3687 = vmul.f32 %v3510, %v3677
        %v3688 = vmul.f32 %v3511, %v3677
        %v3689 = vmul.f32 %v3512, %v3677
        %v3690 = vmul.f32 %v3513, %v3677
        %v3691 = vmul.f32 %v3514, %v3677
        %v3692 = vmul.f32 %v3515, %v3677
        %v3693 = vmul.f32 %v3516, %v3677
        %v3694 = vmul.f32 %v3517, %v3677
        %v3695 = vmul.f32 %v3518, %v3677
        %v3696 = vmul.f32 %v3519, %v3677
        %v3697 = vmul.f32 %v3520, %v3677
        %v3698 = vmul.f32 %v3521, %v3677
        %v3699 = vmul.f32 %v3522, %v3677
        %v3700 = vmul.f32 %v3523, %v3677
        %v3701 = vmul.f32 %v3524, %v3677
        %v3702 = vmul.f32 %v3525, %v3677
        %v3703 = vmul.f32 %v3526, %v3677
        %v3704 = vmul.f32 %v3527, %v3677
        %v3705 = vmul.f32 %v3528, %v3677
        %v3706 = vmul.f32 %v3529, %v3677
        %v3707 = vmul.f32 %v3530, %v3677
        %v3708 = vmul.f32 %v3531, %v3677
        %v3709 = vmul.f32 %v3532, %v3677
        %v3711 = vlaneseq
        %v3712 = vshrl.u32 %v3711, 7
        %v3713 = vsub.s32 0, %v3712
        %v3714 = vrot.slane %v3389, %v3713
        %v3716 = vadd.f32 %v3678, %v3714
        %v3717 = vadd.f32 %v3679, %v3714
        %v3718 = vadd.f32 %v3680, %v3714
        %v3719 = vadd.f32 %v3681, %v3714
        %v3720 = vadd.f32 %v3682, %v3714
        %v3721 = vadd.f32 %v3683, %v3714
        %v3722 = vadd.f32 %v3684, %v3714
        %v3723 = vadd.f32 %v3685, %v3714
        %v3724 = vadd.f32 %v3686, %v3714
        %v3725 = vadd.f32 %v3687, %v3714
        %v3726 = vadd.f32 %v3688, %v3714
        %v3727 = vadd.f32 %v3689, %v3714
        %v3728 = vadd.f32 %v3690, %v3714
        %v3729 = vadd.f32 %v3691, %v3714
        %v3730 = vadd.f32 %v3692, %v3714
        %v3731 = vadd.f32 %v3693, %v3714
        %v3732 = vadd.f32 %v3694, %v3714
        %v3733 = vadd.f32 %v3695, %v3714
        %v3734 = vadd.f32 %v3696, %v3714
        %v3735 = vadd.f32 %v3697, %v3714
        %v3736 = vadd.f32 %v3698, %v3714
        %v3737 = vadd.f32 %v3699, %v3714
        %v3738 = vadd.f32 %v3700, %v3714
        %v3739 = vadd.f32 %v3701, %v3714
        %v3740 = vadd.f32 %v3702, %v3714
        %v3741 = vadd.f32 %v3703, %v3714
        %v3742 = vadd.f32 %v3704, %v3714
        %v3743 = vadd.f32 %v3705, %v3714
        %v3744 = vadd.f32 %v3706, %v3714
        %v3745 = vadd.f32 %v3707, %v3714
        %v3746 = vadd.f32 %v3708, %v3714
        %v3747 = vadd.f32 %v3709, %v3714
        %v3748 = vmul.f32 %v3716, 0.5
        %v3749 = vmul.f32 %v3717, 0.5
        %v3750 = vmul.f32 %v3718, 0.5
        %v3751 = vmul.f32 %v3719, 0.5
        %v3752 = vmul.f32 %v3720, 0.5
        %v3753 = vmul.f32 %v3721, 0.5
        %v3754 = vmul.f32 %v3722, 0.5
        %v3755 = vmul.f32 %v3723, 0.5
        %v3756 = vmul.f32 %v3724, 0.5
        %v3757 = vmul.f32 %v3725, 0.5
        %v3758 = vmul.f32 %v3726, 0.5
        %v3759 = vmul.f32 %v3727, 0.5
        %v3760 = vmul.f32 %v3728, 0.5
        %v3761 = vmul.f32 %v3729, 0.5
        %v3762 = vmul.f32 %v3730, 0.5
        %v3763 = vmul.f32 %v3731, 0.5
        %v3764 = vmul.f32 %v3732, 0.5
        %v3765 = vmul.f32 %v3733, 0.5
        %v3766 = vmul.f32 %v3734, 0.5
        %v3767 = vmul.f32 %v3735, 0.5
        %v3768 = vmul.f32 %v3736, 0.5
        %v3769 = vmul.f32 %v3737, 0.5
        %v3770 = vmul.f32 %v3738, 0.5
        %v3771 = vmul.f32 %v3739, 0.5
        %v3772 = vmul.f32 %v3740, 0.5
        %v3773 = vmul.f32 %v3741, 0.5
        %v3774 = vmul.f32 %v3742, 0.5
        %v3775 = vmul.f32 %v3743, 0.5
        %v3776 = vmul.f32 %v3744, 0.5
        %v3777 = vmul.f32 %v3745, 0.5
        %v3778 = vmul.f32 %v3746, 0.5
        %v3779 = vmul.f32 %v3747, 0.5
        %v3780 = vmul.f32 %v3716, %v3716
        %v3781 = vmul.f32 %v3717, %v3717
        %v3782 = vmul.f32 %v3718, %v3718
        %v3783 = vmul.f32 %v3719, %v3719
        %v3784 = vmul.f32 %v3720, %v3720
        %v3785 = vmul.f32 %v3721, %v3721
        %v3786 = vmul.f32 %v3722, %v3722
        %v3787 = vmul.f32 %v3723, %v3723
        %v3788 = vmul.f32 %v3724, %v3724
        %v3789 = vmul.f32 %v3725, %v3725
        %v3790 = vmul.f32 %v3726, %v3726
        %v3791 = vmul.f32 %v3727, %v3727
        %v3792 = vmul.f32 %v3728, %v3728
        %v3793 = vmul.f32 %v3729, %v3729
        %v3794 = vmul.f32 %v3730, %v3730
        %v3795 = vmul.f32 %v3731, %v3731
        %v3796 = vmul.f32 %v3732, %v3732
        %v3797 = vmul.f32 %v3733, %v3733
        %v3798 = vmul.f32 %v3734, %v3734
        %v3799 = vmul.f32 %v3735, %v3735
        %v3800 = vmul.f32 %v3736, %v3736
        %v3801 = vmul.f32 %v3737, %v3737
        %v3802 = vmul.f32 %v3738, %v3738
        %v3803 = vmul.f32 %v3739, %v3739
        %v3804 = vmul.f32 %v3740, %v3740
        %v3805 = vmul.f32 %v3741, %v3741
        %v3806 = vmul.f32 %v3742, %v3742
        %v3807 = vmul.f32 %v3743, %v3743
        %v3808 = vmul.f32 %v3744, %v3744
        %v3809 = vmul.f32 %v3745, %v3745
        %v3810 = vmul.f32 %v3746, %v3746
        %v3811 = vmul.f32 %v3747, %v3747
        %v3812 = vmul.f32 %v3780, %v3716
        %v3813 = vmul.f32 %v3781, %v3717
        %v3814 = vmul.f32 %v3782, %v3718
        %v3815 = vmul.f32 %v3783, %v3719
        %v3816 = vmul.f32 %v3784, %v3720
        %v3817 = vmul.f32 %v3785, %v3721
        %v3818 = vmul.f32 %v3786, %v3722
        %v3819 = vmul.f32 %v3787, %v3723
        %v3820 = vmul.f32 %v3788, %v3724
        %v3821 = vmul.f32 %v3789, %v3725
        %v3822 = vmul.f32 %v3790, %v3726
        %v3823 = vmul.f32 %v3791, %v3727
        %v3824 = vmul.f32 %v3792, %v3728
        %v3825 = vmul.f32 %v3793, %v3729
        %v3826 = vmul.f32 %v3794, %v3730
        %v3827 = vmul.f32 %v3795, %v3731
        %v3828 = vmul.f32 %v3796, %v3732
        %v3829 = vmul.f32 %v3797, %v3733
        %v3830 = vmul.f32 %v3798, %v3734
        %v3831 = vmul.f32 %v3799, %v3735
        %v3832 = vmul.f32 %v3800, %v3736
        %v3833 = vmul.f32 %v3801, %v3737
        %v3834 = vmul.f32 %v3802, %v3738
        %v3835 = vmul.f32 %v3803, %v3739
        %v3836 = vmul.f32 %v3804, %v3740
        %v3837 = vmul.f32 %v3805, %v3741
        %v3838 = vmul.f32 %v3806, %v3742
        %v3839 = vmul.f32 %v3807, %v3743
        %v3840 = vmul.f32 %v3808, %v3744
        %v3841 = vmul.f32 %v3809, %v3745
        %v3842 = vmul.f32 %v3810, %v3746
        %v3843 = vmul.f32 %v3811, %v3747
        %v3844 = vmul.f32 %v3812, 0.044715
        %v3845 = vmul.f32 %v3813, 0.044715
        %v3846 = vmul.f32 %v3814, 0.044715
        %v3847 = vmul.f32 %v3815, 0.044715
        %v3848 = vmul.f32 %v3816, 0.044715
        %v3849 = vmul.f32 %v3817, 0.044715
        %v3850 = vmul.f32 %v3818, 0.044715
        %v3851 = vmul.f32 %v3819, 0.044715
        %v3852 = vmul.f32 %v3820, 0.044715
        %v3853 = vmul.f32 %v3821, 0.044715
        %v3854 = vmul.f32 %v3822, 0.044715
        %v3855 = vmul.f32 %v3823, 0.044715
        %v3856 = vmul.f32 %v3824, 0.044715
        %v3857 = vmul.f32 %v3825, 0.044715
        %v3858 = vmul.f32 %v3826, 0.044715
        %v3859 = vmul.f32 %v3827, 0.044715
        %v3860 = vmul.f32 %v3828, 0.044715
        %v3861 = vmul.f32 %v3829, 0.044715
        %v3862 = vmul.f32 %v3830, 0.044715
        %v3863 = vmul.f32 %v3831, 0.044715
        %v3864 = vmul.f32 %v3832, 0.044715
        %v3865 = vmul.f32 %v3833, 0.044715
        %v3866 = vmul.f32 %v3834, 0.044715
        %v3867 = vmul.f32 %v3835, 0.044715
        %v3868 = vmul.f32 %v3836, 0.044715
        %v3869 = vmul.f32 %v3837, 0.044715
        %v3870 = vmul.f32 %v3838, 0.044715
        %v3871 = vmul.f32 %v3839, 0.044715
        %v3872 = vmul.f32 %v3840, 0.044715
        %v3873 = vmul.f32 %v3841, 0.044715
        %v3874 = vmul.f32 %v3842, 0.044715
        %v3875 = vmul.f32 %v3843, 0.044715
        %v3876 = vadd.f32 %v3716, %v3844
        %v3877 = vadd.f32 %v3717, %v3845
        %v3878 = vadd.f32 %v3718, %v3846
        %v3879 = vadd.f32 %v3719, %v3847
        %v3880 = vadd.f32 %v3720, %v3848
        %v3881 = vadd.f32 %v3721, %v3849
        %v3882 = vadd.f32 %v3722, %v3850
        %v3883 = vadd.f32 %v3723, %v3851
        %v3884 = vadd.f32 %v3724, %v3852
        %v3885 = vadd.f32 %v3725, %v3853
        %v3886 = vadd.f32 %v3726, %v3854
        %v3887 = vadd.f32 %v3727, %v3855
        %v3888 = vadd.f32 %v3728, %v3856
        %v3889 = vadd.f32 %v3729, %v3857
        %v3890 = vadd.f32 %v3730, %v3858
        %v3891 = vadd.f32 %v3731, %v3859
        %v3892 = vadd.f32 %v3732, %v3860
        %v3893 = vadd.f32 %v3733, %v3861
        %v3894 = vadd.f32 %v3734, %v3862
        %v3895 = vadd.f32 %v3735, %v3863
        %v3896 = vadd.f32 %v3736, %v3864
        %v3897 = vadd.f32 %v3737, %v3865
        %v3898 = vadd.f32 %v3738, %v3866
        %v3899 = vadd.f32 %v3739, %v3867
        %v3900 = vadd.f32 %v3740, %v3868
        %v3901 = vadd.f32 %v3741, %v3869
        %v3902 = vadd.f32 %v3742, %v3870
        %v3903 = vadd.f32 %v3743, %v3871
        %v3904 = vadd.f32 %v3744, %v3872
        %v3905 = vadd.f32 %v3745, %v3873
        %v3906 = vadd.f32 %v3746, %v3874
        %v3907 = vadd.f32 %v3747, %v3875
        %v3908 = vmul.f32 %v3876, 0.7978846
        %v3909 = vmul.f32 %v3877, 0.7978846
        %v3910 = vmul.f32 %v3878, 0.7978846
        %v3911 = vmul.f32 %v3879, 0.7978846
        %v3912 = vmul.f32 %v3880, 0.7978846
        %v3913 = vmul.f32 %v3881, 0.7978846
        %v3914 = vmul.f32 %v3882, 0.7978846
        %v3915 = vmul.f32 %v3883, 0.7978846
        %v3916 = vmul.f32 %v3884, 0.7978846
        %v3917 = vmul.f32 %v3885, 0.7978846
        %v3918 = vmul.f32 %v3886, 0.7978846
        %v3919 = vmul.f32 %v3887, 0.7978846
        %v3920 = vmul.f32 %v3888, 0.7978846
        %v3921 = vmul.f32 %v3889, 0.7978846
        %v3922 = vmul.f32 %v3890, 0.7978846
        %v3923 = vmul.f32 %v3891, 0.7978846
        %v3924 = vmul.f32 %v3892, 0.7978846
        %v3925 = vmul.f32 %v3893, 0.7978846
        %v3926 = vmul.f32 %v3894, 0.7978846
        %v3927 = vmul.f32 %v3895, 0.7978846
        %v3928 = vmul.f32 %v3896, 0.7978846
        %v3929 = vmul.f32 %v3897, 0.7978846
        %v3930 = vmul.f32 %v3898, 0.7978846
        %v3931 = vmul.f32 %v3899, 0.7978846
        %v3932 = vmul.f32 %v3900, 0.7978846
        %v3933 = vmul.f32 %v3901, 0.7978846
        %v3934 = vmul.f32 %v3902, 0.7978846
        %v3935 = vmul.f32 %v3903, 0.7978846
        %v3936 = vmul.f32 %v3904, 0.7978846
        %v3937 = vmul.f32 %v3905, 0.7978846
        %v3938 = vmul.f32 %v3906, 0.7978846
        %v3939 = vmul.f32 %v3907, 0.7978846
        %v3940 = vtanh.pop %v3908
        %v3941 = vtanh.pop %v3909
        %v3942 = vtanh.pop %v3910
        %v3943 = vtanh.pop %v3911
        %v3944 = vtanh.pop %v3912
        %v3945 = vtanh.pop %v3913
        %v3946 = vtanh.pop %v3914
        %v3947 = vtanh.pop %v3915
        %v3948 = vtanh.pop %v3916
        %v3949 = vtanh.pop %v3917
        %v3950 = vtanh.pop %v3918
        %v3951 = vtanh.pop %v3919
        %v3952 = vtanh.pop %v3920
        %v3953 = vtanh.pop %v3921
        %v3954 = vtanh.pop %v3922
        %v3955 = vtanh.pop %v3923
        %v3956 = vtanh.pop %v3924
        %v3957 = vtanh.pop %v3925
        %v3958 = vtanh.pop %v3926
        %v3959 = vtanh.pop %v3927
        %v3960 = vtanh.pop %v3928
        %v3961 = vtanh.pop %v3929
        %v3962 = vtanh.pop %v3930
        %v3963 = vtanh.pop %v3931
        %v3964 = vtanh.pop %v3932
        %v3965 = vtanh.pop %v3933
        %v3966 = vtanh.pop %v3934
        %v3967 = vtanh.pop %v3935
        %v3968 = vtanh.pop %v3936
        %v3969 = vtanh.pop %v3937
        %v3970 = vtanh.pop %v3938
        %v3971 = vtanh.pop %v3939
        %v3972 = vadd.f32 %v3940, 1.0
        %v3973 = vadd.f32 %v3941, 1.0
        %v3974 = vadd.f32 %v3942, 1.0
        %v3975 = vadd.f32 %v3943, 1.0
        %v3976 = vadd.f32 %v3944, 1.0
        %v3977 = vadd.f32 %v3945, 1.0
        %v3978 = vadd.f32 %v3946, 1.0
        %v3979 = vadd.f32 %v3947, 1.0
        %v3980 = vadd.f32 %v3948, 1.0
        %v3981 = vadd.f32 %v3949, 1.0
        %v3982 = vadd.f32 %v3950, 1.0
        %v3983 = vadd.f32 %v3951, 1.0
        %v3984 = vadd.f32 %v3952, 1.0
        %v3985 = vadd.f32 %v3953, 1.0
        %v3986 = vadd.f32 %v3954, 1.0
        %v3987 = vadd.f32 %v3955, 1.0
        %v3988 = vadd.f32 %v3956, 1.0
        %v3989 = vadd.f32 %v3957, 1.0
        %v3990 = vadd.f32 %v3958, 1.0
        %v3991 = vadd.f32 %v3959, 1.0
        %v3992 = vadd.f32 %v3960, 1.0
        %v3993 = vadd.f32 %v3961, 1.0
        %v3994 = vadd.f32 %v3962, 1.0
        %v3995 = vadd.f32 %v3963, 1.0
        %v3996 = vadd.f32 %v3964, 1.0
        %v3997 = vadd.f32 %v3965, 1.0
        %v3998 = vadd.f32 %v3966, 1.0
        %v3999 = vadd.f32 %v3967, 1.0
        %v4000 = vadd.f32 %v3968, 1.0
        %v4001 = vadd.f32 %v3969, 1.0
        %v4002 = vadd.f32 %v3970, 1.0
        %v4003 = vadd.f32 %v3971, 1.0
        %v4004 = vmul.f32 %v3748, %v3972
        %v4005 = vmul.f32 %v3749, %v3973
        %v4006 = vmul.f32 %v3750, %v3974
        %v4007 = vmul.f32 %v3751, %v3975
        %v4008 = vmul.f32 %v3752, %v3976
        %v4009 = vmul.f32 %v3753, %v3977
        %v4010 = vmul.f32 %v3754, %v3978
        %v4011 = vmul.f32 %v3755, %v3979
        %v4012 = vmul.f32 %v3756, %v3980
        %v4013 = vmul.f32 %v3757, %v3981
        %v4014 = vmul.f32 %v3758, %v3982
        %v4015 = vmul.f32 %v3759, %v3983
        %v4016 = vmul.f32 %v3760, %v3984
        %v4017 = vmul.f32 %v3761, %v3985
        %v4018 = vmul.f32 %v3762, %v3986
        %v4019 = vmul.f32 %v3763, %v3987
        %v4020 = vmul.f32 %v3764, %v3988
        %v4021 = vmul.f32 %v3765, %v3989
        %v4022 = vmul.f32 %v3766, %v3990
        %v4023 = vmul.f32 %v3767, %v3991
        %v4024 = vmul.f32 %v3768, %v3992
        %v4025 = vmul.f32 %v3769, %v3993
        %v4026 = vmul.f32 %v3770, %v3994
        %v4027 = vmul.f32 %v3771, %v3995
        %v4028 = vmul.f32 %v3772, %v3996
        %v4029 = vmul.f32 %v3773, %v3997
        %v4030 = vmul.f32 %v3774, %v3998
        %v4031 = vmul.f32 %v3775, %v3999
        %v4032 = vmul.f32 %v3776, %v4000
        %v4033 = vmul.f32 %v3777, %v4001
        %v4034 = vmul.f32 %v3778, %v4002
        %v4035 = vmul.f32 %v3779, %v4003
        %v4036 = vpack.c.bf16 %v4005, %v4004
        %v4037 = vpack.c.bf16 %v4007, %v4006
        %v4038 = vpack.c.bf16 %v4009, %v4008
        %v4039 = vpack.c.bf16 %v4011, %v4010
        %v4040 = vpack.c.bf16 %v4013, %v4012
        %v4041 = vpack.c.bf16 %v4015, %v4014
        %v4042 = vpack.c.bf16 %v4017, %v4016
        %v4043 = vpack.c.bf16 %v4019, %v4018
        %v4044 = vpack.c.bf16 %v4021, %v4020
        %v4045 = vpack.c.bf16 %v4023, %v4022
        %v4046 = vpack.c.bf16 %v4025, %v4024
        %v4047 = vpack.c.bf16 %v4027, %v4026
        %v4048 = vpack.c.bf16 %v4029, %v4028
        %v4049 = vpack.c.bf16 %v4031, %v4030
        %v4050 = vpack.c.bf16 %v4033, %v4032
        %v4051 = vpack.c.bf16 %v4035, %v4034
        %v4068 = vunpack.c.l.b16 %v4036
        %v4069 = vunpack.c.h.b16 %v4036
        %v4070 = vunpack.c.l.b16 %v4037
        %v4071 = vunpack.c.h.b16 %v4037
        %v4072 = vunpack.c.l.b16 %v4038
        %v4073 = vunpack.c.h.b16 %v4038
        %v4074 = vunpack.c.l.b16 %v4039
        %v4075 = vunpack.c.h.b16 %v4039
        %v4076 = vunpack.c.l.b16 %v4040
        %v4077 = vunpack.c.h.b16 %v4040
        %v4078 = vunpack.c.l.b16 %v4041
        %v4079 = vunpack.c.h.b16 %v4041
        %v4080 = vunpack.c.l.b16 %v4042
        %v4081 = vunpack.c.h.b16 %v4042
        %v4082 = vunpack.c.l.b16 %v4043
        %v4083 = vunpack.c.h.b16 %v4043
        %v4084 = vunpack.c.l.b16 %v4044
        %v4085 = vunpack.c.h.b16 %v4044
        %v4086 = vunpack.c.l.b16 %v4045
        %v4087 = vunpack.c.h.b16 %v4045
        %v4088 = vunpack.c.l.b16 %v4046
        %v4089 = vunpack.c.h.b16 %v4046
        %v4090 = vunpack.c.l.b16 %v4047
        %v4091 = vunpack.c.h.b16 %v4047
        %v4092 = vunpack.c.l.b16 %v4048
        %v4093 = vunpack.c.h.b16 %v4048
        %v4094 = vunpack.c.l.b16 %v4049
        %v4095 = vunpack.c.h.b16 %v4049
        %v4096 = vunpack.c.l.b16 %v4050
        %v4097 = vunpack.c.h.b16 %v4050
        %v4098 = vunpack.c.l.b16 %v4051
        %v4099 = vunpack.c.h.b16 %v4051
        %v4100 = vpack.c.b16 %v4068, %v4068
        %v4101 = vpack.c.b16 %v4069, %v4069
        %v4102 = vpack.c.b16 %v4070, %v4070
        %v4103 = vpack.c.b16 %v4071, %v4071
        %v4104 = vpack.c.b16 %v4072, %v4072
        %v4105 = vpack.c.b16 %v4073, %v4073
        %v4106 = vpack.c.b16 %v4074, %v4074
        %v4107 = vpack.c.b16 %v4075, %v4075
        %v4108 = vpack.c.b16 %v4076, %v4076
        %v4109 = vpack.c.b16 %v4077, %v4077
        %v4110 = vpack.c.b16 %v4078, %v4078
        %v4111 = vpack.c.b16 %v4079, %v4079
        %v4112 = vpack.c.b16 %v4080, %v4080
        %v4113 = vpack.c.b16 %v4081, %v4081
        %v4114 = vpack.c.b16 %v4082, %v4082
        %v4115 = vpack.c.b16 %v4083, %v4083
        %v4116 = vpack.c.b16 %v4084, %v4084
        %v4117 = vpack.c.b16 %v4085, %v4085
        %v4118 = vpack.c.b16 %v4086, %v4086
        %v4119 = vpack.c.b16 %v4087, %v4087
        %v4120 = vpack.c.b16 %v4088, %v4088
        %v4121 = vpack.c.b16 %v4089, %v4089
        %v4122 = vpack.c.b16 %v4090, %v4090
        %v4123 = vpack.c.b16 %v4091, %v4091
        %v4124 = vpack.c.b16 %v4092, %v4092
        %v4125 = vpack.c.b16 %v4093, %v4093
        %v4126 = vpack.c.b16 %v4094, %v4094
        %v4127 = vpack.c.b16 %v4095, %v4095
        %v4128 = vpack.c.b16 %v4096, %v4096
        %v4129 = vpack.c.b16 %v4097, %v4097
        %v4130 = vpack.c.b16 %v4098, %v4098
        %v4131 = vpack.c.b16 %v4099, %v4099
        %v4133 = vshrl.u32 %v4100, 16
        %v4135 = vrot.slane %v4133, 7
        %v4136 = vshll.u32 %v4100, 16
        %v4138 = vor.u32 %v4135, %v4136
        %v4139 = vrot.slane %v4135, 4
        %v4141 = vshrl.u32 %v4101, 16
        %v4143 = vrot.slane %v4141, 7
        %v4144 = vshll.u32 %v4101, 16
        %v4146 = vor.u32 %v4143, %v4144
        %v4147 = vsel %vm661, %v4139, %v4146
        %v4148 = vrot.slane %v4143, 4
        %v4150 = vshrl.u32 %v4102, 16
        %v4152 = vrot.slane %v4150, 7
        %v4153 = vshll.u32 %v4102, 16
        %v4155 = vor.u32 %v4152, %v4153
        %v4156 = vrot.slane %v4152, 4
        %v4158 = vshrl.u32 %v4103, 16
        %v4160 = vrot.slane %v4158, 7
        %v4161 = vshll.u32 %v4103, 16
        %v4163 = vor.u32 %v4160, %v4161
        %v4164 = vsel %vm661, %v4156, %v4163
        %v4165 = vrot.slane %v4160, 4
        %v4167 = vshrl.u32 %v4104, 16
        %v4169 = vrot.slane %v4167, 7
        %v4170 = vshll.u32 %v4104, 16
        %v4172 = vor.u32 %v4169, %v4170
        %v4173 = vrot.slane %v4169, 4
        %v4175 = vshrl.u32 %v4105, 16
        %v4177 = vrot.slane %v4175, 7
        %v4178 = vshll.u32 %v4105, 16
        %v4180 = vor.u32 %v4177, %v4178
        %v4181 = vsel %vm661, %v4173, %v4180
        %v4182 = vrot.slane %v4177, 4
        %v4184 = vshrl.u32 %v4106, 16
        %v4186 = vrot.slane %v4184, 7
        %v4187 = vshll.u32 %v4106, 16
        %v4189 = vor.u32 %v4186, %v4187
        %v4190 = vrot.slane %v4186, 4
        %v4192 = vshrl.u32 %v4107, 16
        %v4194 = vrot.slane %v4192, 7
        %v4195 = vshll.u32 %v4107, 16
        %v4197 = vor.u32 %v4194, %v4195
        %v4198 = vsel %vm661, %v4190, %v4197
        %v4199 = vrot.slane %v4194, 4
        %v4201 = vshrl.u32 %v4108, 16
        %v4203 = vrot.slane %v4201, 7
        %v4204 = vshll.u32 %v4108, 16
        %v4206 = vor.u32 %v4203, %v4204
        %v4207 = vrot.slane %v4203, 4
        %v4209 = vshrl.u32 %v4109, 16
        %v4211 = vrot.slane %v4209, 7
        %v4212 = vshll.u32 %v4109, 16
        %v4214 = vor.u32 %v4211, %v4212
        %v4215 = vsel %vm661, %v4207, %v4214
        %v4216 = vrot.slane %v4211, 4
        %v4218 = vshrl.u32 %v4110, 16
        %v4220 = vrot.slane %v4218, 7
        %v4221 = vshll.u32 %v4110, 16
        %v4223 = vor.u32 %v4220, %v4221
        %v4224 = vrot.slane %v4220, 4
        %v4226 = vshrl.u32 %v4111, 16
        %v4228 = vrot.slane %v4226, 7
        %v4229 = vshll.u32 %v4111, 16
        %v4231 = vor.u32 %v4228, %v4229
        %v4232 = vsel %vm661, %v4224, %v4231
        %v4233 = vrot.slane %v4228, 4
        %v4235 = vshrl.u32 %v4112, 16
        %v4237 = vrot.slane %v4235, 7
        %v4238 = vshll.u32 %v4112, 16
        %v4240 = vor.u32 %v4237, %v4238
        %v4241 = vrot.slane %v4237, 4
        %v4243 = vshrl.u32 %v4113, 16
        %v4245 = vrot.slane %v4243, 7
        %v4246 = vshll.u32 %v4113, 16
        %v4248 = vor.u32 %v4245, %v4246
        %v4249 = vsel %vm661, %v4241, %v4248
        %v4250 = vrot.slane %v4245, 4
        %v4252 = vshrl.u32 %v4114, 16
        %v4254 = vrot.slane %v4252, 7
        %v4255 = vshll.u32 %v4114, 16
        %v4257 = vor.u32 %v4254, %v4255
        %v4258 = vrot.slane %v4254, 4
        %v4260 = vshrl.u32 %v4115, 16
        %v4262 = vrot.slane %v4260, 7
        %v4263 = vshll.u32 %v4115, 16
        %v4265 = vor.u32 %v4262, %v4263
        %v4266 = vsel %vm661, %v4258, %v4265
        %v4267 = vrot.slane %v4262, 4
        %v4269 = vshrl.u32 %v4116, 16
        %v4271 = vrot.slane %v4269, 7
        %v4272 = vshll.u32 %v4116, 16
        %v4274 = vor.u32 %v4271, %v4272
        %v4275 = vrot.slane %v4271, 4
        %v4277 = vshrl.u32 %v4117, 16
        %v4279 = vrot.slane %v4277, 7
        %v4280 = vshll.u32 %v4117, 16
        %v4282 = vor.u32 %v4279, %v4280
        %v4283 = vsel %vm661, %v4275, %v4282
        %v4284 = vrot.slane %v4279, 4
        %v4286 = vshrl.u32 %v4118, 16
        %v4288 = vrot.slane %v4286, 7
        %v4289 = vshll.u32 %v4118, 16
        %v4291 = vor.u32 %v4288, %v4289
        %v4292 = vrot.slane %v4288, 4
        %v4294 = vshrl.u32 %v4119, 16
        %v4296 = vrot.slane %v4294, 7
        %v4297 = vshll.u32 %v4119, 16
        %v4299 = vor.u32 %v4296, %v4297
        %v4300 = vsel %vm661, %v4292, %v4299
        %v4301 = vrot.slane %v4296, 4
        %v4303 = vshrl.u32 %v4120, 16
        %v4305 = vrot.slane %v4303, 7
        %v4306 = vshll.u32 %v4120, 16
        %v4308 = vor.u32 %v4305, %v4306
        %v4309 = vrot.slane %v4305, 4
        %v4311 = vshrl.u32 %v4121, 16
        %v4313 = vrot.slane %v4311, 7
        %v4314 = vshll.u32 %v4121, 16
        %v4316 = vor.u32 %v4313, %v4314
        %v4317 = vsel %vm661, %v4309, %v4316
        %v4318 = vrot.slane %v4313, 4
        %v4320 = vshrl.u32 %v4122, 16
        %v4322 = vrot.slane %v4320, 7
        %v4323 = vshll.u32 %v4122, 16
        %v4325 = vor.u32 %v4322, %v4323
        %v4326 = vrot.slane %v4322, 4
        %v4328 = vshrl.u32 %v4123, 16
        %v4330 = vrot.slane %v4328, 7
        %v4331 = vshll.u32 %v4123, 16
        %v4333 = vor.u32 %v4330, %v4331
        %v4334 = vsel %vm661, %v4326, %v4333
        %v4335 = vrot.slane %v4330, 4
        %v4337 = vshrl.u32 %v4124, 16
        %v4339 = vrot.slane %v4337, 7
        %v4340 = vshll.u32 %v4124, 16
        %v4342 = vor.u32 %v4339, %v4340
        %v4343 = vrot.slane %v4339, 4
        %v4345 = vshrl.u32 %v4125, 16
        %v4347 = vrot.slane %v4345, 7
        %v4348 = vshll.u32 %v4125, 16
        %v4350 = vor.u32 %v4347, %v4348
        %v4351 = vsel %vm661, %v4343, %v4350
        %v4352 = vrot.slane %v4347, 4
        %v4354 = vshrl.u32 %v4126, 16
        %v4356 = vrot.slane %v4354, 7
        %v4357 = vshll.u32 %v4126, 16
        %v4359 = vor.u32 %v4356, %v4357
        %v4360 = vrot.slane %v4356, 4
        %v4362 = vshrl.u32 %v4127, 16
        %v4364 = vrot.slane %v4362, 7
        %v4365 = vshll.u32 %v4127, 16
        %v4367 = vor.u32 %v4364, %v4365
        %v4368 = vsel %vm661, %v4360, %v4367
        %v4369 = vrot.slane %v4364, 4
        %v4371 = vshrl.u32 %v4128, 16
        %v4373 = vrot.slane %v4371, 7
        %v4374 = vshll.u32 %v4128, 16
        %v4376 = vor.u32 %v4373, %v4374
        %v4377 = vrot.slane %v4373, 4
        %v4379 = vshrl.u32 %v4129, 16
        %v4381 = vrot.slane %v4379, 7
        %v4382 = vshll.u32 %v4129, 16
        %v4384 = vor.u32 %v4381, %v4382
        %v4385 = vsel %vm661, %v4377, %v4384
        %v4386 = vrot.slane %v4381, 4
        %v4388 = vshrl.u32 %v4130, 16
        %v4390 = vrot.slane %v4388, 7
        %v4391 = vshll.u32 %v4130, 16
        %v4393 = vor.u32 %v4390, %v4391
        %v4394 = vrot.slane %v4390, 4
        %v4396 = vshrl.u32 %v4131, 16
        %v4398 = vrot.slane %v4396, 7
        %v4399 = vshll.u32 %v4131, 16
        %v4401 = vor.u32 %v4398, %v4399
        %v4402 = vsel %vm661, %v4394, %v4401
        %v4403 = vrot.slane %v4398, 4
        %v4452 = vld [vmem:[%s430] sm:$0xf]
        %v4453 = vsel %vm983, %v4138, %v4452
        %4454 = vst [vmem:[%s430] sm:$0xf] %v4453
        %4455 = vst [vmem:[%s430 + $0x4] sm:$0xf] %v4147
        %v4456 = vld [vmem:[%s430 + $0x8] sm:$0x1]
        %v4457 = vsel %vm433, %v4148, %v4456
        %4458 = vst [vmem:[%s430 + $0x8] sm:$0x1] %v4457
        %v4459 = vld [vmem:[%s430 + $0xc] sm:$0xf]
        %v4460 = vsel %vm983, %v4155, %v4459
        %4461 = vst [vmem:[%s430 + $0xc] sm:$0xf] %v4460
        %4462 = vst [vmem:[%s430 + $0x10] sm:$0xf] %v4164
        %v4463 = vld [vmem:[%s430 + $0x14] sm:$0x1]
        %v4464 = vsel %vm433, %v4165, %v4463
        %4465 = vst [vmem:[%s430 + $0x14] sm:$0x1] %v4464
        %v4466 = vld [vmem:[%s430 + $0x18] sm:$0xf]
        %v4467 = vsel %vm983, %v4172, %v4466
        %4468 = vst [vmem:[%s430 + $0x18] sm:$0xf] %v4467
        %4469 = vst [vmem:[%s430 + $0x1c] sm:$0xf] %v4181
        %v4470 = vld [vmem:[%s430 + $0x20] sm:$0x1]
        %v4471 = vsel %vm433, %v4182, %v4470
        %4472 = vst [vmem:[%s430 + $0x20] sm:$0x1] %v4471
        %v4473 = vld [vmem:[%s430 + $0x24] sm:$0xf]
        %v4474 = vsel %vm983, %v4189, %v4473
        %4475 = vst [vmem:[%s430 + $0x24] sm:$0xf] %v4474
        %4476 = vst [vmem:[%s430 + $0x28] sm:$0xf] %v4198
        %v4477 = vld [vmem:[%s430 + $0x2c] sm:$0x1]
        %v4478 = vsel %vm433, %v4199, %v4477
        %4479 = vst [vmem:[%s430 + $0x2c] sm:$0x1] %v4478
        %v4480 = vld [vmem:[%s430 + $0x30] sm:$0xf]
        %v4481 = vsel %vm983, %v4206, %v4480
        %4482 = vst [vmem:[%s430 + $0x30] sm:$0xf] %v4481
        %4483 = vst [vmem:[%s430 + $0x34] sm:$0xf] %v4215
        %v4484 = vld [vmem:[%s430 + $0x38] sm:$0x1]
        %v4485 = vsel %vm433, %v4216, %v4484
        %4486 = vst [vmem:[%s430 + $0x38] sm:$0x1] %v4485
        %v4487 = vld [vmem:[%s430 + $0x3c] sm:$0xf]
        %v4488 = vsel %vm983, %v4223, %v4487
        %4489 = vst [vmem:[%s430 + $0x3c] sm:$0xf] %v4488
        %4490 = vst [vmem:[%s430 + $0x40] sm:$0xf] %v4232
        %v4491 = vld [vmem:[%s430 + $0x44] sm:$0x1]
        %v4492 = vsel %vm433, %v4233, %v4491
        %4493 = vst [vmem:[%s430 + $0x44] sm:$0x1] %v4492
        %v4494 = vld [vmem:[%s430 + $0x48] sm:$0xf]
        %v4495 = vsel %vm983, %v4240, %v4494
        %4496 = vst [vmem:[%s430 + $0x48] sm:$0xf] %v4495
        %4497 = vst [vmem:[%s430 + $0x4c] sm:$0xf] %v4249
        %v4498 = vld [vmem:[%s430 + $0x50] sm:$0x1]
        %v4499 = vsel %vm433, %v4250, %v4498
        %4500 = vst [vmem:[%s430 + $0x50] sm:$0x1] %v4499
        %v4501 = vld [vmem:[%s430 + $0x54] sm:$0xf]
        %v4502 = vsel %vm983, %v4257, %v4501
        %4503 = vst [vmem:[%s430 + $0x54] sm:$0xf] %v4502
        %4504 = vst [vmem:[%s430 + $0x58] sm:$0xf] %v4266
        %v4505 = vld [vmem:[%s430 + $0x5c] sm:$0x1]
        %v4506 = vsel %vm433, %v4267, %v4505
        %4507 = vst [vmem:[%s430 + $0x5c] sm:$0x1] %v4506
        %v4508 = vld [vmem:[%s430 + $0x60] sm:$0xf]
        %v4509 = vsel %vm983, %v4274, %v4508
        %4510 = vst [vmem:[%s430 + $0x60] sm:$0xf] %v4509
        %4511 = vst [vmem:[%s430 + $0x64] sm:$0xf] %v4283
        %v4512 = vld [vmem:[%s430 + $0x68] sm:$0x1]
        %v4513 = vsel %vm433, %v4284, %v4512
        %4514 = vst [vmem:[%s430 + $0x68] sm:$0x1] %v4513
        %v4515 = vld [vmem:[%s430 + $0x6c] sm:$0xf]
        %v4516 = vsel %vm983, %v4291, %v4515
        %4517 = vst [vmem:[%s430 + $0x6c] sm:$0xf] %v4516
        %4518 = vst [vmem:[%s430 + $0x70] sm:$0xf] %v4300
        %v4519 = vld [vmem:[%s430 + $0x74] sm:$0x1]
        %v4520 = vsel %vm433, %v4301, %v4519
        %4521 = vst [vmem:[%s430 + $0x74] sm:$0x1] %v4520
        %v4522 = vld [vmem:[%s430 + $0x78] sm:$0xf]
        %v4523 = vsel %vm983, %v4308, %v4522
        %4524 = vst [vmem:[%s430 + $0x78] sm:$0xf] %v4523
        %4525 = vst [vmem:[%s430 + $0x7c] sm:$0xf] %v4317
        %v4526 = vld [vmem:[%s430 + $0x80] sm:$0x1]
        %v4527 = vsel %vm433, %v4318, %v4526
        %4528 = vst [vmem:[%s430 + $0x80] sm:$0x1] %v4527
        %v4529 = vld [vmem:[%s430 + $0x84] sm:$0xf]
        %v4530 = vsel %vm983, %v4325, %v4529
        %4531 = vst [vmem:[%s430 + $0x84] sm:$0xf] %v4530
        %4532 = vst [vmem:[%s430 + $0x88] sm:$0xf] %v4334
        %v4533 = vld [vmem:[%s430 + $0x8c] sm:$0x1]
        %v4534 = vsel %vm433, %v4335, %v4533
        %4535 = vst [vmem:[%s430 + $0x8c] sm:$0x1] %v4534
        %v4536 = vld [vmem:[%s430 + $0x90] sm:$0xf]
        %v4537 = vsel %vm983, %v4342, %v4536
        %4538 = vst [vmem:[%s430 + $0x90] sm:$0xf] %v4537
        %4539 = vst [vmem:[%s430 + $0x94] sm:$0xf] %v4351
        %v4540 = vld [vmem:[%s430 + $0x98] sm:$0x1]
        %v4541 = vsel %vm433, %v4352, %v4540
        %4542 = vst [vmem:[%s430 + $0x98] sm:$0x1] %v4541
        %v4543 = vld [vmem:[%s430 + $0x9c] sm:$0xf]
        %v4544 = vsel %vm983, %v4359, %v4543
        %4545 = vst [vmem:[%s430 + $0x9c] sm:$0xf] %v4544
        %4546 = vst [vmem:[%s430 + $0xa0] sm:$0xf] %v4368
        %v4547 = vld [vmem:[%s430 + $0xa4] sm:$0x1]
        %v4548 = vsel %vm433, %v4369, %v4547
        %4549 = vst [vmem:[%s430 + $0xa4] sm:$0x1] %v4548
        %v4550 = vld [vmem:[%s430 + $0xa8] sm:$0xf]
        %v4551 = vsel %vm983, %v4376, %v4550
        %4552 = vst [vmem:[%s430 + $0xa8] sm:$0xf] %v4551
        %4553 = vst [vmem:[%s430 + $0xac] sm:$0xf] %v4385
        %v4554 = vld [vmem:[%s430 + $0xb0] sm:$0x1]
        %v4555 = vsel %vm433, %v4386, %v4554
        %4556 = vst [vmem:[%s430 + $0xb0] sm:$0x1] %v4555
        %v4557 = vld [vmem:[%s430 + $0xb4] sm:$0xf]
        %v4558 = vsel %vm983, %v4393, %v4557
        %4559 = vst [vmem:[%s430 + $0xb4] sm:$0xf] %v4558
        %4560 = vst [vmem:[%s430 + $0xb8] sm:$0xf] %v4402
        %v4561 = vld [vmem:[%s430 + $0xbc] sm:$0x1]
        %v4562 = vsel %vm433, %v4403, %v4561
        %4563 = vst [vmem:[%s430 + $0xbc] sm:$0x1] %v4562
        %v4564 = vld [vmem:[#allocation2] sm:$0xf]
        %v4565 = vld [vmem:[#allocation2 + $0x4] sm:$0xf]
        %v4566 = vld [vmem:[#allocation2 + $0x8] sm:$0x1]
        %v4567 = vld [vmem:[#allocation2 + $0xc] sm:$0xf]
        %v4568 = vld [vmem:[#allocation2 + $0x10] sm:$0xf]
        %v4569 = vld [vmem:[#allocation2 + $0x14] sm:$0x1]
        %v4570 = vld [vmem:[#allocation2 + $0x18] sm:$0xf]
        %v4571 = vld [vmem:[#allocation2 + $0x1c] sm:$0xf]
        %v4572 = vld [vmem:[#allocation2 + $0x20] sm:$0x1]
        %v4573 = vld [vmem:[#allocation2 + $0x24] sm:$0xf]
        %v4574 = vld [vmem:[#allocation2 + $0x28] sm:$0xf]
        %v4575 = vld [vmem:[#allocation2 + $0x2c] sm:$0x1]
        %v4576 = vld [vmem:[#allocation2 + $0x30] sm:$0xf]
        %v4577 = vld [vmem:[#allocation2 + $0x34] sm:$0xf]
        %v4578 = vld [vmem:[#allocation2 + $0x38] sm:$0x1]
        %v4579 = vld [vmem:[#allocation2 + $0x3c] sm:$0xf]
        %v4580 = vld [vmem:[#allocation2 + $0x40] sm:$0xf]
        %v4581 = vld [vmem:[#allocation2 + $0x44] sm:$0x1]
        %v4582 = vld [vmem:[#allocation2 + $0x48] sm:$0xf]
        %v4583 = vld [vmem:[#allocation2 + $0x4c] sm:$0xf]
        %v4584 = vld [vmem:[#allocation2 + $0x50] sm:$0x1]
        %v4585 = vld [vmem:[#allocation2 + $0x54] sm:$0xf]
        %v4586 = vld [vmem:[#allocation2 + $0x58] sm:$0xf]
        %v4587 = vld [vmem:[#allocation2 + $0x5c] sm:$0x1]
        %v4588 = vld [vmem:[#allocation2 + $0x60] sm:$0xf]
        %v4589 = vld [vmem:[#allocation2 + $0x64] sm:$0xf]
        %v4590 = vld [vmem:[#allocation2 + $0x68] sm:$0x1]
        %v4591 = vld [vmem:[#allocation2 + $0x6c] sm:$0xf]
        %v4592 = vld [vmem:[#allocation2 + $0x70] sm:$0xf]
        %v4593 = vld [vmem:[#allocation2 + $0x74] sm:$0x1]
        %v4594 = vld [vmem:[#allocation2 + $0x78] sm:$0xf]
        %v4595 = vld [vmem:[#allocation2 + $0x7c] sm:$0xf]
        %v4596 = vld [vmem:[#allocation2 + $0x80] sm:$0x1]
        %v4597 = vld [vmem:[#allocation2 + $0x84] sm:$0xf]
        %v4598 = vld [vmem:[#allocation2 + $0x88] sm:$0xf]
        %v4599 = vld [vmem:[#allocation2 + $0x8c] sm:$0x1]
        %v4600 = vld [vmem:[#allocation2 + $0x90] sm:$0xf]
        %v4601 = vld [vmem:[#allocation2 + $0x94] sm:$0xf]
        %v4602 = vld [vmem:[#allocation2 + $0x98] sm:$0x1]
        %v4603 = vld [vmem:[#allocation2 + $0x9c] sm:$0xf]
        %v4604 = vld [vmem:[#allocation2 + $0xa0] sm:$0xf]
        %v4605 = vld [vmem:[#allocation2 + $0xa4] sm:$0x1]
        %v4606 = vld [vmem:[#allocation2 + $0xa8] sm:$0xf]
        %v4607 = vld [vmem:[#allocation2 + $0xac] sm:$0xf]
        %v4608 = vld [vmem:[#allocation2 + $0xb0] sm:$0x1]
        %v4609 = vld [vmem:[#allocation2 + $0xb4] sm:$0xf]
        %v4610 = vld [vmem:[#allocation2 + $0xb8] sm:$0xf]
        %v4611 = vld [vmem:[#allocation2 + $0xbc] sm:$0x1]
        %v4612 = vld [vmem:[#allocation2 + $0xc0] sm:$0xf]
        %v4613 = vld [vmem:[#allocation2 + $0xc4] sm:$0xf]
        %v4614 = vld [vmem:[#allocation2 + $0xc8] sm:$0x1]
        %v4615 = vld [vmem:[#allocation2 + $0xcc] sm:$0xf]
        %v4616 = vld [vmem:[#allocation2 + $0xd0] sm:$0xf]
        %v4617 = vld [vmem:[#allocation2 + $0xd4] sm:$0x1]
        %v4619 = vshrl.u32 %v4564, 16
        %v4621 = vrot.slane %v4619, 4
        %v4622 = vshll.u32 %v4564, 16
        %v4624 = vrot.slane %v4622, 5
        %v4625 = vor.u32 %v4621, %v4624
        %v4626 = vrot.slane %v4625, 4
        %v4628 = vshll.u32 %v4565, 16
        %v4630 = vrot.slane %v4628, 5
        %v4631 = vsel %vm1168, %v4626, %v4630
        %v4632 = vshrl.u32 %v4565, 16
        %v4634 = vrot.slane %v4632, 4
        %v4635 = vor.u32 %v4634, %v4630
        %v4636 = vrot.slane %v4635, 4
        %v4638 = vshll.u32 %v4566, 16
        %v4640 = vrot.slane %v4638, 5
        %v4641 = vsel %vm1168, %v4636, %v4640
        %v4643 = vshrl.u32 %v4567, 16
        %v4645 = vrot.slane %v4643, 4
        %v4646 = vshll.u32 %v4567, 16
        %v4648 = vrot.slane %v4646, 5
        %v4649 = vor.u32 %v4645, %v4648
        %v4650 = vrot.slane %v4649, 4
        %v4652 = vshll.u32 %v4568, 16
        %v4654 = vrot.slane %v4652, 5
        %v4655 = vsel %vm1168, %v4650, %v4654
        %v4656 = vshrl.u32 %v4568, 16
        %v4658 = vrot.slane %v4656, 4
        %v4659 = vor.u32 %v4658, %v4654
        %v4660 = vrot.slane %v4659, 4
        %v4662 = vshll.u32 %v4569, 16
        %v4664 = vrot.slane %v4662, 5
        %v4665 = vsel %vm1168, %v4660, %v4664
        %v4667 = vshrl.u32 %v4570, 16
        %v4669 = vrot.slane %v4667, 4
        %v4670 = vshll.u32 %v4570, 16
        %v4672 = vrot.slane %v4670, 5
        %v4673 = vor.u32 %v4669, %v4672
        %v4674 = vrot.slane %v4673, 4
        %v4676 = vshll.u32 %v4571, 16
        %v4678 = vrot.slane %v4676, 5
        %v4679 = vsel %vm1168, %v4674, %v4678
        %v4680 = vshrl.u32 %v4571, 16
        %v4682 = vrot.slane %v4680, 4
        %v4683 = vor.u32 %v4682, %v4678
        %v4684 = vrot.slane %v4683, 4
        %v4686 = vshll.u32 %v4572, 16
        %v4688 = vrot.slane %v4686, 5
        %v4689 = vsel %vm1168, %v4684, %v4688
        %v4691 = vshrl.u32 %v4573, 16
        %v4693 = vrot.slane %v4691, 4
        %v4694 = vshll.u32 %v4573, 16
        %v4696 = vrot.slane %v4694, 5
        %v4697 = vor.u32 %v4693, %v4696
        %v4698 = vrot.slane %v4697, 4
        %v4700 = vshll.u32 %v4574, 16
        %v4702 = vrot.slane %v4700, 5
        %v4703 = vsel %vm1168, %v4698, %v4702
        %v4704 = vshrl.u32 %v4574, 16
        %v4706 = vrot.slane %v4704, 4
        %v4707 = vor.u32 %v4706, %v4702
        %v4708 = vrot.slane %v4707, 4
        %v4710 = vshll.u32 %v4575, 16
        %v4712 = vrot.slane %v4710, 5
        %v4713 = vsel %vm1168, %v4708, %v4712
        %v4715 = vshrl.u32 %v4576, 16
        %v4717 = vrot.slane %v4715, 4
        %v4718 = vshll.u32 %v4576, 16
        %v4720 = vrot.slane %v4718, 5
        %v4721 = vor.u32 %v4717, %v4720
        %v4722 = vrot.slane %v4721, 4
        %v4724 = vshll.u32 %v4577, 16
        %v4726 = vrot.slane %v4724, 5
        %v4727 = vsel %vm1168, %v4722, %v4726
        %v4728 = vshrl.u32 %v4577, 16
        %v4730 = vrot.slane %v4728, 4
        %v4731 = vor.u32 %v4730, %v4726
        %v4732 = vrot.slane %v4731, 4
        %v4734 = vshll.u32 %v4578, 16
        %v4736 = vrot.slane %v4734, 5
        %v4737 = vsel %vm1168, %v4732, %v4736
        %v4739 = vshrl.u32 %v4579, 16
        %v4741 = vrot.slane %v4739, 4
        %v4742 = vshll.u32 %v4579, 16
        %v4744 = vrot.slane %v4742, 5
        %v4745 = vor.u32 %v4741, %v4744
        %v4746 = vrot.slane %v4745, 4
        %v4748 = vshll.u32 %v4580, 16
        %v4750 = vrot.slane %v4748, 5
        %v4751 = vsel %vm1168, %v4746, %v4750
        %v4752 = vshrl.u32 %v4580, 16
        %v4754 = vrot.slane %v4752, 4
        %v4755 = vor.u32 %v4754, %v4750
        %v4756 = vrot.slane %v4755, 4
        %v4758 = vshll.u32 %v4581, 16
        %v4760 = vrot.slane %v4758, 5
        %v4761 = vsel %vm1168, %v4756, %v4760
        %v4763 = vshrl.u32 %v4582, 16
        %v4765 = vrot.slane %v4763, 4
        %v4766 = vshll.u32 %v4582, 16
        %v4768 = vrot.slane %v4766, 5
        %v4769 = vor.u32 %v4765, %v4768
        %v4770 = vrot.slane %v4769, 4
        %v4772 = vshll.u32 %v4583, 16
        %v4774 = vrot.slane %v4772, 5
        %v4775 = vsel %vm1168, %v4770, %v4774
        %v4776 = vshrl.u32 %v4583, 16
        %v4778 = vrot.slane %v4776, 4
        %v4779 = vor.u32 %v4778, %v4774
        %v4780 = vrot.slane %v4779, 4
        %v4782 = vshll.u32 %v4584, 16
        %v4784 = vrot.slane %v4782, 5
        %v4785 = vsel %vm1168, %v4780, %v4784
        %v4787 = vshrl.u32 %v4585, 16
        %v4789 = vrot.slane %v4787, 4
        %v4790 = vshll.u32 %v4585, 16
        %v4792 = vrot.slane %v4790, 5
        %v4793 = vor.u32 %v4789, %v4792
        %v4794 = vrot.slane %v4793, 4
        %v4796 = vshll.u32 %v4586, 16
        %v4798 = vrot.slane %v4796, 5
        %v4799 = vsel %vm1168, %v4794, %v4798
        %v4800 = vshrl.u32 %v4586, 16
        %v4802 = vrot.slane %v4800, 4
        %v4803 = vor.u32 %v4802, %v4798
        %v4804 = vrot.slane %v4803, 4
        %v4806 = vshll.u32 %v4587, 16
        %v4808 = vrot.slane %v4806, 5
        %v4809 = vsel %vm1168, %v4804, %v4808
        %v4811 = vshrl.u32 %v4588, 16
        %v4813 = vrot.slane %v4811, 4
        %v4814 = vshll.u32 %v4588, 16
        %v4816 = vrot.slane %v4814, 5
        %v4817 = vor.u32 %v4813, %v4816
        %v4818 = vrot.slane %v4817, 4
        %v4820 = vshll.u32 %v4589, 16
        %v4822 = vrot.slane %v4820, 5
        %v4823 = vsel %vm1168, %v4818, %v4822
        %v4824 = vshrl.u32 %v4589, 16
        %v4826 = vrot.slane %v4824, 4
        %v4827 = vor.u32 %v4826, %v4822
        %v4828 = vrot.slane %v4827, 4
        %v4830 = vshll.u32 %v4590, 16
        %v4832 = vrot.slane %v4830, 5
        %v4833 = vsel %vm1168, %v4828, %v4832
        %v4835 = vshrl.u32 %v4591, 16
        %v4837 = vrot.slane %v4835, 4
        %v4838 = vshll.u32 %v4591, 16
        %v4840 = vrot.slane %v4838, 5
        %v4841 = vor.u32 %v4837, %v4840
        %v4842 = vrot.slane %v4841, 4
        %v4844 = vshll.u32 %v4592, 16
        %v4846 = vrot.slane %v4844, 5
        %v4847 = vsel %vm1168, %v4842, %v4846
        %v4848 = vshrl.u32 %v4592, 16
        %v4850 = vrot.slane %v4848, 4
        %v4851 = vor.u32 %v4850, %v4846
        %v4852 = vrot.slane %v4851, 4
        %v4854 = vshll.u32 %v4593, 16
        %v4856 = vrot.slane %v4854, 5
        %v4857 = vsel %vm1168, %v4852, %v4856
        %v4859 = vshrl.u32 %v4594, 16
        %v4861 = vrot.slane %v4859, 4
        %v4862 = vshll.u32 %v4594, 16
        %v4864 = vrot.slane %v4862, 5
        %v4865 = vor.u32 %v4861, %v4864
        %v4866 = vrot.slane %v4865, 4
        %v4868 = vshll.u32 %v4595, 16
        %v4870 = vrot.slane %v4868, 5
        %v4871 = vsel %vm1168, %v4866, %v4870
        %v4872 = vshrl.u32 %v4595, 16
        %v4874 = vrot.slane %v4872, 4
        %v4875 = vor.u32 %v4874, %v4870
        %v4876 = vrot.slane %v4875, 4
        %v4878 = vshll.u32 %v4596, 16
        %v4880 = vrot.slane %v4878, 5
        %v4881 = vsel %vm1168, %v4876, %v4880
        %v4883 = vshrl.u32 %v4597, 16
        %v4885 = vrot.slane %v4883, 4
        %v4886 = vshll.u32 %v4597, 16
        %v4888 = vrot.slane %v4886, 5
        %v4889 = vor.u32 %v4885, %v4888
        %v4890 = vrot.slane %v4889, 4
        %v4892 = vshll.u32 %v4598, 16
        %v4894 = vrot.slane %v4892, 5
        %v4895 = vsel %vm1168, %v4890, %v4894
        %v4896 = vshrl.u32 %v4598, 16
        %v4898 = vrot.slane %v4896, 4
        %v4899 = vor.u32 %v4898, %v4894
        %v4900 = vrot.slane %v4899, 4
        %v4902 = vshll.u32 %v4599, 16
        %v4904 = vrot.slane %v4902, 5
        %v4905 = vsel %vm1168, %v4900, %v4904
        %v4907 = vshrl.u32 %v4600, 16
        %v4909 = vrot.slane %v4907, 4
        %v4910 = vshll.u32 %v4600, 16
        %v4912 = vrot.slane %v4910, 5
        %v4913 = vor.u32 %v4909, %v4912
        %v4914 = vrot.slane %v4913, 4
        %v4916 = vshll.u32 %v4601, 16
        %v4918 = vrot.slane %v4916, 5
        %v4919 = vsel %vm1168, %v4914, %v4918
        %v4920 = vshrl.u32 %v4601, 16
        %v4922 = vrot.slane %v4920, 4
        %v4923 = vor.u32 %v4922, %v4918
        %v4924 = vrot.slane %v4923, 4
        %v4926 = vshll.u32 %v4602, 16
        %v4928 = vrot.slane %v4926, 5
        %v4929 = vsel %vm1168, %v4924, %v4928
        %v4931 = vshrl.u32 %v4603, 16
        %v4933 = vrot.slane %v4931, 4
        %v4934 = vshll.u32 %v4603, 16
        %v4936 = vrot.slane %v4934, 5
        %v4937 = vor.u32 %v4933, %v4936
        %v4938 = vrot.slane %v4937, 4
        %v4940 = vshll.u32 %v4604, 16
        %v4942 = vrot.slane %v4940, 5
        %v4943 = vsel %vm1168, %v4938, %v4942
        %v4944 = vshrl.u32 %v4604, 16
        %v4946 = vrot.slane %v4944, 4
        %v4947 = vor.u32 %v4946, %v4942
        %v4948 = vrot.slane %v4947, 4
        %v4950 = vshll.u32 %v4605, 16
        %v4952 = vrot.slane %v4950, 5
        %v4953 = vsel %vm1168, %v4948, %v4952
        %v4955 = vshrl.u32 %v4606, 16
        %v4957 = vrot.slane %v4955, 4
        %v4958 = vshll.u32 %v4606, 16
        %v4960 = vrot.slane %v4958, 5
        %v4961 = vor.u32 %v4957, %v4960
        %v4962 = vrot.slane %v4961, 4
        %v4964 = vshll.u32 %v4607, 16
        %v4966 = vrot.slane %v4964, 5
        %v4967 = vsel %vm1168, %v4962, %v4966
        %v4968 = vshrl.u32 %v4607, 16
        %v4970 = vrot.slane %v4968, 4
        %v4971 = vor.u32 %v4970, %v4966
        %v4972 = vrot.slane %v4971, 4
        %v4974 = vshll.u32 %v4608, 16
        %v4976 = vrot.slane %v4974, 5
        %v4977 = vsel %vm1168, %v4972, %v4976
        %v4979 = vshrl.u32 %v4609, 16
        %v4981 = vrot.slane %v4979, 4
        %v4982 = vshll.u32 %v4609, 16
        %v4984 = vrot.slane %v4982, 5
        %v4985 = vor.u32 %v4981, %v4984
        %v4986 = vrot.slane %v4985, 4
        %v4988 = vshll.u32 %v4610, 16
        %v4990 = vrot.slane %v4988, 5
        %v4991 = vsel %vm1168, %v4986, %v4990
        %v4992 = vshrl.u32 %v4610, 16
        %v4994 = vrot.slane %v4992, 4
        %v4995 = vor.u32 %v4994, %v4990
        %v4996 = vrot.slane %v4995, 4
        %v4998 = vshll.u32 %v4611, 16
        %v5000 = vrot.slane %v4998, 5
        %v5001 = vsel %vm1168, %v4996, %v5000
        %v5050 = vrot.slane %v4564, 5
        %v5051 = vrot.slane %v5050, 4
        %v5052 = vrot.slane %v4565, 5
        %v5053 = vsel %vm1603, %v5051, %v5052
        %v5054 = vrot.slane %v5052, 4
        %v5055 = vrot.slane %v4566, 5
        %v5056 = vsel %vm1603, %v5054, %v5055
        %v5057 = vrot.slane %v4567, 5
        %v5058 = vrot.slane %v5057, 4
        %v5059 = vrot.slane %v4568, 5
        %v5060 = vsel %vm1603, %v5058, %v5059
        %v5061 = vrot.slane %v5059, 4
        %v5062 = vrot.slane %v4569, 5
        %v5063 = vsel %vm1603, %v5061, %v5062
        %v5064 = vrot.slane %v4570, 5
        %v5065 = vrot.slane %v5064, 4
        %v5066 = vrot.slane %v4571, 5
        %v5067 = vsel %vm1603, %v5065, %v5066
        %v5068 = vrot.slane %v5066, 4
        %v5069 = vrot.slane %v4572, 5
        %v5070 = vsel %vm1603, %v5068, %v5069
        %v5071 = vrot.slane %v4573, 5
        %v5072 = vrot.slane %v5071, 4
        %v5073 = vrot.slane %v4574, 5
        %v5074 = vsel %vm1603, %v5072, %v5073
        %v5075 = vrot.slane %v5073, 4
        %v5076 = vrot.slane %v4575, 5
        %v5077 = vsel %vm1603, %v5075, %v5076
        %v5078 = vrot.slane %v4576, 5
        %v5079 = vrot.slane %v5078, 4
        %v5080 = vrot.slane %v4577, 5
        %v5081 = vsel %vm1603, %v5079, %v5080
        %v5082 = vrot.slane %v5080, 4
        %v5083 = vrot.slane %v4578, 5
        %v5084 = vsel %vm1603, %v5082, %v5083
        %v5085 = vrot.slane %v4579, 5
        %v5086 = vrot.slane %v5085, 4
        %v5087 = vrot.slane %v4580, 5
        %v5088 = vsel %vm1603, %v5086, %v5087
        %v5089 = vrot.slane %v5087, 4
        %v5090 = vrot.slane %v4581, 5
        %v5091 = vsel %vm1603, %v5089, %v5090
        %v5092 = vrot.slane %v4582, 5
        %v5093 = vrot.slane %v5092, 4
        %v5094 = vrot.slane %v4583, 5
        %v5095 = vsel %vm1603, %v5093, %v5094
        %v5096 = vrot.slane %v5094, 4
        %v5097 = vrot.slane %v4584, 5
        %v5098 = vsel %vm1603, %v5096, %v5097
        %v5099 = vrot.slane %v4585, 5
        %v5100 = vrot.slane %v5099, 4
        %v5101 = vrot.slane %v4586, 5
        %v5102 = vsel %vm1603, %v5100, %v5101
        %v5103 = vrot.slane %v5101, 4
        %v5104 = vrot.slane %v4587, 5
        %v5105 = vsel %vm1603, %v5103, %v5104
        %v5106 = vrot.slane %v4588, 5
        %v5107 = vrot.slane %v5106, 4
        %v5108 = vrot.slane %v4589, 5
        %v5109 = vsel %vm1603, %v5107, %v5108
        %v5110 = vrot.slane %v5108, 4
        %v5111 = vrot.slane %v4590, 5
        %v5112 = vsel %vm1603, %v5110, %v5111
        %v5113 = vrot.slane %v4591, 5
        %v5114 = vrot.slane %v5113, 4
        %v5115 = vrot.slane %v4592, 5
        %v5116 = vsel %vm1603, %v5114, %v5115
        %v5117 = vrot.slane %v5115, 4
        %v5118 = vrot.slane %v4593, 5
        %v5119 = vsel %vm1603, %v5117, %v5118
        %v5120 = vrot.slane %v4594, 5
        %v5121 = vrot.slane %v5120, 4
        %v5122 = vrot.slane %v4595, 5
        %v5123 = vsel %vm1603, %v5121, %v5122
        %v5124 = vrot.slane %v5122, 4
        %v5125 = vrot.slane %v4596, 5
        %v5126 = vsel %vm1603, %v5124, %v5125
        %v5127 = vrot.slane %v4597, 5
        %v5128 = vrot.slane %v5127, 4
        %v5129 = vrot.slane %v4598, 5
        %v5130 = vsel %vm1603, %v5128, %v5129
        %v5131 = vrot.slane %v5129, 4
        %v5132 = vrot.slane %v4599, 5
        %v5133 = vsel %vm1603, %v5131, %v5132
        %v5134 = vrot.slane %v4600, 5
        %v5135 = vrot.slane %v5134, 4
        %v5136 = vrot.slane %v4601, 5
        %v5137 = vsel %vm1603, %v5135, %v5136
        %v5138 = vrot.slane %v5136, 4
        %v5139 = vrot.slane %v4602, 5
        %v5140 = vsel %vm1603, %v5138, %v5139
        %v5141 = vrot.slane %v4603, 5
        %v5142 = vrot.slane %v5141, 4
        %v5143 = vrot.slane %v4604, 5
        %v5144 = vsel %vm1603, %v5142, %v5143
        %v5145 = vrot.slane %v5143, 4
        %v5146 = vrot.slane %v4605, 5
        %v5147 = vsel %vm1603, %v5145, %v5146
        %v5148 = vrot.slane %v4606, 5
        %v5149 = vrot.slane %v5148, 4
        %v5150 = vrot.slane %v4607, 5
        %v5151 = vsel %vm1603, %v5149, %v5150
        %v5152 = vrot.slane %v5150, 4
        %v5153 = vrot.slane %v4608, 5
        %v5154 = vsel %vm1603, %v5152, %v5153
        %v5155 = vrot.slane %v4609, 5
        %v5156 = vrot.slane %v5155, 4
        %v5157 = vrot.slane %v4610, 5
        %v5158 = vsel %vm1603, %v5156, %v5157
        %v5159 = vrot.slane %v5157, 4
        %v5160 = vrot.slane %v4611, 5
        %v5161 = vsel %vm1603, %v5159, %v5160
        %v5163 = vshrl.u32 %v4612, 16
        %v5165 = vrot.slane %v5163, 4
        %v5166 = vshll.u32 %v4612, 16
        %v5168 = vrot.slane %v5166, 5
        %v5169 = vor.u32 %v5165, %v5168
        %v5170 = vrot.slane %v5169, 4
        %v5172 = vshll.u32 %v4613, 16
        %v5174 = vrot.slane %v5172, 5
        %v5175 = vsel %vm1168, %v5170, %v5174
        %v5176 = vshrl.u32 %v4613, 16
        %v5178 = vrot.slane %v5176, 4
        %v5179 = vor.u32 %v5178, %v5174
        %v5180 = vrot.slane %v5179, 4
        %v5182 = vshll.u32 %v4614, 16
        %v5184 = vrot.slane %v5182, 5
        %v5185 = vsel %vm1168, %v5180, %v5184
        %v5189 = vrot.slane %v4612, 5
        %v5190 = vrot.slane %v5189, 4
        %v5191 = vrot.slane %v4613, 5
        %v5192 = vsel %vm1603, %v5190, %v5191
        %v5193 = vrot.slane %v5191, 4
        %v5194 = vrot.slane %v4614, 5
        %v5195 = vsel %vm1603, %v5193, %v5194
        %v5197 = vshrl.u32 %v4615, 16
        %v5199 = vrot.slane %v5197, 4
        %v5200 = vshll.u32 %v4615, 16
        %v5202 = vrot.slane %v5200, 5
        %v5203 = vor.u32 %v5199, %v5202
        %v5204 = vrot.slane %v5203, 4
        %v5206 = vshll.u32 %v4616, 16
        %v5208 = vrot.slane %v5206, 5
        %v5209 = vsel %vm1168, %v5204, %v5208
        %v5210 = vshrl.u32 %v4616, 16
        %v5212 = vrot.slane %v5210, 4
        %v5213 = vor.u32 %v5212, %v5208
        %v5214 = vrot.slane %v5213, 4
        %v5216 = vshll.u32 %v4617, 16
        %v5218 = vrot.slane %v5216, 5
        %v5219 = vsel %vm1168, %v5214, %v5218
        %v5223 = vrot.slane %v4615, 5
        %v5224 = vrot.slane %v5223, 4
        %v5225 = vrot.slane %v4616, 5
        %v5226 = vsel %vm1603, %v5224, %v5225
        %v5227 = vrot.slane %v5225, 4
        %v5228 = vrot.slane %v4617, 5
        %v5229 = vsel %vm1603, %v5227, %v5228
        %v5230 = vunpack.c.l.b16 %v4564
        %v5231 = vunpack.c.l.b16 %v4565
        %v5232 = vunpack.c.l.b16 %v4567
        %v5233 = vunpack.c.l.b16 %v4568
        %v5234 = vunpack.c.l.b16 %v4570
        %v5235 = vunpack.c.l.b16 %v4571
        %v5236 = vunpack.c.l.b16 %v4573
        %v5237 = vunpack.c.l.b16 %v4574
        %v5238 = vunpack.c.l.b16 %v4576
        %v5239 = vunpack.c.l.b16 %v4577
        %v5240 = vunpack.c.l.b16 %v4579
        %v5241 = vunpack.c.l.b16 %v4580
        %v5242 = vunpack.c.l.b16 %v4582
        %v5243 = vunpack.c.l.b16 %v4583
        %v5244 = vunpack.c.l.b16 %v4585
        %v5245 = vunpack.c.l.b16 %v4586
        %v5246 = vunpack.c.l.b16 %v4588
        %v5247 = vunpack.c.l.b16 %v4589
        %v5248 = vunpack.c.l.b16 %v4591
        %v5249 = vunpack.c.l.b16 %v4592
        %v5250 = vunpack.c.l.b16 %v4594
        %v5251 = vunpack.c.l.b16 %v4595
        %v5252 = vunpack.c.l.b16 %v4597
        %v5253 = vunpack.c.l.b16 %v4598
        %v5254 = vunpack.c.l.b16 %v4600
        %v5255 = vunpack.c.l.b16 %v4601
        %v5256 = vunpack.c.l.b16 %v4603
        %v5257 = vunpack.c.l.b16 %v4604
        %v5258 = vunpack.c.l.b16 %v4606
        %v5259 = vunpack.c.l.b16 %v4607
        %v5260 = vunpack.c.l.b16 %v4609
        %v5261 = vunpack.c.l.b16 %v4610
        %v5262 = vpack.c.b16 %v5231, %v5230
        %v5263 = vpack.c.b16 %v5233, %v5232
        %v5264 = vpack.c.b16 %v5235, %v5234
        %v5265 = vpack.c.b16 %v5237, %v5236
        %v5266 = vpack.c.b16 %v5239, %v5238
        %v5267 = vpack.c.b16 %v5241, %v5240
        %v5268 = vpack.c.b16 %v5243, %v5242
        %v5269 = vpack.c.b16 %v5245, %v5244
        %v5270 = vpack.c.b16 %v5247, %v5246
        %v5271 = vpack.c.b16 %v5249, %v5248
        %v5272 = vpack.c.b16 %v5251, %v5250
        %v5273 = vpack.c.b16 %v5253, %v5252
        %v5274 = vpack.c.b16 %v5255, %v5254
        %v5275 = vpack.c.b16 %v5257, %v5256
        %v5276 = vpack.c.b16 %v5259, %v5258
        %v5277 = vpack.c.b16 %v5261, %v5260
        %v5294 = vunpack.c.l.b16 %v4631
        %v5295 = vunpack.c.l.b16 %v4641
        %v5296 = vunpack.c.l.b16 %v4655
        %v5297 = vunpack.c.l.b16 %v4665
        %v5298 = vunpack.c.l.b16 %v4679
        %v5299 = vunpack.c.l.b16 %v4689
        %v5300 = vunpack.c.l.b16 %v4703
        %v5301 = vunpack.c.l.b16 %v4713
        %v5302 = vunpack.c.l.b16 %v4727
        %v5303 = vunpack.c.l.b16 %v4737
        %v5304 = vunpack.c.l.b16 %v4751
        %v5305 = vunpack.c.l.b16 %v4761
        %v5306 = vunpack.c.l.b16 %v4775
        %v5307 = vunpack.c.l.b16 %v4785
        %v5308 = vunpack.c.l.b16 %v4799
        %v5309 = vunpack.c.l.b16 %v4809
        %v5310 = vunpack.c.l.b16 %v4823
        %v5311 = vunpack.c.l.b16 %v4833
        %v5312 = vunpack.c.l.b16 %v4847
        %v5313 = vunpack.c.l.b16 %v4857
        %v5314 = vunpack.c.l.b16 %v4871
        %v5315 = vunpack.c.l.b16 %v4881
        %v5316 = vunpack.c.l.b16 %v4895
        %v5317 = vunpack.c.l.b16 %v4905
        %v5318 = vunpack.c.l.b16 %v4919
        %v5319 = vunpack.c.l.b16 %v4929
        %v5320 = vunpack.c.l.b16 %v4943
        %v5321 = vunpack.c.l.b16 %v4953
        %v5322 = vunpack.c.l.b16 %v4967
        %v5323 = vunpack.c.l.b16 %v4977
        %v5324 = vunpack.c.l.b16 %v4991
        %v5325 = vunpack.c.l.b16 %v5001
        %v5326 = vpack.c.b16 %v5295, %v5294
        %v5327 = vpack.c.b16 %v5297, %v5296
        %v5328 = vpack.c.b16 %v5299, %v5298
        %v5329 = vpack.c.b16 %v5301, %v5300
        %v5330 = vpack.c.b16 %v5303, %v5302
        %v5331 = vpack.c.b16 %v5305, %v5304
        %v5332 = vpack.c.b16 %v5307, %v5306
        %v5333 = vpack.c.b16 %v5309, %v5308
        %v5334 = vpack.c.b16 %v5311, %v5310
        %v5335 = vpack.c.b16 %v5313, %v5312
        %v5336 = vpack.c.b16 %v5315, %v5314
        %v5337 = vpack.c.b16 %v5317, %v5316
        %v5338 = vpack.c.b16 %v5319, %v5318
        %v5339 = vpack.c.b16 %v5321, %v5320
        %v5340 = vpack.c.b16 %v5323, %v5322
        %v5341 = vpack.c.b16 %v5325, %v5324
        %v5358 = vunpack.c.l.b16 %v5053
        %v5359 = vunpack.c.l.b16 %v5056
        %v5360 = vunpack.c.l.b16 %v5060
        %v5361 = vunpack.c.l.b16 %v5063
        %v5362 = vunpack.c.l.b16 %v5067
        %v5363 = vunpack.c.l.b16 %v5070
        %v5364 = vunpack.c.l.b16 %v5074
        %v5365 = vunpack.c.l.b16 %v5077
        %v5366 = vunpack.c.l.b16 %v5081
        %v5367 = vunpack.c.l.b16 %v5084
        %v5368 = vunpack.c.l.b16 %v5088
        %v5369 = vunpack.c.l.b16 %v5091
        %v5370 = vunpack.c.l.b16 %v5095
        %v5371 = vunpack.c.l.b16 %v5098
        %v5372 = vunpack.c.l.b16 %v5102
        %v5373 = vunpack.c.l.b16 %v5105
        %v5374 = vunpack.c.l.b16 %v5109
        %v5375 = vunpack.c.l.b16 %v5112
        %v5376 = vunpack.c.l.b16 %v5116
        %v5377 = vunpack.c.l.b16 %v5119
        %v5378 = vunpack.c.l.b16 %v5123
        %v5379 = vunpack.c.l.b16 %v5126
        %v5380 = vunpack.c.l.b16 %v5130
        %v5381 = vunpack.c.l.b16 %v5133
        %v5382 = vunpack.c.l.b16 %v5137
        %v5383 = vunpack.c.l.b16 %v5140
        %v5384 = vunpack.c.l.b16 %v5144
        %v5385 = vunpack.c.l.b16 %v5147
        %v5386 = vunpack.c.l.b16 %v5151
        %v5387 = vunpack.c.l.b16 %v5154
        %v5388 = vunpack.c.l.b16 %v5158
        %v5389 = vunpack.c.l.b16 %v5161
        %v5390 = vpack.c.b16 %v5359, %v5358
        %v5391 = vpack.c.b16 %v5361, %v5360
        %v5392 = vpack.c.b16 %v5363, %v5362
        %v5393 = vpack.c.b16 %v5365, %v5364
        %v5394 = vpack.c.b16 %v5367, %v5366
        %v5395 = vpack.c.b16 %v5369, %v5368
        %v5396 = vpack.c.b16 %v5371, %v5370
        %v5397 = vpack.c.b16 %v5373, %v5372
        %v5398 = vpack.c.b16 %v5375, %v5374
        %v5399 = vpack.c.b16 %v5377, %v5376
        %v5400 = vpack.c.b16 %v5379, %v5378
        %v5401 = vpack.c.b16 %v5381, %v5380
        %v5402 = vpack.c.b16 %v5383, %v5382
        %v5403 = vpack.c.b16 %v5385, %v5384
        %v5404 = vpack.c.b16 %v5387, %v5386
        %v5405 = vpack.c.b16 %v5389, %v5388
        %v5422 = vunpack.c.l.b16 %v4612
        %v5423 = vunpack.c.l.b16 %v4613
        %v5424 = vpack.c.b16 %v5423, %v5422
        %v5426 = vunpack.c.l.b16 %v5175
        %v5427 = vunpack.c.l.b16 %v5185
        %v5428 = vpack.c.b16 %v5427, %v5426
        %v5430 = vunpack.c.l.b16 %v5192
        %v5431 = vunpack.c.l.b16 %v5195
        %v5432 = vpack.c.b16 %v5431, %v5430
        %v5434 = vunpack.c.l.b16 %v4615
        %v5435 = vunpack.c.l.b16 %v4616
        %v5436 = vpack.c.b16 %v5435, %v5434
        %v5438 = vunpack.c.l.b16 %v5209
        %v5439 = vunpack.c.l.b16 %v5219
        %v5440 = vpack.c.b16 %v5439, %v5438
        %v5442 = vunpack.c.l.b16 %v5226
        %v5443 = vunpack.c.l.b16 %v5229
        %v5444 = vpack.c.b16 %v5443, %v5442
        %v5446 = vld [vmem:[#allocation8] sm:$0xf]
        %v5447 = vld [vmem:[#allocation8 + $0x4] sm:$0xf]
        %v5448 = vld [vmem:[#allocation8 + $0x8] sm:$0xf]
        %v5449 = vld [vmem:[#allocation8 + $0xc] sm:$0xf]
        %v5450 = vld [vmem:[#allocation8 + $0x10] sm:$0xf]
        %v5451 = vld [vmem:[#allocation8 + $0x14] sm:$0xf]
        %v5452 = vld [vmem:[#allocation8 + $0x18] sm:$0xf]
        %v5453 = vld [vmem:[#allocation8 + $0x1c] sm:$0xf]
        %v5454 = vld [vmem:[#allocation8 + $0x20] sm:$0xf]
        %v5455 = vld [vmem:[#allocation8 + $0x24] sm:$0xf]
        %v5456 = vld [vmem:[#allocation8 + $0x28] sm:$0xf]
        %v5457 = vld [vmem:[#allocation8 + $0x2c] sm:$0xf]
        %v5458 = vld [vmem:[#allocation8 + $0x30] sm:$0xf]
        %v5459 = vld [vmem:[#allocation8 + $0x34] sm:$0xf]
        %v5460 = vld [vmem:[#allocation8 + $0x38] sm:$0xf]
        %v5461 = vld [vmem:[#allocation8 + $0x3c] sm:$0xf]
        %v5462 = vld [vmem:[#allocation8 + $0x40] sm:$0xf]
        %v5463 = vld [vmem:[#allocation8 + $0x44] sm:$0xf]
        %v5464 = vld [vmem:[#allocation8 + $0x48] sm:$0xf]
        %v5465 = vld [vmem:[#allocation8 + $0x4c] sm:$0xf]
        %v5466 = vld [vmem:[#allocation8 + $0x50] sm:$0xf]
        %v5467 = vld [vmem:[#allocation8 + $0x54] sm:$0xf]
        %v5468 = vld [vmem:[#allocation8 + $0x58] sm:$0xf]
        %v5469 = vld [vmem:[#allocation8 + $0x5c] sm:$0xf]
        %v5470 = vld [vmem:[#allocation8 + $0x60] sm:$0xf]
        %v5471 = vld [vmem:[#allocation8 + $0x64] sm:$0xf]
        %v5472 = vld [vmem:[#allocation8 + $0x68] sm:$0xf]
        %v5473 = vld [vmem:[#allocation8 + $0x6c] sm:$0xf]
        %v5474 = vld [vmem:[#allocation8 + $0x70] sm:$0xf]
        %v5475 = vld [vmem:[#allocation8 + $0x74] sm:$0xf]
        %v5476 = vld [vmem:[#allocation8 + $0x78] sm:$0xf]
        %v5477 = vld [vmem:[#allocation8 + $0x7c] sm:$0xf]
        %v5478 = vld [vmem:[#allocation8 + $0x80] sm:$0xf]
        %v5479 = vld [vmem:[#allocation8 + $0x84] sm:$0xf]
        %v5480 = vld [vmem:[#allocation8 + $0x88] sm:$0xf]
        %v5481 = vld [vmem:[#allocation8 + $0x8c] sm:$0xf]
        %v5482 = vld [vmem:[#allocation8 + $0x90] sm:$0xf]
        %v5483 = vld [vmem:[#allocation8 + $0x94] sm:$0xf]
        %v5484 = vld [vmem:[#allocation8 + $0x98] sm:$0xf]
        %v5485 = vld [vmem:[#allocation8 + $0x9c] sm:$0xf]
        %v5486 = vld [vmem:[#allocation8 + $0xa0] sm:$0xf]
        %v5487 = vld [vmem:[#allocation8 + $0xa4] sm:$0xf]
        %v5488 = vld [vmem:[#allocation8 + $0xa8] sm:$0xf]
        %v5489 = vld [vmem:[#allocation8 + $0xac] sm:$0xf]
        %v5490 = vld [vmem:[#allocation8 + $0xb0] sm:$0xf]
        %v5491 = vld [vmem:[#allocation8 + $0xb4] sm:$0xf]
        %v5492 = vld [vmem:[#allocation8 + $0xb8] sm:$0xf]
        %v5493 = vld [vmem:[#allocation8 + $0xbc] sm:$0xf]
        %v5494 = vld [vmem:[#allocation8 + $0xc0] sm:$0xf]
        %v5495 = vld [vmem:[#allocation8 + $0xc4] sm:$0xf]
        %v5496 = vld [vmem:[#allocation8 + $0xc8] sm:$0xf]
        %v5497 = vld [vmem:[#allocation8 + $0xcc] sm:$0xf]
        %v5498 = vld [vmem:[#allocation8 + $0xd0] sm:$0xf]
        %v5499 = vld [vmem:[#allocation8 + $0xd4] sm:$0xf]
        %v5500 = vld [vmem:[#allocation8 + $0xd8] sm:$0xf]
        %v5501 = vld [vmem:[#allocation8 + $0xdc] sm:$0xf]
        %v5502 = vld [vmem:[#allocation8 + $0xe0] sm:$0xf]
        %v5503 = vld [vmem:[#allocation8 + $0xe4] sm:$0xf]
        %v5504 = vld [vmem:[#allocation8 + $0xe8] sm:$0xf]
        %v5505 = vld [vmem:[#allocation8 + $0xec] sm:$0xf]
        %v5506 = vld [vmem:[#allocation8 + $0xf0] sm:$0xf]
        %v5507 = vld [vmem:[#allocation8 + $0xf4] sm:$0xf]
        %v5508 = vld [vmem:[#allocation8 + $0xf8] sm:$0xf]
        %v5509 = vld [vmem:[#allocation8 + $0xfc] sm:$0xf]
        %v5510 = vld [vmem:[#allocation8 + $0x100] sm:$0xf]
        %v5511 = vld [vmem:[#allocation8 + $0x104] sm:$0xf]
        %v5512 = vld [vmem:[#allocation8 + $0x108] sm:$0xf]
        %v5513 = vld [vmem:[#allocation8 + $0x10c] sm:$0xf]
        %v5514 = vld [vmem:[#allocation8 + $0x110] sm:$0xf]
        %v5515 = vld [vmem:[#allocation8 + $0x114] sm:$0xf]
        %v5516 = vld [vmem:[#allocation8 + $0x118] sm:$0xf]
        %v5517 = vld [vmem:[#allocation8 + $0x11c] sm:$0xf]
        %v5518 = vld [vmem:[#allocation8 + $0x120] sm:$0xf]
        %v5519 = vld [vmem:[#allocation8 + $0x124] sm:$0xf]
        %v5520 = vld [vmem:[#allocation8 + $0x128] sm:$0xf]
        %v5521 = vld [vmem:[#allocation8 + $0x12c] sm:$0xf]
        %v5522 = vld [vmem:[#allocation8 + $0x130] sm:$0xf]
        %v5523 = vld [vmem:[#allocation8 + $0x134] sm:$0xf]
        %v5524 = vld [vmem:[#allocation8 + $0x138] sm:$0xf]
        %v5525 = vld [vmem:[#allocation8 + $0x13c] sm:$0xf]
        %v5526 = vld [vmem:[#allocation8 + $0x140] sm:$0xf]
        %v5527 = vld [vmem:[#allocation8 + $0x144] sm:$0xf]
        %v5528 = vld [vmem:[#allocation8 + $0x148] sm:$0xf]
        %v5529 = vld [vmem:[#allocation8 + $0x14c] sm:$0xf]
        %v5530 = vld [vmem:[#allocation8 + $0x150] sm:$0xf]
        %v5531 = vld [vmem:[#allocation8 + $0x154] sm:$0xf]
        %v5532 = vld [vmem:[#allocation8 + $0x158] sm:$0xf]
        %v5533 = vld [vmem:[#allocation8 + $0x15c] sm:$0xf]
        %v5534 = vld [vmem:[#allocation8 + $0x160] sm:$0xf]
        %v5535 = vld [vmem:[#allocation8 + $0x164] sm:$0xf]
        %v5536 = vld [vmem:[#allocation8 + $0x168] sm:$0xf]
        %v5537 = vld [vmem:[#allocation8 + $0x16c] sm:$0xf]
        %v5538 = vld [vmem:[#allocation8 + $0x170] sm:$0xf]
        %v5539 = vld [vmem:[#allocation8 + $0x174] sm:$0xf]
        %v5540 = vld [vmem:[#allocation8 + $0x178] sm:$0xf]
        %v5541 = vld [vmem:[#allocation8 + $0x17c] sm:$0xf]
        %v5542 = vld [vmem:[#allocation8 + $0x180] sm:$0xf]
        %v5543 = vld [vmem:[#allocation8 + $0x184] sm:$0xf]
        %v5544 = vld [vmem:[#allocation8 + $0x188] sm:$0xf]
        %v5545 = vld [vmem:[#allocation8 + $0x18c] sm:$0xf]
        %v5546 = vld [vmem:[#allocation8 + $0x190] sm:$0xf]
        %v5547 = vld [vmem:[#allocation8 + $0x194] sm:$0xf]
        %v5548 = vld [vmem:[#allocation8 + $0x198] sm:$0xf]
        %v5549 = vld [vmem:[#allocation8 + $0x19c] sm:$0xf]
        %v5550 = vld [vmem:[#allocation8 + $0x1a0] sm:$0xf]
        %v5551 = vld [vmem:[#allocation8 + $0x1a4] sm:$0xf]
        %v5552 = vld [vmem:[#allocation8 + $0x1a8] sm:$0xf]
        %v5553 = vld [vmem:[#allocation8 + $0x1ac] sm:$0xf]
        %v5554 = vld [vmem:[#allocation8 + $0x1b0] sm:$0xf]
        %v5555 = vld [vmem:[#allocation8 + $0x1b4] sm:$0xf]
        %v5556 = vld [vmem:[#allocation8 + $0x1b8] sm:$0xf]
        %v5557 = vld [vmem:[#allocation8 + $0x1bc] sm:$0xf]
        %v5558 = vld [vmem:[#allocation8 + $0x1c0] sm:$0xf]
        %v5559 = vld [vmem:[#allocation8 + $0x1c4] sm:$0xf]
        %v5560 = vld [vmem:[#allocation8 + $0x1c8] sm:$0xf]
        %v5561 = vld [vmem:[#allocation8 + $0x1cc] sm:$0xf]
        %v5562 = vld [vmem:[#allocation8 + $0x1d0] sm:$0xf]
        %v5563 = vld [vmem:[#allocation8 + $0x1d4] sm:$0xf]
        %v5564 = vld [vmem:[#allocation8 + $0x1d8] sm:$0xf]
        %v5565 = vld [vmem:[#allocation8 + $0x1dc] sm:$0xf]
        %v5566 = vld [vmem:[#allocation8 + $0x1e0] sm:$0xf]
        %v5567 = vld [vmem:[#allocation8 + $0x1e4] sm:$0xf]
        %v5568 = vld [vmem:[#allocation8 + $0x1e8] sm:$0xf]
        %v5569 = vld [vmem:[#allocation8 + $0x1ec] sm:$0xf]
        %v5570 = vld [vmem:[#allocation8 + $0x1f0] sm:$0xf]
        %v5571 = vld [vmem:[#allocation8 + $0x1f4] sm:$0xf]
        %v5572 = vld [vmem:[#allocation8 + $0x1f8] sm:$0xf]
        %v5573 = vld [vmem:[#allocation8 + $0x1fc] sm:$0xf]
        %v5574 = vld [vmem:[#allocation8 + $0x200] sm:$0xf]
        %v5575 = vld [vmem:[#allocation8 + $0x204] sm:$0xf]
        %v5576 = vld [vmem:[#allocation8 + $0x208] sm:$0xf]
        %v5577 = vld [vmem:[#allocation8 + $0x20c] sm:$0xf]
        %v5578 = vld [vmem:[#allocation8 + $0x210] sm:$0xf]
        %v5579 = vld [vmem:[#allocation8 + $0x214] sm:$0xf]
        %v5580 = vld [vmem:[#allocation8 + $0x218] sm:$0xf]
        %v5581 = vld [vmem:[#allocation8 + $0x21c] sm:$0xf]
        %v5582 = vld [vmem:[#allocation8 + $0x220] sm:$0xf]
        %v5583 = vld [vmem:[#allocation8 + $0x224] sm:$0xf]
        %v5584 = vld [vmem:[#allocation8 + $0x228] sm:$0xf]
        %v5585 = vld [vmem:[#allocation8 + $0x22c] sm:$0xf]
        %v5586 = vld [vmem:[#allocation8 + $0x230] sm:$0xf]
        %v5587 = vld [vmem:[#allocation8 + $0x234] sm:$0xf]
        %v5588 = vld [vmem:[#allocation8 + $0x238] sm:$0xf]
        %v5589 = vld [vmem:[#allocation8 + $0x23c] sm:$0xf]
        %v5590 = vld [vmem:[%s6] sm:$0x1]
        %v5592 = vlaneseq
        %v5593 = vshrl.u32 %v5592, 7
        %v5594 = vsub.s32 0, %v5593
        %v5595 = vrot.slane %v5590, %v5594
        %v5741 = vunpack.c.l.b16 %v5446
        %v5742 = vunpack.c.l.b16 %v5447
        %v5743 = vunpack.c.l.b16 %v5448
        %v5744 = vunpack.c.l.b16 %v5449
        %v5745 = vunpack.c.l.b16 %v5450
        %v5746 = vunpack.c.l.b16 %v5451
        %v5747 = vunpack.c.l.b16 %v5452
        %v5748 = vunpack.c.l.b16 %v5453
        %v5749 = vunpack.c.l.b16 %v5454
        %v5750 = vunpack.c.l.b16 %v5455
        %v5751 = vunpack.c.l.b16 %v5456
        %v5752 = vunpack.c.l.b16 %v5457
        %v5753 = vunpack.c.l.b16 %v5458
        %v5754 = vunpack.c.l.b16 %v5459
        %v5755 = vunpack.c.l.b16 %v5460
        %v5756 = vunpack.c.l.b16 %v5461
        %v5757 = vunpack.c.l.b16 %v5462
        %v5758 = vunpack.c.l.b16 %v5463
        %v5759 = vunpack.c.l.b16 %v5464
        %v5760 = vunpack.c.l.b16 %v5465
        %v5761 = vunpack.c.l.b16 %v5466
        %v5762 = vunpack.c.l.b16 %v5467
        %v5763 = vunpack.c.l.b16 %v5468
        %v5764 = vunpack.c.l.b16 %v5469
        %v5765 = vunpack.c.l.b16 %v5470
        %v5766 = vunpack.c.l.b16 %v5471
        %v5767 = vunpack.c.l.b16 %v5472
        %v5768 = vunpack.c.l.b16 %v5473
        %v5769 = vunpack.c.l.b16 %v5474
        %v5770 = vunpack.c.l.b16 %v5475
        %v5771 = vunpack.c.l.b16 %v5476
        %v5772 = vunpack.c.l.b16 %v5477
        %v5773 = vunpack.c.l.b16 %v5478
        %v5774 = vunpack.c.l.b16 %v5479
        %v5775 = vunpack.c.l.b16 %v5480
        %v5776 = vunpack.c.l.b16 %v5481
        %v5777 = vunpack.c.l.b16 %v5482
        %v5778 = vunpack.c.l.b16 %v5483
        %v5779 = vunpack.c.l.b16 %v5484
        %v5780 = vunpack.c.l.b16 %v5485
        %v5781 = vunpack.c.l.b16 %v5486
        %v5782 = vunpack.c.l.b16 %v5487
        %v5783 = vunpack.c.l.b16 %v5488
        %v5784 = vunpack.c.l.b16 %v5489
        %v5785 = vunpack.c.l.b16 %v5490
        %v5786 = vunpack.c.l.b16 %v5491
        %v5787 = vunpack.c.l.b16 %v5492
        %v5788 = vunpack.c.l.b16 %v5493
        %v5789 = vunpack.c.l.b16 %v5494
        %v5790 = vunpack.c.l.b16 %v5495
        %v5791 = vunpack.c.l.b16 %v5496
        %v5792 = vunpack.c.l.b16 %v5497
        %v5793 = vunpack.c.l.b16 %v5498
        %v5794 = vunpack.c.l.b16 %v5499
        %v5795 = vunpack.c.l.b16 %v5500
        %v5796 = vunpack.c.l.b16 %v5501
        %v5797 = vunpack.c.l.b16 %v5502
        %v5798 = vunpack.c.l.b16 %v5503
        %v5799 = vunpack.c.l.b16 %v5504
        %v5800 = vunpack.c.l.b16 %v5505
        %v5801 = vunpack.c.l.b16 %v5506
        %v5802 = vunpack.c.l.b16 %v5507
        %v5803 = vunpack.c.l.b16 %v5508
        %v5804 = vunpack.c.l.b16 %v5509
        %v5805 = vunpack.c.l.b16 %v5510
        %v5806 = vunpack.c.l.b16 %v5511
        %v5807 = vunpack.c.l.b16 %v5512
        %v5808 = vunpack.c.l.b16 %v5513
        %v5809 = vunpack.c.l.b16 %v5514
        %v5810 = vunpack.c.l.b16 %v5515
        %v5811 = vunpack.c.l.b16 %v5516
        %v5812 = vunpack.c.l.b16 %v5517
        %v5813 = vunpack.c.l.b16 %v5518
        %v5814 = vunpack.c.l.b16 %v5519
        %v5815 = vunpack.c.l.b16 %v5520
        %v5816 = vunpack.c.l.b16 %v5521
        %v5817 = vunpack.c.l.b16 %v5522
        %v5818 = vunpack.c.l.b16 %v5523
        %v5819 = vunpack.c.l.b16 %v5524
        %v5820 = vunpack.c.l.b16 %v5525
        %v5821 = vunpack.c.l.b16 %v5526
        %v5822 = vunpack.c.l.b16 %v5527
        %v5823 = vunpack.c.l.b16 %v5528
        %v5824 = vunpack.c.l.b16 %v5529
        %v5825 = vunpack.c.l.b16 %v5530
        %v5826 = vunpack.c.l.b16 %v5531
        %v5827 = vunpack.c.l.b16 %v5532
        %v5828 = vunpack.c.l.b16 %v5533
        %v5829 = vunpack.c.l.b16 %v5534
        %v5830 = vunpack.c.l.b16 %v5535
        %v5831 = vunpack.c.l.b16 %v5536
        %v5832 = vunpack.c.l.b16 %v5537
        %v5833 = vunpack.c.l.b16 %v5538
        %v5834 = vunpack.c.l.b16 %v5539
        %v5835 = vunpack.c.l.b16 %v5540
        %v5836 = vunpack.c.l.b16 %v5541
        %v5837 = vunpack.c.l.b16 %v5542
        %v5838 = vunpack.c.l.b16 %v5543
        %v5839 = vunpack.c.l.b16 %v5544
        %v5840 = vunpack.c.l.b16 %v5545
        %v5841 = vunpack.c.l.b16 %v5546
        %v5842 = vunpack.c.l.b16 %v5547
        %v5843 = vunpack.c.l.b16 %v5548
        %v5844 = vunpack.c.l.b16 %v5549
        %v5845 = vunpack.c.l.b16 %v5550
        %v5846 = vunpack.c.l.b16 %v5551
        %v5847 = vunpack.c.l.b16 %v5552
        %v5848 = vunpack.c.l.b16 %v5553
        %v5849 = vunpack.c.l.b16 %v5554
        %v5850 = vunpack.c.l.b16 %v5555
        %v5851 = vunpack.c.l.b16 %v5556
        %v5852 = vunpack.c.l.b16 %v5557
        %v5853 = vunpack.c.l.b16 %v5558
        %v5854 = vunpack.c.l.b16 %v5559
        %v5855 = vunpack.c.l.b16 %v5560
        %v5856 = vunpack.c.l.b16 %v5561
        %v5857 = vunpack.c.l.b16 %v5562
        %v5858 = vunpack.c.l.b16 %v5563
        %v5859 = vunpack.c.l.b16 %v5564
        %v5860 = vunpack.c.l.b16 %v5565
        %v5861 = vunpack.c.l.b16 %v5566
        %v5862 = vunpack.c.l.b16 %v5567
        %v5863 = vunpack.c.l.b16 %v5568
        %v5864 = vunpack.c.l.b16 %v5569
        %v5865 = vunpack.c.l.b16 %v5570
        %v5866 = vunpack.c.l.b16 %v5571
        %v5867 = vunpack.c.l.b16 %v5572
        %v5868 = vunpack.c.l.b16 %v5573
        %v5869 = vunpack.c.l.b16 %v5574
        %v5870 = vunpack.c.l.b16 %v5575
        %v5871 = vunpack.c.l.b16 %v5576
        %v5872 = vunpack.c.l.b16 %v5577
        %v5873 = vunpack.c.l.b16 %v5578
        %v5874 = vunpack.c.l.b16 %v5579
        %v5875 = vunpack.c.l.b16 %v5580
        %v5876 = vunpack.c.l.b16 %v5581
        %v5877 = vunpack.c.l.b16 %v5582
        %v5878 = vunpack.c.l.b16 %v5583
        %v5879 = vunpack.c.l.b16 %v5584
        %v5880 = vunpack.c.l.b16 %v5585
        %v5881 = vunpack.c.l.b16 %v5586
        %v5882 = vunpack.c.l.b16 %v5587
        %v5883 = vunpack.c.l.b16 %v5588
        %v5884 = vunpack.c.l.b16 %v5589
        %v5885 = vpack.c.b16 %v5742, %v5741
        %v5886 = vpack.c.b16 %v5744, %v5743
        %v5887 = vpack.c.b16 %v5746, %v5745
        %v5888 = vpack.c.b16 %v5748, %v5747
        %v5889 = vpack.c.b16 %v5750, %v5749
        %v5890 = vpack.c.b16 %v5752, %v5751
        %v5891 = vpack.c.b16 %v5754, %v5753
        %v5892 = vpack.c.b16 %v5756, %v5755
        %v5893 = vpack.c.b16 %v5758, %v5757
        %v5894 = vpack.c.b16 %v5760, %v5759
        %v5895 = vpack.c.b16 %v5762, %v5761
        %v5896 = vpack.c.b16 %v5764, %v5763
        %v5897 = vpack.c.b16 %v5766, %v5765
        %v5898 = vpack.c.b16 %v5768, %v5767
        %v5899 = vpack.c.b16 %v5770, %v5769
        %v5900 = vpack.c.b16 %v5772, %v5771
        %v5901 = vpack.c.b16 %v5774, %v5773
        %v5902 = vpack.c.b16 %v5776, %v5775
        %v5903 = vpack.c.b16 %v5778, %v5777
        %v5904 = vpack.c.b16 %v5780, %v5779
        %v5905 = vpack.c.b16 %v5782, %v5781
        %v5906 = vpack.c.b16 %v5784, %v5783
        %v5907 = vpack.c.b16 %v5786, %v5785
        %v5908 = vpack.c.b16 %v5788, %v5787
        %v5909 = vpack.c.b16 %v5790, %v5789
        %v5910 = vpack.c.b16 %v5792, %v5791
        %v5911 = vpack.c.b16 %v5794, %v5793
        %v5912 = vpack.c.b16 %v5796, %v5795
        %v5913 = vpack.c.b16 %v5798, %v5797
        %v5914 = vpack.c.b16 %v5800, %v5799
        %v5915 = vpack.c.b16 %v5802, %v5801
        %v5916 = vpack.c.b16 %v5804, %v5803
        %v5917 = vpack.c.b16 %v5806, %v5805
        %v5918 = vpack.c.b16 %v5808, %v5807
        %v5919 = vpack.c.b16 %v5810, %v5809
        %v5920 = vpack.c.b16 %v5812, %v5811
        %v5921 = vpack.c.b16 %v5814, %v5813
        %v5922 = vpack.c.b16 %v5816, %v5815
        %v5923 = vpack.c.b16 %v5818, %v5817
        %v5924 = vpack.c.b16 %v5820, %v5819
        %v5925 = vpack.c.b16 %v5822, %v5821
        %v5926 = vpack.c.b16 %v5824, %v5823
        %v5927 = vpack.c.b16 %v5826, %v5825
        %v5928 = vpack.c.b16 %v5828, %v5827
        %v5929 = vpack.c.b16 %v5830, %v5829
        %v5930 = vpack.c.b16 %v5832, %v5831
        %v5931 = vpack.c.b16 %v5834, %v5833
        %v5932 = vpack.c.b16 %v5836, %v5835
        %v5933 = vpack.c.b16 %v5838, %v5837
        %v5934 = vpack.c.b16 %v5840, %v5839
        %v5935 = vpack.c.b16 %v5842, %v5841
        %v5936 = vpack.c.b16 %v5844, %v5843
        %v5937 = vpack.c.b16 %v5846, %v5845
        %v5938 = vpack.c.b16 %v5848, %v5847
        %v5939 = vpack.c.b16 %v5850, %v5849
        %v5940 = vpack.c.b16 %v5852, %v5851
        %v5941 = vpack.c.b16 %v5854, %v5853
        %v5942 = vpack.c.b16 %v5856, %v5855
        %v5943 = vpack.c.b16 %v5858, %v5857
        %v5944 = vpack.c.b16 %v5860, %v5859
        %v5945 = vpack.c.b16 %v5862, %v5861
        %v5946 = vpack.c.b16 %v5864, %v5863
        %v5947 = vpack.c.b16 %v5866, %v5865
        %v5948 = vpack.c.b16 %v5868, %v5867
        %v5949 = vpack.c.b16 %v5870, %v5869
        %v5950 = vpack.c.b16 %v5872, %v5871
        %v5951 = vpack.c.b16 %v5874, %v5873
        %v5952 = vpack.c.b16 %v5876, %v5875
        %v5953 = vpack.c.b16 %v5878, %v5877
        %v5954 = vpack.c.b16 %v5880, %v5879
        %v5955 = vpack.c.b16 %v5882, %v5881
        %v5956 = vpack.c.b16 %v5884, %v5883
        %6029 = vmatprep.subr.bf16.mxu0 0
        %6030 = vmatpush1.bf16.msra.mxu0 %v5885
        %6031 = vmatprep.subr.bf16.mxu0 0
        %6032 = vmatpush1.bf16.msra.mxu0 %v5886
        %6033 = vmatprep.subr.bf16.mxu0 0
        %6034 = vmatpush1.bf16.msra.mxu0 %v5887
        %6035 = vmatprep.subr.bf16.mxu0 0
        %6036 = vmatpush1.bf16.msra.mxu0 %v5888
        %6037 = vmatprep.subr.bf16.mxu0 0
        %6038 = vmatpush1.bf16.msra.mxu0 %v5889
        %6039 = vmatprep.subr.bf16.mxu0 0
        %6040 = vmatpush1.bf16.msra.mxu0 %v5890
        %6041 = vmatprep.subr.bf16.mxu0 0
        %6042 = vmatpush1.bf16.msra.mxu0 %v5891
        %6043 = vmatprep.subr.bf16.mxu0 0
        %6044 = vmatpush1.bf16.msra.mxu0 %v5892
        %6045 = vmatprep.subr.bf16.mxu0 0
        %6046 = vmatpush1.bf16.msra.mxu0 %v5893
        %6047 = vmatprep.subr.bf16.mxu0 0
        %6048 = vmatpush1.bf16.msra.mxu0 %v5894
        %6049 = vmatprep.subr.bf16.mxu0 0
        %6050 = vmatpush1.bf16.msra.mxu0 %v5895
        %6051 = vmatprep.subr.bf16.mxu0 0
        %6052 = vmatpush1.bf16.msra.mxu0 %v5896
        %6053 = vmatprep.subr.bf16.mxu0 0
        %6054 = vmatpush1.bf16.msra.mxu0 %v5897
        %6055 = vmatprep.subr.bf16.mxu0 0
        %6056 = vmatpush1.bf16.msra.mxu0 %v5898
        %6057 = vmatprep.subr.bf16.mxu0 0
        %6058 = vmatpush1.bf16.msra.mxu0 %v5899
        %6059 = vmatprep.subr.bf16.mxu0 0
        %6060 = vmatpush1.bf16.msra.mxu0 %v5900
        %6061 = vmatprep.mubr.bf16.mxu0 %v5326
        %6062 = vmatmul.mubr.bf16.gmra.mrb[0].mxu0 %v5262
        %v6063 = vpop.f32.mrb[0].mxu0
        %v6064 = vadd.f32 %v5595, %v6063
        %v6065 = vpop.f32.mrb[0].mxu0
        %v6066 = vpop.f32.mrb[0].mxu0
        %v6067 = vadd.f32 %v5595, %v6066
        %v6068 = vpop.f32.mrb[0].mxu0
        %6069 = vmatprep.mubr.bf16.mxu0 %v5327
        %6070 = vmatmul.mubr.bf16.gmra.mrb[0].mxu0 %v5263
        %v6071 = vpop.f32.mrb[0].mxu0
        %v6072 = vadd.f32 %v5595, %v6071
        %v6073 = vpop.f32.mrb[0].mxu0
        %v6074 = vpop.f32.mrb[0].mxu0
        %v6075 = vadd.f32 %v5595, %v6074
        %v6076 = vpop.f32.mrb[0].mxu0
        %6077 = vmatprep.mubr.bf16.mxu0 %v5328
        %6078 = vmatmul.mubr.bf16.gmra.mrb[0].mxu0 %v5264
        %v6079 = vpop.f32.mrb[0].mxu0
        %v6080 = vadd.f32 %v5595, %v6079
        %v6081 = vpop.f32.mrb[0].mxu0
        %v6082 = vpop.f32.mrb[0].mxu0
        %v6083 = vadd.f32 %v5595, %v6082
        %v6084 = vpop.f32.mrb[0].mxu0
        %6085 = vmatprep.mubr.bf16.mxu0 %v5329
        %6086 = vmatmul.mubr.bf16.gmra.mrb[0].mxu0 %v5265
        %v6087 = vpop.f32.mrb[0].mxu0
        %v6088 = vadd.f32 %v5595, %v6087
        %v6089 = vpop.f32.mrb[0].mxu0
        %v6090 = vpop.f32.mrb[0].mxu0
        %v6091 = vadd.f32 %v5595, %v6090
        %v6092 = vpop.f32.mrb[0].mxu0
        %6093 = vmatprep.mubr.bf16.mxu0 %v5330
        %6094 = vmatmul.mubr.bf16.gmra.mrb[0].mxu0 %v5266
        %v6095 = vpop.f32.mrb[0].mxu0
        %v6096 = vadd.f32 %v5595, %v6095
        %v6097 = vpop.f32.mrb[0].mxu0
        %v6098 = vpop.f32.mrb[0].mxu0
        %v6099 = vadd.f32 %v5595, %v6098
        %v6100 = vpop.f32.mrb[0].mxu0
        %6101 = vmatprep.mubr.bf16.mxu0 %v5331
        %6102 = vmatmul.mubr.bf16.gmra.mrb[0].mxu0 %v5267
        %v6103 = vpop.f32.mrb[0].mxu0
        %v6104 = vadd.f32 %v5595, %v6103
        %v6105 = vpop.f32.mrb[0].mxu0
        %v6106 = vpop.f32.mrb[0].mxu0
        %v6107 = vadd.f32 %v5595, %v6106
        %v6108 = vpop.f32.mrb[0].mxu0
        %6109 = vmatprep.mubr.bf16.mxu0 %v5332
        %6110 = vmatmul.mubr.bf16.gmra.mrb[0].mxu0 %v5268
        %v6111 = vpop.f32.mrb[0].mxu0
        %v6112 = vadd.f32 %v5595, %v6111
        %v6113 = vpop.f32.mrb[0].mxu0
        %v6114 = vpop.f32.mrb[0].mxu0
        %v6115 = vadd.f32 %v5595, %v6114
        %v6116 = vpop.f32.mrb[0].mxu0
        %6117 = vmatprep.mubr.bf16.mxu0 %v5333
        %6118 = vmatmul.mubr.bf16.gmra.mrb[0].mxu0 %v5269
        %v6119 = vpop.f32.mrb[0].mxu0
        %v6120 = vadd.f32 %v5595, %v6119
        %v6121 = vpop.f32.mrb[0].mxu0
        %v6122 = vpop.f32.mrb[0].mxu0
        %v6123 = vadd.f32 %v5595, %v6122
        %v6124 = vpop.f32.mrb[0].mxu0
        %6125 = vmatprep.mubr.bf16.mxu0 %v5334
        %6126 = vmatmul.mubr.bf16.gmra.mrb[0].mxu0 %v5270
        %v6127 = vpop.f32.mrb[0].mxu0
        %v6128 = vadd.f32 %v5595, %v6127
        %v6129 = vpop.f32.mrb[0].mxu0
        %v6130 = vpop.f32.mrb[0].mxu0
        %v6131 = vadd.f32 %v5595, %v6130
        %v6132 = vpop.f32.mrb[0].mxu0
        %6133 = vmatprep.mubr.bf16.mxu0 %v5335
        %6134 = vmatmul.mubr.bf16.gmra.mrb[0].mxu0 %v5271
        %v6135 = vpop.f32.mrb[0].mxu0
        %v6136 = vadd.f32 %v5595, %v6135
        %v6137 = vpop.f32.mrb[0].mxu0
        %v6138 = vpop.f32.mrb[0].mxu0
        %v6139 = vadd.f32 %v5595, %v6138
        %v6140 = vpop.f32.mrb[0].mxu0
        %6141 = vmatprep.mubr.bf16.mxu0 %v5336
        %6142 = vmatmul.mubr.bf16.gmra.mrb[0].mxu0 %v5272
        %v6143 = vpop.f32.mrb[0].mxu0
        %v6144 = vadd.f32 %v5595, %v6143
        %v6145 = vpop.f32.mrb[0].mxu0
        %v6146 = vpop.f32.mrb[0].mxu0
        %v6147 = vadd.f32 %v5595, %v6146
        %v6148 = vpop.f32.mrb[0].mxu0
        %6149 = vmatprep.mubr.bf16.mxu0 %v5337
        %6150 = vmatmul.mubr.bf16.gmra.mrb[0].mxu0 %v5273
        %v6151 = vpop.f32.mrb[0].mxu0
        %v6152 = vadd.f32 %v5595, %v6151
        %v6153 = vpop.f32.mrb[0].mxu0
        %v6154 = vpop.f32.mrb[0].mxu0
        %v6155 = vadd.f32 %v5595, %v6154
        %v6156 = vpop.f32.mrb[0].mxu0
        %6157 = vmatprep.mubr.bf16.mxu0 %v5338
        %6158 = vmatmul.mubr.bf16.gmra.mrb[0].mxu0 %v5274
        %v6159 = vpop.f32.mrb[0].mxu0
        %v6160 = vadd.f32 %v5595, %v6159
        %v6161 = vpop.f32.mrb[0].mxu0
        %v6162 = vpop.f32.mrb[0].mxu0
        %v6163 = vadd.f32 %v5595, %v6162
        %v6164 = vpop.f32.mrb[0].mxu0
        %6165 = vmatprep.mubr.bf16.mxu0 %v5339
        %6166 = vmatmul.mubr.bf16.gmra.mrb[0].mxu0 %v5275
        %v6167 = vpop.f32.mrb[0].mxu0
        %v6168 = vadd.f32 %v5595, %v6167
        %v6169 = vpop.f32.mrb[0].mxu0
        %v6170 = vpop.f32.mrb[0].mxu0
        %v6171 = vadd.f32 %v5595, %v6170
        %v6172 = vpop.f32.mrb[0].mxu0
        %6173 = vmatprep.mubr.bf16.mxu0 %v5340
        %6174 = vmatmul.mubr.bf16.gmra.mrb[0].mxu0 %v5276
        %v6175 = vpop.f32.mrb[0].mxu0
        %v6176 = vadd.f32 %v5595, %v6175
        %v6177 = vpop.f32.mrb[0].mxu0
        %v6178 = vpop.f32.mrb[0].mxu0
        %v6179 = vadd.f32 %v5595, %v6178
        %v6180 = vpop.f32.mrb[0].mxu0
        %6181 = vmatprep.mubr.bf16.mxu0 %v5341
        %6182 = vmatmul.mubr.bf16.gmra.mrb[0].mxu0 %v5277
        %v6183 = vpop.f32.mrb[0].mxu0
        %v6184 = vadd.f32 %v5595, %v6183
        %v6185 = vpop.f32.mrb[0].mxu0
        %v6186 = vpop.f32.mrb[0].mxu0
        %v6187 = vadd.f32 %v5595, %v6186
        %v6188 = vpop.f32.mrb[0].mxu0
        %6189 = vdwg.mxu0
        %6190 = vmatprep.subr.bf16.mxu0 0
        %6191 = vmatpush1.bf16.msra.mxu0 %v5901
        %6192 = vmatprep.subr.bf16.mxu0 0
        %6193 = vmatpush1.bf16.msra.mxu0 %v5902
        %6194 = vmatprep.subr.bf16.mxu0 0
        %6195 = vmatpush1.bf16.msra.mxu0 %v5903
        %6196 = vmatprep.subr.bf16.mxu0 0
        %6197 = vmatpush1.bf16.msra.mxu0 %v5904
        %6198 = vmatprep.subr.bf16.mxu0 0
        %6199 = vmatpush1.bf16.msra.mxu0 %v5905
        %6200 = vmatprep.subr.bf16.mxu0 0
        %6201 = vmatpush1.bf16.msra.mxu0 %v5906
        %6202 = vmatprep.subr.bf16.mxu0 0
        %6203 = vmatpush1.bf16.msra.mxu0 %v5907
        %6204 = vmatprep.subr.bf16.mxu0 0
        %6205 = vmatpush1.bf16.msra.mxu0 %v5908
        %6206 = vmatprep.subr.bf16.mxu0 0
        %6207 = vmatpush1.bf16.msra.mxu0 %v5909
        %6208 = vmatprep.subr.bf16.mxu0 0
        %6209 = vmatpush1.bf16.msra.mxu0 %v5910
        %6210 = vmatprep.subr.bf16.mxu0 0
        %6211 = vmatpush1.bf16.msra.mxu0 %v5911
        %6212 = vmatprep.subr.bf16.mxu0 0
        %6213 = vmatpush1.bf16.msra.mxu0 %v5912
        %6214 = vmatprep.subr.bf16.mxu0 0
        %6215 = vmatpush1.bf16.msra.mxu0 %v5913
        %6216 = vmatprep.subr.bf16.mxu0 0
        %6217 = vmatpush1.bf16.msra.mxu0 %v5914
        %6218 = vmatprep.subr.bf16.mxu0 0
        %6219 = vmatpush1.bf16.msra.mxu0 %v5915
        %6220 = vmatprep.subr.bf16.mxu0 0
        %6221 = vmatpush1.bf16.msra.mxu0 %v5916
        %6222 = vmatprep.mubr.bf16.mxu0 %v5263
        %6223 = vmatmul.mubr.bf16.gmra.mrb[0].mxu0 %v5390
        %v6224 = vpop.f32.mrb[0].mxu0
        %v6225 = vadd.f32 %v6064, %v6224
        %v6226 = vpop.f32.mrb[0].mxu0
        %v6227 = vpop.f32.mrb[0].mxu0
        %v6228 = vadd.f32 %v6067, %v6227
        %v6229 = vpop.f32.mrb[0].mxu0
        %6230 = vmatprep.mubr.bf16.mxu0 %v5264
        %6231 = vmatmul.mubr.bf16.gmra.mrb[0].mxu0 %v5391
        %v6232 = vpop.f32.mrb[0].mxu0
        %v6233 = vadd.f32 %v6072, %v6232
        %v6234 = vpop.f32.mrb[0].mxu0
        %v6235 = vpop.f32.mrb[0].mxu0
        %v6236 = vadd.f32 %v6075, %v6235
        %v6237 = vpop.f32.mrb[0].mxu0
        %6238 = vmatprep.mubr.bf16.mxu0 %v5265
        %6239 = vmatmul.mubr.bf16.gmra.mrb[0].mxu0 %v5392
        %v6240 = vpop.f32.mrb[0].mxu0
        %v6241 = vadd.f32 %v6080, %v6240
        %v6242 = vpop.f32.mrb[0].mxu0
        %v6243 = vpop.f32.mrb[0].mxu0
        %v6244 = vadd.f32 %v6083, %v6243
        %v6245 = vpop.f32.mrb[0].mxu0
        %6246 = vmatprep.mubr.bf16.mxu0 %v5266
        %6247 = vmatmul.mubr.bf16.gmra.mrb[0].mxu0 %v5393
        %v6248 = vpop.f32.mrb[0].mxu0
        %v6249 = vadd.f32 %v6088, %v6248
        %v6250 = vpop.f32.mrb[0].mxu0
        %v6251 = vpop.f32.mrb[0].mxu0
        %v6252 = vadd.f32 %v6091, %v6251
        %v6253 = vpop.f32.mrb[0].mxu0
        %6254 = vmatprep.mubr.bf16.mxu0 %v5267
        %6255 = vmatmul.mubr.bf16.gmra.mrb[0].mxu0 %v5394
        %v6256 = vpop.f32.mrb[0].mxu0
        %v6257 = vadd.f32 %v6096, %v6256
        %v6258 = vpop.f32.mrb[0].mxu0
        %v6259 = vpop.f32.mrb[0].mxu0
        %v6260 = vadd.f32 %v6099, %v6259
        %v6261 = vpop.f32.mrb[0].mxu0
        %6262 = vmatprep.mubr.bf16.mxu0 %v5268
        %6263 = vmatmul.mubr.bf16.gmra.mrb[0].mxu0 %v5395
        %v6264 = vpop.f32.mrb[0].mxu0
        %v6265 = vadd.f32 %v6104, %v6264
        %v6266 = vpop.f32.mrb[0].mxu0
        %v6267 = vpop.f32.mrb[0].mxu0
        %v6268 = vadd.f32 %v6107, %v6267
        %v6269 = vpop.f32.mrb[0].mxu0
        %6270 = vmatprep.mubr.bf16.mxu0 %v5269
        %6271 = vmatmul.mubr.bf16.gmra.mrb[0].mxu0 %v5396
        %v6272 = vpop.f32.mrb[0].mxu0
        %v6273 = vadd.f32 %v6112, %v6272
        %v6274 = vpop.f32.mrb[0].mxu0
        %v6275 = vpop.f32.mrb[0].mxu0
        %v6276 = vadd.f32 %v6115, %v6275
        %v6277 = vpop.f32.mrb[0].mxu0
        %6278 = vmatprep.mubr.bf16.mxu0 %v5270
        %6279 = vmatmul.mubr.bf16.gmra.mrb[0].mxu0 %v5397
        %v6280 = vpop.f32.mrb[0].mxu0
        %v6281 = vadd.f32 %v6120, %v6280
        %v6282 = vpop.f32.mrb[0].mxu0
        %v6283 = vpop.f32.mrb[0].mxu0
        %v6284 = vadd.f32 %v6123, %v6283
        %v6285 = vpop.f32.mrb[0].mxu0
        %6286 = vmatprep.mubr.bf16.mxu0 %v5271
        %6287 = vmatmul.mubr.bf16.gmra.mrb[0].mxu0 %v5398
        %v6288 = vpop.f32.mrb[0].mxu0
        %v6289 = vadd.f32 %v6128, %v6288
        %v6290 = vpop.f32.mrb[0].mxu0
        %v6291 = vpop.f32.mrb[0].mxu0
        %v6292 = vadd.f32 %v6131, %v6291
        %v6293 = vpop.f32.mrb[0].mxu0
        %6294 = vmatprep.mubr.bf16.mxu0 %v5272
        %6295 = vmatmul.mubr.bf16.gmra.mrb[0].mxu0 %v5399
        %v6296 = vpop.f32.mrb[0].mxu0
        %v6297 = vadd.f32 %v6136, %v6296
        %v6298 = vpop.f32.mrb[0].mxu0
        %v6299 = vpop.f32.mrb[0].mxu0
        %v6300 = vadd.f32 %v6139, %v6299
        %v6301 = vpop.f32.mrb[0].mxu0
        %6302 = vmatprep.mubr.bf16.mxu0 %v5273
        %6303 = vmatmul.mubr.bf16.gmra.mrb[0].mxu0 %v5400
        %v6304 = vpop.f32.mrb[0].mxu0
        %v6305 = vadd.f32 %v6144, %v6304
        %v6306 = vpop.f32.mrb[0].mxu0
        %v6307 = vpop.f32.mrb[0].mxu0
        %v6308 = vadd.f32 %v6147, %v6307
        %v6309 = vpop.f32.mrb[0].mxu0
        %6310 = vmatprep.mubr.bf16.mxu0 %v5274
        %6311 = vmatmul.mubr.bf16.gmra.mrb[0].mxu0 %v5401
        %v6312 = vpop.f32.mrb[0].mxu0
        %v6313 = vadd.f32 %v6152, %v6312
        %v6314 = vpop.f32.mrb[0].mxu0
        %v6315 = vpop.f32.mrb[0].mxu0
        %v6316 = vadd.f32 %v6155, %v6315
        %v6317 = vpop.f32.mrb[0].mxu0
        %6318 = vmatprep.mubr.bf16.mxu0 %v5275
        %6319 = vmatmul.mubr.bf16.gmra.mrb[0].mxu0 %v5402
        %v6320 = vpop.f32.mrb[0].mxu0
        %v6321 = vadd.f32 %v6160, %v6320
        %v6322 = vpop.f32.mrb[0].mxu0
        %v6323 = vpop.f32.mrb[0].mxu0
        %v6324 = vadd.f32 %v6163, %v6323
        %v6325 = vpop.f32.mrb[0].mxu0
        %6326 = vmatprep.mubr.bf16.mxu0 %v5276
        %6327 = vmatmul.mubr.bf16.gmra.mrb[0].mxu0 %v5403
        %v6328 = vpop.f32.mrb[0].mxu0
        %v6329 = vadd.f32 %v6168, %v6328
        %v6330 = vpop.f32.mrb[0].mxu0
        %v6331 = vpop.f32.mrb[0].mxu0
        %v6332 = vadd.f32 %v6171, %v6331
        %v6333 = vpop.f32.mrb[0].mxu0
        %6334 = vmatprep.mubr.bf16.mxu0 %v5277
        %6335 = vmatmul.mubr.bf16.gmra.mrb[0].mxu0 %v5404
        %v6336 = vpop.f32.mrb[0].mxu0
        %v6337 = vadd.f32 %v6176, %v6336
        %v6338 = vpop.f32.mrb[0].mxu0
        %v6339 = vpop.f32.mrb[0].mxu0
        %v6340 = vadd.f32 %v6179, %v6339
        %v6341 = vpop.f32.mrb[0].mxu0
        %6342 = vmatprep.mubr.bf16.mxu0 %v5424
        %6343 = vmatmul.mubr.bf16.gmra.mrb[0].mxu0 %v5405
        %v6344 = vpop.f32.mrb[0].mxu0
        %v6345 = vadd.f32 %v6184, %v6344
        %v6346 = vpop.f32.mrb[0].mxu0
        %v6347 = vpop.f32.mrb[0].mxu0
        %v6348 = vadd.f32 %v6187, %v6347
        %v6349 = vpop.f32.mrb[0].mxu0
        %6350 = vdwg.mxu0
        %6351 = vmatprep.subr.bf16.mxu0 0
        %6352 = vmatpush1.bf16.msra.mxu0 %v5917
        %6353 = vmatprep.subr.bf16.mxu0 0
        %6354 = vmatpush1.bf16.msra.mxu0 %v5918
        %6355 = vmatprep.subr.bf16.mxu0 0
        %6356 = vmatpush1.bf16.msra.mxu0 %v5919
        %6357 = vmatprep.subr.bf16.mxu0 0
        %6358 = vmatpush1.bf16.msra.mxu0 %v5920
        %6359 = vmatprep.subr.bf16.mxu0 0
        %6360 = vmatpush1.bf16.msra.mxu0 %v5921
        %6361 = vmatprep.subr.bf16.mxu0 0
        %6362 = vmatpush1.bf16.msra.mxu0 %v5922
        %6363 = vmatprep.subr.bf16.mxu0 0
        %6364 = vmatpush1.bf16.msra.mxu0 %v5923
        %6365 = vmatprep.subr.bf16.mxu0 0
        %6366 = vmatpush1.bf16.msra.mxu0 %v5924
        %6367 = vmatprep.subr.bf16.mxu0 0
        %6368 = vmatpush1.bf16.msra.mxu0 %v5925
        %6369 = vmatprep.subr.bf16.mxu0 0
        %6370 = vmatpush1.bf16.msra.mxu0 %v5926
        %6371 = vmatprep.subr.bf16.mxu0 0
        %6372 = vmatpush1.bf16.msra.mxu0 %v5927
        %6373 = vmatprep.subr.bf16.mxu0 0
        %6374 = vmatpush1.bf16.msra.mxu0 %v5928
        %6375 = vmatprep.subr.bf16.mxu0 0
        %6376 = vmatpush1.bf16.msra.mxu0 %v5929
        %6377 = vmatprep.subr.bf16.mxu0 0
        %6378 = vmatpush1.bf16.msra.mxu0 %v5930
        %6379 = vmatprep.subr.bf16.mxu0 0
        %6380 = vmatpush1.bf16.msra.mxu0 %v5931
        %6381 = vmatprep.subr.bf16.mxu0 0
        %6382 = vmatpush1.bf16.msra.mxu0 %v5932
        %6383 = vmatprep.mubr.bf16.mxu0 %v5391
        %6384 = vmatmul.mubr.bf16.gmra.mrb[0].mxu0 %v5327
        %v6385 = vpop.f32.mrb[0].mxu0
        %v6386 = vadd.f32 %v6225, %v6385
        %v6387 = vpop.f32.mrb[0].mxu0
        %v6388 = vpop.f32.mrb[0].mxu0
        %v6389 = vadd.f32 %v6228, %v6388
        %v6390 = vpop.f32.mrb[0].mxu0
        %6391 = vmatprep.mubr.bf16.mxu0 %v5392
        %6392 = vmatmul.mubr.bf16.gmra.mrb[0].mxu0 %v5328
        %v6393 = vpop.f32.mrb[0].mxu0
        %v6394 = vadd.f32 %v6233, %v6393
        %v6395 = vpop.f32.mrb[0].mxu0
        %v6396 = vpop.f32.mrb[0].mxu0
        %v6397 = vadd.f32 %v6236, %v6396
        %v6398 = vpop.f32.mrb[0].mxu0
        %6399 = vmatprep.mubr.bf16.mxu0 %v5393
        %6400 = vmatmul.mubr.bf16.gmra.mrb[0].mxu0 %v5329
        %v6401 = vpop.f32.mrb[0].mxu0
        %v6402 = vadd.f32 %v6241, %v6401
        %v6403 = vpop.f32.mrb[0].mxu0
        %v6404 = vpop.f32.mrb[0].mxu0
        %v6405 = vadd.f32 %v6244, %v6404
        %v6406 = vpop.f32.mrb[0].mxu0
        %6407 = vmatprep.mubr.bf16.mxu0 %v5394
        %6408 = vmatmul.mubr.bf16.gmra.mrb[0].mxu0 %v5330
        %v6409 = vpop.f32.mrb[0].mxu0
        %v6410 = vadd.f32 %v6249, %v6409
        %v6411 = vpop.f32.mrb[0].mxu0
        %v6412 = vpop.f32.mrb[0].mxu0
        %v6413 = vadd.f32 %v6252, %v6412
        %v6414 = vpop.f32.mrb[0].mxu0
        %6415 = vmatprep.mubr.bf16.mxu0 %v5395
        %6416 = vmatmul.mubr.bf16.gmra.mrb[0].mxu0 %v5331
        %v6417 = vpop.f32.mrb[0].mxu0
        %v6418 = vadd.f32 %v6257, %v6417
        %v6419 = vpop.f32.mrb[0].mxu0
        %v6420 = vpop.f32.mrb[0].mxu0
        %v6421 = vadd.f32 %v6260, %v6420
        %v6422 = vpop.f32.mrb[0].mxu0
        %6423 = vmatprep.mubr.bf16.mxu0 %v5396
        %6424 = vmatmul.mubr.bf16.gmra.mrb[0].mxu0 %v5332
        %v6425 = vpop.f32.mrb[0].mxu0
        %v6426 = vadd.f32 %v6265, %v6425
        %v6427 = vpop.f32.mrb[0].mxu0
        %v6428 = vpop.f32.mrb[0].mxu0
        %v6429 = vadd.f32 %v6268, %v6428
        %v6430 = vpop.f32.mrb[0].mxu0
        %6431 = vmatprep.mubr.bf16.mxu0 %v5397
        %6432 = vmatmul.mubr.bf16.gmra.mrb[0].mxu0 %v5333
        %v6433 = vpop.f32.mrb[0].mxu0
        %v6434 = vadd.f32 %v6273, %v6433
        %v6435 = vpop.f32.mrb[0].mxu0
        %v6436 = vpop.f32.mrb[0].mxu0
        %v6437 = vadd.f32 %v6276, %v6436
        %v6438 = vpop.f32.mrb[0].mxu0
        %6439 = vmatprep.mubr.bf16.mxu0 %v5398
        %6440 = vmatmul.mubr.bf16.gmra.mrb[0].mxu0 %v5334
        %v6441 = vpop.f32.mrb[0].mxu0
        %v6442 = vadd.f32 %v6281, %v6441
        %v6443 = vpop.f32.mrb[0].mxu0
        %v6444 = vpop.f32.mrb[0].mxu0
        %v6445 = vadd.f32 %v6284, %v6444
        %v6446 = vpop.f32.mrb[0].mxu0
        %6447 = vmatprep.mubr.bf16.mxu0 %v5399
        %6448 = vmatmul.mubr.bf16.gmra.mrb[0].mxu0 %v5335
        %v6449 = vpop.f32.mrb[0].mxu0
        %v6450 = vadd.f32 %v6289, %v6449
        %v6451 = vpop.f32.mrb[0].mxu0
        %v6452 = vpop.f32.mrb[0].mxu0
        %v6453 = vadd.f32 %v6292, %v6452
        %v6454 = vpop.f32.mrb[0].mxu0
        %6455 = vmatprep.mubr.bf16.mxu0 %v5400
        %6456 = vmatmul.mubr.bf16.gmra.mrb[0].mxu0 %v5336
        %v6457 = vpop.f32.mrb[0].mxu0
        %v6458 = vadd.f32 %v6297, %v6457
        %v6459 = vpop.f32.mrb[0].mxu0
        %v6460 = vpop.f32.mrb[0].mxu0
        %v6461 = vadd.f32 %v6300, %v6460
        %v6462 = vpop.f32.mrb[0].mxu0
        %6463 = vmatprep.mubr.bf16.mxu0 %v5401
        %6464 = vmatmul.mubr.bf16.gmra.mrb[0].mxu0 %v5337
        %v6465 = vpop.f32.mrb[0].mxu0
        %v6466 = vadd.f32 %v6305, %v6465
        %v6467 = vpop.f32.mrb[0].mxu0
        %v6468 = vpop.f32.mrb[0].mxu0
        %v6469 = vadd.f32 %v6308, %v6468
        %v6470 = vpop.f32.mrb[0].mxu0
        %6471 = vmatprep.mubr.bf16.mxu0 %v5402
        %6472 = vmatmul.mubr.bf16.gmra.mrb[0].mxu0 %v5338
        %v6473 = vpop.f32.mrb[0].mxu0
        %v6474 = vadd.f32 %v6313, %v6473
        %v6475 = vpop.f32.mrb[0].mxu0
        %v6476 = vpop.f32.mrb[0].mxu0
        %v6477 = vadd.f32 %v6316, %v6476
        %v6478 = vpop.f32.mrb[0].mxu0
        %6479 = vmatprep.mubr.bf16.mxu0 %v5403
        %6480 = vmatmul.mubr.bf16.gmra.mrb[0].mxu0 %v5339
        %v6481 = vpop.f32.mrb[0].mxu0
        %v6482 = vadd.f32 %v6321, %v6481
        %v6483 = vpop.f32.mrb[0].mxu0
        %v6484 = vpop.f32.mrb[0].mxu0
        %v6485 = vadd.f32 %v6324, %v6484
        %v6486 = vpop.f32.mrb[0].mxu0
        %6487 = vmatprep.mubr.bf16.mxu0 %v5404
        %6488 = vmatmul.mubr.bf16.gmra.mrb[0].mxu0 %v5340
        %v6489 = vpop.f32.mrb[0].mxu0
        %v6490 = vadd.f32 %v6329, %v6489
        %v6491 = vpop.f32.mrb[0].mxu0
        %v6492 = vpop.f32.mrb[0].mxu0
        %v6493 = vadd.f32 %v6332, %v6492
        %v6494 = vpop.f32.mrb[0].mxu0
        %6495 = vmatprep.mubr.bf16.mxu0 %v5405
        %6496 = vmatmul.mubr.bf16.gmra.mrb[0].mxu0 %v5341
        %v6497 = vpop.f32.mrb[0].mxu0
        %v6498 = vadd.f32 %v6337, %v6497
        %v6499 = vpop.f32.mrb[0].mxu0
        %v6500 = vpop.f32.mrb[0].mxu0
        %v6501 = vadd.f32 %v6340, %v6500
        %v6502 = vpop.f32.mrb[0].mxu0
        %6503 = vmatprep.mubr.bf16.mxu0 %v5432
        %6504 = vmatmul.mubr.bf16.gmra.mrb[0].mxu0 %v5428
        %v6505 = vpop.f32.mrb[0].mxu0
        %v6506 = vadd.f32 %v6345, %v6505
        %v6507 = vpop.f32.mrb[0].mxu0
        %v6508 = vpop.f32.mrb[0].mxu0
        %v6509 = vadd.f32 %v6348, %v6508
        %v6510 = vpop.f32.mrb[0].mxu0
        %6511 = vdwg.mxu0
        %6512 = vmatprep.subr.bf16.mxu0 0
        %6513 = vmatpush1.bf16.msra.mxu0 %v5933
        %6514 = vmatprep.subr.bf16.mxu0 0
        %6515 = vmatpush1.bf16.msra.mxu0 %v5934
        %6516 = vmatprep.subr.bf16.mxu0 0
        %6517 = vmatpush1.bf16.msra.mxu0 %v5935
        %6518 = vmatprep.subr.bf16.mxu0 0
        %6519 = vmatpush1.bf16.msra.mxu0 %v5936
        %6520 = vmatprep.subr.bf16.mxu0 0
        %6521 = vmatpush1.bf16.msra.mxu0 %v5937
        %6522 = vmatprep.subr.bf16.mxu0 0
        %6523 = vmatpush1.bf16.msra.mxu0 %v5938
        %6524 = vmatprep.subr.bf16.mxu0 0
        %6525 = vmatpush1.bf16.msra.mxu0 %v5939
        %6526 = vmatprep.subr.bf16.mxu0 0
        %6527 = vmatpush1.bf16.msra.mxu0 %v5940
        %6528 = vmatprep.subr.bf16.mxu0 0
        %6529 = vmatpush1.bf16.msra.mxu0 %v5941
        %6530 = vmatprep.subr.bf16.mxu0 0
        %6531 = vmatpush1.bf16.msra.mxu0 %v5942
        %6532 = vmatprep.subr.bf16.mxu0 0
        %6533 = vmatpush1.bf16.msra.mxu0 %v5943
        %6534 = vmatprep.subr.bf16.mxu0 0
        %6535 = vmatpush1.bf16.msra.mxu0 %v5944
        %6536 = vmatprep.subr.bf16.mxu0 0
        %6537 = vmatpush1.bf16.msra.mxu0 %v5945
        %6538 = vmatprep.subr.bf16.mxu0 0
        %6539 = vmatpush1.bf16.msra.mxu0 %v5946
        %6540 = vmatprep.subr.bf16.mxu0 0
        %6541 = vmatpush1.bf16.msra.mxu0 %v5947
        %6542 = vmatprep.subr.bf16.mxu0 0
        %6543 = vmatpush1.bf16.msra.mxu0 %v5948
        %6544 = vmatprep.mubr.bf16.mxu0 %v5328
        %6545 = vmatmul.mubr.bf16.gmra.mrb[0].mxu0 %v5264
        %v6546 = vpop.f32.mrb[0].mxu0
        %v6547 = vadd.f32 %v6386, %v6546
        %v6548 = vpop.f32.mrb[0].mxu0
        %v6549 = vpop.f32.mrb[0].mxu0
        %v6550 = vadd.f32 %v6389, %v6549
        %v6551 = vpop.f32.mrb[0].mxu0
        %6552 = vmatprep.mubr.bf16.mxu0 %v5329
        %6553 = vmatmul.mubr.bf16.gmra.mrb[0].mxu0 %v5265
        %v6554 = vpop.f32.mrb[0].mxu0
        %v6555 = vadd.f32 %v6394, %v6554
        %v6556 = vpop.f32.mrb[0].mxu0
        %v6557 = vpop.f32.mrb[0].mxu0
        %v6558 = vadd.f32 %v6397, %v6557
        %v6559 = vpop.f32.mrb[0].mxu0
        %6560 = vmatprep.mubr.bf16.mxu0 %v5330
        %6561 = vmatmul.mubr.bf16.gmra.mrb[0].mxu0 %v5266
        %v6562 = vpop.f32.mrb[0].mxu0
        %v6563 = vadd.f32 %v6402, %v6562
        %v6564 = vpop.f32.mrb[0].mxu0
        %v6565 = vpop.f32.mrb[0].mxu0
        %v6566 = vadd.f32 %v6405, %v6565
        %v6567 = vpop.f32.mrb[0].mxu0
        %6568 = vmatprep.mubr.bf16.mxu0 %v5331
        %6569 = vmatmul.mubr.bf16.gmra.mrb[0].mxu0 %v5267
        %v6570 = vpop.f32.mrb[0].mxu0
        %v6571 = vadd.f32 %v6410, %v6570
        %v6572 = vpop.f32.mrb[0].mxu0
        %v6573 = vpop.f32.mrb[0].mxu0
        %v6574 = vadd.f32 %v6413, %v6573
        %v6575 = vpop.f32.mrb[0].mxu0
        %6576 = vmatprep.mubr.bf16.mxu0 %v5332
        %6577 = vmatmul.mubr.bf16.gmra.mrb[0].mxu0 %v5268
        %v6578 = vpop.f32.mrb[0].mxu0
        %v6579 = vadd.f32 %v6418, %v6578
        %v6580 = vpop.f32.mrb[0].mxu0
        %v6581 = vpop.f32.mrb[0].mxu0
        %v6582 = vadd.f32 %v6421, %v6581
        %v6583 = vpop.f32.mrb[0].mxu0
        %6584 = vmatprep.mubr.bf16.mxu0 %v5333
        %6585 = vmatmul.mubr.bf16.gmra.mrb[0].mxu0 %v5269
        %v6586 = vpop.f32.mrb[0].mxu0
        %v6587 = vadd.f32 %v6426, %v6586
        %v6588 = vpop.f32.mrb[0].mxu0
        %v6589 = vpop.f32.mrb[0].mxu0
        %v6590 = vadd.f32 %v6429, %v6589
        %v6591 = vpop.f32.mrb[0].mxu0
        %6592 = vmatprep.mubr.bf16.mxu0 %v5334
        %6593 = vmatmul.mubr.bf16.gmra.mrb[0].mxu0 %v5270
        %v6594 = vpop.f32.mrb[0].mxu0
        %v6595 = vadd.f32 %v6434, %v6594
        %v6596 = vpop.f32.mrb[0].mxu0
        %v6597 = vpop.f32.mrb[0].mxu0
        %v6598 = vadd.f32 %v6437, %v6597
        %v6599 = vpop.f32.mrb[0].mxu0
        %6600 = vmatprep.mubr.bf16.mxu0 %v5335
        %6601 = vmatmul.mubr.bf16.gmra.mrb[0].mxu0 %v5271
        %v6602 = vpop.f32.mrb[0].mxu0
        %v6603 = vadd.f32 %v6442, %v6602
        %v6604 = vpop.f32.mrb[0].mxu0
        %v6605 = vpop.f32.mrb[0].mxu0
        %v6606 = vadd.f32 %v6445, %v6605
        %v6607 = vpop.f32.mrb[0].mxu0
        %6608 = vmatprep.mubr.bf16.mxu0 %v5336
        %6609 = vmatmul.mubr.bf16.gmra.mrb[0].mxu0 %v5272
        %v6610 = vpop.f32.mrb[0].mxu0
        %v6611 = vadd.f32 %v6450, %v6610
        %v6612 = vpop.f32.mrb[0].mxu0
        %v6613 = vpop.f32.mrb[0].mxu0
        %v6614 = vadd.f32 %v6453, %v6613
        %v6615 = vpop.f32.mrb[0].mxu0
        %6616 = vmatprep.mubr.bf16.mxu0 %v5337
        %6617 = vmatmul.mubr.bf16.gmra.mrb[0].mxu0 %v5273
        %v6618 = vpop.f32.mrb[0].mxu0
        %v6619 = vadd.f32 %v6458, %v6618
        %v6620 = vpop.f32.mrb[0].mxu0
        %v6621 = vpop.f32.mrb[0].mxu0
        %v6622 = vadd.f32 %v6461, %v6621
        %v6623 = vpop.f32.mrb[0].mxu0
        %6624 = vmatprep.mubr.bf16.mxu0 %v5338
        %6625 = vmatmul.mubr.bf16.gmra.mrb[0].mxu0 %v5274
        %v6626 = vpop.f32.mrb[0].mxu0
        %v6627 = vadd.f32 %v6466, %v6626
        %v6628 = vpop.f32.mrb[0].mxu0
        %v6629 = vpop.f32.mrb[0].mxu0
        %v6630 = vadd.f32 %v6469, %v6629
        %v6631 = vpop.f32.mrb[0].mxu0
        %6632 = vmatprep.mubr.bf16.mxu0 %v5339
        %6633 = vmatmul.mubr.bf16.gmra.mrb[0].mxu0 %v5275
        %v6634 = vpop.f32.mrb[0].mxu0
        %v6635 = vadd.f32 %v6474, %v6634
        %v6636 = vpop.f32.mrb[0].mxu0
        %v6637 = vpop.f32.mrb[0].mxu0
        %v6638 = vadd.f32 %v6477, %v6637
        %v6639 = vpop.f32.mrb[0].mxu0
        %6640 = vmatprep.mubr.bf16.mxu0 %v5340
        %6641 = vmatmul.mubr.bf16.gmra.mrb[0].mxu0 %v5276
        %v6642 = vpop.f32.mrb[0].mxu0
        %v6643 = vadd.f32 %v6482, %v6642
        %v6644 = vpop.f32.mrb[0].mxu0
        %v6645 = vpop.f32.mrb[0].mxu0
        %v6646 = vadd.f32 %v6485, %v6645
        %v6647 = vpop.f32.mrb[0].mxu0
        %6648 = vmatprep.mubr.bf16.mxu0 %v5341
        %6649 = vmatmul.mubr.bf16.gmra.mrb[0].mxu0 %v5277
        %v6650 = vpop.f32.mrb[0].mxu0
        %v6651 = vadd.f32 %v6490, %v6650
        %v6652 = vpop.f32.mrb[0].mxu0
        %v6653 = vpop.f32.mrb[0].mxu0
        %v6654 = vadd.f32 %v6493, %v6653
        %v6655 = vpop.f32.mrb[0].mxu0
        %6656 = vmatprep.mubr.bf16.mxu0 %v5428
        %6657 = vmatmul.mubr.bf16.gmra.mrb[0].mxu0 %v5424
        %v6658 = vpop.f32.mrb[0].mxu0
        %v6659 = vadd.f32 %v6498, %v6658
        %v6660 = vpop.f32.mrb[0].mxu0
        %v6661 = vpop.f32.mrb[0].mxu0
        %v6662 = vadd.f32 %v6501, %v6661
        %v6663 = vpop.f32.mrb[0].mxu0
        %6664 = vmatprep.mubr.bf16.mxu0 %v5440
        %6665 = vmatmul.mubr.bf16.gmra.mrb[0].mxu0 %v5436
        %v6666 = vpop.f32.mrb[0].mxu0
        %v6667 = vadd.f32 %v6506, %v6666
        %v6668 = vpop.f32.mrb[0].mxu0
        %v6669 = vpop.f32.mrb[0].mxu0
        %v6670 = vadd.f32 %v6509, %v6669
        %v6671 = vpop.f32.mrb[0].mxu0
        %6672 = vdwg.mxu0
        %6673 = vmatprep.subr.bf16.mxu0 0
        %6674 = vmatpush1.bf16.msra.mxu0 %v5949
        %6675 = vmatprep.subr.bf16.mxu0 0
        %6676 = vmatpush1.bf16.msra.mxu0 %v5950
        %6677 = vmatprep.subr.bf16.mxu0 0
        %6678 = vmatpush1.bf16.msra.mxu0 %v5951
        %6679 = vmatprep.subr.bf16.mxu0 0
        %6680 = vmatpush1.bf16.msra.mxu0 %v5952
        %6681 = vmatprep.subr.bf16.mxu0 0
        %6682 = vmatpush1.bf16.msra.mxu0 %v5953
        %6683 = vmatprep.subr.bf16.mxu0 0
        %6684 = vmatpush1.bf16.msra.mxu0 %v5954
        %6685 = vmatprep.subr.bf16.mxu0 0
        %6686 = vmatpush1.bf16.msra.mxu0 %v5955
        %6687 = vmatprep.subr.bf16.mxu0 0
        %6688 = vmatpush1.bf16.msra.mxu0 %v5956
        %6689 = vmatprep.subr.bf16.mxu0 0
        %6690 = vmatpush1.bf16.msra.mxu0 0
        %6691 = vmatprep.subr.bf16.mxu0 0
        %6692 = vmatpush1.bf16.msra.mxu0 0
        %6693 = vmatprep.subr.bf16.mxu0 0
        %6694 = vmatpush1.bf16.msra.mxu0 0
        %6695 = vmatprep.subr.bf16.mxu0 0
        %6696 = vmatpush1.bf16.msra.mxu0 0
        %6697 = vmatprep.subr.bf16.mxu0 0
        %6698 = vmatpush1.bf16.msra.mxu0 0
        %6699 = vmatprep.subr.bf16.mxu0 0
        %6700 = vmatpush1.bf16.msra.mxu0 0
        %6701 = vmatprep.subr.bf16.mxu0 0
        %6702 = vmatpush1.bf16.msra.mxu0 0
        %6703 = vmatprep.subr.bf16.mxu0 0
        %6704 = vmatpush1.bf16.msra.mxu0 0
        %6705 = vmatprep.mubr.bf16.mxu0 0
        %6706 = vmatmul.mubr.bf16.gmra.mrb[0].mxu0 %v5392
        %v6707 = vpop.f32.mrb[0].mxu0
        %v6708 = vadd.f32 %v6547, %v6707
        %v6709 = vpop.f32.mrb[0].mxu0
        %v6710 = vpop.f32.mrb[0].mxu0
        %v6711 = vadd.f32 %v6550, %v6710
        %v6712 = vpop.f32.mrb[0].mxu0
        %6713 = vmatprep.mubr.bf16.mxu0 0
        %6714 = vmatmul.mubr.bf16.gmra.mrb[0].mxu0 %v5393
        %v6715 = vpop.f32.mrb[0].mxu0
        %v6716 = vadd.f32 %v6555, %v6715
        %v6717 = vpop.f32.mrb[0].mxu0
        %v6718 = vpop.f32.mrb[0].mxu0
        %v6719 = vadd.f32 %v6558, %v6718
        %v6720 = vpop.f32.mrb[0].mxu0
        %6721 = vmatprep.mubr.bf16.mxu0 0
        %6722 = vmatmul.mubr.bf16.gmra.mrb[0].mxu0 %v5394
        %v6723 = vpop.f32.mrb[0].mxu0
        %v6724 = vadd.f32 %v6563, %v6723
        %v6725 = vpop.f32.mrb[0].mxu0
        %v6726 = vpop.f32.mrb[0].mxu0
        %v6727 = vadd.f32 %v6566, %v6726
        %v6728 = vpop.f32.mrb[0].mxu0
        %6729 = vmatprep.mubr.bf16.mxu0 0
        %6730 = vmatmul.mubr.bf16.gmra.mrb[0].mxu0 %v5395
        %v6731 = vpop.f32.mrb[0].mxu0
        %v6732 = vadd.f32 %v6571, %v6731
        %v6733 = vpop.f32.mrb[0].mxu0
        %v6734 = vpop.f32.mrb[0].mxu0
        %v6735 = vadd.f32 %v6574, %v6734
        %v6736 = vpop.f32.mrb[0].mxu0
        %6737 = vmatprep.mubr.bf16.mxu0 0
        %6738 = vmatmul.mubr.bf16.gmra.mrb[0].mxu0 %v5396
        %v6739 = vpop.f32.mrb[0].mxu0
        %v6740 = vadd.f32 %v6579, %v6739
        %v6741 = vpop.f32.mrb[0].mxu0
        %v6742 = vpop.f32.mrb[0].mxu0
        %v6743 = vadd.f32 %v6582, %v6742
        %v6744 = vpop.f32.mrb[0].mxu0
        %6745 = vmatprep.mubr.bf16.mxu0 0
        %6746 = vmatmul.mubr.bf16.gmra.mrb[0].mxu0 %v5397
        %v6747 = vpop.f32.mrb[0].mxu0
        %v6748 = vadd.f32 %v6587, %v6747
        %v6749 = vpop.f32.mrb[0].mxu0
        %v6750 = vpop.f32.mrb[0].mxu0
        %v6751 = vadd.f32 %v6590, %v6750
        %v6752 = vpop.f32.mrb[0].mxu0
        %6753 = vmatprep.mubr.bf16.mxu0 0
        %6754 = vmatmul.mubr.bf16.gmra.mrb[0].mxu0 %v5398
        %v6755 = vpop.f32.mrb[0].mxu0
        %v6756 = vadd.f32 %v6595, %v6755
        %v6757 = vpop.f32.mrb[0].mxu0
        %v6758 = vpop.f32.mrb[0].mxu0
        %v6759 = vadd.f32 %v6598, %v6758
        %v6760 = vpop.f32.mrb[0].mxu0
        %6761 = vmatprep.mubr.bf16.mxu0 0
        %6762 = vmatmul.mubr.bf16.gmra.mrb[0].mxu0 %v5399
        %v6763 = vpop.f32.mrb[0].mxu0
        %v6764 = vadd.f32 %v6603, %v6763
        %v6765 = vpop.f32.mrb[0].mxu0
        %v6766 = vpop.f32.mrb[0].mxu0
        %v6767 = vadd.f32 %v6606, %v6766
        %v6768 = vpop.f32.mrb[0].mxu0
        %6769 = vmatprep.mubr.bf16.mxu0 0
        %6770 = vmatmul.mubr.bf16.gmra.mrb[0].mxu0 %v5400
        %v6771 = vpop.f32.mrb[0].mxu0
        %v6772 = vadd.f32 %v6611, %v6771
        %v6773 = vpop.f32.mrb[0].mxu0
        %v6774 = vpop.f32.mrb[0].mxu0
        %v6775 = vadd.f32 %v6614, %v6774
        %v6776 = vpop.f32.mrb[0].mxu0
        %6777 = vmatprep.mubr.bf16.mxu0 0
        %6778 = vmatmul.mubr.bf16.gmra.mrb[0].mxu0 %v5401
        %v6779 = vpop.f32.mrb[0].mxu0
        %v6780 = vadd.f32 %v6619, %v6779
        %v6781 = vpop.f32.mrb[0].mxu0
        %v6782 = vpop.f32.mrb[0].mxu0
        %v6783 = vadd.f32 %v6622, %v6782
        %v6784 = vpop.f32.mrb[0].mxu0
        %6785 = vmatprep.mubr.bf16.mxu0 0
        %6786 = vmatmul.mubr.bf16.gmra.mrb[0].mxu0 %v5402
        %v6787 = vpop.f32.mrb[0].mxu0
        %v6788 = vadd.f32 %v6627, %v6787
        %v6789 = vpop.f32.mrb[0].mxu0
        %v6790 = vpop.f32.mrb[0].mxu0
        %v6791 = vadd.f32 %v6630, %v6790
        %v6792 = vpop.f32.mrb[0].mxu0
        %6793 = vmatprep.mubr.bf16.mxu0 0
        %6794 = vmatmul.mubr.bf16.gmra.mrb[0].mxu0 %v5403
        %v6795 = vpop.f32.mrb[0].mxu0
        %v6796 = vadd.f32 %v6635, %v6795
        %v6797 = vpop.f32.mrb[0].mxu0
        %v6798 = vpop.f32.mrb[0].mxu0
        %v6799 = vadd.f32 %v6638, %v6798
        %v6800 = vpop.f32.mrb[0].mxu0
        %6801 = vmatprep.mubr.bf16.mxu0 0
        %6802 = vmatmul.mubr.bf16.gmra.mrb[0].mxu0 %v5404
        %v6803 = vpop.f32.mrb[0].mxu0
        %v6804 = vadd.f32 %v6643, %v6803
        %v6805 = vpop.f32.mrb[0].mxu0
        %v6806 = vpop.f32.mrb[0].mxu0
        %v6807 = vadd.f32 %v6646, %v6806
        %v6808 = vpop.f32.mrb[0].mxu0
        %6809 = vmatprep.mubr.bf16.mxu0 0
        %6810 = vmatmul.mubr.bf16.gmra.mrb[0].mxu0 %v5405
        %v6811 = vpop.f32.mrb[0].mxu0
        %v6812 = vadd.f32 %v6651, %v6811
        %v6813 = vpop.f32.mrb[0].mxu0
        %v6814 = vpop.f32.mrb[0].mxu0
        %v6815 = vadd.f32 %v6654, %v6814
        %v6816 = vpop.f32.mrb[0].mxu0
        %6817 = vmatprep.mubr.bf16.mxu0 0
        %6818 = vmatmul.mubr.bf16.gmra.mrb[0].mxu0 %v5432
        %v6819 = vpop.f32.mrb[0].mxu0
        %v6820 = vadd.f32 %v6659, %v6819
        %v6821 = vpop.f32.mrb[0].mxu0
        %v6822 = vpop.f32.mrb[0].mxu0
        %v6823 = vadd.f32 %v6662, %v6822
        %v6824 = vpop.f32.mrb[0].mxu0
        %6825 = vmatprep.mubr.bf16.mxu0 0
        %6826 = vmatmul.mubr.bf16.gmra.mrb[0].mxu0 %v5444
        %v6827 = vpop.f32.mrb[0].mxu0
        %v6828 = vadd.f32 %v6667, %v6827
        %v6829 = vpop.f32.mrb[0].mxu0
        %v6830 = vpop.f32.mrb[0].mxu0
        %v6831 = vadd.f32 %v6670, %v6830
        %v6832 = vpop.f32.mrb[0].mxu0
        %6833 = vdwg.mxu0
        %v6834 = vld [vmem:[%s7] sm:$0x1]
        %v6835 = vld [vmem:[%s8] sm:$0x1]
        %v6836 = vadd.f32 %v6708, %v6711
        %v6837 = vadd.f32 %v6836, %v6716
        %v6838 = vadd.f32 %v6837, %v6719
        %v6839 = vadd.f32 %v6838, %v6724
        %v6840 = vadd.f32 %v6839, %v6727
        %v6841 = vadd.f32 %v6840, %v6732
        %v6842 = vadd.f32 %v6841, %v6735
        %v6843 = vadd.f32 %v6842, %v6740
        %v6844 = vadd.f32 %v6843, %v6743
        %v6845 = vadd.f32 %v6844, %v6748
        %v6846 = vadd.f32 %v6845, %v6751
        %v6847 = vadd.f32 %v6846, %v6756
        %v6848 = vadd.f32 %v6847, %v6759
        %v6849 = vadd.f32 %v6848, %v6764
        %v6850 = vadd.f32 %v6849, %v6767
        %v6851 = vadd.f32 %v6850, %v6772
        %v6852 = vadd.f32 %v6851, %v6775
        %v6853 = vadd.f32 %v6852, %v6780
        %v6854 = vadd.f32 %v6853, %v6783
        %v6855 = vadd.f32 %v6854, %v6788
        %v6856 = vadd.f32 %v6855, %v6791
        %v6857 = vadd.f32 %v6856, %v6796
        %v6858 = vadd.f32 %v6857, %v6799
        %v6859 = vadd.f32 %v6858, %v6804
        %v6860 = vadd.f32 %v6859, %v6807
        %v6861 = vadd.f32 %v6860, %v6812
        %v6862 = vadd.f32 %v6861, %v6815
        %v6863 = vadd.f32 %v6862, %v6820
        %v6864 = vadd.f32 %v6863, %v6823
        %v6865 = vadd.f32 %v6864, %v6828
        %v6866 = vadd.f32 %v6865, %v6831
        %v6867 = vrot.slane %v6866, 4
        %v6868 = vadd.f32 %v6866, %v6867
        %v6869 = vrot.slane %v6868, 2
        %v6870 = vadd.f32 %v6868, %v6869
        %v6871 = vrot.slane %v6870, 1
        %v6872 = vadd.f32 %v6870, %v6871
        %6873 = vmatprep.subr.mxu0 0.0
        %6874 = vmatpush1.msra.mxu0 %v1096
        %6875 = vmatprep.subr.mxu0 0.0
        %6876 = vmatpush1.msra.mxu0 %v1097
        %6877 = vmatprep.subr.mxu0 0.0
        %6878 = vmatpush1.msra.mxu0 %v1098
        %6879 = vmatprep.subr.mxu0 0.0
        %6880 = vmatpush1.msra.mxu0 %v1099
        %6881 = vmatprep.subr.mxu0 0.0
        %6882 = vmatpush1.msra.mxu0 %v1100
        %6883 = vmatprep.subr.mxu0 0.0
        %6884 = vmatpush1.msra.mxu0 %v1101
        %6885 = vmatprep.subr.mxu0 0.0
        %6886 = vmatpush1.msra.mxu0 %v1102
        %6887 = vmatprep.subr.mxu0 0.0
        %6888 = vmatpush1.msra.mxu0 %v1103
        %6889 = vmatprep.subr.mxu0 0.0
        %6890 = vmatpush1.msra.mxu0 %v1104
        %6891 = vmatprep.subr.mxu0 0.0
        %6892 = vmatpush1.msra.mxu0 %v1105
        %6893 = vmatprep.subr.mxu0 0.0
        %6894 = vmatpush1.msra.mxu0 %v1106
        %6895 = vmatprep.subr.mxu0 0.0
        %6896 = vmatpush1.msra.mxu0 %v1107
        %6897 = vmatprep.subr.mxu0 0.0
        %6898 = vmatpush1.msra.mxu0 %v1108
        %6899 = vmatprep.subr.mxu0 0.0
        %6900 = vmatpush1.msra.mxu0 %v1109
        %6901 = vmatprep.subr.mxu0 0.0
        %6902 = vmatpush1.msra.mxu0 %v1110
        %6903 = vmatprep.subr.mxu0 0.0
        %6904 = vmatpush1.msra.mxu0 %v1111
        %6905 = vmatprep.subr.mxu0 0.0
        %6906 = vmatpush1.msra.mxu0 0.0
        %6907 = vmatprep.subr.mxu0 0.0
        %6908 = vmatpush1.msra.mxu0 0.0
        %6909 = vmatprep.subr.mxu0 0.0
        %6910 = vmatpush1.msra.mxu0 0.0
        %6911 = vmatprep.subr.mxu0 0.0
        %6912 = vmatpush1.msra.mxu0 0.0
        %6913 = vmatprep.subr.mxu0 0.0
        %6914 = vmatpush1.msra.mxu0 0.0
        %6915 = vmatprep.subr.mxu0 0.0
        %6916 = vmatpush1.msra.mxu0 0.0
        %6917 = vmatprep.subr.mxu0 0.0
        %6918 = vmatpush1.msra.mxu0 0.0
        %6919 = vmatprep.subr.mxu0 0.0
        %6920 = vmatpush1.msra.mxu0 0.0
        %6921 = vmatprep.subr.mxu0 0.0
        %6922 = vmatpush1.msra.mxu0 0.0
        %6923 = vmatprep.subr.mxu0 0.0
        %6924 = vmatpush1.msra.mxu0 0.0
        %6925 = vmatprep.subr.mxu0 0.0
        %6926 = vmatpush1.msra.mxu0 0.0
        %6927 = vmatprep.subr.mxu0 0.0
        %6928 = vmatpush1.msra.mxu0 0.0
        %6929 = vmatprep.subr.mxu0 0.0
        %6930 = vmatpush1.msra.mxu0 0.0
        %6931 = vmatprep.subr.mxu0 0.0
        %6932 = vmatpush1.msra.mxu0 0.0
        %6933 = vmatprep.subr.mxu0 0.0
        %6934 = vmatpush1.msra.mxu0 0.0
        %6935 = vmatprep.subr.mxu0 0.0
        %6936 = vmatpush1.msra.mxu0 0.0
        %6937 = vmatprep.mubr.f32.mxu0 0.0
        %6938 = vmatmul.mubr.f32.gmra.mrb[0].mxu0 %v6872
        %v6939 = vpop.f32.mrb[0].mxu0
        %v6940 = vadd.f32 0.0, %v6939
        %v6941 = vpop.f32.mrb[0].mxu0
        %6942 = vdwg.mxu0
        %v6943 = vlaneseq
        %v6944 = vshrl.u32 %v6943, 7
        %v6945 = vsub.s32 0, %v6944
        %v6946 = vrot.slane %v6940, %v6945
        %v6947 = vsub.f32 %v6708, %v6946
        %v6948 = vsub.f32 %v6711, %v6946
        %v6949 = vsub.f32 %v6716, %v6946
        %v6950 = vsub.f32 %v6719, %v6946
        %v6951 = vsub.f32 %v6724, %v6946
        %v6952 = vsub.f32 %v6727, %v6946
        %v6953 = vsub.f32 %v6732, %v6946
        %v6954 = vsub.f32 %v6735, %v6946
        %v6955 = vsub.f32 %v6740, %v6946
        %v6956 = vsub.f32 %v6743, %v6946
        %v6957 = vsub.f32 %v6748, %v6946
        %v6958 = vsub.f32 %v6751, %v6946
        %v6959 = vsub.f32 %v6756, %v6946
        %v6960 = vsub.f32 %v6759, %v6946
        %v6961 = vsub.f32 %v6764, %v6946
        %v6962 = vsub.f32 %v6767, %v6946
        %v6963 = vsub.f32 %v6772, %v6946
        %v6964 = vsub.f32 %v6775, %v6946
        %v6965 = vsub.f32 %v6780, %v6946
        %v6966 = vsub.f32 %v6783, %v6946
        %v6967 = vsub.f32 %v6788, %v6946
        %v6968 = vsub.f32 %v6791, %v6946
        %v6969 = vsub.f32 %v6796, %v6946
        %v6970 = vsub.f32 %v6799, %v6946
        %v6971 = vsub.f32 %v6804, %v6946
        %v6972 = vsub.f32 %v6807, %v6946
        %v6973 = vsub.f32 %v6812, %v6946
        %v6974 = vsub.f32 %v6815, %v6946
        %v6975 = vsub.f32 %v6820, %v6946
        %v6976 = vsub.f32 %v6823, %v6946
        %v6977 = vsub.f32 %v6828, %v6946
        %v6978 = vsub.f32 %v6831, %v6946
        %v6979 = vmul.f32 %v6947, %v6947
        %v6980 = vmul.f32 %v6948, %v6948
        %v6981 = vmul.f32 %v6949, %v6949
        %v6982 = vmul.f32 %v6950, %v6950
        %v6983 = vmul.f32 %v6951, %v6951
        %v6984 = vmul.f32 %v6952, %v6952
        %v6985 = vmul.f32 %v6953, %v6953
        %v6986 = vmul.f32 %v6954, %v6954
        %v6987 = vmul.f32 %v6955, %v6955
        %v6988 = vmul.f32 %v6956, %v6956
        %v6989 = vmul.f32 %v6957, %v6957
        %v6990 = vmul.f32 %v6958, %v6958
        %v6991 = vmul.f32 %v6959, %v6959
        %v6992 = vmul.f32 %v6960, %v6960
        %v6993 = vmul.f32 %v6961, %v6961
        %v6994 = vmul.f32 %v6962, %v6962
        %v6995 = vmul.f32 %v6963, %v6963
        %v6996 = vmul.f32 %v6964, %v6964
        %v6997 = vmul.f32 %v6965, %v6965
        %v6998 = vmul.f32 %v6966, %v6966
        %v6999 = vmul.f32 %v6967, %v6967
        %v7000 = vmul.f32 %v6968, %v6968
        %v7001 = vmul.f32 %v6969, %v6969
        %v7002 = vmul.f32 %v6970, %v6970
        %v7003 = vmul.f32 %v6971, %v6971
        %v7004 = vmul.f32 %v6972, %v6972
        %v7005 = vmul.f32 %v6973, %v6973
        %v7006 = vmul.f32 %v6974, %v6974
        %v7007 = vmul.f32 %v6975, %v6975
        %v7008 = vmul.f32 %v6976, %v6976
        %v7009 = vmul.f32 %v6977, %v6977
        %v7010 = vmul.f32 %v6978, %v6978
        %v7011 = vadd.f32 %v6979, %v6980
        %v7012 = vadd.f32 %v7011, %v6981
        %v7013 = vadd.f32 %v7012, %v6982
        %v7014 = vadd.f32 %v7013, %v6983
        %v7015 = vadd.f32 %v7014, %v6984
        %v7016 = vadd.f32 %v7015, %v6985
        %v7017 = vadd.f32 %v7016, %v6986
        %v7018 = vadd.f32 %v7017, %v6987
        %v7019 = vadd.f32 %v7018, %v6988
        %v7020 = vadd.f32 %v7019, %v6989
        %v7021 = vadd.f32 %v7020, %v6990
        %v7022 = vadd.f32 %v7021, %v6991
        %v7023 = vadd.f32 %v7022, %v6992
        %v7024 = vadd.f32 %v7023, %v6993
        %v7025 = vadd.f32 %v7024, %v6994
        %v7026 = vadd.f32 %v7025, %v6995
        %v7027 = vadd.f32 %v7026, %v6996
        %v7028 = vadd.f32 %v7027, %v6997
        %v7029 = vadd.f32 %v7028, %v6998
        %v7030 = vadd.f32 %v7029, %v6999
        %v7031 = vadd.f32 %v7030, %v7000
        %v7032 = vadd.f32 %v7031, %v7001
        %v7033 = vadd.f32 %v7032, %v7002
        %v7034 = vadd.f32 %v7033, %v7003
        %v7035 = vadd.f32 %v7034, %v7004
        %v7036 = vadd.f32 %v7035, %v7005
        %v7037 = vadd.f32 %v7036, %v7006
        %v7038 = vadd.f32 %v7037, %v7007
        %v7039 = vadd.f32 %v7038, %v7008
        %v7040 = vadd.f32 %v7039, %v7009
        %v7041 = vadd.f32 %v7040, %v7010
        %v7042 = vrot.slane %v7041, 4
        %v7043 = vadd.f32 %v7041, %v7042
        %v7044 = vrot.slane %v7043, 2
        %v7045 = vadd.f32 %v7043, %v7044
        %v7046 = vrot.slane %v7045, 1
        %v7047 = vadd.f32 %v7045, %v7046
        %7048 = vmatprep.subr.mxu0 0.0
        %7049 = vmatpush1.msra.mxu0 %v1096
        %7050 = vmatprep.subr.mxu0 0.0
        %7051 = vmatpush1.msra.mxu0 %v1097
        %7052 = vmatprep.subr.mxu0 0.0
        %7053 = vmatpush1.msra.mxu0 %v1098
        %7054 = vmatprep.subr.mxu0 0.0
        %7055 = vmatpush1.msra.mxu0 %v1099
        %7056 = vmatprep.subr.mxu0 0.0
        %7057 = vmatpush1.msra.mxu0 %v1100
        %7058 = vmatprep.subr.mxu0 0.0
        %7059 = vmatpush1.msra.mxu0 %v1101
        %7060 = vmatprep.subr.mxu0 0.0
        %7061 = vmatpush1.msra.mxu0 %v1102
        %7062 = vmatprep.subr.mxu0 0.0
        %7063 = vmatpush1.msra.mxu0 %v1103
        %7064 = vmatprep.subr.mxu0 0.0
        %7065 = vmatpush1.msra.mxu0 %v1104
        %7066 = vmatprep.subr.mxu0 0.0
        %7067 = vmatpush1.msra.mxu0 %v1105
        %7068 = vmatprep.subr.mxu0 0.0
        %7069 = vmatpush1.msra.mxu0 %v1106
        %7070 = vmatprep.subr.mxu0 0.0
        %7071 = vmatpush1.msra.mxu0 %v1107
        %7072 = vmatprep.subr.mxu0 0.0
        %7073 = vmatpush1.msra.mxu0 %v1108
        %7074 = vmatprep.subr.mxu0 0.0
        %7075 = vmatpush1.msra.mxu0 %v1109
        %7076 = vmatprep.subr.mxu0 0.0
        %7077 = vmatpush1.msra.mxu0 %v1110
        %7078 = vmatprep.subr.mxu0 0.0
        %7079 = vmatpush1.msra.mxu0 %v1111
        %7080 = vmatprep.subr.mxu0 0.0
        %7081 = vmatpush1.msra.mxu0 0.0
        %7082 = vmatprep.subr.mxu0 0.0
        %7083 = vmatpush1.msra.mxu0 0.0
        %7084 = vmatprep.subr.mxu0 0.0
        %7085 = vmatpush1.msra.mxu0 0.0
        %7086 = vmatprep.subr.mxu0 0.0
        %7087 = vmatpush1.msra.mxu0 0.0
        %7088 = vmatprep.subr.mxu0 0.0
        %7089 = vmatpush1.msra.mxu0 0.0
        %7090 = vmatprep.subr.mxu0 0.0
        %7091 = vmatpush1.msra.mxu0 0.0
        %7092 = vmatprep.subr.mxu0 0.0
        %7093 = vmatpush1.msra.mxu0 0.0
        %7094 = vmatprep.subr.mxu0 0.0
        %7095 = vmatpush1.msra.mxu0 0.0
        %7096 = vmatprep.subr.mxu0 0.0
        %7097 = vmatpush1.msra.mxu0 0.0
        %7098 = vmatprep.subr.mxu0 0.0
        %7099 = vmatpush1.msra.mxu0 0.0
        %7100 = vmatprep.subr.mxu0 0.0
        %7101 = vmatpush1.msra.mxu0 0.0
        %7102 = vmatprep.subr.mxu0 0.0
        %7103 = vmatpush1.msra.mxu0 0.0
        %7104 = vmatprep.subr.mxu0 0.0
        %7105 = vmatpush1.msra.mxu0 0.0
        %7106 = vmatprep.subr.mxu0 0.0
        %7107 = vmatpush1.msra.mxu0 0.0
        %7108 = vmatprep.subr.mxu0 0.0
        %7109 = vmatpush1.msra.mxu0 0.0
        %7110 = vmatprep.subr.mxu0 0.0
        %7111 = vmatpush1.msra.mxu0 0.0
        %7112 = vmatprep.mubr.f32.mxu0 0.0
        %7113 = vmatmul.mubr.f32.gmra.mrb[0].mxu0 %v7047
        %v7114 = vpop.f32.mrb[0].mxu0
        %v7115 = vadd.f32 1e-05, %v7114
        %v7116 = vpop.f32.mrb[0].mxu0
        %7117 = vdwg.mxu0
        %v7118 = vrsqrt.pop %v7115
        %v7119 = vmul.f32 %v7118, %v6834
        %v7120 = vlaneseq
        %v7121 = vshrl.u32 %v7120, 7
        %v7122 = vsub.s32 0, %v7121
        %v7123 = vrot.slane %v7119, %v7122
        %v7124 = vmul.f32 %v6947, %v7123
        %v7125 = vmul.f32 %v6948, %v7123
        %v7126 = vmul.f32 %v6949, %v7123
        %v7127 = vmul.f32 %v6950, %v7123
        %v7128 = vmul.f32 %v6951, %v7123
        %v7129 = vmul.f32 %v6952, %v7123
        %v7130 = vmul.f32 %v6953, %v7123
        %v7131 = vmul.f32 %v6954, %v7123
        %v7132 = vmul.f32 %v6955, %v7123
        %v7133 = vmul.f32 %v6956, %v7123
        %v7134 = vmul.f32 %v6957, %v7123
        %v7135 = vmul.f32 %v6958, %v7123
        %v7136 = vmul.f32 %v6959, %v7123
        %v7137 = vmul.f32 %v6960, %v7123
        %v7138 = vmul.f32 %v6961, %v7123
        %v7139 = vmul.f32 %v6962, %v7123
        %v7140 = vmul.f32 %v6963, %v7123
        %v7141 = vmul.f32 %v6964, %v7123
        %v7142 = vmul.f32 %v6965, %v7123
        %v7143 = vmul.f32 %v6966, %v7123
        %v7144 = vmul.f32 %v6967, %v7123
        %v7145 = vmul.f32 %v6968, %v7123
        %v7146 = vmul.f32 %v6969, %v7123
        %v7147 = vmul.f32 %v6970, %v7123
        %v7148 = vmul.f32 %v6971, %v7123
        %v7149 = vmul.f32 %v6972, %v7123
        %v7150 = vmul.f32 %v6973, %v7123
        %v7151 = vmul.f32 %v6974, %v7123
        %v7152 = vmul.f32 %v6975, %v7123
        %v7153 = vmul.f32 %v6976, %v7123
        %v7154 = vmul.f32 %v6977, %v7123
        %v7155 = vmul.f32 %v6978, %v7123
        %v7157 = vlaneseq
        %v7158 = vshrl.u32 %v7157, 7
        %v7159 = vsub.s32 0, %v7158
        %v7160 = vrot.slane %v6835, %v7159
        %v7162 = vadd.f32 %v7124, %v7160
        %v7163 = vadd.f32 %v7125, %v7160
        %v7164 = vadd.f32 %v7126, %v7160
        %v7165 = vadd.f32 %v7127, %v7160
        %v7166 = vadd.f32 %v7128, %v7160
        %v7167 = vadd.f32 %v7129, %v7160
        %v7168 = vadd.f32 %v7130, %v7160
        %v7169 = vadd.f32 %v7131, %v7160
        %v7170 = vadd.f32 %v7132, %v7160
        %v7171 = vadd.f32 %v7133, %v7160
        %v7172 = vadd.f32 %v7134, %v7160
        %v7173 = vadd.f32 %v7135, %v7160
        %v7174 = vadd.f32 %v7136, %v7160
        %v7175 = vadd.f32 %v7137, %v7160
        %v7176 = vadd.f32 %v7138, %v7160
        %v7177 = vadd.f32 %v7139, %v7160
        %v7178 = vadd.f32 %v7140, %v7160
        %v7179 = vadd.f32 %v7141, %v7160
        %v7180 = vadd.f32 %v7142, %v7160
        %v7181 = vadd.f32 %v7143, %v7160
        %v7182 = vadd.f32 %v7144, %v7160
        %v7183 = vadd.f32 %v7145, %v7160
        %v7184 = vadd.f32 %v7146, %v7160
        %v7185 = vadd.f32 %v7147, %v7160
        %v7186 = vadd.f32 %v7148, %v7160
        %v7187 = vadd.f32 %v7149, %v7160
        %v7188 = vadd.f32 %v7150, %v7160
        %v7189 = vadd.f32 %v7151, %v7160
        %v7190 = vadd.f32 %v7152, %v7160
        %v7191 = vadd.f32 %v7153, %v7160
        %v7192 = vadd.f32 %v7154, %v7160
        %v7193 = vadd.f32 %v7155, %v7160
        %v7194 = vld [vmem:[%s373] sm:$0xff]
        %v7195 = vld [vmem:[%s373 + $0x8] sm:$0xff]
        %v7196 = vld [vmem:[%s373 + $0x10] sm:$0xff]
        %v7197 = vld [vmem:[%s373 + $0x18] sm:$0xff]
        %v7198 = vld [vmem:[%s373 + $0x20] sm:$0xff]
        %v7199 = vld [vmem:[%s373 + $0x28] sm:$0xff]
        %v7200 = vld [vmem:[%s373 + $0x30] sm:$0xff]
        %v7201 = vld [vmem:[%s373 + $0x38] sm:$0xff]
        %v7202 = vld [vmem:[%s373 + $0x40] sm:$0xff]
        %v7203 = vld [vmem:[%s373 + $0x48] sm:$0xff]
        %v7204 = vld [vmem:[%s373 + $0x50] sm:$0xff]
        %v7205 = vld [vmem:[%s373 + $0x58] sm:$0xff]
        %v7206 = vld [vmem:[%s373 + $0x60] sm:$0xff]
        %v7207 = vld [vmem:[%s373 + $0x68] sm:$0xff]
        %v7208 = vld [vmem:[%s373 + $0x70] sm:$0xff]
        %v7209 = vld [vmem:[%s373 + $0x78] sm:$0xff]
        %v7210 = vld [vmem:[%s373 + $0x80] sm:$0xff]
        %v7211 = vld [vmem:[%s373 + $0x88] sm:$0xff]
        %v7212 = vld [vmem:[%s373 + $0x90] sm:$0xff]
        %v7213 = vld [vmem:[%s373 + $0x98] sm:$0xff]
        %v7214 = vld [vmem:[%s373 + $0xa0] sm:$0xff]
        %v7215 = vld [vmem:[%s373 + $0xa8] sm:$0xff]
        %v7216 = vld [vmem:[%s373 + $0xb0] sm:$0xff]
        %v7217 = vld [vmem:[%s373 + $0xb8] sm:$0xff]
        %v7218 = vld [vmem:[%s373 + $0xc0] sm:$0xff]
        %v7219 = vld [vmem:[%s373 + $0xc8] sm:$0xff]
        %v7220 = vld [vmem:[%s373 + $0xd0] sm:$0xff]
        %v7221 = vld [vmem:[%s373 + $0xd8] sm:$0xff]
        %v7222 = vld [vmem:[%s373 + $0xe0] sm:$0xff]
        %v7223 = vld [vmem:[%s373 + $0xe8] sm:$0xff]
        %v7224 = vld [vmem:[%s373 + $0xf0] sm:$0xff]
        %v7225 = vld [vmem:[%s373 + $0xf8] sm:$0xff]
        %v7226 = vadd.f32 %v7162, %v7194
        %v7227 = vadd.f32 %v7163, %v7195
        %v7228 = vadd.f32 %v7164, %v7196
        %v7229 = vadd.f32 %v7165, %v7197
        %v7230 = vadd.f32 %v7166, %v7198
        %v7231 = vadd.f32 %v7167, %v7199
        %v7232 = vadd.f32 %v7168, %v7200
        %v7233 = vadd.f32 %v7169, %v7201
        %v7234 = vadd.f32 %v7170, %v7202
        %v7235 = vadd.f32 %v7171, %v7203
        %v7236 = vadd.f32 %v7172, %v7204
        %v7237 = vadd.f32 %v7173, %v7205
        %v7238 = vadd.f32 %v7174, %v7206
        %v7239 = vadd.f32 %v7175, %v7207
        %v7240 = vadd.f32 %v7176, %v7208
        %v7241 = vadd.f32 %v7177, %v7209
        %v7242 = vadd.f32 %v7178, %v7210
        %v7243 = vadd.f32 %v7179, %v7211
        %v7244 = vadd.f32 %v7180, %v7212
        %v7245 = vadd.f32 %v7181, %v7213
        %v7246 = vadd.f32 %v7182, %v7214
        %v7247 = vadd.f32 %v7183, %v7215
        %v7248 = vadd.f32 %v7184, %v7216
        %v7249 = vadd.f32 %v7185, %v7217
        %v7250 = vadd.f32 %v7186, %v7218
        %v7251 = vadd.f32 %v7187, %v7219
        %v7252 = vadd.f32 %v7188, %v7220
        %v7253 = vadd.f32 %v7189, %v7221
        %v7254 = vadd.f32 %v7190, %v7222
        %v7255 = vadd.f32 %v7191, %v7223
        %v7256 = vadd.f32 %v7192, %v7224
        %v7257 = vadd.f32 %v7193, %v7225
        %v7258 = vmul.f32 %v7226, 0.5
        %v7259 = vmul.f32 %v7227, 0.5
        %v7260 = vmul.f32 %v7228, 0.5
        %v7261 = vmul.f32 %v7229, 0.5
        %v7262 = vmul.f32 %v7230, 0.5
        %v7263 = vmul.f32 %v7231, 0.5
        %v7264 = vmul.f32 %v7232, 0.5
        %v7265 = vmul.f32 %v7233, 0.5
        %v7266 = vmul.f32 %v7234, 0.5
        %v7267 = vmul.f32 %v7235, 0.5
        %v7268 = vmul.f32 %v7236, 0.5
        %v7269 = vmul.f32 %v7237, 0.5
        %v7270 = vmul.f32 %v7238, 0.5
        %v7271 = vmul.f32 %v7239, 0.5
        %v7272 = vmul.f32 %v7240, 0.5
        %v7273 = vmul.f32 %v7241, 0.5
        %v7274 = vmul.f32 %v7242, 0.5
        %v7275 = vmul.f32 %v7243, 0.5
        %v7276 = vmul.f32 %v7244, 0.5
        %v7277 = vmul.f32 %v7245, 0.5
        %v7278 = vmul.f32 %v7246, 0.5
        %v7279 = vmul.f32 %v7247, 0.5
        %v7280 = vmul.f32 %v7248, 0.5
        %v7281 = vmul.f32 %v7249, 0.5
        %v7282 = vmul.f32 %v7250, 0.5
        %v7283 = vmul.f32 %v7251, 0.5
        %v7284 = vmul.f32 %v7252, 0.5
        %v7285 = vmul.f32 %v7253, 0.5
        %v7286 = vmul.f32 %v7254, 0.5
        %v7287 = vmul.f32 %v7255, 0.5
        %v7288 = vmul.f32 %v7256, 0.5
        %v7289 = vmul.f32 %v7257, 0.5
        %v7290 = vmul.f32 %v7226, %v7226
        %v7291 = vmul.f32 %v7227, %v7227
        %v7292 = vmul.f32 %v7228, %v7228
        %v7293 = vmul.f32 %v7229, %v7229
        %v7294 = vmul.f32 %v7230, %v7230
        %v7295 = vmul.f32 %v7231, %v7231
        %v7296 = vmul.f32 %v7232, %v7232
        %v7297 = vmul.f32 %v7233, %v7233
        %v7298 = vmul.f32 %v7234, %v7234
        %v7299 = vmul.f32 %v7235, %v7235
        %v7300 = vmul.f32 %v7236, %v7236
        %v7301 = vmul.f32 %v7237, %v7237
        %v7302 = vmul.f32 %v7238, %v7238
        %v7303 = vmul.f32 %v7239, %v7239
        %v7304 = vmul.f32 %v7240, %v7240
        %v7305 = vmul.f32 %v7241, %v7241
        %v7306 = vmul.f32 %v7242, %v7242
        %v7307 = vmul.f32 %v7243, %v7243
        %v7308 = vmul.f32 %v7244, %v7244
        %v7309 = vmul.f32 %v7245, %v7245
        %v7310 = vmul.f32 %v7246, %v7246
        %v7311 = vmul.f32 %v7247, %v7247
        %v7312 = vmul.f32 %v7248, %v7248
        %v7313 = vmul.f32 %v7249, %v7249
        %v7314 = vmul.f32 %v7250, %v7250
        %v7315 = vmul.f32 %v7251, %v7251
        %v7316 = vmul.f32 %v7252, %v7252
        %v7317 = vmul.f32 %v7253, %v7253
        %v7318 = vmul.f32 %v7254, %v7254
        %v7319 = vmul.f32 %v7255, %v7255
        %v7320 = vmul.f32 %v7256, %v7256
        %v7321 = vmul.f32 %v7257, %v7257
        %v7322 = vmul.f32 %v7290, %v7226
        %v7323 = vmul.f32 %v7291, %v7227
        %v7324 = vmul.f32 %v7292, %v7228
        %v7325 = vmul.f32 %v7293, %v7229
        %v7326 = vmul.f32 %v7294, %v7230
        %v7327 = vmul.f32 %v7295, %v7231
        %v7328 = vmul.f32 %v7296, %v7232
        %v7329 = vmul.f32 %v7297, %v7233
        %v7330 = vmul.f32 %v7298, %v7234
        %v7331 = vmul.f32 %v7299, %v7235
        %v7332 = vmul.f32 %v7300, %v7236
        %v7333 = vmul.f32 %v7301, %v7237
        %v7334 = vmul.f32 %v7302, %v7238
        %v7335 = vmul.f32 %v7303, %v7239
        %v7336 = vmul.f32 %v7304, %v7240
        %v7337 = vmul.f32 %v7305, %v7241
        %v7338 = vmul.f32 %v7306, %v7242
        %v7339 = vmul.f32 %v7307, %v7243
        %v7340 = vmul.f32 %v7308, %v7244
        %v7341 = vmul.f32 %v7309, %v7245
        %v7342 = vmul.f32 %v7310, %v7246
        %v7343 = vmul.f32 %v7311, %v7247
        %v7344 = vmul.f32 %v7312, %v7248
        %v7345 = vmul.f32 %v7313, %v7249
        %v7346 = vmul.f32 %v7314, %v7250
        %v7347 = vmul.f32 %v7315, %v7251
        %v7348 = vmul.f32 %v7316, %v7252
        %v7349 = vmul.f32 %v7317, %v7253
        %v7350 = vmul.f32 %v7318, %v7254
        %v7351 = vmul.f32 %v7319, %v7255
        %v7352 = vmul.f32 %v7320, %v7256
        %v7353 = vmul.f32 %v7321, %v7257
        %v7354 = vmul.f32 %v7322, 0.044715
        %v7355 = vmul.f32 %v7323, 0.044715
        %v7356 = vmul.f32 %v7324, 0.044715
        %v7357 = vmul.f32 %v7325, 0.044715
        %v7358 = vmul.f32 %v7326, 0.044715
        %v7359 = vmul.f32 %v7327, 0.044715
        %v7360 = vmul.f32 %v7328, 0.044715
        %v7361 = vmul.f32 %v7329, 0.044715
        %v7362 = vmul.f32 %v7330, 0.044715
        %v7363 = vmul.f32 %v7331, 0.044715
        %v7364 = vmul.f32 %v7332, 0.044715
        %v7365 = vmul.f32 %v7333, 0.044715
        %v7366 = vmul.f32 %v7334, 0.044715
        %v7367 = vmul.f32 %v7335, 0.044715
        %v7368 = vmul.f32 %v7336, 0.044715
        %v7369 = vmul.f32 %v7337, 0.044715
        %v7370 = vmul.f32 %v7338, 0.044715
        %v7371 = vmul.f32 %v7339, 0.044715
        %v7372 = vmul.f32 %v7340, 0.044715
        %v7373 = vmul.f32 %v7341, 0.044715
        %v7374 = vmul.f32 %v7342, 0.044715
        %v7375 = vmul.f32 %v7343, 0.044715
        %v7376 = vmul.f32 %v7344, 0.044715
        %v7377 = vmul.f32 %v7345, 0.044715
        %v7378 = vmul.f32 %v7346, 0.044715
        %v7379 = vmul.f32 %v7347, 0.044715
        %v7380 = vmul.f32 %v7348, 0.044715
        %v7381 = vmul.f32 %v7349, 0.044715
        %v7382 = vmul.f32 %v7350, 0.044715
        %v7383 = vmul.f32 %v7351, 0.044715
        %v7384 = vmul.f32 %v7352, 0.044715
        %v7385 = vmul.f32 %v7353, 0.044715
        %v7386 = vadd.f32 %v7226, %v7354
        %v7387 = vadd.f32 %v7227, %v7355
        %v7388 = vadd.f32 %v7228, %v7356
        %v7389 = vadd.f32 %v7229, %v7357
        %v7390 = vadd.f32 %v7230, %v7358
        %v7391 = vadd.f32 %v7231, %v7359
        %v7392 = vadd.f32 %v7232, %v7360
        %v7393 = vadd.f32 %v7233, %v7361
        %v7394 = vadd.f32 %v7234, %v7362
        %v7395 = vadd.f32 %v7235, %v7363
        %v7396 = vadd.f32 %v7236, %v7364
        %v7397 = vadd.f32 %v7237, %v7365
        %v7398 = vadd.f32 %v7238, %v7366
        %v7399 = vadd.f32 %v7239, %v7367
        %v7400 = vadd.f32 %v7240, %v7368
        %v7401 = vadd.f32 %v7241, %v7369
        %v7402 = vadd.f32 %v7242, %v7370
        %v7403 = vadd.f32 %v7243, %v7371
        %v7404 = vadd.f32 %v7244, %v7372
        %v7405 = vadd.f32 %v7245, %v7373
        %v7406 = vadd.f32 %v7246, %v7374
        %v7407 = vadd.f32 %v7247, %v7375
        %v7408 = vadd.f32 %v7248, %v7376
        %v7409 = vadd.f32 %v7249, %v7377
        %v7410 = vadd.f32 %v7250, %v7378
        %v7411 = vadd.f32 %v7251, %v7379
        %v7412 = vadd.f32 %v7252, %v7380
        %v7413 = vadd.f32 %v7253, %v7381
        %v7414 = vadd.f32 %v7254, %v7382
        %v7415 = vadd.f32 %v7255, %v7383
        %v7416 = vadd.f32 %v7256, %v7384
        %v7417 = vadd.f32 %v7257, %v7385
        %v7418 = vmul.f32 %v7386, 0.7978846
        %v7419 = vmul.f32 %v7387, 0.7978846
        %v7420 = vmul.f32 %v7388, 0.7978846
        %v7421 = vmul.f32 %v7389, 0.7978846
        %v7422 = vmul.f32 %v7390, 0.7978846
        %v7423 = vmul.f32 %v7391, 0.7978846
        %v7424 = vmul.f32 %v7392, 0.7978846
        %v7425 = vmul.f32 %v7393, 0.7978846
        %v7426 = vmul.f32 %v7394, 0.7978846
        %v7427 = vmul.f32 %v7395, 0.7978846
        %v7428 = vmul.f32 %v7396, 0.7978846
        %v7429 = vmul.f32 %v7397, 0.7978846
        %v7430 = vmul.f32 %v7398, 0.7978846
        %v7431 = vmul.f32 %v7399, 0.7978846
        %v7432 = vmul.f32 %v7400, 0.7978846
        %v7433 = vmul.f32 %v7401, 0.7978846
        %v7434 = vmul.f32 %v7402, 0.7978846
        %v7435 = vmul.f32 %v7403, 0.7978846
        %v7436 = vmul.f32 %v7404, 0.7978846
        %v7437 = vmul.f32 %v7405, 0.7978846
        %v7438 = vmul.f32 %v7406, 0.7978846
        %v7439 = vmul.f32 %v7407, 0.7978846
        %v7440 = vmul.f32 %v7408, 0.7978846
        %v7441 = vmul.f32 %v7409, 0.7978846
        %v7442 = vmul.f32 %v7410, 0.7978846
        %v7443 = vmul.f32 %v7411, 0.7978846
        %v7444 = vmul.f32 %v7412, 0.7978846
        %v7445 = vmul.f32 %v7413, 0.7978846
        %v7446 = vmul.f32 %v7414, 0.7978846
        %v7447 = vmul.f32 %v7415, 0.7978846
        %v7448 = vmul.f32 %v7416, 0.7978846
        %v7449 = vmul.f32 %v7417, 0.7978846
        %v7450 = vtanh.pop %v7418
        %v7451 = vtanh.pop %v7419
        %v7452 = vtanh.pop %v7420
        %v7453 = vtanh.pop %v7421
        %v7454 = vtanh.pop %v7422
        %v7455 = vtanh.pop %v7423
        %v7456 = vtanh.pop %v7424
        %v7457 = vtanh.pop %v7425
        %v7458 = vtanh.pop %v7426
        %v7459 = vtanh.pop %v7427
        %v7460 = vtanh.pop %v7428
        %v7461 = vtanh.pop %v7429
        %v7462 = vtanh.pop %v7430
        %v7463 = vtanh.pop %v7431
        %v7464 = vtanh.pop %v7432
        %v7465 = vtanh.pop %v7433
        %v7466 = vtanh.pop %v7434
        %v7467 = vtanh.pop %v7435
        %v7468 = vtanh.pop %v7436
        %v7469 = vtanh.pop %v7437
        %v7470 = vtanh.pop %v7438
        %v7471 = vtanh.pop %v7439
        %v7472 = vtanh.pop %v7440
        %v7473 = vtanh.pop %v7441
        %v7474 = vtanh.pop %v7442
        %v7475 = vtanh.pop %v7443
        %v7476 = vtanh.pop %v7444
        %v7477 = vtanh.pop %v7445
        %v7478 = vtanh.pop %v7446
        %v7479 = vtanh.pop %v7447
        %v7480 = vtanh.pop %v7448
        %v7481 = vtanh.pop %v7449
        %v7482 = vadd.f32 %v7450, 1.0
        %v7483 = vadd.f32 %v7451, 1.0
        %v7484 = vadd.f32 %v7452, 1.0
        %v7485 = vadd.f32 %v7453, 1.0
        %v7486 = vadd.f32 %v7454, 1.0
        %v7487 = vadd.f32 %v7455, 1.0
        %v7488 = vadd.f32 %v7456, 1.0
        %v7489 = vadd.f32 %v7457, 1.0
        %v7490 = vadd.f32 %v7458, 1.0
        %v7491 = vadd.f32 %v7459, 1.0
        %v7492 = vadd.f32 %v7460, 1.0
        %v7493 = vadd.f32 %v7461, 1.0
        %v7494 = vadd.f32 %v7462, 1.0
        %v7495 = vadd.f32 %v7463, 1.0
        %v7496 = vadd.f32 %v7464, 1.0
        %v7497 = vadd.f32 %v7465, 1.0
        %v7498 = vadd.f32 %v7466, 1.0
        %v7499 = vadd.f32 %v7467, 1.0
        %v7500 = vadd.f32 %v7468, 1.0
        %v7501 = vadd.f32 %v7469, 1.0
        %v7502 = vadd.f32 %v7470, 1.0
        %v7503 = vadd.f32 %v7471, 1.0
        %v7504 = vadd.f32 %v7472, 1.0
        %v7505 = vadd.f32 %v7473, 1.0
        %v7506 = vadd.f32 %v7474, 1.0
        %v7507 = vadd.f32 %v7475, 1.0
        %v7508 = vadd.f32 %v7476, 1.0
        %v7509 = vadd.f32 %v7477, 1.0
        %v7510 = vadd.f32 %v7478, 1.0
        %v7511 = vadd.f32 %v7479, 1.0
        %v7512 = vadd.f32 %v7480, 1.0
        %v7513 = vadd.f32 %v7481, 1.0
        %v7514 = vmul.f32 %v7258, %v7482
        %v7515 = vmul.f32 %v7259, %v7483
        %v7516 = vmul.f32 %v7260, %v7484
        %v7517 = vmul.f32 %v7261, %v7485
        %v7518 = vmul.f32 %v7262, %v7486
        %v7519 = vmul.f32 %v7263, %v7487
        %v7520 = vmul.f32 %v7264, %v7488
        %v7521 = vmul.f32 %v7265, %v7489
        %v7522 = vmul.f32 %v7266, %v7490
        %v7523 = vmul.f32 %v7267, %v7491
        %v7524 = vmul.f32 %v7268, %v7492
        %v7525 = vmul.f32 %v7269, %v7493
        %v7526 = vmul.f32 %v7270, %v7494
        %v7527 = vmul.f32 %v7271, %v7495
        %v7528 = vmul.f32 %v7272, %v7496
        %v7529 = vmul.f32 %v7273, %v7497
        %v7530 = vmul.f32 %v7274, %v7498
        %v7531 = vmul.f32 %v7275, %v7499
        %v7532 = vmul.f32 %v7276, %v7500
        %v7533 = vmul.f32 %v7277, %v7501
        %v7534 = vmul.f32 %v7278, %v7502
        %v7535 = vmul.f32 %v7279, %v7503
        %v7536 = vmul.f32 %v7280, %v7504
        %v7537 = vmul.f32 %v7281, %v7505
        %v7538 = vmul.f32 %v7282, %v7506
        %v7539 = vmul.f32 %v7283, %v7507
        %v7540 = vmul.f32 %v7284, %v7508
        %v7541 = vmul.f32 %v7285, %v7509
        %v7542 = vmul.f32 %v7286, %v7510
        %v7543 = vmul.f32 %v7287, %v7511
        %v7544 = vmul.f32 %v7288, %v7512
        %v7545 = vmul.f32 %v7289, %v7513
        %7546 = vst [vmem:[%s421] sm:$0xff] %v7514
        %7547 = vst [vmem:[%s421 + $0x8] sm:$0xff] %v7515
        %7548 = vst [vmem:[%s421 + $0x10] sm:$0xff] %v7516
        %7549 = vst [vmem:[%s421 + $0x18] sm:$0xff] %v7517
        %7550 = vst [vmem:[%s421 + $0x20] sm:$0xff] %v7518
        %7551 = vst [vmem:[%s421 + $0x28] sm:$0xff] %v7519
        %7552 = vst [vmem:[%s421 + $0x30] sm:$0xff] %v7520
        %7553 = vst [vmem:[%s421 + $0x38] sm:$0xff] %v7521
        %7554 = vst [vmem:[%s421 + $0x40] sm:$0xff] %v7522
        %7555 = vst [vmem:[%s421 + $0x48] sm:$0xff] %v7523
        %7556 = vst [vmem:[%s421 + $0x50] sm:$0xff] %v7524
        %7557 = vst [vmem:[%s421 + $0x58] sm:$0xff] %v7525
        %7558 = vst [vmem:[%s421 + $0x60] sm:$0xff] %v7526
        %7559 = vst [vmem:[%s421 + $0x68] sm:$0xff] %v7527
        %7560 = vst [vmem:[%s421 + $0x70] sm:$0xff] %v7528
        %7561 = vst [vmem:[%s421 + $0x78] sm:$0xff] %v7529
        %7562 = vst [vmem:[%s421 + $0x80] sm:$0xff] %v7530
        %7563 = vst [vmem:[%s421 + $0x88] sm:$0xff] %v7531
        %7564 = vst [vmem:[%s421 + $0x90] sm:$0xff] %v7532
        %7565 = vst [vmem:[%s421 + $0x98] sm:$0xff] %v7533
        %7566 = vst [vmem:[%s421 + $0xa0] sm:$0xff] %v7534
        %7567 = vst [vmem:[%s421 + $0xa8] sm:$0xff] %v7535
        %7568 = vst [vmem:[%s421 + $0xb0] sm:$0xff] %v7536
        %7569 = vst [vmem:[%s421 + $0xb8] sm:$0xff] %v7537
        %7570 = vst [vmem:[%s421 + $0xc0] sm:$0xff] %v7538
        %7571 = vst [vmem:[%s421 + $0xc8] sm:$0xff] %v7539
        %7572 = vst [vmem:[%s421 + $0xd0] sm:$0xff] %v7540
        %7573 = vst [vmem:[%s421 + $0xd8] sm:$0xff] %v7541
        %7574 = vst [vmem:[%s421 + $0xe0] sm:$0xff] %v7542
        %7575 = vst [vmem:[%s421 + $0xe8] sm:$0xff] %v7543
        %7576 = vst [vmem:[%s421 + $0xf0] sm:$0xff] %v7544
        %7577 = vst [vmem:[%s421 + $0xf8] sm:$0xff] %v7545
        %s7578 = sand.u32 %s252, 1
        %s7579 = scalar_lea.sflag [#allocation5], %s7578
        %s7580 = sand.u32 %s252, 1
        %s7581 = smul.addr %s7580, 256
        %s7582 = scalar_lea.vmem [#allocation11], %s7581
        // Predicated region
        $region77: #{tpu_custom_call.1} parent=59 // pred_check
          %p7583 = pneg %p262
        $region78: #{tpu_custom_call.1} parent=59 // pred_check_branch
          %7585 = sbr.rel (%p7583) target = $region80
        $region79: #{tpu_custom_call.1} parent=59 // pred_region
          %s7587 = ssub.s32 4096, 4096
          %7588 = vsyncadd %s7579, %s7587
          %s7589 = smul.addr %s29, 32
          %s7590 = smul.addr %s7589, 128
          %s7591 = scalar_lea.hbm %s10, %s7590
          %s7592 = sshll.u32 %s7582, 4
          %s7593 = int_to_ptr.vmem [resolvable:$true] %s7592
          %7598 = dma.vmem_to_hbm [thread:$0]  %s7593, 4096, %s7591, %s7579, 128, 128, 8
        $region80: #{tpu_custom_call.1} parent=59 // pred_fallthru
          _
      $region60: #{tpu_custom_call.1} parent=5 // pred_fallthru
        _
      %p7599 = scmp.le.s32.totalorder 2, %s24
      // Predicated region
      $region81: #{tpu_custom_call.1} parent=5 // pred_check
        %p7600 = pneg %p7599
      $region82: #{tpu_custom_call.1} parent=5 // pred_check_branch
        %7602 = sbr.rel (%p7600) target = $region84
      $region83: #{tpu_custom_call.1} parent=5 // pred_region
        %s7603 = ssub.s32 %s24, 2
        // Predicated region
        $region85: #{tpu_custom_call.1} parent=83 // pred_check
          %p7604 = pneg %p268
        $region86: #{tpu_custom_call.1} parent=83 // pred_check_branch
          %7606 = sbr.rel (%p7604) target = $region88
        $region87: #{tpu_custom_call.1} parent=83 // pred_region
          %s7607 = sand.u32 %s253, 1
          %s7608 = scalar_lea.sflag [#allocation5], %s7607
          %s7609 = sand.u32 %s253, 1
          %s7610 = smul.addr %s7609, 256
          %s7611 = scalar_lea.vmem [#allocation11], %s7610
          %7612 = dma.done %s7608, 4096
        $region88: #{tpu_custom_call.1} parent=83 // pred_fallthru
          _
      $region84: #{tpu_custom_call.1} parent=5 // pred_fallthru
        _
    $region6: #{tpu_custom_call.1} parent=1 // loop_footer
      %s28 = sadd.s32 1, %s24
    $region7: #{tpu_custom_call.1} parent=1 // loop_footer_branch
      %23 = sbr.rel target = $region3
    $region8: #{tpu_custom_call.1} parent=1 // loop_exit
      _
    %7613 = vsyncpa [#allocation4], 1
    %s7614 = scalar_lea.sflag [#allocation4], 1
    %7615 = vsyncpa %s7614, 1
    %7616 = vsyncpa [#allocation7], 1
    %7617 = vsyncpa [#allocation10], 1
    %7618 = vsyncpa [#allocation5], 1
    %s7619 = scalar_lea.sflag [#allocation5], 1
    %7620 = vsyncpa %s7619, 1

</llo_original>
